<compile_context>
chip_gen: v7x
topology: tpu7x:2x2x1
jax: 0.10.0
libtpu: 0.0.40
codegen_flags: <defaults>
</compile_context>

<pallas_src>
import jax
import jax.numpy as jnp
from jax.experimental import pallas as pl
from jax.experimental.pallas import tpu as pltpu


# ----------------------------- relative position bias -----------------------------
def _rel_pos_bias(table, ws, nh):
    """table: ((2*ws-1)^2, nh) -> (nh, ws*ws, ws*ws), exactly as the torch module."""
    coords = jnp.stack(jnp.meshgrid(jnp.arange(ws), jnp.arange(ws), indexing="ij"))
    cf = coords.reshape(2, -1)
    rel = cf[:, :, None] - cf[:, None, :]
    rel = jnp.transpose(rel, (1, 2, 0)) + (ws - 1)
    idx = rel[..., 0] * (2 * ws - 1) + rel[..., 1]
    bias = jnp.take(table, idx.reshape(-1), axis=0)
    N = ws * ws
    return jnp.transpose(bias.reshape(N, N, nh), (2, 0, 1)).astype(jnp.float32)


# ----------------------------------- Pallas kernel ---------------------------------
def _make_kernel(H, W, C, ws, nh, shift):
    CF = 5 * C            # fused channels: [q | k | v | k_edge | v_edge]
    C3 = 3 * C
    hd = C // nh
    N = ws * ws
    nWh, nWw = H // ws, W // ws
    nW = nWh * nWw

    def kernel(xe_ref, w1_ref, b1_ref, wdw_ref, bdw_ref,
               bias_ref, wproj_ref, bproj_ref, out_ref):
        f32 = jnp.float32

        # ---- fused 1x1 convs: one block-diagonal MXU matmul (H*W,2C)@(2C,5C) ----
        xin = xe_ref[0]                                              # (H*W, 2C)
        lin = jnp.dot(xin, w1_ref[...], preferred_element_type=f32) + b1_ref[...]
        y_sp = lin.reshape(H, W, CF)                                 # (H, W, 5C)

        # ---- depthwise 3x3: shift-and-accumulate (no padded scratch, no zeroing) ----
        zcol = jnp.zeros((H, 1, CF), f32)
        left = jnp.concatenate([zcol, y_sp[:, :W - 1, :]], axis=1)   # in[y, x-1]
        right = jnp.concatenate([y_sp[:, 1:, :], zcol], axis=1)      # in[y, x+1]
        rows = []
        for dy in range(3):
            rows.append(left * wdw_ref[3 * dy + 0:3 * dy + 1, :]
                        + y_sp * wdw_ref[3 * dy + 1:3 * dy + 2, :]
                        + right * wdw_ref[3 * dy + 2:3 * dy + 3, :])
        zrow = jnp.zeros((1, W, CF), f32)
        qkv_sp = (jnp.concatenate([zrow, rows[0][:H - 1]], axis=0)   # uses in[y-1, *]
                  + rows[1]
                  + jnp.concatenate([rows[2][1:], zrow], axis=0)     # uses in[y+1, *]
                  + bdw_ref[...])

        # ---- shifted-window cyclic shift (static; demo uses shift == 0) ----
        # TODO(synk): shift>0 rolls but (like the torch call with mask=None) applies
        #             no shifted-window attention mask.
        if shift > 0:
            qkv_sp = jnp.roll(qkv_sp, (-shift, -shift), axis=(0, 1))

        # ---- window partition ONCE: (nW, N, 5C) ----
        blks = []
        for wi in range(nWh):
            for wj in range(nWw):
                blks.append(qkv_sp[wi * ws:(wi + 1) * ws,
                                   wj * ws:(wj + 1) * ws, :].reshape(N, CF))
        qkv_w = jnp.stack(blks, axis=0)                              # (nW, N, 5C)

        # scale / alpha1 / alpha2 are already folded into the depthwise weights.
        q = qkv_w[:, :, 0:C]
        k = qkv_w[:, :, C:2 * C] + qkv_w[:, :, 3 * C:4 * C]
        v = qkv_w[:, :, 2 * C:C3] + qkv_w[:, :, 4 * C:5 * C]

        # ---- split heads onto the batch axis: slab index = h*nW + w ----
        qh = jnp.concatenate([q[:, :, h * hd:(h + 1) * hd] for h in range(nh)], axis=0)
        kh = jnp.concatenate([k[:, :, h * hd:(h + 1) * hd] for h in range(nh)], axis=0)
        vh = jnp.concatenate([v[:, :, h * hd:(h + 1) * hd] for h in range(nh)], axis=0)

        # ---- batched attention over all windows*heads at once ----
        s = jax.lax.dot_general(qh, kh, (((2,), (2,)), ((0,), (0,))),
                                preferred_element_type=f32)          # (nh*nW, N, N)
        s = (s.reshape(nh, nW, N, N) + bias_ref[...][:, None]).reshape(nh * nW, N, N)
        s = s - jnp.max(s, axis=-1, keepdims=True)
        p = jnp.exp(s)
        l = jnp.sum(p, axis=-1, keepdims=True)                       # (nh*nW, N, 1)
        ctx = jax.lax.dot_general(p, vh, (((2,), (1,)), ((0,), (0,))),
                                  preferred_element_type=f32)        # (nh*nW, N, hd)
        ctx = ctx / l             # deferred softmax normalization (exact, 8 lanes)

        # ---- merge heads back onto the lane axis: (nW, N, C) ----
        ctx_full = jnp.concatenate([ctx[h * nW:(h + 1) * nW] for h in range(nh)],
                                   axis=-1)

        # ---- output projection: one (nW*N, C) @ (C, C) MXU matmul ----
        y = jnp.dot(ctx_full.reshape(nW * N, C), wproj_ref[...],
                    preferred_element_type=f32) + bproj_ref[...]     # (nW*N, C)

        # ---- window reverse directly into a lane-dense (H, W*C) output slab ----
        row_blocks = []
        for wi in range(nWh):
            col_blocks = []
            for wj in range(nWw):
                w_idx = wi * nWw + wj
                yw = y[w_idx * N:(w_idx + 1) * N, :].reshape(ws, ws, C)
                col_blocks.append(jnp.concatenate(
                    [yw[:, col, :] for col in range(ws)], axis=1))   # (ws, ws*C)
            row_blocks.append(jnp.concatenate(col_blocks, axis=1))   # (ws, W*C)
        y_img = jnp.concatenate(row_blocks, axis=0)                  # (H, W*C)

        if shift > 0:
            y_img = jnp.roll(y_img.reshape(H, W, C), (shift, shift),
                             axis=(0, 1)).reshape(H, W * C)
        out_ref[0] = y_img

    return kernel


# ----------------------------------- wrapper ---------------------------------------
def spatial_window_attention_forward(x_nchw, edge_nchw, params, *,
                                     window_size, num_heads, shift_size=0):
    B, C, H, W = x_nchw.shape
    ws, nh = window_size, num_heads
    assert H % ws == 0 and W % ws == 0 and C % nh == 0
    hd = C // nh
    C3, CF, N = 3 * C, 5 * C, ws * ws
    scale = float(hd) ** -0.5
    f32 = jnp.float32

    # Layout plumbing (wrapper side): NCHW -> NHWC -> one (B, H*W, 2C) operand.
    x = jnp.transpose(x_nchw, (0, 2, 3, 1)).reshape(B, H * W, C).astype(f32)
    e = jnp.transpose(edge_nchw, (0, 2, 3, 1)).reshape(B, H * W, C).astype(f32)
    xe = jnp.concatenate([x, e], axis=-1)                            # (B, H*W, 2C)

    # Fused block-diagonal 1x1 weight; unused edge-q slice dropped (5C columns):
    #   columns = [q | k | v | k_edge | v_edge]
    wqkv = params["wqkv"].astype(f32)
    wqkv_e = params["wqkv_e"].astype(f32)
    w1 = jnp.zeros((2 * C, CF), f32)
    w1 = w1.at[0:C, 0:C3].set(wqkv)
    w1 = w1.at[C:2 * C, C3:CF].set(wqkv_e[:, C:C3])
    b1 = jnp.concatenate([params["bqkv"].astype(f32),
                          params["bqkv_e"].astype(f32)[C:C3]]).reshape(1, CF)

    # Depthwise 3x3 weights with qk-scale / alpha1 / alpha2 folded in (zero cost).
    a1 = params["alpha1"].astype(f32)
    a2 = params["alpha2"].astype(f32)
    wdw = params["wdw"].astype(f32)
    wdw_e = params["wdw_e"].astype(f32)
    bdw = params["bdw"].astype(f32)
    bdw_e = params["bdw_e"].astype(f32)
    wdw_big = jnp.concatenate([wdw[:, 0:C] * scale, wdw[:, C:C3],
                               wdw_e[:, C:2 * C] * a1, wdw_e[:, 2 * C:C3] * a2],
                              axis=1)                                # (9, 5C)
    bdw_big = jnp.concatenate([bdw[0:C] * scale, bdw[C:C3],
                               bdw_e[C:2 * C] * a1, bdw_e[2 * C:C3] * a2]
                              ).reshape(1, CF)

    rel_bias = _rel_pos_bias(params["rel_table"], ws, nh)            # (nh, N, N)
    wproj = params["wproj"].astype(f32)
    bproj = params["bproj"].reshape(1, C).astype(f32)

    kernel = _make_kernel(H, W, C, ws, nh, shift_size)

    # TODO(synk): for large H*W on v7x (64 MiB VMEM) tile the grid over window rows
    #             (grid=(B, H//ws)); at this size a whole image per step fits easily.
    out = pl.pallas_call(
        kernel,
        out_shape=jax.ShapeDtypeStruct((B, H, W * C), f32),          # lane-dense slab
        grid=(B,),
        in_specs=[
            pl.BlockSpec((1, H * W, 2 * C), lambda b: (b, 0, 0)),
            pl.BlockSpec((2 * C, CF), lambda b: (0, 0)),
            pl.BlockSpec((1, CF), lambda b: (0, 0)),
            pl.BlockSpec((9, CF), lambda b: (0, 0)),
            pl.BlockSpec((1, CF), lambda b: (0, 0)),
            pl.BlockSpec((nh, N, N), lambda b: (0, 0, 0)),
            pl.BlockSpec((C, C), lambda b: (0, 0)),
            pl.BlockSpec((1, C), lambda b: (0, 0)),
        ],
        out_specs=pl.BlockSpec((1, H, W * C), lambda b: (b, 0, 0)),
        compiler_params=pltpu.CompilerParams(dimension_semantics=("parallel",)),
    )(xe, w1, b1, wdw_big, bdw_big, rel_bias, wproj, bproj)

    out = out.reshape(B, H, W, C)
    return jnp.transpose(out, (0, 3, 1, 2))                          # NHWC -> NCHW


# ------------------------------- reference (plain JAX) ------------------------------
def spatial_window_attention_ref(x_nchw, e_nchw, p, *, window_size, num_heads, shift_size=0):
    ws, nh, shift = window_size, num_heads, shift_size
    B, C, H, W = x_nchw.shape
    C3, N, hd = 3 * C, ws * ws, C // num_heads
    hp = jax.lax.Precision.HIGHEST
    x = jnp.transpose(x_nchw, (0, 2, 3, 1)).astype(jnp.float32)
    e = jnp.transpose(e_nchw, (0, 2, 3, 1)).astype(jnp.float32)

    def pw_dw(inp, w1, b1, wd, bd):
        y = jax.lax.conv_general_dilated(
            inp, w1.reshape(1, 1, C, C3), (1, 1), "SAME",
            dimension_numbers=("NHWC", "HWIO", "NHWC"), precision=hp) + b1
        y = jax.lax.conv_general_dilated(
            y, wd.reshape(3, 3, 1, C3), (1, 1), "SAME",
            dimension_numbers=("NHWC", "HWIO", "NHWC"),
            feature_group_count=C3, precision=hp) + bd
        return y

    qkv = pw_dw(x, p["wqkv"], p["bqkv"], p["wdw"], p["bdw"])
    qkv_e = pw_dw(e, p["wqkv_e"], p["bqkv_e"], p["wdw_e"], p["bdw_e"])
    if shift > 0:
        qkv = jnp.roll(qkv, (-shift, -shift), axis=(1, 2))
        qkv_e = jnp.roll(qkv_e, (-shift, -shift), axis=(1, 2))

    def part(t):
        Cc = t.shape[-1]
        t = t.reshape(B, H // ws, ws, W // ws, ws, Cc)
        return jnp.transpose(t, (0, 1, 3, 2, 4, 5)).reshape(-1, N, Cc)

    qw, qew = part(qkv), part(qkv_e)
    B_ = qw.shape[0]
    qw = jnp.transpose(qw.reshape(B_, N, 3, nh, hd), (2, 0, 3, 1, 4))
    qew = jnp.transpose(qew.reshape(B_, N, 3, nh, hd), (2, 0, 3, 1, 4))
    q, k, v = qw[0], qw[1], qw[2]
    k = qew[1] * p["alpha1"] + k
    v = qew[2] * p["alpha2"] + v
    q = q * (hd ** -0.5)
    attn = jnp.einsum("bhnd,bhmd->bhnm", q, k, precision=hp)
    attn = attn + _rel_pos_bias(p["rel_table"], ws, nh)[None]
    attn = jax.nn.softmax(attn, axis=-1)
    out = jnp.einsum("bhnm,bhmd->bhnd", attn, v, precision=hp)
    out = jnp.transpose(out, (0, 2, 1, 3)).reshape(B_, N, C)
    out = jnp.dot(out, p["wproj"], precision=hp) + p["bproj"]
    out = out.reshape(B, H // ws, W // ws, ws, ws, C)
    out = jnp.transpose(out, (0, 1, 3, 2, 4, 5)).reshape(B, H, W, C)
    if shift > 0:
        out = jnp.roll(out, (shift, shift), axis=(1, 2))
    return jnp.transpose(out, (0, 3, 1, 2))


if __name__ == "__main__":
    # Module config: dim=32, window_size=(8,8), num_heads=4,
    #                input_resolution=(16,16), shift_size=0, drop rates 0.
    B, C, H, W = 2, 32, 16, 16
    ws, nh, shift = 8, 4, 0
    C3 = 3 * C

    key = jax.random.PRNGKey(0)
    ks = jax.random.split(key, 16)

    x = jax.random.normal(ks[0], (B, C, H, W), jnp.float32)      # NCHW
    edge = jax.random.normal(ks[1], (B, C, H, W), jnp.float32)   # NCHW

    params = {
        "wqkv": 0.2 * jax.random.normal(ks[2], (C, C3), jnp.float32),
        "bqkv": 0.1 * jax.random.normal(ks[3], (C3,), jnp.float32),
        "wdw": 0.2 * jax.random.normal(ks[4], (9, C3), jnp.float32),
        "bdw": 0.1 * jax.random.normal(ks[5], (C3,), jnp.float32),
        "wqkv_e": 0.2 * jax.random.normal(ks[6], (C, C3), jnp.float32),
        "bqkv_e": 0.1 * jax.random.normal(ks[7], (C3,), jnp.float32),
        "wdw_e": 0.2 * jax.random.normal(ks[8], (9, C3), jnp.float32),
        "bdw_e": 0.1 * jax.random.normal(ks[9], (C3,), jnp.float32),
        "rel_table": 0.02 * jax.random.normal(ks[10], ((2 * ws - 1) ** 2, nh), jnp.float32),
        "wproj": 0.2 * jax.random.normal(ks[11], (C, C), jnp.float32),
        "bproj": 0.1 * jax.random.normal(ks[12], (C,), jnp.float32),
        # alphas are trainable scalars (init 0 in torch); use nonzero values so the
        # edge branch is actually exercised.
        "alpha1": 0.3 * jax.random.normal(ks[13], (), jnp.float32),
        "alpha2": 0.3 * jax.random.normal(ks[14], (), jnp.float32),
    }

    out = jax.block_until_ready(
        spatial_window_attention_forward(x, edge, params,
                                         window_size=ws, num_heads=nh, shift_size=shift))
    ref = jax.block_until_ready(
        spatial_window_attention_ref(x, edge, params,
                                     window_size=ws, num_heads=nh, shift_size=shift))

    assert out.shape == (B, C, H, W), out.shape
    max_err = float(jnp.max(jnp.abs(out - ref)))
    assert jnp.allclose(out, ref, atol=1e-3, rtol=1e-3), max_err
    print("KERNEL_OK")
</pallas_src>

<mosaic_0001>
module attributes {stable_mosaic.version = 11 : i64} {
  func.func @kernel(%arg0: i32, %arg1: memref<1x256x64xf32, #tpu.memory_space<vmem>>, %arg2: memref<64x160xf32, #tpu.memory_space<vmem>>, %arg3: memref<1x160xf32, #tpu.memory_space<vmem>>, %arg4: memref<9x160xf32, #tpu.memory_space<vmem>>, %arg5: memref<1x160xf32, #tpu.memory_space<vmem>>, %arg6: memref<4x64x64xf32, #tpu.memory_space<vmem>>, %arg7: memref<32x32xf32, #tpu.memory_space<vmem>>, %arg8: memref<1x32xf32, #tpu.memory_space<vmem>>, %arg9: memref<1x16x512xf32, #tpu.memory_space<vmem>>) attributes {dimension_semantics = [#tpu.dimension_semantics<parallel>], iteration_bounds = array<i64: 2>, scalar_prefetch = 0 : i64, scratch_operands = 0 : i64, tpu.core_type = #tpu.core_type<tc>, window_params = [{transform_indices = @transform_0, window_bounds = array<i64: 1, 256, 64>}, {pipeline_mode = #tpu.pipeline_mode<synchronous>, transform_indices = @transform_1, window_bounds = array<i64: 64, 160>}, {pipeline_mode = #tpu.pipeline_mode<synchronous>, transform_indices = @transform_2, window_bounds = array<i64: 1, 160>}, {pipeline_mode = #tpu.pipeline_mode<synchronous>, transform_indices = @transform_3, window_bounds = array<i64: 9, 160>}, {pipeline_mode = #tpu.pipeline_mode<synchronous>, transform_indices = @transform_4, window_bounds = array<i64: 1, 160>}, {pipeline_mode = #tpu.pipeline_mode<synchronous>, transform_indices = @transform_5, window_bounds = array<i64: 4, 64, 64>}, {pipeline_mode = #tpu.pipeline_mode<synchronous>, transform_indices = @transform_6, window_bounds = array<i64: 32, 32>}, {pipeline_mode = #tpu.pipeline_mode<synchronous>, transform_indices = @transform_7, window_bounds = array<i64: 1, 32>}, {transform_indices = @transform_8, window_bounds = array<i64: 1, 16, 512>}]} {
    %c0 = arith.constant 0 : index
    %c0_0 = arith.constant 0 : index
    %c0_1 = arith.constant 0 : index
    %0 = vector.load %arg1[%c0, %c0_0, %c0_1] : memref<1x256x64xf32, #tpu.memory_space<vmem>>, vector<1x256x64xf32>
    %1 = vector.shape_cast %0 : vector<1x256x64xf32> to vector<256x64xf32>
    %c0_2 = arith.constant 0 : index
    %c0_3 = arith.constant 0 : index
    %2 = vector.load %arg2[%c0_2, %c0_3] : memref<64x160xf32, #tpu.memory_space<vmem>>, vector<64x160xf32>
    %cst = arith.constant dense<0.000000e+00> : vector<256x160xf32>
    %3 = tpu.matmul %1, %2, %cst {dimension_numbers = #tpu.dot_dimension_numbers<[1], [0], [0], [1], [0, 0, 1, 1], [], []>} : vector<256x64xf32>, vector<64x160xf32>, vector<256x160xf32> -> vector<256x160xf32>
    %c0_4 = arith.constant 0 : index
    %c0_5 = arith.constant 0 : index
    %4 = vector.load %arg3[%c0_4, %c0_5] : memref<1x160xf32, #tpu.memory_space<vmem>>, vector<1x160xf32>
    %5 = vector.broadcast %4 : vector<1x160xf32> to vector<256x160xf32>
    %6 = arith.addf %3, %5 : vector<256x160xf32>
    %7 = vector.shape_cast %6 : vector<256x160xf32> to vector<16x16x160xf32>
    %cst_6 = arith.constant 0.000000e+00 : f32
    %8 = vector.broadcast %cst_6 : f32 to vector<16x1x160xf32>
    %9 = vector.extract_strided_slice %7 {offsets = [0, 0, 0], sizes = [16, 15, 160], strides = [1, 1, 1]} : vector<16x16x160xf32> to vector<16x15x160xf32>
    %10 = tpu.concatenate %8, %9 in 1 : vector<16x1x160xf32>, vector<16x15x160xf32> -> vector<16x16x160xf32>
    %11 = vector.extract_strided_slice %7 {offsets = [0, 1, 0], sizes = [16, 15, 160], strides = [1, 1, 1]} : vector<16x16x160xf32> to vector<16x15x160xf32>
    %12 = tpu.concatenate %11, %8 in 1 : vector<16x15x160xf32>, vector<16x1x160xf32> -> vector<16x16x160xf32>
    %c0_7 = arith.constant 0 : index
    %c0_8 = arith.constant 0 : index
    %13 = vector.load %arg4[%c0_7, %c0_8] : memref<9x160xf32, #tpu.memory_space<vmem>>, vector<1x160xf32>
    %14 = vector.shape_cast %13 : vector<1x160xf32> to vector<1x1x160xf32>
    %15 = vector.broadcast %14 : vector<1x1x160xf32> to vector<16x16x160xf32>
    %16 = arith.mulf %10, %15 : vector<16x16x160xf32>
    %c1 = arith.constant 1 : index
    %c0_9 = arith.constant 0 : index
    %17 = vector.load %arg4[%c1, %c0_9] : memref<9x160xf32, #tpu.memory_space<vmem>>, vector<1x160xf32>
    %18 = vector.shape_cast %17 : vector<1x160xf32> to vector<1x1x160xf32>
    %19 = vector.broadcast %18 : vector<1x1x160xf32> to vector<16x16x160xf32>
    %20 = arith.mulf %7, %19 : vector<16x16x160xf32>
    %21 = arith.addf %16, %20 : vector<16x16x160xf32>
    %c2 = arith.constant 2 : index
    %c0_10 = arith.constant 0 : index
    %22 = vector.load %arg4[%c2, %c0_10] : memref<9x160xf32, #tpu.memory_space<vmem>>, vector<1x160xf32>
    %23 = vector.shape_cast %22 : vector<1x160xf32> to vector<1x1x160xf32>
    %24 = vector.broadcast %23 : vector<1x1x160xf32> to vector<16x16x160xf32>
    %25 = arith.mulf %12, %24 : vector<16x16x160xf32>
    %26 = arith.addf %21, %25 : vector<16x16x160xf32>
    %c3 = arith.constant 3 : index
    %c0_11 = arith.constant 0 : index
    %27 = vector.load %arg4[%c3, %c0_11] : memref<9x160xf32, #tpu.memory_space<vmem>>, vector<1x160xf32>
    %28 = vector.shape_cast %27 : vector<1x160xf32> to vector<1x1x160xf32>
    %29 = vector.broadcast %28 : vector<1x1x160xf32> to vector<16x16x160xf32>
    %30 = arith.mulf %10, %29 : vector<16x16x160xf32>
    %c4 = arith.constant 4 : index
    %c0_12 = arith.constant 0 : index
    %31 = vector.load %arg4[%c4, %c0_12] : memref<9x160xf32, #tpu.memory_space<vmem>>, vector<1x160xf32>
    %32 = vector.shape_cast %31 : vector<1x160xf32> to vector<1x1x160xf32>
    %33 = vector.broadcast %32 : vector<1x1x160xf32> to vector<16x16x160xf32>
    %34 = arith.mulf %7, %33 : vector<16x16x160xf32>
    %35 = arith.addf %30, %34 : vector<16x16x160xf32>
    %c5 = arith.constant 5 : index
    %c0_13 = arith.constant 0 : index
    %36 = vector.load %arg4[%c5, %c0_13] : memref<9x160xf32, #tpu.memory_space<vmem>>, vector<1x160xf32>
    %37 = vector.shape_cast %36 : vector<1x160xf32> to vector<1x1x160xf32>
    %38 = vector.broadcast %37 : vector<1x1x160xf32> to vector<16x16x160xf32>
    %39 = arith.mulf %12, %38 : vector<16x16x160xf32>
    %40 = arith.addf %35, %39 : vector<16x16x160xf32>
    %c6 = arith.constant 6 : index
    %c0_14 = arith.constant 0 : index
    %41 = vector.load %arg4[%c6, %c0_14] : memref<9x160xf32, #tpu.memory_space<vmem>>, vector<1x160xf32>
    %42 = vector.shape_cast %41 : vector<1x160xf32> to vector<1x1x160xf32>
    %43 = vector.broadcast %42 : vector<1x1x160xf32> to vector<16x16x160xf32>
    %44 = arith.mulf %10, %43 : vector<16x16x160xf32>
    %c7 = arith.constant 7 : index
    %c0_15 = arith.constant 0 : index
    %45 = vector.load %arg4[%c7, %c0_15] : memref<9x160xf32, #tpu.memory_space<vmem>>, vector<1x160xf32>
    %46 = vector.shape_cast %45 : vector<1x160xf32> to vector<1x1x160xf32>
    %47 = vector.broadcast %46 : vector<1x1x160xf32> to vector<16x16x160xf32>
    %48 = arith.mulf %7, %47 : vector<16x16x160xf32>
    %49 = arith.addf %44, %48 : vector<16x16x160xf32>
    %c8 = arith.constant 8 : index
    %c0_16 = arith.constant 0 : index
    %50 = vector.load %arg4[%c8, %c0_16] : memref<9x160xf32, #tpu.memory_space<vmem>>, vector<1x160xf32>
    %51 = vector.shape_cast %50 : vector<1x160xf32> to vector<1x1x160xf32>
    %52 = vector.broadcast %51 : vector<1x1x160xf32> to vector<16x16x160xf32>
    %53 = arith.mulf %12, %52 : vector<16x16x160xf32>
    %54 = arith.addf %49, %53 : vector<16x16x160xf32>
    %cst_17 = arith.constant 0.000000e+00 : f32
    %55 = vector.broadcast %cst_17 : f32 to vector<1x16x160xf32>
    %56 = vector.extract_strided_slice %26 {offsets = [0, 0, 0], sizes = [15, 16, 160], strides = [1, 1, 1]} : vector<16x16x160xf32> to vector<15x16x160xf32>
    %57 = tpu.concatenate %55, %56 in 0 : vector<1x16x160xf32>, vector<15x16x160xf32> -> vector<16x16x160xf32>
    %58 = arith.addf %57, %40 : vector<16x16x160xf32>
    %59 = vector.extract_strided_slice %54 {offsets = [1, 0, 0], sizes = [15, 16, 160], strides = [1, 1, 1]} : vector<16x16x160xf32> to vector<15x16x160xf32>
    %60 = tpu.concatenate %59, %55 in 0 : vector<15x16x160xf32>, vector<1x16x160xf32> -> vector<16x16x160xf32>
    %61 = arith.addf %58, %60 : vector<16x16x160xf32>
    %c0_18 = arith.constant 0 : index
    %c0_19 = arith.constant 0 : index
    %62 = vector.load %arg5[%c0_18, %c0_19] : memref<1x160xf32, #tpu.memory_space<vmem>>, vector<1x160xf32>
    %63 = vector.shape_cast %62 : vector<1x160xf32> to vector<1x1x160xf32>
    %64 = vector.broadcast %63 : vector<1x1x160xf32> to vector<16x16x160xf32>
    %65 = arith.addf %61, %64 : vector<16x16x160xf32>
    %66 = vector.extract_strided_slice %65 {offsets = [0, 0, 0], sizes = [8, 8, 160], strides = [1, 1, 1]} : vector<16x16x160xf32> to vector<8x8x160xf32>
    %67 = vector.shape_cast %66 : vector<8x8x160xf32> to vector<64x160xf32>
    %68 = vector.extract_strided_slice %65 {offsets = [0, 8, 0], sizes = [8, 8, 160], strides = [1, 1, 1]} : vector<16x16x160xf32> to vector<8x8x160xf32>
    %69 = vector.shape_cast %68 : vector<8x8x160xf32> to vector<64x160xf32>
    %70 = vector.extract_strided_slice %65 {offsets = [8, 0, 0], sizes = [8, 8, 160], strides = [1, 1, 1]} : vector<16x16x160xf32> to vector<8x8x160xf32>
    %71 = vector.shape_cast %70 : vector<8x8x160xf32> to vector<64x160xf32>
    %72 = vector.extract_strided_slice %65 {offsets = [8, 8, 0], sizes = [8, 8, 160], strides = [1, 1, 1]} : vector<16x16x160xf32> to vector<8x8x160xf32>
    %73 = vector.shape_cast %72 : vector<8x8x160xf32> to vector<64x160xf32>
    %74 = vector.shape_cast %67 : vector<64x160xf32> to vector<1x64x160xf32>
    %75 = vector.shape_cast %69 : vector<64x160xf32> to vector<1x64x160xf32>
    %76 = vector.shape_cast %71 : vector<64x160xf32> to vector<1x64x160xf32>
    %77 = vector.shape_cast %73 : vector<64x160xf32> to vector<1x64x160xf32>
    %78 = tpu.concatenate %74, %75, %76, %77 in 0 : vector<1x64x160xf32>, vector<1x64x160xf32>, vector<1x64x160xf32>, vector<1x64x160xf32> -> vector<4x64x160xf32>
    %79 = vector.extract_strided_slice %78 {offsets = [0, 0, 0], sizes = [4, 64, 32], strides = [1, 1, 1]} : vector<4x64x160xf32> to vector<4x64x32xf32>
    %80 = vector.extract_strided_slice %78 {offsets = [0, 0, 32], sizes = [4, 64, 32], strides = [1, 1, 1]} : vector<4x64x160xf32> to vector<4x64x32xf32>
    %81 = vector.extract_strided_slice %78 {offsets = [0, 0, 96], sizes = [4, 64, 32], strides = [1, 1, 1]} : vector<4x64x160xf32> to vector<4x64x32xf32>
    %82 = arith.addf %80, %81 : vector<4x64x32xf32>
    %83 = vector.extract_strided_slice %78 {offsets = [0, 0, 64], sizes = [4, 64, 32], strides = [1, 1, 1]} : vector<4x64x160xf32> to vector<4x64x32xf32>
    %84 = vector.extract_strided_slice %78 {offsets = [0, 0, 128], sizes = [4, 64, 32], strides = [1, 1, 1]} : vector<4x64x160xf32> to vector<4x64x32xf32>
    %85 = arith.addf %83, %84 : vector<4x64x32xf32>
    %86 = vector.extract_strided_slice %79 {offsets = [0, 0, 0], sizes = [4, 64, 8], strides = [1, 1, 1]} : vector<4x64x32xf32> to vector<4x64x8xf32>
    %87 = vector.extract_strided_slice %79 {offsets = [0, 0, 8], sizes = [4, 64, 8], strides = [1, 1, 1]} : vector<4x64x32xf32> to vector<4x64x8xf32>
    %88 = vector.extract_strided_slice %79 {offsets = [0, 0, 16], sizes = [4, 64, 8], strides = [1, 1, 1]} : vector<4x64x32xf32> to vector<4x64x8xf32>
    %89 = vector.extract_strided_slice %79 {offsets = [0, 0, 24], sizes = [4, 64, 8], strides = [1, 1, 1]} : vector<4x64x32xf32> to vector<4x64x8xf32>
    %90 = tpu.concatenate %86, %87, %88, %89 in 0 : vector<4x64x8xf32>, vector<4x64x8xf32>, vector<4x64x8xf32>, vector<4x64x8xf32> -> vector<16x64x8xf32>
    %91 = vector.extract_strided_slice %82 {offsets = [0, 0, 0], sizes = [4, 64, 8], strides = [1, 1, 1]} : vector<4x64x32xf32> to vector<4x64x8xf32>
    %92 = vector.extract_strided_slice %82 {offsets = [0, 0, 8], sizes = [4, 64, 8], strides = [1, 1, 1]} : vector<4x64x32xf32> to vector<4x64x8xf32>
    %93 = vector.extract_strided_slice %82 {offsets = [0, 0, 16], sizes = [4, 64, 8], strides = [1, 1, 1]} : vector<4x64x32xf32> to vector<4x64x8xf32>
    %94 = vector.extract_strided_slice %82 {offsets = [0, 0, 24], sizes = [4, 64, 8], strides = [1, 1, 1]} : vector<4x64x32xf32> to vector<4x64x8xf32>
    %95 = tpu.concatenate %91, %92, %93, %94 in 0 : vector<4x64x8xf32>, vector<4x64x8xf32>, vector<4x64x8xf32>, vector<4x64x8xf32> -> vector<16x64x8xf32>
    %96 = vector.extract_strided_slice %85 {offsets = [0, 0, 0], sizes = [4, 64, 8], strides = [1, 1, 1]} : vector<4x64x32xf32> to vector<4x64x8xf32>
    %97 = vector.extract_strided_slice %85 {offsets = [0, 0, 8], sizes = [4, 64, 8], strides = [1, 1, 1]} : vector<4x64x32xf32> to vector<4x64x8xf32>
    %98 = vector.extract_strided_slice %85 {offsets = [0, 0, 16], sizes = [4, 64, 8], strides = [1, 1, 1]} : vector<4x64x32xf32> to vector<4x64x8xf32>
    %99 = vector.extract_strided_slice %85 {offsets = [0, 0, 24], sizes = [4, 64, 8], strides = [1, 1, 1]} : vector<4x64x32xf32> to vector<4x64x8xf32>
    %100 = tpu.concatenate %96, %97, %98, %99 in 0 : vector<4x64x8xf32>, vector<4x64x8xf32>, vector<4x64x8xf32>, vector<4x64x8xf32> -> vector<16x64x8xf32>
    %cst_20 = arith.constant dense<0.000000e+00> : vector<16x64x64xf32>
    %101 = tpu.matmul %90, %95, %cst_20 {dimension_numbers = #tpu.dot_dimension_numbers<[2], [2], [1], [1], [0, 0, 0, 1, 1, 1], [0], [0]>} : vector<16x64x8xf32>, vector<16x64x8xf32>, vector<16x64x64xf32> -> vector<16x64x64xf32>
    %102 = vector.shape_cast %101 : vector<16x64x64xf32> to vector<4x4x64x64xf32>
    %c0_21 = arith.constant 0 : index
    %c0_22 = arith.constant 0 : index
    %c0_23 = arith.constant 0 : index
    %103 = vector.load %arg6[%c0_21, %c0_22, %c0_23] : memref<4x64x64xf32, #tpu.memory_space<vmem>>, vector<4x64x64xf32>
    %104 = vector.shape_cast %103 : vector<4x64x64xf32> to vector<4x1x64x64xf32>
    %105 = vector.broadcast %104 : vector<4x1x64x64xf32> to vector<4x4x64x64xf32>
    %106 = arith.addf %102, %105 : vector<4x4x64x64xf32>
    %107 = vector.shape_cast %106 : vector<4x4x64x64xf32> to vector<16x64x64xf32>
    %cst_24 = arith.constant dense<0xFF800000> : vector<16x64xf32>
    %108 = vector.multi_reduction <maximumf>, %107, %cst_24 [2] : vector<16x64x64xf32> to vector<16x64xf32>
    %109 = vector.shape_cast %108 : vector<16x64xf32> to vector<16x64x1xf32>
    %110 = vector.broadcast %109 : vector<16x64x1xf32> to vector<16x64x64xf32>
    %111 = arith.subf %107, %110 : vector<16x64x64xf32>
    %112 = math.exp %111 : vector<16x64x64xf32>
    %cst_25 = arith.constant dense<0.000000e+00> : vector<16x64xf32>
    %113 = vector.multi_reduction <add>, %112, %cst_25 [2] : vector<16x64x64xf32> to vector<16x64xf32>
    %114 = vector.shape_cast %113 : vector<16x64xf32> to vector<16x64x1xf32>
    %cst_26 = arith.constant dense<0.000000e+00> : vector<16x64x8xf32>
    %115 = tpu.matmul %112, %100, %cst_26 {dimension_numbers = #tpu.dot_dimension_numbers<[2], [1], [1], [2], [0, 0, 0, 1, 1, 2], [0], [0]>} : vector<16x64x64xf32>, vector<16x64x8xf32>, vector<16x64x8xf32> -> vector<16x64x8xf32>
    %116 = vector.broadcast %114 : vector<16x64x1xf32> to vector<16x64x8xf32>
    %117 = arith.divf %115, %116 : vector<16x64x8xf32>
    %118 = vector.extract_strided_slice %117 {offsets = [0, 0, 0], sizes = [4, 64, 8], strides = [1, 1, 1]} : vector<16x64x8xf32> to vector<4x64x8xf32>
    %119 = vector.extract_strided_slice %117 {offsets = [4, 0, 0], sizes = [4, 64, 8], strides = [1, 1, 1]} : vector<16x64x8xf32> to vector<4x64x8xf32>
    %120 = vector.extract_strided_slice %117 {offsets = [8, 0, 0], sizes = [4, 64, 8], strides = [1, 1, 1]} : vector<16x64x8xf32> to vector<4x64x8xf32>
    %121 = vector.extract_strided_slice %117 {offsets = [12, 0, 0], sizes = [4, 64, 8], strides = [1, 1, 1]} : vector<16x64x8xf32> to vector<4x64x8xf32>
    %122 = tpu.concatenate %118, %119, %120, %121 in 2 : vector<4x64x8xf32>, vector<4x64x8xf32>, vector<4x64x8xf32>, vector<4x64x8xf32> -> vector<4x64x32xf32>
    %123 = vector.shape_cast %122 : vector<4x64x32xf32> to vector<256x32xf32>
    %c0_27 = arith.constant 0 : index
    %c0_28 = arith.constant 0 : index
    %124 = vector.load %arg7[%c0_27, %c0_28] : memref<32x32xf32, #tpu.memory_space<vmem>>, vector<32x32xf32>
    %cst_29 = arith.constant dense<0.000000e+00> : vector<256x32xf32>
    %125 = tpu.matmul %123, %124, %cst_29 {dimension_numbers = #tpu.dot_dimension_numbers<[1], [0], [0], [1], [0, 0, 1, 1], [], []>} : vector<256x32xf32>, vector<32x32xf32>, vector<256x32xf32> -> vector<256x32xf32>
    %c0_30 = arith.constant 0 : index
    %c0_31 = arith.constant 0 : index
    %126 = vector.load %arg8[%c0_30, %c0_31] : memref<1x32xf32, #tpu.memory_space<vmem>>, vector<1x32xf32>
    %127 = vector.broadcast %126 : vector<1x32xf32> to vector<256x32xf32>
    %128 = arith.addf %125, %127 : vector<256x32xf32>
    %129 = vector.extract_strided_slice %128 {offsets = [0, 0], sizes = [64, 32], strides = [1, 1]} : vector<256x32xf32> to vector<64x32xf32>
    %130 = vector.shape_cast %129 : vector<64x32xf32> to vector<8x8x32xf32>
    %131 = vector.extract_strided_slice %130 {offsets = [0, 0, 0], sizes = [8, 1, 32], strides = [1, 1, 1]} : vector<8x8x32xf32> to vector<8x1x32xf32>
    %132 = vector.shape_cast %131 : vector<8x1x32xf32> to vector<8x32xf32>
    %133 = vector.extract_strided_slice %130 {offsets = [0, 1, 0], sizes = [8, 1, 32], strides = [1, 1, 1]} : vector<8x8x32xf32> to vector<8x1x32xf32>
    %134 = vector.shape_cast %133 : vector<8x1x32xf32> to vector<8x32xf32>
    %135 = vector.extract_strided_slice %130 {offsets = [0, 2, 0], sizes = [8, 1, 32], strides = [1, 1, 1]} : vector<8x8x32xf32> to vector<8x1x32xf32>
    %136 = vector.shape_cast %135 : vector<8x1x32xf32> to vector<8x32xf32>
    %137 = vector.extract_strided_slice %130 {offsets = [0, 3, 0], sizes = [8, 1, 32], strides = [1, 1, 1]} : vector<8x8x32xf32> to vector<8x1x32xf32>
    %138 = vector.shape_cast %137 : vector<8x1x32xf32> to vector<8x32xf32>
    %139 = vector.extract_strided_slice %130 {offsets = [0, 4, 0], sizes = [8, 1, 32], strides = [1, 1, 1]} : vector<8x8x32xf32> to vector<8x1x32xf32>
    %140 = vector.shape_cast %139 : vector<8x1x32xf32> to vector<8x32xf32>
    %141 = vector.extract_strided_slice %130 {offsets = [0, 5, 0], sizes = [8, 1, 32], strides = [1, 1, 1]} : vector<8x8x32xf32> to vector<8x1x32xf32>
    %142 = vector.shape_cast %141 : vector<8x1x32xf32> to vector<8x32xf32>
    %143 = vector.extract_strided_slice %130 {offsets = [0, 6, 0], sizes = [8, 1, 32], strides = [1, 1, 1]} : vector<8x8x32xf32> to vector<8x1x32xf32>
    %144 = vector.shape_cast %143 : vector<8x1x32xf32> to vector<8x32xf32>
    %145 = vector.extract_strided_slice %130 {offsets = [0, 7, 0], sizes = [8, 1, 32], strides = [1, 1, 1]} : vector<8x8x32xf32> to vector<8x1x32xf32>
    %146 = vector.shape_cast %145 : vector<8x1x32xf32> to vector<8x32xf32>
    %147 = tpu.concatenate %132, %134, %136, %138, %140, %142, %144, %146 in 1 : vector<8x32xf32>, vector<8x32xf32>, vector<8x32xf32>, vector<8x32xf32>, vector<8x32xf32>, vector<8x32xf32>, vector<8x32xf32>, vector<8x32xf32> -> vector<8x256xf32>
    %148 = vector.extract_strided_slice %128 {offsets = [64, 0], sizes = [64, 32], strides = [1, 1]} : vector<256x32xf32> to vector<64x32xf32>
    %149 = vector.shape_cast %148 : vector<64x32xf32> to vector<8x8x32xf32>
    %150 = vector.extract_strided_slice %149 {offsets = [0, 0, 0], sizes = [8, 1, 32], strides = [1, 1, 1]} : vector<8x8x32xf32> to vector<8x1x32xf32>
    %151 = vector.shape_cast %150 : vector<8x1x32xf32> to vector<8x32xf32>
    %152 = vector.extract_strided_slice %149 {offsets = [0, 1, 0], sizes = [8, 1, 32], strides = [1, 1, 1]} : vector<8x8x32xf32> to vector<8x1x32xf32>
    %153 = vector.shape_cast %152 : vector<8x1x32xf32> to vector<8x32xf32>
    %154 = vector.extract_strided_slice %149 {offsets = [0, 2, 0], sizes = [8, 1, 32], strides = [1, 1, 1]} : vector<8x8x32xf32> to vector<8x1x32xf32>
    %155 = vector.shape_cast %154 : vector<8x1x32xf32> to vector<8x32xf32>
    %156 = vector.extract_strided_slice %149 {offsets = [0, 3, 0], sizes = [8, 1, 32], strides = [1, 1, 1]} : vector<8x8x32xf32> to vector<8x1x32xf32>
    %157 = vector.shape_cast %156 : vector<8x1x32xf32> to vector<8x32xf32>
    %158 = vector.extract_strided_slice %149 {offsets = [0, 4, 0], sizes = [8, 1, 32], strides = [1, 1, 1]} : vector<8x8x32xf32> to vector<8x1x32xf32>
    %159 = vector.shape_cast %158 : vector<8x1x32xf32> to vector<8x32xf32>
    %160 = vector.extract_strided_slice %149 {offsets = [0, 5, 0], sizes = [8, 1, 32], strides = [1, 1, 1]} : vector<8x8x32xf32> to vector<8x1x32xf32>
    %161 = vector.shape_cast %160 : vector<8x1x32xf32> to vector<8x32xf32>
    %162 = vector.extract_strided_slice %149 {offsets = [0, 6, 0], sizes = [8, 1, 32], strides = [1, 1, 1]} : vector<8x8x32xf32> to vector<8x1x32xf32>
    %163 = vector.shape_cast %162 : vector<8x1x32xf32> to vector<8x32xf32>
    %164 = vector.extract_strided_slice %149 {offsets = [0, 7, 0], sizes = [8, 1, 32], strides = [1, 1, 1]} : vector<8x8x32xf32> to vector<8x1x32xf32>
    %165 = vector.shape_cast %164 : vector<8x1x32xf32> to vector<8x32xf32>
    %166 = tpu.concatenate %151, %153, %155, %157, %159, %161, %163, %165 in 1 : vector<8x32xf32>, vector<8x32xf32>, vector<8x32xf32>, vector<8x32xf32>, vector<8x32xf32>, vector<8x32xf32>, vector<8x32xf32>, vector<8x32xf32> -> vector<8x256xf32>
    %167 = tpu.concatenate %147, %166 in 1 : vector<8x256xf32>, vector<8x256xf32> -> vector<8x512xf32>
    %168 = vector.extract_strided_slice %128 {offsets = [128, 0], sizes = [64, 32], strides = [1, 1]} : vector<256x32xf32> to vector<64x32xf32>
    %169 = vector.shape_cast %168 : vector<64x32xf32> to vector<8x8x32xf32>
    %170 = vector.extract_strided_slice %169 {offsets = [0, 0, 0], sizes = [8, 1, 32], strides = [1, 1, 1]} : vector<8x8x32xf32> to vector<8x1x32xf32>
    %171 = vector.shape_cast %170 : vector<8x1x32xf32> to vector<8x32xf32>
    %172 = vector.extract_strided_slice %169 {offsets = [0, 1, 0], sizes = [8, 1, 32], strides = [1, 1, 1]} : vector<8x8x32xf32> to vector<8x1x32xf32>
    %173 = vector.shape_cast %172 : vector<8x1x32xf32> to vector<8x32xf32>
    %174 = vector.extract_strided_slice %169 {offsets = [0, 2, 0], sizes = [8, 1, 32], strides = [1, 1, 1]} : vector<8x8x32xf32> to vector<8x1x32xf32>
    %175 = vector.shape_cast %174 : vector<8x1x32xf32> to vector<8x32xf32>
    %176 = vector.extract_strided_slice %169 {offsets = [0, 3, 0], sizes = [8, 1, 32], strides = [1, 1, 1]} : vector<8x8x32xf32> to vector<8x1x32xf32>
    %177 = vector.shape_cast %176 : vector<8x1x32xf32> to vector<8x32xf32>
    %178 = vector.extract_strided_slice %169 {offsets = [0, 4, 0], sizes = [8, 1, 32], strides = [1, 1, 1]} : vector<8x8x32xf32> to vector<8x1x32xf32>
    %179 = vector.shape_cast %178 : vector<8x1x32xf32> to vector<8x32xf32>
    %180 = vector.extract_strided_slice %169 {offsets = [0, 5, 0], sizes = [8, 1, 32], strides = [1, 1, 1]} : vector<8x8x32xf32> to vector<8x1x32xf32>
    %181 = vector.shape_cast %180 : vector<8x1x32xf32> to vector<8x32xf32>
    %182 = vector.extract_strided_slice %169 {offsets = [0, 6, 0], sizes = [8, 1, 32], strides = [1, 1, 1]} : vector<8x8x32xf32> to vector<8x1x32xf32>
    %183 = vector.shape_cast %182 : vector<8x1x32xf32> to vector<8x32xf32>
    %184 = vector.extract_strided_slice %169 {offsets = [0, 7, 0], sizes = [8, 1, 32], strides = [1, 1, 1]} : vector<8x8x32xf32> to vector<8x1x32xf32>
    %185 = vector.shape_cast %184 : vector<8x1x32xf32> to vector<8x32xf32>
    %186 = tpu.concatenate %171, %173, %175, %177, %179, %181, %183, %185 in 1 : vector<8x32xf32>, vector<8x32xf32>, vector<8x32xf32>, vector<8x32xf32>, vector<8x32xf32>, vector<8x32xf32>, vector<8x32xf32>, vector<8x32xf32> -> vector<8x256xf32>
    %187 = vector.extract_strided_slice %128 {offsets = [192, 0], sizes = [64, 32], strides = [1, 1]} : vector<256x32xf32> to vector<64x32xf32>
    %188 = vector.shape_cast %187 : vector<64x32xf32> to vector<8x8x32xf32>
    %189 = vector.extract_strided_slice %188 {offsets = [0, 0, 0], sizes = [8, 1, 32], strides = [1, 1, 1]} : vector<8x8x32xf32> to vector<8x1x32xf32>
    %190 = vector.shape_cast %189 : vector<8x1x32xf32> to vector<8x32xf32>
    %191 = vector.extract_strided_slice %188 {offsets = [0, 1, 0], sizes = [8, 1, 32], strides = [1, 1, 1]} : vector<8x8x32xf32> to vector<8x1x32xf32>
    %192 = vector.shape_cast %191 : vector<8x1x32xf32> to vector<8x32xf32>
    %193 = vector.extract_strided_slice %188 {offsets = [0, 2, 0], sizes = [8, 1, 32], strides = [1, 1, 1]} : vector<8x8x32xf32> to vector<8x1x32xf32>
    %194 = vector.shape_cast %193 : vector<8x1x32xf32> to vector<8x32xf32>
    %195 = vector.extract_strided_slice %188 {offsets = [0, 3, 0], sizes = [8, 1, 32], strides = [1, 1, 1]} : vector<8x8x32xf32> to vector<8x1x32xf32>
    %196 = vector.shape_cast %195 : vector<8x1x32xf32> to vector<8x32xf32>
    %197 = vector.extract_strided_slice %188 {offsets = [0, 4, 0], sizes = [8, 1, 32], strides = [1, 1, 1]} : vector<8x8x32xf32> to vector<8x1x32xf32>
    %198 = vector.shape_cast %197 : vector<8x1x32xf32> to vector<8x32xf32>
    %199 = vector.extract_strided_slice %188 {offsets = [0, 5, 0], sizes = [8, 1, 32], strides = [1, 1, 1]} : vector<8x8x32xf32> to vector<8x1x32xf32>
    %200 = vector.shape_cast %199 : vector<8x1x32xf32> to vector<8x32xf32>
    %201 = vector.extract_strided_slice %188 {offsets = [0, 6, 0], sizes = [8, 1, 32], strides = [1, 1, 1]} : vector<8x8x32xf32> to vector<8x1x32xf32>
    %202 = vector.shape_cast %201 : vector<8x1x32xf32> to vector<8x32xf32>
    %203 = vector.extract_strided_slice %188 {offsets = [0, 7, 0], sizes = [8, 1, 32], strides = [1, 1, 1]} : vector<8x8x32xf32> to vector<8x1x32xf32>
    %204 = vector.shape_cast %203 : vector<8x1x32xf32> to vector<8x32xf32>
    %205 = tpu.concatenate %190, %192, %194, %196, %198, %200, %202, %204 in 1 : vector<8x32xf32>, vector<8x32xf32>, vector<8x32xf32>, vector<8x32xf32>, vector<8x32xf32>, vector<8x32xf32>, vector<8x32xf32>, vector<8x32xf32> -> vector<8x256xf32>
    %206 = tpu.concatenate %186, %205 in 1 : vector<8x256xf32>, vector<8x256xf32> -> vector<8x512xf32>
    %207 = tpu.concatenate %167, %206 in 0 : vector<8x512xf32>, vector<8x512xf32> -> vector<16x512xf32>
    %c0_32 = arith.constant 0 : index
    %c0_33 = arith.constant 0 : index
    %c0_34 = arith.constant 0 : index
    %208 = vector.load %arg9[%c0_32, %c0_33, %c0_34] : memref<1x16x512xf32, #tpu.memory_space<vmem>>, vector<1x16x512xf32>
    %209 = vector.shape_cast %208 : vector<1x16x512xf32> to vector<16x512xf32>
    %210 = vector.shape_cast %207 : vector<16x512xf32> to vector<1x16x512xf32>
    tpu.vector_store %arg9[%c0_32, %c0_33, %c0_34], %210 {strides = array<i32>} : memref<1x16x512xf32, #tpu.memory_space<vmem>>, vector<1x16x512xf32>,
    return
  }
  func.func @transform_0(%arg0: i32) -> (i32, i32, i32) {
    %c0_i32 = arith.constant 0 : i32
    %c0_i32_0 = arith.constant 0 : i32
    %c0_i32_1 = arith.constant 0 : i32
    return %arg0, %c0_i32, %c0_i32_0 : i32, i32, i32
  }
  func.func @transform_1(%arg0: i32) -> (i32, i32) {
    %c0_i32 = arith.constant 0 : i32
    %c0_i32_0 = arith.constant 0 : i32
    %c0_i32_1 = arith.constant 0 : i32
    return %c0_i32, %c0_i32_0 : i32, i32
  }
  func.func @transform_2(%arg0: i32) -> (i32, i32) {
    %c0_i32 = arith.constant 0 : i32
    %c0_i32_0 = arith.constant 0 : i32
    %c0_i32_1 = arith.constant 0 : i32
    return %c0_i32, %c0_i32_0 : i32, i32
  }
  func.func @transform_3(%arg0: i32) -> (i32, i32) {
    %c0_i32 = arith.constant 0 : i32
    %c0_i32_0 = arith.constant 0 : i32
    %c0_i32_1 = arith.constant 0 : i32
    return %c0_i32, %c0_i32_0 : i32, i32
  }
  func.func @transform_4(%arg0: i32) -> (i32, i32) {
    %c0_i32 = arith.constant 0 : i32
    %c0_i32_0 = arith.constant 0 : i32
    %c0_i32_1 = arith.constant 0 : i32
    return %c0_i32, %c0_i32_0 : i32, i32
  }
  func.func @transform_5(%arg0: i32) -> (i32, i32, i32) {
    %c0_i32 = arith.constant 0 : i32
    %c0_i32_0 = arith.constant 0 : i32
    %c0_i32_1 = arith.constant 0 : i32
    %c0_i32_2 = arith.constant 0 : i32
    return %c0_i32, %c0_i32_0, %c0_i32_1 : i32, i32, i32
  }
  func.func @transform_6(%arg0: i32) -> (i32, i32) {
    %c0_i32 = arith.constant 0 : i32
    %c0_i32_0 = arith.constant 0 : i32
    %c0_i32_1 = arith.constant 0 : i32
    return %c0_i32, %c0_i32_0 : i32, i32
  }
  func.func @transform_7(%arg0: i32) -> (i32, i32) {
    %c0_i32 = arith.constant 0 : i32
    %c0_i32_0 = arith.constant 0 : i32
    %c0_i32_1 = arith.constant 0 : i32
    return %c0_i32, %c0_i32_0 : i32, i32
  }
  func.func @transform_8(%arg0: i32) -> (i32, i32, i32) {
    %c0_i32 = arith.constant 0 : i32
    %c0_i32_0 = arith.constant 0 : i32
    %c0_i32_1 = arith.constant 0 : i32
    return %arg0, %c0_i32, %c0_i32_0 : i32, i32, i32
  }
}

</mosaic_0001>

<llo_original>
// kernel: tpu_custom_call.1
$region0: #{tpu_custom_call.1}
  #allocation0 [shape = 'u32[]', space=smem, size = 0x4, offset = 0x4, fixed_abs, tag = 'smem constant byte address 0x4 - core index']
  #allocation1 [shape = 'u32[144,128]{1,0:T(1,128)}', space=vmem, size = 0x12000, scoped, tag = 'internal scratch']
  %s0 = inlined_call_operand.vmem [shape: f32[2,256,64], index: 0, kind: input, shape index: {}]
  %s1 = inlined_call_operand.vmem [shape: f32[64,160], index: 1, kind: input, shape index: {}]
  %s2 = inlined_call_operand.vmem [shape: f32[1,160], index: 2, kind: input, shape index: {}]
  %s3 = inlined_call_operand.vmem [shape: f32[9,160], index: 3, kind: input, shape index: {}]
  %s4 = inlined_call_operand.vmem [shape: f32[1,160], index: 4, kind: input, shape index: {}]
  %s5 = inlined_call_operand.vmem [shape: f32[4,64,64], index: 5, kind: input, shape index: {}]
  %s6 = inlined_call_operand.vmem [shape: f32[32,32], index: 6, kind: input, shape index: {}]
  %s7 = inlined_call_operand.vmem [shape: f32[1,32], index: 7, kind: input, shape index: {}]
  %s8 = inlined_call_operand.hbm [shape: f32[2,16,512], index: 8, kind: output, shape index: {}]
  %s9 = sld [smem:[#allocation0]]
  $region65: #{tpu_custom_call.1} parent=0
    _
  %s11 = ssub.s32 1, %s9
  %s12 = scalar_select 0, %s11, %s9
  $region1: #{tpu_custom_call.1} parent=0
    #allocation2 [shape = 'u8[65536]{0}', space=vmem, size = 0x10000, scoped, tag = 'output window, operand 0']
    #allocation3 [shape = 's32[2]{0}', space=sflag, size = 0x8, scoped, tag = 'scoped memory for tpu_custom_call.1']
    %13 = vsyncpa [#allocation3], 0
    %s14 = scalar_lea.sflag [#allocation3], 1
    %15 = vsyncpa %s14, 0
    loop: start=0, step=1, limit=4
    $region2: #{tpu_custom_call.1} parent=1 // loop_pre_header
      _
    $region3: #{tpu_custom_call.1} parent=1 // loop_header
      %s17 = sphi 0, %s21
      %p18 = scmp.ge.s32.totalorder %s17, 4
      %s27 = sphi 0, %s29
      %s30 = sphi 0, %s27
      %s31 = sphi 0, %s30
      %s47 = sphi 0, %s31
      %s51 = sphi 0, %s51
      %s53 = sphi 0, %s51
      %s54 = sphi 0, %s53
      %s68 = sphi 0, %s54
      %s72 = sphi 0, %s72
      %s74 = sphi 0, %s72
      %s75 = sphi 0, %s74
      %s89 = sphi 0, %s75
      %s93 = sphi 0, %s93
      %s95 = sphi 0, %s93
      %s96 = sphi 0, %s95
      %s110 = sphi 0, %s96
      %s114 = sphi 0, %s114
      %s116 = sphi 0, %s114
      %s117 = sphi 0, %s116
      %s131 = sphi 0, %s117
      %s135 = sphi 0, %s135
      %s137 = sphi 0, %s135
      %s138 = sphi 0, %s137
      %s152 = sphi 0, %s138
      %s156 = sphi 0, %s156
      %s158 = sphi 0, %s156
      %s159 = sphi 0, %s158
      %s173 = sphi 0, %s159
      %s177 = sphi 0, %s177
      %s179 = sphi 0, %s177
      %s180 = sphi 0, %s179
      %s194 = sphi 0, %s180
      %s200 = sphi 0, %s202
      %s203 = sphi 0, %s200
      %s204 = sphi 0, %s203
      %s220 = sphi 0, %s204
    $region4: #{tpu_custom_call.1} parent=1 // loop_header_branch
      %20 = sbr.rel (%p18) target = $region8
    $region5: #{tpu_custom_call.1} parent=1 // loop_body
      %s22 = ssub.s32 %s17, 1
      %s23 = ssub.s32 %s17, 2
      %s24 = sadd.s32 %s17, 1
      %s25 = ssub.s32 %s17, %s24
      %p26 = scmp.eq.s32.totalorder %s25, 0
      %s28 = sadd.s32 %s27, 1
      %s29 = scalar_select %p26, %s27, %s28
      %p32 = pneg %p26
      %p33 = scmp.eq.s32.totalorder %s17, 1
      %p34 = por %p32, %p33
      %p35 = scmp.ne.s32.totalorder %s27, %s30
      %p36 = scmp.eq.s32.totalorder %s17, 0
      %p37 = por %p35, %p36
      %p38 = scmp.ne.s32.totalorder %s27, %s30
      %p39 = scmp.eq.s32.totalorder %s22, 1
      %p40 = por %p38, %p39
      %p41 = scmp.ne.s32.totalorder %s30, %s31
      %p42 = scmp.eq.s32.totalorder %s22, 0
      %p43 = por %p41, %p42
      %p44 = scmp.ne.s32.totalorder %s30, %s31
      %p45 = scmp.eq.s32.totalorder %s23, 1
      %p46 = por %p44, %p45
      %p48 = scmp.ne.s32.totalorder %s31, %s47
      %p49 = scmp.eq.s32.totalorder %s23, 0
      %p50 = por %p48, %p49
      %s52 = sadd.s32 %s51, 1
      %p55 = scmp.eq.s32.totalorder %s17, 1
      %p56 = scmp.ne.s32.totalorder %s51, %s53
      %p57 = scmp.eq.s32.totalorder %s17, 0
      %p58 = por %p56, %p57
      %p59 = scmp.ne.s32.totalorder %s51, %s53
      %p60 = scmp.eq.s32.totalorder %s22, 1
      %p61 = por %p59, %p60
      %p62 = scmp.ne.s32.totalorder %s53, %s54
      %p63 = scmp.eq.s32.totalorder %s22, 0
      %p64 = por %p62, %p63
      %p65 = scmp.ne.s32.totalorder %s53, %s54
      %p66 = scmp.eq.s32.totalorder %s23, 1
      %p67 = por %p65, %p66
      %p69 = scmp.ne.s32.totalorder %s54, %s68
      %p70 = scmp.eq.s32.totalorder %s23, 0
      %p71 = por %p69, %p70
      %s73 = sadd.s32 %s72, 1
      %p76 = scmp.eq.s32.totalorder %s17, 1
      %p77 = scmp.ne.s32.totalorder %s72, %s74
      %p78 = scmp.eq.s32.totalorder %s17, 0
      %p79 = por %p77, %p78
      %p80 = scmp.ne.s32.totalorder %s72, %s74
      %p81 = scmp.eq.s32.totalorder %s22, 1
      %p82 = por %p80, %p81
      %p83 = scmp.ne.s32.totalorder %s74, %s75
      %p84 = scmp.eq.s32.totalorder %s22, 0
      %p85 = por %p83, %p84
      %p86 = scmp.ne.s32.totalorder %s74, %s75
      %p87 = scmp.eq.s32.totalorder %s23, 1
      %p88 = por %p86, %p87
      %p90 = scmp.ne.s32.totalorder %s75, %s89
      %p91 = scmp.eq.s32.totalorder %s23, 0
      %p92 = por %p90, %p91
      %s94 = sadd.s32 %s93, 1
      %p97 = scmp.eq.s32.totalorder %s17, 1
      %p98 = scmp.ne.s32.totalorder %s93, %s95
      %p99 = scmp.eq.s32.totalorder %s17, 0
      %p100 = por %p98, %p99
      %p101 = scmp.ne.s32.totalorder %s93, %s95
      %p102 = scmp.eq.s32.totalorder %s22, 1
      %p103 = por %p101, %p102
      %p104 = scmp.ne.s32.totalorder %s95, %s96
      %p105 = scmp.eq.s32.totalorder %s22, 0
      %p106 = por %p104, %p105
      %p107 = scmp.ne.s32.totalorder %s95, %s96
      %p108 = scmp.eq.s32.totalorder %s23, 1
      %p109 = por %p107, %p108
      %p111 = scmp.ne.s32.totalorder %s96, %s110
      %p112 = scmp.eq.s32.totalorder %s23, 0
      %p113 = por %p111, %p112
      %s115 = sadd.s32 %s114, 1
      %p118 = scmp.eq.s32.totalorder %s17, 1
      %p119 = scmp.ne.s32.totalorder %s114, %s116
      %p120 = scmp.eq.s32.totalorder %s17, 0
      %p121 = por %p119, %p120
      %p122 = scmp.ne.s32.totalorder %s114, %s116
      %p123 = scmp.eq.s32.totalorder %s22, 1
      %p124 = por %p122, %p123
      %p125 = scmp.ne.s32.totalorder %s116, %s117
      %p126 = scmp.eq.s32.totalorder %s22, 0
      %p127 = por %p125, %p126
      %p128 = scmp.ne.s32.totalorder %s116, %s117
      %p129 = scmp.eq.s32.totalorder %s23, 1
      %p130 = por %p128, %p129
      %p132 = scmp.ne.s32.totalorder %s117, %s131
      %p133 = scmp.eq.s32.totalorder %s23, 0
      %p134 = por %p132, %p133
      %s136 = sadd.s32 %s135, 1
      %p139 = scmp.eq.s32.totalorder %s17, 1
      %p140 = scmp.ne.s32.totalorder %s135, %s137
      %p141 = scmp.eq.s32.totalorder %s17, 0
      %p142 = por %p140, %p141
      %p143 = scmp.ne.s32.totalorder %s135, %s137
      %p144 = scmp.eq.s32.totalorder %s22, 1
      %p145 = por %p143, %p144
      %p146 = scmp.ne.s32.totalorder %s137, %s138
      %p147 = scmp.eq.s32.totalorder %s22, 0
      %p148 = por %p146, %p147
      %p149 = scmp.ne.s32.totalorder %s137, %s138
      %p150 = scmp.eq.s32.totalorder %s23, 1
      %p151 = por %p149, %p150
      %p153 = scmp.ne.s32.totalorder %s138, %s152
      %p154 = scmp.eq.s32.totalorder %s23, 0
      %p155 = por %p153, %p154
      %s157 = sadd.s32 %s156, 1
      %p160 = scmp.eq.s32.totalorder %s17, 1
      %p161 = scmp.ne.s32.totalorder %s156, %s158
      %p162 = scmp.eq.s32.totalorder %s17, 0
      %p163 = por %p161, %p162
      %p164 = scmp.ne.s32.totalorder %s156, %s158
      %p165 = scmp.eq.s32.totalorder %s22, 1
      %p166 = por %p164, %p165
      %p167 = scmp.ne.s32.totalorder %s158, %s159
      %p168 = scmp.eq.s32.totalorder %s22, 0
      %p169 = por %p167, %p168
      %p170 = scmp.ne.s32.totalorder %s158, %s159
      %p171 = scmp.eq.s32.totalorder %s23, 1
      %p172 = por %p170, %p171
      %p174 = scmp.ne.s32.totalorder %s159, %s173
      %p175 = scmp.eq.s32.totalorder %s23, 0
      %p176 = por %p174, %p175
      %s178 = sadd.s32 %s177, 1
      %p181 = scmp.eq.s32.totalorder %s17, 1
      %p182 = scmp.ne.s32.totalorder %s177, %s179
      %p183 = scmp.eq.s32.totalorder %s17, 0
      %p184 = por %p182, %p183
      %p185 = scmp.ne.s32.totalorder %s177, %s179
      %p186 = scmp.eq.s32.totalorder %s22, 1
      %p187 = por %p185, %p186
      %p188 = scmp.ne.s32.totalorder %s179, %s180
      %p189 = scmp.eq.s32.totalorder %s22, 0
      %p190 = por %p188, %p189
      %p191 = scmp.ne.s32.totalorder %s179, %s180
      %p192 = scmp.eq.s32.totalorder %s23, 1
      %p193 = por %p191, %p192
      %p195 = scmp.ne.s32.totalorder %s180, %s194
      %p196 = scmp.eq.s32.totalorder %s23, 0
      %p197 = por %p195, %p196
      %s198 = ssub.s32 %s17, %s24
      %p199 = scmp.eq.s32.totalorder %s198, 0
      %s201 = sadd.s32 %s200, 1
      %s202 = scalar_select %p199, %s200, %s201
      %p205 = pneg %p199
      %p206 = scmp.eq.s32.totalorder %s17, 1
      %p207 = por %p205, %p206
      %p208 = scmp.ne.s32.totalorder %s200, %s203
      %p209 = scmp.eq.s32.totalorder %s17, 0
      %p210 = por %p208, %p209
      %p211 = scmp.ne.s32.totalorder %s200, %s203
      %p212 = scmp.eq.s32.totalorder %s22, 1
      %p213 = por %p211, %p212
      %p214 = scmp.ne.s32.totalorder %s203, %s204
      %p215 = scmp.eq.s32.totalorder %s22, 0
      %p216 = por %p214, %p215
      %p217 = scmp.ne.s32.totalorder %s203, %s204
      %p218 = scmp.eq.s32.totalorder %s23, 1
      %p219 = por %p217, %p218
      %p221 = scmp.ne.s32.totalorder %s204, %s220
      %p222 = scmp.eq.s32.totalorder %s23, 0
      %p223 = por %p221, %p222
      %p224 = scmp.le.s32.totalorder 1, %s17
      %p225 = scmp.lt.s32.totalorder %s17, 3
      %p226 = pnand %p224, %p225
      %p227 = pneg %p226
      // Predicated region
      $region9: #{tpu_custom_call.1} parent=5 // pred_check
        _
      $region10: #{tpu_custom_call.1} parent=5 // pred_check_branch
        %229 = sbr.rel (%p226) target = $region12
      $region11: #{tpu_custom_call.1} parent=5 // pred_region
        %s230 = ssub.s32 %s17, 1
        // Predicated region
        $region13: #{tpu_custom_call.1} parent=11 // pred_check
          %p231 = pneg %p64
        $region14: #{tpu_custom_call.1} parent=11 // pred_check_branch
          %233 = sbr.rel (%p231) target = $region16
        $region15: #{tpu_custom_call.1} parent=11 // pred_region
          _
        $region16: #{tpu_custom_call.1} parent=11 // pred_fallthru
          _
        // Predicated region
        $region17: #{tpu_custom_call.1} parent=11 // pred_check
          %p234 = pneg %p85
        $region18: #{tpu_custom_call.1} parent=11 // pred_check_branch
          %236 = sbr.rel (%p234) target = $region20
        $region19: #{tpu_custom_call.1} parent=11 // pred_region
          _
        $region20: #{tpu_custom_call.1} parent=11 // pred_fallthru
          _
        // Predicated region
        $region21: #{tpu_custom_call.1} parent=11 // pred_check
          %p237 = pneg %p106
        $region22: #{tpu_custom_call.1} parent=11 // pred_check_branch
          %239 = sbr.rel (%p237) target = $region24
        $region23: #{tpu_custom_call.1} parent=11 // pred_region
          _
        $region24: #{tpu_custom_call.1} parent=11 // pred_fallthru
          _
        // Predicated region
        $region25: #{tpu_custom_call.1} parent=11 // pred_check
          %p240 = pneg %p127
        $region26: #{tpu_custom_call.1} parent=11 // pred_check_branch
          %242 = sbr.rel (%p240) target = $region28
        $region27: #{tpu_custom_call.1} parent=11 // pred_region
          _
        $region28: #{tpu_custom_call.1} parent=11 // pred_fallthru
          _
        // Predicated region
        $region29: #{tpu_custom_call.1} parent=11 // pred_check
          %p243 = pneg %p148
        $region30: #{tpu_custom_call.1} parent=11 // pred_check_branch
          %245 = sbr.rel (%p243) target = $region32
        $region31: #{tpu_custom_call.1} parent=11 // pred_region
          _
        $region32: #{tpu_custom_call.1} parent=11 // pred_fallthru
          _
        // Predicated region
        $region33: #{tpu_custom_call.1} parent=11 // pred_check
          %p246 = pneg %p169
        $region34: #{tpu_custom_call.1} parent=11 // pred_check_branch
          %248 = sbr.rel (%p246) target = $region36
        $region35: #{tpu_custom_call.1} parent=11 // pred_region
          _
        $region36: #{tpu_custom_call.1} parent=11 // pred_fallthru
          _
        // Predicated region
        $region37: #{tpu_custom_call.1} parent=11 // pred_check
          %p249 = pneg %p190
        $region38: #{tpu_custom_call.1} parent=11 // pred_check_branch
          %251 = sbr.rel (%p249) target = $region40
        $region39: #{tpu_custom_call.1} parent=11 // pred_region
          _
        $region40: #{tpu_custom_call.1} parent=11 // pred_fallthru
          _
      $region12: #{tpu_custom_call.1} parent=5 // pred_fallthru
        _
      %p252 = scmp.lt.s32.totalorder %s17, 2
      // Predicated region
      $region41: #{tpu_custom_call.1} parent=5 // pred_check
        %p253 = pneg %p252
      $region42: #{tpu_custom_call.1} parent=5 // pred_check_branch
        %255 = sbr.rel (%p253) target = $region44
      $region43: #{tpu_custom_call.1} parent=5 // pred_region
        // Predicated region
        $region45: #{tpu_custom_call.1} parent=43 // pred_check
          %p256 = pneg %p37
        $region46: #{tpu_custom_call.1} parent=43 // pred_check_branch
          %258 = sbr.rel (%p256) target = $region48
        $region47: #{tpu_custom_call.1} parent=43 // pred_region
          %p259 = scmp.lt.s32.totalorder %s17, 1
          %s260 = scalar_select %p259, %s17, 1
          %s261 = smul.addr %s260, 32
          %s262 = smul.addr %s261, 8
          %s263 = scalar_lea.vmem %s0, %s262
        $region48: #{tpu_custom_call.1} parent=43 // pred_fallthru
          _
      $region44: #{tpu_custom_call.1} parent=5 // pred_fallthru
        _
      %p264 = scmp.le.s32.totalorder 1, %s17
      %p265 = scmp.lt.s32.totalorder %s17, 3
      %p266 = pnand %p264, %p265
      %p267 = pneg %p266
      // Predicated region
      $region49: #{tpu_custom_call.1} parent=5 // pred_check
        _
      $region50: #{tpu_custom_call.1} parent=5 // pred_check_branch
        %269 = sbr.rel (%p266) target = $region52
      $region51: #{tpu_custom_call.1} parent=5 // pred_region
        %s270 = ssub.s32 %s17, 1
        %p271 = scmp.lt.s32.totalorder %s22, 1
        %s272 = scalar_select %p271, %s22, 1
        %s273 = smul.addr %s272, 32
        %s274 = smul.addr %s273, 8
        %s275 = scalar_lea.vmem %s0, %s274
        %p276 = pneg %p43
        %p277 = pneg %p40
        %p278 = pneg %p64
        %p279 = pneg %p61
        %p280 = pneg %p85
        %p281 = pneg %p82
        %p282 = pneg %p106
        %p283 = pneg %p103
        %p284 = pneg %p127
        %p285 = pneg %p124
        %p286 = pneg %p148
        %p287 = pneg %p145
        %p288 = pneg %p169
        %p289 = pneg %p166
        %p290 = pneg %p190
        %p291 = pneg %p187
        %p292 = pneg %p216
        %p293 = pneg %p213
        %s294 = sand.u32 %s203, 1
        %s295 = scalar_lea.sflag [#allocation3], %s294
        %s296 = sand.u32 %s203, 1
        %s297 = smul.addr %s296, 64
        %s298 = scalar_lea.vmem [#allocation2], %s297
        %p299 = scmp.lt.s32.totalorder %s22, 1
        %s300 = scalar_select %p299, %s22, 1
        %s301 = smul.addr %s300, 32
        %s302 = smul.addr %s301, 8
        %s303 = scalar_lea.vmem %s0, %s302
        %v304 = vld [vmem:[%s303] sm:$0xff]
        %v305 = vld [vmem:[%s303 + $0x8] sm:$0xff]
        %v306 = vld [vmem:[%s303 + $0x10] sm:$0xff]
        %v307 = vld [vmem:[%s303 + $0x18] sm:$0xff]
        %v308 = vld [vmem:[%s303 + $0x20] sm:$0xff]
        %v309 = vld [vmem:[%s303 + $0x28] sm:$0xff]
        %v310 = vld [vmem:[%s303 + $0x30] sm:$0xff]
        %v311 = vld [vmem:[%s303 + $0x38] sm:$0xff]
        %v312 = vld [vmem:[%s303 + $0x40] sm:$0xff]
        %v313 = vld [vmem:[%s303 + $0x48] sm:$0xff]
        %v314 = vld [vmem:[%s303 + $0x50] sm:$0xff]
        %v315 = vld [vmem:[%s303 + $0x58] sm:$0xff]
        %v316 = vld [vmem:[%s303 + $0x60] sm:$0xff]
        %v317 = vld [vmem:[%s303 + $0x68] sm:$0xff]
        %v318 = vld [vmem:[%s303 + $0x70] sm:$0xff]
        %v319 = vld [vmem:[%s303 + $0x78] sm:$0xff]
        %v320 = vld [vmem:[%s303 + $0x80] sm:$0xff]
        %v321 = vld [vmem:[%s303 + $0x88] sm:$0xff]
        %v322 = vld [vmem:[%s303 + $0x90] sm:$0xff]
        %v323 = vld [vmem:[%s303 + $0x98] sm:$0xff]
        %v324 = vld [vmem:[%s303 + $0xa0] sm:$0xff]
        %v325 = vld [vmem:[%s303 + $0xa8] sm:$0xff]
        %v326 = vld [vmem:[%s303 + $0xb0] sm:$0xff]
        %v327 = vld [vmem:[%s303 + $0xb8] sm:$0xff]
        %v328 = vld [vmem:[%s303 + $0xc0] sm:$0xff]
        %v329 = vld [vmem:[%s303 + $0xc8] sm:$0xff]
        %v330 = vld [vmem:[%s303 + $0xd0] sm:$0xff]
        %v331 = vld [vmem:[%s303 + $0xd8] sm:$0xff]
        %v332 = vld [vmem:[%s303 + $0xe0] sm:$0xff]
        %v333 = vld [vmem:[%s303 + $0xe8] sm:$0xff]
        %v334 = vld [vmem:[%s303 + $0xf0] sm:$0xff]
        %v335 = vld [vmem:[%s303 + $0xf8] sm:$0xff]
        %v336 = vld [vmem:[%s1] sm:$0xff]
        %v337 = vld [vmem:[%s1 + $0x8] sm:$0xff]
        %v338 = vld [vmem:[%s1 + $0x10] sm:$0xff]
        %v339 = vld [vmem:[%s1 + $0x18] sm:$0xff]
        %v340 = vld [vmem:[%s1 + $0x20] sm:$0xff]
        %v341 = vld [vmem:[%s1 + $0x28] sm:$0xff]
        %v342 = vld [vmem:[%s1 + $0x30] sm:$0xff]
        %v343 = vld [vmem:[%s1 + $0x38] sm:$0xff]
        %v344 = vld [vmem:[%s1 + $0x40] sm:$0xff]
        %v345 = vld [vmem:[%s1 + $0x48] sm:$0xff]
        %v346 = vld [vmem:[%s1 + $0x50] sm:$0xff]
        %v347 = vld [vmem:[%s1 + $0x58] sm:$0xff]
        %v348 = vld [vmem:[%s1 + $0x60] sm:$0xff]
        %v349 = vld [vmem:[%s1 + $0x68] sm:$0xff]
        %v350 = vld [vmem:[%s1 + $0x70] sm:$0xff]
        %v351 = vld [vmem:[%s1 + $0x78] sm:$0xff]
        %v352 = vld [vmem:[%s2] sm:$0x3]
        %v354 = vlaneseq
        %v355 = vshrl.u32 %v354, 7
        %v356 = vsub.s32 0, %v355
        %v357 = vrot.slane %v352, %v356
        %v358 = vlaneseq
        %v359 = vshrl.u32 %v358, 7
        %v360 = vsub.s32 1, %v359
        %v361 = vrot.slane %v352, %v360
        %vm364 = vcmask 523264
        %v366 = vsel %vm364, %v304, 0
        %v369 = vsel %vm364, %v305, 0
        %v372 = vsel %vm364, %v306, 0
        %v375 = vsel %vm364, %v307, 0
        %v378 = vsel %vm364, %v308, 0
        %v381 = vsel %vm364, %v309, 0
        %v384 = vsel %vm364, %v310, 0
        %v387 = vsel %vm364, %v311, 0
        %v390 = vsel %vm364, %v312, 0
        %v393 = vsel %vm364, %v313, 0
        %v396 = vsel %vm364, %v314, 0
        %v399 = vsel %vm364, %v315, 0
        %v402 = vsel %vm364, %v316, 0
        %v405 = vsel %vm364, %v317, 0
        %v408 = vsel %vm364, %v318, 0
        %v411 = vsel %vm364, %v319, 0
        %v414 = vsel %vm364, %v320, 0
        %v417 = vsel %vm364, %v321, 0
        %v420 = vsel %vm364, %v322, 0
        %v423 = vsel %vm364, %v323, 0
        %v426 = vsel %vm364, %v324, 0
        %v429 = vsel %vm364, %v325, 0
        %v432 = vsel %vm364, %v326, 0
        %v435 = vsel %vm364, %v327, 0
        %v438 = vsel %vm364, %v328, 0
        %v441 = vsel %vm364, %v329, 0
        %v444 = vsel %vm364, %v330, 0
        %v447 = vsel %vm364, %v331, 0
        %v450 = vsel %vm364, %v332, 0
        %v453 = vsel %vm364, %v333, 0
        %v456 = vsel %vm364, %v334, 0
        %v459 = vsel %vm364, %v335, 0
        %461 = vmatprep.subr.mxu0 %v337
        %462 = vmatpush1.msra.mxu0 %v336
        %463 = vmatprep.subr.mxu0 %v339
        %464 = vmatpush1.msra.mxu0 %v338
        %465 = vmatprep.subr.mxu0 %v341
        %466 = vmatpush1.msra.mxu0 %v340
        %467 = vmatprep.subr.mxu0 %v343
        %468 = vmatpush1.msra.mxu0 %v342
        %469 = vmatprep.subr.mxu0 %v345
        %470 = vmatpush1.msra.mxu0 %v344
        %471 = vmatprep.subr.mxu0 %v347
        %472 = vmatpush1.msra.mxu0 %v346
        %473 = vmatprep.subr.mxu0 %v349
        %474 = vmatpush1.msra.mxu0 %v348
        %475 = vmatprep.subr.mxu0 %v351
        %476 = vmatpush1.msra.mxu0 %v350
        %477 = vmatprep.subr.mxu0 0.0
        %478 = vmatpush1.msra.mxu0 0.0
        %479 = vmatprep.subr.mxu0 0.0
        %480 = vmatpush1.msra.mxu0 0.0
        %481 = vmatprep.subr.mxu0 0.0
        %482 = vmatpush1.msra.mxu0 0.0
        %483 = vmatprep.subr.mxu0 0.0
        %484 = vmatpush1.msra.mxu0 0.0
        %485 = vmatprep.subr.mxu0 0.0
        %486 = vmatpush1.msra.mxu0 0.0
        %487 = vmatprep.subr.mxu0 0.0
        %488 = vmatpush1.msra.mxu0 0.0
        %489 = vmatprep.subr.mxu0 0.0
        %490 = vmatpush1.msra.mxu0 0.0
        %491 = vmatprep.subr.mxu0 0.0
        %492 = vmatpush1.msra.mxu0 0.0
        %493 = vmatprep.subr.mxu0 0.0
        %494 = vmatpush1.msra.mxu0 0.0
        %495 = vmatprep.subr.mxu0 0.0
        %496 = vmatpush1.msra.mxu0 0.0
        %497 = vmatprep.subr.mxu0 0.0
        %498 = vmatpush1.msra.mxu0 0.0
        %499 = vmatprep.subr.mxu0 0.0
        %500 = vmatpush1.msra.mxu0 0.0
        %501 = vmatprep.subr.mxu0 0.0
        %502 = vmatpush1.msra.mxu0 0.0
        %503 = vmatprep.subr.mxu0 0.0
        %504 = vmatpush1.msra.mxu0 0.0
        %505 = vmatprep.subr.mxu0 0.0
        %506 = vmatpush1.msra.mxu0 0.0
        %507 = vmatprep.subr.mxu0 0.0
        %508 = vmatpush1.msra.mxu0 0.0
        %509 = vmatprep.subr.mxu0 0.0
        %510 = vmatpush1.msra.mxu0 0.0
        %511 = vmatprep.subr.mxu0 0.0
        %512 = vmatpush1.msra.mxu0 0.0
        %513 = vmatprep.subr.mxu0 0.0
        %514 = vmatpush1.msra.mxu0 0.0
        %515 = vmatprep.subr.mxu0 0.0
        %516 = vmatpush1.msra.mxu0 0.0
        %517 = vmatprep.subr.mxu0 0.0
        %518 = vmatpush1.msra.mxu0 0.0
        %519 = vmatprep.subr.mxu0 0.0
        %520 = vmatpush1.msra.mxu0 0.0
        %521 = vmatprep.subr.mxu0 0.0
        %522 = vmatpush1.msra.mxu0 0.0
        %523 = vmatprep.subr.mxu0 0.0
        %524 = vmatpush1.msra.mxu0 0.0
        %525 = vmatprep.mubr.f32.mxu0 0.0
        %526 = vmatmul.mubr.f32.gmra.mrb[0].mxu0 %v366
        %v527 = vpop.f32.mrb[0].mxu0
        %v528 = vadd.f32 %v357, %v527
        %v529 = vpop.f32.mrb[0].mxu0
        %v530 = vadd.f32 %v361, %v529
        %531 = vmatprep.mubr.f32.mxu0 0.0
        %532 = vmatmul.mubr.f32.gmra.mrb[0].mxu0 %v369
        %v533 = vpop.f32.mrb[0].mxu0
        %v534 = vadd.f32 %v357, %v533
        %v535 = vpop.f32.mrb[0].mxu0
        %v536 = vadd.f32 %v361, %v535
        %537 = vmatprep.mubr.f32.mxu0 0.0
        %538 = vmatmul.mubr.f32.gmra.mrb[0].mxu0 %v372
        %v539 = vpop.f32.mrb[0].mxu0
        %v540 = vadd.f32 %v357, %v539
        %v541 = vpop.f32.mrb[0].mxu0
        %v542 = vadd.f32 %v361, %v541
        %543 = vmatprep.mubr.f32.mxu0 0.0
        %544 = vmatmul.mubr.f32.gmra.mrb[0].mxu0 %v375
        %v545 = vpop.f32.mrb[0].mxu0
        %v546 = vadd.f32 %v357, %v545
        %v547 = vpop.f32.mrb[0].mxu0
        %v548 = vadd.f32 %v361, %v547
        %549 = vmatprep.mubr.f32.mxu0 0.0
        %550 = vmatmul.mubr.f32.gmra.mrb[0].mxu0 %v378
        %v551 = vpop.f32.mrb[0].mxu0
        %v552 = vadd.f32 %v357, %v551
        %v553 = vpop.f32.mrb[0].mxu0
        %v554 = vadd.f32 %v361, %v553
        %555 = vmatprep.mubr.f32.mxu0 0.0
        %556 = vmatmul.mubr.f32.gmra.mrb[0].mxu0 %v381
        %v557 = vpop.f32.mrb[0].mxu0
        %v558 = vadd.f32 %v357, %v557
        %v559 = vpop.f32.mrb[0].mxu0
        %v560 = vadd.f32 %v361, %v559
        %561 = vmatprep.mubr.f32.mxu0 0.0
        %562 = vmatmul.mubr.f32.gmra.mrb[0].mxu0 %v384
        %v563 = vpop.f32.mrb[0].mxu0
        %v564 = vadd.f32 %v357, %v563
        %v565 = vpop.f32.mrb[0].mxu0
        %v566 = vadd.f32 %v361, %v565
        %567 = vmatprep.mubr.f32.mxu0 0.0
        %568 = vmatmul.mubr.f32.gmra.mrb[0].mxu0 %v387
        %v569 = vpop.f32.mrb[0].mxu0
        %v570 = vadd.f32 %v357, %v569
        %v571 = vpop.f32.mrb[0].mxu0
        %v572 = vadd.f32 %v361, %v571
        %573 = vmatprep.mubr.f32.mxu0 0.0
        %574 = vmatmul.mubr.f32.gmra.mrb[0].mxu0 %v390
        %v575 = vpop.f32.mrb[0].mxu0
        %v576 = vadd.f32 %v357, %v575
        %v577 = vpop.f32.mrb[0].mxu0
        %v578 = vadd.f32 %v361, %v577
        %579 = vmatprep.mubr.f32.mxu0 0.0
        %580 = vmatmul.mubr.f32.gmra.mrb[0].mxu0 %v393
        %v581 = vpop.f32.mrb[0].mxu0
        %v582 = vadd.f32 %v357, %v581
        %v583 = vpop.f32.mrb[0].mxu0
        %v584 = vadd.f32 %v361, %v583
        %585 = vmatprep.mubr.f32.mxu0 0.0
        %586 = vmatmul.mubr.f32.gmra.mrb[0].mxu0 %v396
        %v587 = vpop.f32.mrb[0].mxu0
        %v588 = vadd.f32 %v357, %v587
        %v589 = vpop.f32.mrb[0].mxu0
        %v590 = vadd.f32 %v361, %v589
        %591 = vmatprep.mubr.f32.mxu0 0.0
        %592 = vmatmul.mubr.f32.gmra.mrb[0].mxu0 %v399
        %v593 = vpop.f32.mrb[0].mxu0
        %v594 = vadd.f32 %v357, %v593
        %v595 = vpop.f32.mrb[0].mxu0
        %v596 = vadd.f32 %v361, %v595
        %597 = vmatprep.mubr.f32.mxu0 0.0
        %598 = vmatmul.mubr.f32.gmra.mrb[0].mxu0 %v402
        %v599 = vpop.f32.mrb[0].mxu0
        %v600 = vadd.f32 %v357, %v599
        %v601 = vpop.f32.mrb[0].mxu0
        %v602 = vadd.f32 %v361, %v601
        %603 = vmatprep.mubr.f32.mxu0 0.0
        %604 = vmatmul.mubr.f32.gmra.mrb[0].mxu0 %v405
        %v605 = vpop.f32.mrb[0].mxu0
        %v606 = vadd.f32 %v357, %v605
        %v607 = vpop.f32.mrb[0].mxu0
        %v608 = vadd.f32 %v361, %v607
        %609 = vmatprep.mubr.f32.mxu0 0.0
        %610 = vmatmul.mubr.f32.gmra.mrb[0].mxu0 %v408
        %v611 = vpop.f32.mrb[0].mxu0
        %v612 = vadd.f32 %v357, %v611
        %v613 = vpop.f32.mrb[0].mxu0
        %v614 = vadd.f32 %v361, %v613
        %615 = vmatprep.mubr.f32.mxu0 0.0
        %616 = vmatmul.mubr.f32.gmra.mrb[0].mxu0 %v411
        %v617 = vpop.f32.mrb[0].mxu0
        %v618 = vadd.f32 %v357, %v617
        %v619 = vpop.f32.mrb[0].mxu0
        %v620 = vadd.f32 %v361, %v619
        %621 = vmatprep.mubr.f32.mxu0 0.0
        %622 = vmatmul.mubr.f32.gmra.mrb[0].mxu0 %v414
        %v623 = vpop.f32.mrb[0].mxu0
        %v624 = vadd.f32 %v357, %v623
        %v625 = vpop.f32.mrb[0].mxu0
        %v626 = vadd.f32 %v361, %v625
        %627 = vmatprep.mubr.f32.mxu0 0.0
        %628 = vmatmul.mubr.f32.gmra.mrb[0].mxu0 %v417
        %v629 = vpop.f32.mrb[0].mxu0
        %v630 = vadd.f32 %v357, %v629
        %v631 = vpop.f32.mrb[0].mxu0
        %v632 = vadd.f32 %v361, %v631
        %633 = vmatprep.mubr.f32.mxu0 0.0
        %634 = vmatmul.mubr.f32.gmra.mrb[0].mxu0 %v420
        %v635 = vpop.f32.mrb[0].mxu0
        %v636 = vadd.f32 %v357, %v635
        %v637 = vpop.f32.mrb[0].mxu0
        %v638 = vadd.f32 %v361, %v637
        %639 = vmatprep.mubr.f32.mxu0 0.0
        %640 = vmatmul.mubr.f32.gmra.mrb[0].mxu0 %v423
        %v641 = vpop.f32.mrb[0].mxu0
        %v642 = vadd.f32 %v357, %v641
        %v643 = vpop.f32.mrb[0].mxu0
        %v644 = vadd.f32 %v361, %v643
        %645 = vmatprep.mubr.f32.mxu0 0.0
        %646 = vmatmul.mubr.f32.gmra.mrb[0].mxu0 %v426
        %v647 = vpop.f32.mrb[0].mxu0
        %v648 = vadd.f32 %v357, %v647
        %v649 = vpop.f32.mrb[0].mxu0
        %v650 = vadd.f32 %v361, %v649
        %651 = vmatprep.mubr.f32.mxu0 0.0
        %652 = vmatmul.mubr.f32.gmra.mrb[0].mxu0 %v429
        %v653 = vpop.f32.mrb[0].mxu0
        %v654 = vadd.f32 %v357, %v653
        %v655 = vpop.f32.mrb[0].mxu0
        %v656 = vadd.f32 %v361, %v655
        %657 = vmatprep.mubr.f32.mxu0 0.0
        %658 = vmatmul.mubr.f32.gmra.mrb[0].mxu0 %v432
        %v659 = vpop.f32.mrb[0].mxu0
        %v660 = vadd.f32 %v357, %v659
        %v661 = vpop.f32.mrb[0].mxu0
        %v662 = vadd.f32 %v361, %v661
        %663 = vmatprep.mubr.f32.mxu0 0.0
        %664 = vmatmul.mubr.f32.gmra.mrb[0].mxu0 %v435
        %v665 = vpop.f32.mrb[0].mxu0
        %v666 = vadd.f32 %v357, %v665
        %v667 = vpop.f32.mrb[0].mxu0
        %v668 = vadd.f32 %v361, %v667
        %669 = vmatprep.mubr.f32.mxu0 0.0
        %670 = vmatmul.mubr.f32.gmra.mrb[0].mxu0 %v438
        %v671 = vpop.f32.mrb[0].mxu0
        %v672 = vadd.f32 %v357, %v671
        %v673 = vpop.f32.mrb[0].mxu0
        %v674 = vadd.f32 %v361, %v673
        %675 = vmatprep.mubr.f32.mxu0 0.0
        %676 = vmatmul.mubr.f32.gmra.mrb[0].mxu0 %v441
        %v677 = vpop.f32.mrb[0].mxu0
        %v678 = vadd.f32 %v357, %v677
        %v679 = vpop.f32.mrb[0].mxu0
        %v680 = vadd.f32 %v361, %v679
        %681 = vmatprep.mubr.f32.mxu0 0.0
        %682 = vmatmul.mubr.f32.gmra.mrb[0].mxu0 %v444
        %v683 = vpop.f32.mrb[0].mxu0
        %v684 = vadd.f32 %v357, %v683
        %v685 = vpop.f32.mrb[0].mxu0
        %v686 = vadd.f32 %v361, %v685
        %687 = vmatprep.mubr.f32.mxu0 0.0
        %688 = vmatmul.mubr.f32.gmra.mrb[0].mxu0 %v447
        %v689 = vpop.f32.mrb[0].mxu0
        %v690 = vadd.f32 %v357, %v689
        %v691 = vpop.f32.mrb[0].mxu0
        %v692 = vadd.f32 %v361, %v691
        %693 = vmatprep.mubr.f32.mxu0 0.0
        %694 = vmatmul.mubr.f32.gmra.mrb[0].mxu0 %v450
        %v695 = vpop.f32.mrb[0].mxu0
        %v696 = vadd.f32 %v357, %v695
        %v697 = vpop.f32.mrb[0].mxu0
        %v698 = vadd.f32 %v361, %v697
        %699 = vmatprep.mubr.f32.mxu0 0.0
        %700 = vmatmul.mubr.f32.gmra.mrb[0].mxu0 %v453
        %v701 = vpop.f32.mrb[0].mxu0
        %v702 = vadd.f32 %v357, %v701
        %v703 = vpop.f32.mrb[0].mxu0
        %v704 = vadd.f32 %v361, %v703
        %705 = vmatprep.mubr.f32.mxu0 0.0
        %706 = vmatmul.mubr.f32.gmra.mrb[0].mxu0 %v456
        %v707 = vpop.f32.mrb[0].mxu0
        %v708 = vadd.f32 %v357, %v707
        %v709 = vpop.f32.mrb[0].mxu0
        %v710 = vadd.f32 %v361, %v709
        %711 = vmatprep.mubr.f32.mxu0 0.0
        %712 = vmatmul.mubr.f32.gmra.mrb[0].mxu0 %v459
        %v713 = vpop.f32.mrb[0].mxu0
        %v714 = vadd.f32 %v357, %v713
        %v715 = vpop.f32.mrb[0].mxu0
        %v716 = vadd.f32 %v361, %v715
        %717 = vdwg.mxu0
        %vm782 = vcmask 1040384
        %v783 = vrot.slane %v528, 7
        %v784 = vrot.slane %v530, 7
        %v785 = vrot.slane %v534, 7
        %v786 = vsel %vm782, %v783, %v785
        %v787 = vrot.slane %v536, 7
        %v788 = vsel %vm782, %v784, %v787
        %v789 = vrot.slane %v540, 7
        %v790 = vrot.slane %v542, 7
        %v791 = vrot.slane %v546, 7
        %v792 = vsel %vm782, %v789, %v791
        %v793 = vrot.slane %v548, 7
        %v794 = vsel %vm782, %v790, %v793
        %v795 = vrot.slane %v552, 7
        %v796 = vrot.slane %v554, 7
        %v797 = vrot.slane %v558, 7
        %v798 = vsel %vm782, %v795, %v797
        %v799 = vrot.slane %v560, 7
        %v800 = vsel %vm782, %v796, %v799
        %v801 = vrot.slane %v564, 7
        %v802 = vrot.slane %v566, 7
        %v803 = vrot.slane %v570, 7
        %v804 = vsel %vm782, %v801, %v803
        %v805 = vrot.slane %v572, 7
        %v806 = vsel %vm782, %v802, %v805
        %v807 = vrot.slane %v576, 7
        %v808 = vrot.slane %v578, 7
        %v809 = vrot.slane %v582, 7
        %v810 = vsel %vm782, %v807, %v809
        %v811 = vrot.slane %v584, 7
        %v812 = vsel %vm782, %v808, %v811
        %v813 = vrot.slane %v588, 7
        %v814 = vrot.slane %v590, 7
        %v815 = vrot.slane %v594, 7
        %v816 = vsel %vm782, %v813, %v815
        %v817 = vrot.slane %v596, 7
        %v818 = vsel %vm782, %v814, %v817
        %v819 = vrot.slane %v600, 7
        %v820 = vrot.slane %v602, 7
        %v821 = vrot.slane %v606, 7
        %v822 = vsel %vm782, %v819, %v821
        %v823 = vrot.slane %v608, 7
        %v824 = vsel %vm782, %v820, %v823
        %v825 = vrot.slane %v612, 7
        %v826 = vrot.slane %v614, 7
        %v827 = vrot.slane %v618, 7
        %v828 = vsel %vm782, %v825, %v827
        %v829 = vrot.slane %v620, 7
        %v830 = vsel %vm782, %v826, %v829
        %v831 = vrot.slane %v624, 7
        %v832 = vrot.slane %v626, 7
        %v833 = vrot.slane %v630, 7
        %v834 = vsel %vm782, %v831, %v833
        %v835 = vrot.slane %v632, 7
        %v836 = vsel %vm782, %v832, %v835
        %v837 = vrot.slane %v636, 7
        %v838 = vrot.slane %v638, 7
        %v839 = vrot.slane %v642, 7
        %v840 = vsel %vm782, %v837, %v839
        %v841 = vrot.slane %v644, 7
        %v842 = vsel %vm782, %v838, %v841
        %v843 = vrot.slane %v648, 7
        %v844 = vrot.slane %v650, 7
        %v845 = vrot.slane %v654, 7
        %v846 = vsel %vm782, %v843, %v845
        %v847 = vrot.slane %v656, 7
        %v848 = vsel %vm782, %v844, %v847
        %v849 = vrot.slane %v660, 7
        %v850 = vrot.slane %v662, 7
        %v851 = vrot.slane %v666, 7
        %v852 = vsel %vm782, %v849, %v851
        %v853 = vrot.slane %v668, 7
        %v854 = vsel %vm782, %v850, %v853
        %v855 = vrot.slane %v672, 7
        %v856 = vrot.slane %v674, 7
        %v857 = vrot.slane %v678, 7
        %v858 = vsel %vm782, %v855, %v857
        %v859 = vrot.slane %v680, 7
        %v860 = vsel %vm782, %v856, %v859
        %v861 = vrot.slane %v684, 7
        %v862 = vrot.slane %v686, 7
        %v863 = vrot.slane %v690, 7
        %v864 = vsel %vm782, %v861, %v863
        %v865 = vrot.slane %v692, 7
        %v866 = vsel %vm782, %v862, %v865
        %v867 = vrot.slane %v696, 7
        %v868 = vrot.slane %v698, 7
        %v869 = vrot.slane %v702, 7
        %v870 = vsel %vm782, %v867, %v869
        %v871 = vrot.slane %v704, 7
        %v872 = vsel %vm782, %v868, %v871
        %v873 = vrot.slane %v708, 7
        %v874 = vrot.slane %v710, 7
        %v875 = vrot.slane %v714, 7
        %v876 = vsel %vm782, %v873, %v875
        %v877 = vrot.slane %v716, 7
        %v878 = vsel %vm782, %v874, %v877
        %v943 = vsel %vm782, 0.0, %v783
        %v944 = vsel %vm782, 0.0, %v784
        %v945 = vsel %vm782, 0.0, %v789
        %v946 = vsel %vm782, 0.0, %v790
        %v947 = vsel %vm782, 0.0, %v795
        %v948 = vsel %vm782, 0.0, %v796
        %v949 = vsel %vm782, 0.0, %v801
        %v950 = vsel %vm782, 0.0, %v802
        %v951 = vsel %vm782, 0.0, %v807
        %v952 = vsel %vm782, 0.0, %v808
        %v953 = vsel %vm782, 0.0, %v813
        %v954 = vsel %vm782, 0.0, %v814
        %v955 = vsel %vm782, 0.0, %v819
        %v956 = vsel %vm782, 0.0, %v820
        %v957 = vsel %vm782, 0.0, %v825
        %v958 = vsel %vm782, 0.0, %v826
        %v959 = vsel %vm782, 0.0, %v831
        %v960 = vsel %vm782, 0.0, %v832
        %v961 = vsel %vm782, 0.0, %v837
        %v962 = vsel %vm782, 0.0, %v838
        %v963 = vsel %vm782, 0.0, %v843
        %v964 = vsel %vm782, 0.0, %v844
        %v965 = vsel %vm782, 0.0, %v849
        %v966 = vsel %vm782, 0.0, %v850
        %v967 = vsel %vm782, 0.0, %v855
        %v968 = vsel %vm782, 0.0, %v856
        %v969 = vsel %vm782, 0.0, %v861
        %v970 = vsel %vm782, 0.0, %v862
        %v971 = vsel %vm782, 0.0, %v867
        %v972 = vsel %vm782, 0.0, %v868
        %v973 = vsel %vm782, 0.0, %v873
        %v974 = vsel %vm782, 0.0, %v874
        %vm975 = vcmask 1046528
        %v976 = vrot.slane %v528, 1
        %v977 = vrot.slane %v534, 1
        %v978 = vsel %vm975, %v976, %v977
        %v979 = vrot.slane %v530, 1
        %v980 = vrot.slane %v536, 1
        %v981 = vsel %vm975, %v979, %v980
        %v982 = vrot.slane %v540, 1
        %v983 = vrot.slane %v546, 1
        %v984 = vsel %vm975, %v982, %v983
        %v985 = vrot.slane %v542, 1
        %v986 = vrot.slane %v548, 1
        %v987 = vsel %vm975, %v985, %v986
        %v988 = vrot.slane %v552, 1
        %v989 = vrot.slane %v558, 1
        %v990 = vsel %vm975, %v988, %v989
        %v991 = vrot.slane %v554, 1
        %v992 = vrot.slane %v560, 1
        %v993 = vsel %vm975, %v991, %v992
        %v994 = vrot.slane %v564, 1
        %v995 = vrot.slane %v570, 1
        %v996 = vsel %vm975, %v994, %v995
        %v997 = vrot.slane %v566, 1
        %v998 = vrot.slane %v572, 1
        %v999 = vsel %vm975, %v997, %v998
        %v1000 = vrot.slane %v576, 1
        %v1001 = vrot.slane %v582, 1
        %v1002 = vsel %vm975, %v1000, %v1001
        %v1003 = vrot.slane %v578, 1
        %v1004 = vrot.slane %v584, 1
        %v1005 = vsel %vm975, %v1003, %v1004
        %v1006 = vrot.slane %v588, 1
        %v1007 = vrot.slane %v594, 1
        %v1008 = vsel %vm975, %v1006, %v1007
        %v1009 = vrot.slane %v590, 1
        %v1010 = vrot.slane %v596, 1
        %v1011 = vsel %vm975, %v1009, %v1010
        %v1012 = vrot.slane %v600, 1
        %v1013 = vrot.slane %v606, 1
        %v1014 = vsel %vm975, %v1012, %v1013
        %v1015 = vrot.slane %v602, 1
        %v1016 = vrot.slane %v608, 1
        %v1017 = vsel %vm975, %v1015, %v1016
        %v1018 = vrot.slane %v612, 1
        %v1019 = vrot.slane %v618, 1
        %v1020 = vsel %vm975, %v1018, %v1019
        %v1021 = vrot.slane %v614, 1
        %v1022 = vrot.slane %v620, 1
        %v1023 = vsel %vm975, %v1021, %v1022
        %v1024 = vrot.slane %v624, 1
        %v1025 = vrot.slane %v630, 1
        %v1026 = vsel %vm975, %v1024, %v1025
        %v1027 = vrot.slane %v626, 1
        %v1028 = vrot.slane %v632, 1
        %v1029 = vsel %vm975, %v1027, %v1028
        %v1030 = vrot.slane %v636, 1
        %v1031 = vrot.slane %v642, 1
        %v1032 = vsel %vm975, %v1030, %v1031
        %v1033 = vrot.slane %v638, 1
        %v1034 = vrot.slane %v644, 1
        %v1035 = vsel %vm975, %v1033, %v1034
        %v1036 = vrot.slane %v648, 1
        %v1037 = vrot.slane %v654, 1
        %v1038 = vsel %vm975, %v1036, %v1037
        %v1039 = vrot.slane %v650, 1
        %v1040 = vrot.slane %v656, 1
        %v1041 = vsel %vm975, %v1039, %v1040
        %v1042 = vrot.slane %v660, 1
        %v1043 = vrot.slane %v666, 1
        %v1044 = vsel %vm975, %v1042, %v1043
        %v1045 = vrot.slane %v662, 1
        %v1046 = vrot.slane %v668, 1
        %v1047 = vsel %vm975, %v1045, %v1046
        %v1048 = vrot.slane %v672, 1
        %v1049 = vrot.slane %v678, 1
        %v1050 = vsel %vm975, %v1048, %v1049
        %v1051 = vrot.slane %v674, 1
        %v1052 = vrot.slane %v680, 1
        %v1053 = vsel %vm975, %v1051, %v1052
        %v1054 = vrot.slane %v684, 1
        %v1055 = vrot.slane %v690, 1
        %v1056 = vsel %vm975, %v1054, %v1055
        %v1057 = vrot.slane %v686, 1
        %v1058 = vrot.slane %v692, 1
        %v1059 = vsel %vm975, %v1057, %v1058
        %v1060 = vrot.slane %v696, 1
        %v1061 = vrot.slane %v702, 1
        %v1062 = vsel %vm975, %v1060, %v1061
        %v1063 = vrot.slane %v698, 1
        %v1064 = vrot.slane %v704, 1
        %v1065 = vsel %vm975, %v1063, %v1064
        %v1066 = vrot.slane %v708, 1
        %v1067 = vrot.slane %v714, 1
        %v1068 = vsel %vm975, %v1066, %v1067
        %v1069 = vrot.slane %v710, 1
        %v1070 = vrot.slane %v716, 1
        %v1071 = vsel %vm975, %v1069, %v1070
        %v1136 = vsel %vm975, %v977, 0.0
        %v1137 = vsel %vm975, %v980, 0.0
        %v1138 = vsel %vm975, %v983, 0.0
        %v1139 = vsel %vm975, %v986, 0.0
        %v1140 = vsel %vm975, %v989, 0.0
        %v1141 = vsel %vm975, %v992, 0.0
        %v1142 = vsel %vm975, %v995, 0.0
        %v1143 = vsel %vm975, %v998, 0.0
        %v1144 = vsel %vm975, %v1001, 0.0
        %v1145 = vsel %vm975, %v1004, 0.0
        %v1146 = vsel %vm975, %v1007, 0.0
        %v1147 = vsel %vm975, %v1010, 0.0
        %v1148 = vsel %vm975, %v1013, 0.0
        %v1149 = vsel %vm975, %v1016, 0.0
        %v1150 = vsel %vm975, %v1019, 0.0
        %v1151 = vsel %vm975, %v1022, 0.0
        %v1152 = vsel %vm975, %v1025, 0.0
        %v1153 = vsel %vm975, %v1028, 0.0
        %v1154 = vsel %vm975, %v1031, 0.0
        %v1155 = vsel %vm975, %v1034, 0.0
        %v1156 = vsel %vm975, %v1037, 0.0
        %v1157 = vsel %vm975, %v1040, 0.0
        %v1158 = vsel %vm975, %v1043, 0.0
        %v1159 = vsel %vm975, %v1046, 0.0
        %v1160 = vsel %vm975, %v1049, 0.0
        %v1161 = vsel %vm975, %v1052, 0.0
        %v1162 = vsel %vm975, %v1055, 0.0
        %v1163 = vsel %vm975, %v1058, 0.0
        %v1164 = vsel %vm975, %v1061, 0.0
        %v1165 = vsel %vm975, %v1064, 0.0
        %v1166 = vsel %vm975, %v1067, 0.0
        %v1167 = vsel %vm975, %v1070, 0.0
        %v1168 = vld [vmem:[%s3] ss:$8 sm:$0x3]
        %v1170 = vlaneseq
        %v1171 = vshrl.u32 %v1170, 7
        %v1172 = vsub.s32 0, %v1171
        %v1173 = vrot.slane %v1168, %v1172
        %v1174 = vlaneseq
        %v1175 = vshrl.u32 %v1174, 7
        %v1176 = vsub.s32 1, %v1175
        %v1177 = vrot.slane %v1168, %v1176
        %v1180 = vmul.f32 %v943, %v1173
        %v1181 = vmul.f32 %v944, %v1177
        %v1182 = vmul.f32 %v786, %v1173
        %v1183 = vmul.f32 %v788, %v1177
        %v1184 = vmul.f32 %v945, %v1173
        %v1185 = vmul.f32 %v946, %v1177
        %v1186 = vmul.f32 %v792, %v1173
        %v1187 = vmul.f32 %v794, %v1177
        %v1188 = vmul.f32 %v947, %v1173
        %v1189 = vmul.f32 %v948, %v1177
        %v1190 = vmul.f32 %v798, %v1173
        %v1191 = vmul.f32 %v800, %v1177
        %v1192 = vmul.f32 %v949, %v1173
        %v1193 = vmul.f32 %v950, %v1177
        %v1194 = vmul.f32 %v804, %v1173
        %v1195 = vmul.f32 %v806, %v1177
        %v1196 = vmul.f32 %v951, %v1173
        %v1197 = vmul.f32 %v952, %v1177
        %v1198 = vmul.f32 %v810, %v1173
        %v1199 = vmul.f32 %v812, %v1177
        %v1200 = vmul.f32 %v953, %v1173
        %v1201 = vmul.f32 %v954, %v1177
        %v1202 = vmul.f32 %v816, %v1173
        %v1203 = vmul.f32 %v818, %v1177
        %v1204 = vmul.f32 %v955, %v1173
        %v1205 = vmul.f32 %v956, %v1177
        %v1206 = vmul.f32 %v822, %v1173
        %v1207 = vmul.f32 %v824, %v1177
        %v1208 = vmul.f32 %v957, %v1173
        %v1209 = vmul.f32 %v958, %v1177
        %v1210 = vmul.f32 %v828, %v1173
        %v1211 = vmul.f32 %v830, %v1177
        %v1212 = vmul.f32 %v959, %v1173
        %v1213 = vmul.f32 %v960, %v1177
        %v1214 = vmul.f32 %v834, %v1173
        %v1215 = vmul.f32 %v836, %v1177
        %v1216 = vmul.f32 %v961, %v1173
        %v1217 = vmul.f32 %v962, %v1177
        %v1218 = vmul.f32 %v840, %v1173
        %v1219 = vmul.f32 %v842, %v1177
        %v1220 = vmul.f32 %v963, %v1173
        %v1221 = vmul.f32 %v964, %v1177
        %v1222 = vmul.f32 %v846, %v1173
        %v1223 = vmul.f32 %v848, %v1177
        %v1224 = vmul.f32 %v965, %v1173
        %v1225 = vmul.f32 %v966, %v1177
        %v1226 = vmul.f32 %v852, %v1173
        %v1227 = vmul.f32 %v854, %v1177
        %v1228 = vmul.f32 %v967, %v1173
        %v1229 = vmul.f32 %v968, %v1177
        %v1230 = vmul.f32 %v858, %v1173
        %v1231 = vmul.f32 %v860, %v1177
        %v1232 = vmul.f32 %v969, %v1173
        %v1233 = vmul.f32 %v970, %v1177
        %v1234 = vmul.f32 %v864, %v1173
        %v1235 = vmul.f32 %v866, %v1177
        %v1236 = vmul.f32 %v971, %v1173
        %v1237 = vmul.f32 %v972, %v1177
        %v1238 = vmul.f32 %v870, %v1173
        %v1239 = vmul.f32 %v872, %v1177
        %s1240 = scalar_lea.vmem %s3, 1
        %v1241 = vld [vmem:[%s1240] ss:$8 sm:$0x3]
        %v1243 = vlaneseq
        %v1244 = vshrl.u32 %v1243, 7
        %v1245 = vsub.s32 0, %v1244
        %v1246 = vrot.slane %v1241, %v1245
        %v1247 = vlaneseq
        %v1248 = vshrl.u32 %v1247, 7
        %v1249 = vsub.s32 1, %v1248
        %v1250 = vrot.slane %v1241, %v1249
        %v1253 = vmul.f32 %v528, %v1246
        %v1254 = vmul.f32 %v530, %v1250
        %v1255 = vmul.f32 %v534, %v1246
        %v1256 = vmul.f32 %v536, %v1250
        %v1257 = vmul.f32 %v540, %v1246
        %v1258 = vmul.f32 %v542, %v1250
        %v1259 = vmul.f32 %v546, %v1246
        %v1260 = vmul.f32 %v548, %v1250
        %v1261 = vmul.f32 %v552, %v1246
        %v1262 = vmul.f32 %v554, %v1250
        %v1263 = vmul.f32 %v558, %v1246
        %v1264 = vmul.f32 %v560, %v1250
        %v1265 = vmul.f32 %v564, %v1246
        %v1266 = vmul.f32 %v566, %v1250
        %v1267 = vmul.f32 %v570, %v1246
        %v1268 = vmul.f32 %v572, %v1250
        %v1269 = vmul.f32 %v576, %v1246
        %v1270 = vmul.f32 %v578, %v1250
        %v1271 = vmul.f32 %v582, %v1246
        %v1272 = vmul.f32 %v584, %v1250
        %v1273 = vmul.f32 %v588, %v1246
        %v1274 = vmul.f32 %v590, %v1250
        %v1275 = vmul.f32 %v594, %v1246
        %v1276 = vmul.f32 %v596, %v1250
        %v1277 = vmul.f32 %v600, %v1246
        %v1278 = vmul.f32 %v602, %v1250
        %v1279 = vmul.f32 %v606, %v1246
        %v1280 = vmul.f32 %v608, %v1250
        %v1281 = vmul.f32 %v612, %v1246
        %v1282 = vmul.f32 %v614, %v1250
        %v1283 = vmul.f32 %v618, %v1246
        %v1284 = vmul.f32 %v620, %v1250
        %v1285 = vmul.f32 %v624, %v1246
        %v1286 = vmul.f32 %v626, %v1250
        %v1287 = vmul.f32 %v630, %v1246
        %v1288 = vmul.f32 %v632, %v1250
        %v1289 = vmul.f32 %v636, %v1246
        %v1290 = vmul.f32 %v638, %v1250
        %v1291 = vmul.f32 %v642, %v1246
        %v1292 = vmul.f32 %v644, %v1250
        %v1293 = vmul.f32 %v648, %v1246
        %v1294 = vmul.f32 %v650, %v1250
        %v1295 = vmul.f32 %v654, %v1246
        %v1296 = vmul.f32 %v656, %v1250
        %v1297 = vmul.f32 %v660, %v1246
        %v1298 = vmul.f32 %v662, %v1250
        %v1299 = vmul.f32 %v666, %v1246
        %v1300 = vmul.f32 %v668, %v1250
        %v1301 = vmul.f32 %v672, %v1246
        %v1302 = vmul.f32 %v674, %v1250
        %v1303 = vmul.f32 %v678, %v1246
        %v1304 = vmul.f32 %v680, %v1250
        %v1305 = vmul.f32 %v684, %v1246
        %v1306 = vmul.f32 %v686, %v1250
        %v1307 = vmul.f32 %v690, %v1246
        %v1308 = vmul.f32 %v692, %v1250
        %v1309 = vmul.f32 %v696, %v1246
        %v1310 = vmul.f32 %v698, %v1250
        %v1311 = vmul.f32 %v702, %v1246
        %v1312 = vmul.f32 %v704, %v1250
        %v1313 = vadd.f32 %v1180, %v1253
        %v1314 = vadd.f32 %v1181, %v1254
        %v1315 = vadd.f32 %v1182, %v1255
        %v1316 = vadd.f32 %v1183, %v1256
        %v1317 = vadd.f32 %v1184, %v1257
        %v1318 = vadd.f32 %v1185, %v1258
        %v1319 = vadd.f32 %v1186, %v1259
        %v1320 = vadd.f32 %v1187, %v1260
        %v1321 = vadd.f32 %v1188, %v1261
        %v1322 = vadd.f32 %v1189, %v1262
        %v1323 = vadd.f32 %v1190, %v1263
        %v1324 = vadd.f32 %v1191, %v1264
        %v1325 = vadd.f32 %v1192, %v1265
        %v1326 = vadd.f32 %v1193, %v1266
        %v1327 = vadd.f32 %v1194, %v1267
        %v1328 = vadd.f32 %v1195, %v1268
        %v1329 = vadd.f32 %v1196, %v1269
        %v1330 = vadd.f32 %v1197, %v1270
        %v1331 = vadd.f32 %v1198, %v1271
        %v1332 = vadd.f32 %v1199, %v1272
        %v1333 = vadd.f32 %v1200, %v1273
        %v1334 = vadd.f32 %v1201, %v1274
        %v1335 = vadd.f32 %v1202, %v1275
        %v1336 = vadd.f32 %v1203, %v1276
        %v1337 = vadd.f32 %v1204, %v1277
        %v1338 = vadd.f32 %v1205, %v1278
        %v1339 = vadd.f32 %v1206, %v1279
        %v1340 = vadd.f32 %v1207, %v1280
        %v1341 = vadd.f32 %v1208, %v1281
        %v1342 = vadd.f32 %v1209, %v1282
        %v1343 = vadd.f32 %v1210, %v1283
        %v1344 = vadd.f32 %v1211, %v1284
        %v1345 = vadd.f32 %v1212, %v1285
        %v1346 = vadd.f32 %v1213, %v1286
        %v1347 = vadd.f32 %v1214, %v1287
        %v1348 = vadd.f32 %v1215, %v1288
        %v1349 = vadd.f32 %v1216, %v1289
        %v1350 = vadd.f32 %v1217, %v1290
        %v1351 = vadd.f32 %v1218, %v1291
        %v1352 = vadd.f32 %v1219, %v1292
        %v1353 = vadd.f32 %v1220, %v1293
        %v1354 = vadd.f32 %v1221, %v1294
        %v1355 = vadd.f32 %v1222, %v1295
        %v1356 = vadd.f32 %v1223, %v1296
        %v1357 = vadd.f32 %v1224, %v1297
        %v1358 = vadd.f32 %v1225, %v1298
        %v1359 = vadd.f32 %v1226, %v1299
        %v1360 = vadd.f32 %v1227, %v1300
        %v1361 = vadd.f32 %v1228, %v1301
        %v1362 = vadd.f32 %v1229, %v1302
        %v1363 = vadd.f32 %v1230, %v1303
        %v1364 = vadd.f32 %v1231, %v1304
        %v1365 = vadd.f32 %v1232, %v1305
        %v1366 = vadd.f32 %v1233, %v1306
        %v1367 = vadd.f32 %v1234, %v1307
        %v1368 = vadd.f32 %v1235, %v1308
        %v1369 = vadd.f32 %v1236, %v1309
        %v1370 = vadd.f32 %v1237, %v1310
        %v1371 = vadd.f32 %v1238, %v1311
        %v1372 = vadd.f32 %v1239, %v1312
        %s1373 = scalar_lea.vmem %s3, 2
        %v1374 = vld [vmem:[%s1373] ss:$8 sm:$0x3]
        %v1376 = vlaneseq
        %v1377 = vshrl.u32 %v1376, 7
        %v1378 = vsub.s32 0, %v1377
        %v1379 = vrot.slane %v1374, %v1378
        %v1380 = vlaneseq
        %v1381 = vshrl.u32 %v1380, 7
        %v1382 = vsub.s32 1, %v1381
        %v1383 = vrot.slane %v1374, %v1382
        %v1386 = vmul.f32 %v978, %v1379
        %v1387 = vmul.f32 %v981, %v1383
        %v1388 = vmul.f32 %v1136, %v1379
        %v1389 = vmul.f32 %v1137, %v1383
        %v1390 = vmul.f32 %v984, %v1379
        %v1391 = vmul.f32 %v987, %v1383
        %v1392 = vmul.f32 %v1138, %v1379
        %v1393 = vmul.f32 %v1139, %v1383
        %v1394 = vmul.f32 %v990, %v1379
        %v1395 = vmul.f32 %v993, %v1383
        %v1396 = vmul.f32 %v1140, %v1379
        %v1397 = vmul.f32 %v1141, %v1383
        %v1398 = vmul.f32 %v996, %v1379
        %v1399 = vmul.f32 %v999, %v1383
        %v1400 = vmul.f32 %v1142, %v1379
        %v1401 = vmul.f32 %v1143, %v1383
        %v1402 = vmul.f32 %v1002, %v1379
        %v1403 = vmul.f32 %v1005, %v1383
        %v1404 = vmul.f32 %v1144, %v1379
        %v1405 = vmul.f32 %v1145, %v1383
        %v1406 = vmul.f32 %v1008, %v1379
        %v1407 = vmul.f32 %v1011, %v1383
        %v1408 = vmul.f32 %v1146, %v1379
        %v1409 = vmul.f32 %v1147, %v1383
        %v1410 = vmul.f32 %v1014, %v1379
        %v1411 = vmul.f32 %v1017, %v1383
        %v1412 = vmul.f32 %v1148, %v1379
        %v1413 = vmul.f32 %v1149, %v1383
        %v1414 = vmul.f32 %v1020, %v1379
        %v1415 = vmul.f32 %v1023, %v1383
        %v1416 = vmul.f32 %v1150, %v1379
        %v1417 = vmul.f32 %v1151, %v1383
        %v1418 = vmul.f32 %v1026, %v1379
        %v1419 = vmul.f32 %v1029, %v1383
        %v1420 = vmul.f32 %v1152, %v1379
        %v1421 = vmul.f32 %v1153, %v1383
        %v1422 = vmul.f32 %v1032, %v1379
        %v1423 = vmul.f32 %v1035, %v1383
        %v1424 = vmul.f32 %v1154, %v1379
        %v1425 = vmul.f32 %v1155, %v1383
        %v1426 = vmul.f32 %v1038, %v1379
        %v1427 = vmul.f32 %v1041, %v1383
        %v1428 = vmul.f32 %v1156, %v1379
        %v1429 = vmul.f32 %v1157, %v1383
        %v1430 = vmul.f32 %v1044, %v1379
        %v1431 = vmul.f32 %v1047, %v1383
        %v1432 = vmul.f32 %v1158, %v1379
        %v1433 = vmul.f32 %v1159, %v1383
        %v1434 = vmul.f32 %v1050, %v1379
        %v1435 = vmul.f32 %v1053, %v1383
        %v1436 = vmul.f32 %v1160, %v1379
        %v1437 = vmul.f32 %v1161, %v1383
        %v1438 = vmul.f32 %v1056, %v1379
        %v1439 = vmul.f32 %v1059, %v1383
        %v1440 = vmul.f32 %v1162, %v1379
        %v1441 = vmul.f32 %v1163, %v1383
        %v1442 = vmul.f32 %v1062, %v1379
        %v1443 = vmul.f32 %v1065, %v1383
        %v1444 = vmul.f32 %v1164, %v1379
        %v1445 = vmul.f32 %v1165, %v1383
        %v1446 = vadd.f32 %v1313, %v1386
        %v1447 = vadd.f32 %v1314, %v1387
        %v1448 = vadd.f32 %v1315, %v1388
        %v1449 = vadd.f32 %v1316, %v1389
        %v1450 = vadd.f32 %v1317, %v1390
        %v1451 = vadd.f32 %v1318, %v1391
        %v1452 = vadd.f32 %v1319, %v1392
        %v1453 = vadd.f32 %v1320, %v1393
        %v1454 = vadd.f32 %v1321, %v1394
        %v1455 = vadd.f32 %v1322, %v1395
        %v1456 = vadd.f32 %v1323, %v1396
        %v1457 = vadd.f32 %v1324, %v1397
        %v1458 = vadd.f32 %v1325, %v1398
        %v1459 = vadd.f32 %v1326, %v1399
        %v1460 = vadd.f32 %v1327, %v1400
        %v1461 = vadd.f32 %v1328, %v1401
        %v1462 = vadd.f32 %v1329, %v1402
        %v1463 = vadd.f32 %v1330, %v1403
        %v1464 = vadd.f32 %v1331, %v1404
        %v1465 = vadd.f32 %v1332, %v1405
        %v1466 = vadd.f32 %v1333, %v1406
        %v1467 = vadd.f32 %v1334, %v1407
        %v1468 = vadd.f32 %v1335, %v1408
        %v1469 = vadd.f32 %v1336, %v1409
        %v1470 = vadd.f32 %v1337, %v1410
        %v1471 = vadd.f32 %v1338, %v1411
        %v1472 = vadd.f32 %v1339, %v1412
        %v1473 = vadd.f32 %v1340, %v1413
        %v1474 = vadd.f32 %v1341, %v1414
        %v1475 = vadd.f32 %v1342, %v1415
        %v1476 = vadd.f32 %v1343, %v1416
        %v1477 = vadd.f32 %v1344, %v1417
        %v1478 = vadd.f32 %v1345, %v1418
        %v1479 = vadd.f32 %v1346, %v1419
        %v1480 = vadd.f32 %v1347, %v1420
        %v1481 = vadd.f32 %v1348, %v1421
        %v1482 = vadd.f32 %v1349, %v1422
        %v1483 = vadd.f32 %v1350, %v1423
        %v1484 = vadd.f32 %v1351, %v1424
        %v1485 = vadd.f32 %v1352, %v1425
        %v1486 = vadd.f32 %v1353, %v1426
        %v1487 = vadd.f32 %v1354, %v1427
        %v1488 = vadd.f32 %v1355, %v1428
        %v1489 = vadd.f32 %v1356, %v1429
        %v1490 = vadd.f32 %v1357, %v1430
        %v1491 = vadd.f32 %v1358, %v1431
        %v1492 = vadd.f32 %v1359, %v1432
        %v1493 = vadd.f32 %v1360, %v1433
        %v1494 = vadd.f32 %v1361, %v1434
        %v1495 = vadd.f32 %v1362, %v1435
        %v1496 = vadd.f32 %v1363, %v1436
        %v1497 = vadd.f32 %v1364, %v1437
        %v1498 = vadd.f32 %v1365, %v1438
        %v1499 = vadd.f32 %v1366, %v1439
        %v1500 = vadd.f32 %v1367, %v1440
        %v1501 = vadd.f32 %v1368, %v1441
        %v1502 = vadd.f32 %v1369, %v1442
        %v1503 = vadd.f32 %v1370, %v1443
        %v1504 = vadd.f32 %v1371, %v1444
        %v1505 = vadd.f32 %v1372, %v1445
        %s1506 = scalar_lea.vmem %s3, 3
        %v1507 = vld [vmem:[%s1506] ss:$8 sm:$0x3]
        %v1509 = vlaneseq
        %v1510 = vshrl.u32 %v1509, 7
        %v1511 = vsub.s32 0, %v1510
        %v1512 = vrot.slane %v1507, %v1511
        %v1513 = vlaneseq
        %v1514 = vshrl.u32 %v1513, 7
        %v1515 = vsub.s32 1, %v1514
        %v1516 = vrot.slane %v1507, %v1515
        %v1519 = vmul.f32 %v943, %v1512
        %v1520 = vmul.f32 %v944, %v1516
        %v1521 = vmul.f32 %v786, %v1512
        %v1522 = vmul.f32 %v788, %v1516
        %v1523 = vmul.f32 %v945, %v1512
        %v1524 = vmul.f32 %v946, %v1516
        %v1525 = vmul.f32 %v792, %v1512
        %v1526 = vmul.f32 %v794, %v1516
        %v1527 = vmul.f32 %v947, %v1512
        %v1528 = vmul.f32 %v948, %v1516
        %v1529 = vmul.f32 %v798, %v1512
        %v1530 = vmul.f32 %v800, %v1516
        %v1531 = vmul.f32 %v949, %v1512
        %v1532 = vmul.f32 %v950, %v1516
        %v1533 = vmul.f32 %v804, %v1512
        %v1534 = vmul.f32 %v806, %v1516
        %v1535 = vmul.f32 %v951, %v1512
        %v1536 = vmul.f32 %v952, %v1516
        %v1537 = vmul.f32 %v810, %v1512
        %v1538 = vmul.f32 %v812, %v1516
        %v1539 = vmul.f32 %v953, %v1512
        %v1540 = vmul.f32 %v954, %v1516
        %v1541 = vmul.f32 %v816, %v1512
        %v1542 = vmul.f32 %v818, %v1516
        %v1543 = vmul.f32 %v955, %v1512
        %v1544 = vmul.f32 %v956, %v1516
        %v1545 = vmul.f32 %v822, %v1512
        %v1546 = vmul.f32 %v824, %v1516
        %v1547 = vmul.f32 %v957, %v1512
        %v1548 = vmul.f32 %v958, %v1516
        %v1549 = vmul.f32 %v828, %v1512
        %v1550 = vmul.f32 %v830, %v1516
        %v1551 = vmul.f32 %v959, %v1512
        %v1552 = vmul.f32 %v960, %v1516
        %v1553 = vmul.f32 %v834, %v1512
        %v1554 = vmul.f32 %v836, %v1516
        %v1555 = vmul.f32 %v961, %v1512
        %v1556 = vmul.f32 %v962, %v1516
        %v1557 = vmul.f32 %v840, %v1512
        %v1558 = vmul.f32 %v842, %v1516
        %v1559 = vmul.f32 %v963, %v1512
        %v1560 = vmul.f32 %v964, %v1516
        %v1561 = vmul.f32 %v846, %v1512
        %v1562 = vmul.f32 %v848, %v1516
        %v1563 = vmul.f32 %v965, %v1512
        %v1564 = vmul.f32 %v966, %v1516
        %v1565 = vmul.f32 %v852, %v1512
        %v1566 = vmul.f32 %v854, %v1516
        %v1567 = vmul.f32 %v967, %v1512
        %v1568 = vmul.f32 %v968, %v1516
        %v1569 = vmul.f32 %v858, %v1512
        %v1570 = vmul.f32 %v860, %v1516
        %v1571 = vmul.f32 %v969, %v1512
        %v1572 = vmul.f32 %v970, %v1516
        %v1573 = vmul.f32 %v864, %v1512
        %v1574 = vmul.f32 %v866, %v1516
        %v1575 = vmul.f32 %v971, %v1512
        %v1576 = vmul.f32 %v972, %v1516
        %v1577 = vmul.f32 %v870, %v1512
        %v1578 = vmul.f32 %v872, %v1516
        %v1579 = vmul.f32 %v973, %v1512
        %v1580 = vmul.f32 %v974, %v1516
        %v1581 = vmul.f32 %v876, %v1512
        %v1582 = vmul.f32 %v878, %v1516
        %s1583 = scalar_lea.vmem %s3, 4
        %v1584 = vld [vmem:[%s1583] ss:$8 sm:$0x3]
        %v1586 = vlaneseq
        %v1587 = vshrl.u32 %v1586, 7
        %v1588 = vsub.s32 0, %v1587
        %v1589 = vrot.slane %v1584, %v1588
        %v1590 = vlaneseq
        %v1591 = vshrl.u32 %v1590, 7
        %v1592 = vsub.s32 1, %v1591
        %v1593 = vrot.slane %v1584, %v1592
        %v1596 = vmul.f32 %v528, %v1589
        %v1597 = vmul.f32 %v530, %v1593
        %v1598 = vmul.f32 %v534, %v1589
        %v1599 = vmul.f32 %v536, %v1593
        %v1600 = vmul.f32 %v540, %v1589
        %v1601 = vmul.f32 %v542, %v1593
        %v1602 = vmul.f32 %v546, %v1589
        %v1603 = vmul.f32 %v548, %v1593
        %v1604 = vmul.f32 %v552, %v1589
        %v1605 = vmul.f32 %v554, %v1593
        %v1606 = vmul.f32 %v558, %v1589
        %v1607 = vmul.f32 %v560, %v1593
        %v1608 = vmul.f32 %v564, %v1589
        %v1609 = vmul.f32 %v566, %v1593
        %v1610 = vmul.f32 %v570, %v1589
        %v1611 = vmul.f32 %v572, %v1593
        %v1612 = vmul.f32 %v576, %v1589
        %v1613 = vmul.f32 %v578, %v1593
        %v1614 = vmul.f32 %v582, %v1589
        %v1615 = vmul.f32 %v584, %v1593
        %v1616 = vmul.f32 %v588, %v1589
        %v1617 = vmul.f32 %v590, %v1593
        %v1618 = vmul.f32 %v594, %v1589
        %v1619 = vmul.f32 %v596, %v1593
        %v1620 = vmul.f32 %v600, %v1589
        %v1621 = vmul.f32 %v602, %v1593
        %v1622 = vmul.f32 %v606, %v1589
        %v1623 = vmul.f32 %v608, %v1593
        %v1624 = vmul.f32 %v612, %v1589
        %v1625 = vmul.f32 %v614, %v1593
        %v1626 = vmul.f32 %v618, %v1589
        %v1627 = vmul.f32 %v620, %v1593
        %v1628 = vmul.f32 %v624, %v1589
        %v1629 = vmul.f32 %v626, %v1593
        %v1630 = vmul.f32 %v630, %v1589
        %v1631 = vmul.f32 %v632, %v1593
        %v1632 = vmul.f32 %v636, %v1589
        %v1633 = vmul.f32 %v638, %v1593
        %v1634 = vmul.f32 %v642, %v1589
        %v1635 = vmul.f32 %v644, %v1593
        %v1636 = vmul.f32 %v648, %v1589
        %v1637 = vmul.f32 %v650, %v1593
        %v1638 = vmul.f32 %v654, %v1589
        %v1639 = vmul.f32 %v656, %v1593
        %v1640 = vmul.f32 %v660, %v1589
        %v1641 = vmul.f32 %v662, %v1593
        %v1642 = vmul.f32 %v666, %v1589
        %v1643 = vmul.f32 %v668, %v1593
        %v1644 = vmul.f32 %v672, %v1589
        %v1645 = vmul.f32 %v674, %v1593
        %v1646 = vmul.f32 %v678, %v1589
        %v1647 = vmul.f32 %v680, %v1593
        %v1648 = vmul.f32 %v684, %v1589
        %v1649 = vmul.f32 %v686, %v1593
        %v1650 = vmul.f32 %v690, %v1589
        %v1651 = vmul.f32 %v692, %v1593
        %v1652 = vmul.f32 %v696, %v1589
        %v1653 = vmul.f32 %v698, %v1593
        %v1654 = vmul.f32 %v702, %v1589
        %v1655 = vmul.f32 %v704, %v1593
        %v1656 = vmul.f32 %v708, %v1589
        %v1657 = vmul.f32 %v710, %v1593
        %v1658 = vmul.f32 %v714, %v1589
        %v1659 = vmul.f32 %v716, %v1593
        %v1660 = vadd.f32 %v1519, %v1596
        %v1661 = vadd.f32 %v1520, %v1597
        %v1662 = vadd.f32 %v1521, %v1598
        %v1663 = vadd.f32 %v1522, %v1599
        %v1664 = vadd.f32 %v1523, %v1600
        %v1665 = vadd.f32 %v1524, %v1601
        %v1666 = vadd.f32 %v1525, %v1602
        %v1667 = vadd.f32 %v1526, %v1603
        %v1668 = vadd.f32 %v1527, %v1604
        %v1669 = vadd.f32 %v1528, %v1605
        %v1670 = vadd.f32 %v1529, %v1606
        %v1671 = vadd.f32 %v1530, %v1607
        %v1672 = vadd.f32 %v1531, %v1608
        %v1673 = vadd.f32 %v1532, %v1609
        %v1674 = vadd.f32 %v1533, %v1610
        %v1675 = vadd.f32 %v1534, %v1611
        %v1676 = vadd.f32 %v1535, %v1612
        %v1677 = vadd.f32 %v1536, %v1613
        %v1678 = vadd.f32 %v1537, %v1614
        %v1679 = vadd.f32 %v1538, %v1615
        %v1680 = vadd.f32 %v1539, %v1616
        %v1681 = vadd.f32 %v1540, %v1617
        %v1682 = vadd.f32 %v1541, %v1618
        %v1683 = vadd.f32 %v1542, %v1619
        %v1684 = vadd.f32 %v1543, %v1620
        %v1685 = vadd.f32 %v1544, %v1621
        %v1686 = vadd.f32 %v1545, %v1622
        %v1687 = vadd.f32 %v1546, %v1623
        %v1688 = vadd.f32 %v1547, %v1624
        %v1689 = vadd.f32 %v1548, %v1625
        %v1690 = vadd.f32 %v1549, %v1626
        %v1691 = vadd.f32 %v1550, %v1627
        %v1692 = vadd.f32 %v1551, %v1628
        %v1693 = vadd.f32 %v1552, %v1629
        %v1694 = vadd.f32 %v1553, %v1630
        %v1695 = vadd.f32 %v1554, %v1631
        %v1696 = vadd.f32 %v1555, %v1632
        %v1697 = vadd.f32 %v1556, %v1633
        %v1698 = vadd.f32 %v1557, %v1634
        %v1699 = vadd.f32 %v1558, %v1635
        %v1700 = vadd.f32 %v1559, %v1636
        %v1701 = vadd.f32 %v1560, %v1637
        %v1702 = vadd.f32 %v1561, %v1638
        %v1703 = vadd.f32 %v1562, %v1639
        %v1704 = vadd.f32 %v1563, %v1640
        %v1705 = vadd.f32 %v1564, %v1641
        %v1706 = vadd.f32 %v1565, %v1642
        %v1707 = vadd.f32 %v1566, %v1643
        %v1708 = vadd.f32 %v1567, %v1644
        %v1709 = vadd.f32 %v1568, %v1645
        %v1710 = vadd.f32 %v1569, %v1646
        %v1711 = vadd.f32 %v1570, %v1647
        %v1712 = vadd.f32 %v1571, %v1648
        %v1713 = vadd.f32 %v1572, %v1649
        %v1714 = vadd.f32 %v1573, %v1650
        %v1715 = vadd.f32 %v1574, %v1651
        %v1716 = vadd.f32 %v1575, %v1652
        %v1717 = vadd.f32 %v1576, %v1653
        %v1718 = vadd.f32 %v1577, %v1654
        %v1719 = vadd.f32 %v1578, %v1655
        %v1720 = vadd.f32 %v1579, %v1656
        %v1721 = vadd.f32 %v1580, %v1657
        %v1722 = vadd.f32 %v1581, %v1658
        %v1723 = vadd.f32 %v1582, %v1659
        %s1724 = scalar_lea.vmem %s3, 5
        %v1725 = vld [vmem:[%s1724] ss:$8 sm:$0x3]
        %v1727 = vlaneseq
        %v1728 = vshrl.u32 %v1727, 7
        %v1729 = vsub.s32 0, %v1728
        %v1730 = vrot.slane %v1725, %v1729
        %v1731 = vlaneseq
        %v1732 = vshrl.u32 %v1731, 7
        %v1733 = vsub.s32 1, %v1732
        %v1734 = vrot.slane %v1725, %v1733
        %v1737 = vmul.f32 %v978, %v1730
        %v1738 = vmul.f32 %v981, %v1734
        %v1739 = vmul.f32 %v1136, %v1730
        %v1740 = vmul.f32 %v1137, %v1734
        %v1741 = vmul.f32 %v984, %v1730
        %v1742 = vmul.f32 %v987, %v1734
        %v1743 = vmul.f32 %v1138, %v1730
        %v1744 = vmul.f32 %v1139, %v1734
        %v1745 = vmul.f32 %v990, %v1730
        %v1746 = vmul.f32 %v993, %v1734
        %v1747 = vmul.f32 %v1140, %v1730
        %v1748 = vmul.f32 %v1141, %v1734
        %v1749 = vmul.f32 %v996, %v1730
        %v1750 = vmul.f32 %v999, %v1734
        %v1751 = vmul.f32 %v1142, %v1730
        %v1752 = vmul.f32 %v1143, %v1734
        %v1753 = vmul.f32 %v1002, %v1730
        %v1754 = vmul.f32 %v1005, %v1734
        %v1755 = vmul.f32 %v1144, %v1730
        %v1756 = vmul.f32 %v1145, %v1734
        %v1757 = vmul.f32 %v1008, %v1730
        %v1758 = vmul.f32 %v1011, %v1734
        %v1759 = vmul.f32 %v1146, %v1730
        %v1760 = vmul.f32 %v1147, %v1734
        %v1761 = vmul.f32 %v1014, %v1730
        %v1762 = vmul.f32 %v1017, %v1734
        %v1763 = vmul.f32 %v1148, %v1730
        %v1764 = vmul.f32 %v1149, %v1734
        %v1765 = vmul.f32 %v1020, %v1730
        %v1766 = vmul.f32 %v1023, %v1734
        %v1767 = vmul.f32 %v1150, %v1730
        %v1768 = vmul.f32 %v1151, %v1734
        %v1769 = vmul.f32 %v1026, %v1730
        %v1770 = vmul.f32 %v1029, %v1734
        %v1771 = vmul.f32 %v1152, %v1730
        %v1772 = vmul.f32 %v1153, %v1734
        %v1773 = vmul.f32 %v1032, %v1730
        %v1774 = vmul.f32 %v1035, %v1734
        %v1775 = vmul.f32 %v1154, %v1730
        %v1776 = vmul.f32 %v1155, %v1734
        %v1777 = vmul.f32 %v1038, %v1730
        %v1778 = vmul.f32 %v1041, %v1734
        %v1779 = vmul.f32 %v1156, %v1730
        %v1780 = vmul.f32 %v1157, %v1734
        %v1781 = vmul.f32 %v1044, %v1730
        %v1782 = vmul.f32 %v1047, %v1734
        %v1783 = vmul.f32 %v1158, %v1730
        %v1784 = vmul.f32 %v1159, %v1734
        %v1785 = vmul.f32 %v1050, %v1730
        %v1786 = vmul.f32 %v1053, %v1734
        %v1787 = vmul.f32 %v1160, %v1730
        %v1788 = vmul.f32 %v1161, %v1734
        %v1789 = vmul.f32 %v1056, %v1730
        %v1790 = vmul.f32 %v1059, %v1734
        %v1791 = vmul.f32 %v1162, %v1730
        %v1792 = vmul.f32 %v1163, %v1734
        %v1793 = vmul.f32 %v1062, %v1730
        %v1794 = vmul.f32 %v1065, %v1734
        %v1795 = vmul.f32 %v1164, %v1730
        %v1796 = vmul.f32 %v1165, %v1734
        %v1797 = vmul.f32 %v1068, %v1730
        %v1798 = vmul.f32 %v1071, %v1734
        %v1799 = vmul.f32 %v1166, %v1730
        %v1800 = vmul.f32 %v1167, %v1734
        %v1801 = vadd.f32 %v1660, %v1737
        %v1802 = vadd.f32 %v1661, %v1738
        %v1803 = vadd.f32 %v1662, %v1739
        %v1804 = vadd.f32 %v1663, %v1740
        %v1805 = vadd.f32 %v1664, %v1741
        %v1806 = vadd.f32 %v1665, %v1742
        %v1807 = vadd.f32 %v1666, %v1743
        %v1808 = vadd.f32 %v1667, %v1744
        %v1809 = vadd.f32 %v1668, %v1745
        %v1810 = vadd.f32 %v1669, %v1746
        %v1811 = vadd.f32 %v1670, %v1747
        %v1812 = vadd.f32 %v1671, %v1748
        %v1813 = vadd.f32 %v1672, %v1749
        %v1814 = vadd.f32 %v1673, %v1750
        %v1815 = vadd.f32 %v1674, %v1751
        %v1816 = vadd.f32 %v1675, %v1752
        %v1817 = vadd.f32 %v1676, %v1753
        %v1818 = vadd.f32 %v1677, %v1754
        %v1819 = vadd.f32 %v1678, %v1755
        %v1820 = vadd.f32 %v1679, %v1756
        %v1821 = vadd.f32 %v1680, %v1757
        %v1822 = vadd.f32 %v1681, %v1758
        %v1823 = vadd.f32 %v1682, %v1759
        %v1824 = vadd.f32 %v1683, %v1760
        %v1825 = vadd.f32 %v1684, %v1761
        %v1826 = vadd.f32 %v1685, %v1762
        %v1827 = vadd.f32 %v1686, %v1763
        %v1828 = vadd.f32 %v1687, %v1764
        %v1829 = vadd.f32 %v1688, %v1765
        %v1830 = vadd.f32 %v1689, %v1766
        %v1831 = vadd.f32 %v1690, %v1767
        %v1832 = vadd.f32 %v1691, %v1768
        %v1833 = vadd.f32 %v1692, %v1769
        %v1834 = vadd.f32 %v1693, %v1770
        %v1835 = vadd.f32 %v1694, %v1771
        %v1836 = vadd.f32 %v1695, %v1772
        %v1837 = vadd.f32 %v1696, %v1773
        %v1838 = vadd.f32 %v1697, %v1774
        %v1839 = vadd.f32 %v1698, %v1775
        %v1840 = vadd.f32 %v1699, %v1776
        %v1841 = vadd.f32 %v1700, %v1777
        %v1842 = vadd.f32 %v1701, %v1778
        %v1843 = vadd.f32 %v1702, %v1779
        %v1844 = vadd.f32 %v1703, %v1780
        %v1845 = vadd.f32 %v1704, %v1781
        %v1846 = vadd.f32 %v1705, %v1782
        %v1847 = vadd.f32 %v1706, %v1783
        %v1848 = vadd.f32 %v1707, %v1784
        %v1849 = vadd.f32 %v1708, %v1785
        %v1850 = vadd.f32 %v1709, %v1786
        %v1851 = vadd.f32 %v1710, %v1787
        %v1852 = vadd.f32 %v1711, %v1788
        %v1853 = vadd.f32 %v1712, %v1789
        %v1854 = vadd.f32 %v1713, %v1790
        %v1855 = vadd.f32 %v1714, %v1791
        %v1856 = vadd.f32 %v1715, %v1792
        %v1857 = vadd.f32 %v1716, %v1793
        %v1858 = vadd.f32 %v1717, %v1794
        %v1859 = vadd.f32 %v1718, %v1795
        %v1860 = vadd.f32 %v1719, %v1796
        %v1861 = vadd.f32 %v1720, %v1797
        %v1862 = vadd.f32 %v1721, %v1798
        %v1863 = vadd.f32 %v1722, %v1799
        %v1864 = vadd.f32 %v1723, %v1800
        %s1865 = scalar_lea.vmem %s3, 6
        %v1866 = vld [vmem:[%s1865] ss:$8 sm:$0x3]
        %v1868 = vlaneseq
        %v1869 = vshrl.u32 %v1868, 7
        %v1870 = vsub.s32 0, %v1869
        %v1871 = vrot.slane %v1866, %v1870
        %v1872 = vlaneseq
        %v1873 = vshrl.u32 %v1872, 7
        %v1874 = vsub.s32 1, %v1873
        %v1875 = vrot.slane %v1866, %v1874
        %v1878 = vmul.f32 %v945, %v1871
        %v1879 = vmul.f32 %v946, %v1875
        %v1880 = vmul.f32 %v792, %v1871
        %v1881 = vmul.f32 %v794, %v1875
        %v1882 = vmul.f32 %v947, %v1871
        %v1883 = vmul.f32 %v948, %v1875
        %v1884 = vmul.f32 %v798, %v1871
        %v1885 = vmul.f32 %v800, %v1875
        %v1886 = vmul.f32 %v949, %v1871
        %v1887 = vmul.f32 %v950, %v1875
        %v1888 = vmul.f32 %v804, %v1871
        %v1889 = vmul.f32 %v806, %v1875
        %v1890 = vmul.f32 %v951, %v1871
        %v1891 = vmul.f32 %v952, %v1875
        %v1892 = vmul.f32 %v810, %v1871
        %v1893 = vmul.f32 %v812, %v1875
        %v1894 = vmul.f32 %v953, %v1871
        %v1895 = vmul.f32 %v954, %v1875
        %v1896 = vmul.f32 %v816, %v1871
        %v1897 = vmul.f32 %v818, %v1875
        %v1898 = vmul.f32 %v955, %v1871
        %v1899 = vmul.f32 %v956, %v1875
        %v1900 = vmul.f32 %v822, %v1871
        %v1901 = vmul.f32 %v824, %v1875
        %v1902 = vmul.f32 %v957, %v1871
        %v1903 = vmul.f32 %v958, %v1875
        %v1904 = vmul.f32 %v828, %v1871
        %v1905 = vmul.f32 %v830, %v1875
        %v1906 = vmul.f32 %v959, %v1871
        %v1907 = vmul.f32 %v960, %v1875
        %v1908 = vmul.f32 %v834, %v1871
        %v1909 = vmul.f32 %v836, %v1875
        %v1910 = vmul.f32 %v961, %v1871
        %v1911 = vmul.f32 %v962, %v1875
        %v1912 = vmul.f32 %v840, %v1871
        %v1913 = vmul.f32 %v842, %v1875
        %v1914 = vmul.f32 %v963, %v1871
        %v1915 = vmul.f32 %v964, %v1875
        %v1916 = vmul.f32 %v846, %v1871
        %v1917 = vmul.f32 %v848, %v1875
        %v1918 = vmul.f32 %v965, %v1871
        %v1919 = vmul.f32 %v966, %v1875
        %v1920 = vmul.f32 %v852, %v1871
        %v1921 = vmul.f32 %v854, %v1875
        %v1922 = vmul.f32 %v967, %v1871
        %v1923 = vmul.f32 %v968, %v1875
        %v1924 = vmul.f32 %v858, %v1871
        %v1925 = vmul.f32 %v860, %v1875
        %v1926 = vmul.f32 %v969, %v1871
        %v1927 = vmul.f32 %v970, %v1875
        %v1928 = vmul.f32 %v864, %v1871
        %v1929 = vmul.f32 %v866, %v1875
        %v1930 = vmul.f32 %v971, %v1871
        %v1931 = vmul.f32 %v972, %v1875
        %v1932 = vmul.f32 %v870, %v1871
        %v1933 = vmul.f32 %v872, %v1875
        %v1934 = vmul.f32 %v973, %v1871
        %v1935 = vmul.f32 %v974, %v1875
        %v1936 = vmul.f32 %v876, %v1871
        %v1937 = vmul.f32 %v878, %v1875
        %s1938 = scalar_lea.vmem %s3, 7
        %v1939 = vld [vmem:[%s1938] ss:$8 sm:$0x3]
        %v1941 = vlaneseq
        %v1942 = vshrl.u32 %v1941, 7
        %v1943 = vsub.s32 0, %v1942
        %v1944 = vrot.slane %v1939, %v1943
        %v1945 = vlaneseq
        %v1946 = vshrl.u32 %v1945, 7
        %v1947 = vsub.s32 1, %v1946
        %v1948 = vrot.slane %v1939, %v1947
        %v1951 = vmul.f32 %v540, %v1944
        %v1952 = vmul.f32 %v542, %v1948
        %v1953 = vmul.f32 %v546, %v1944
        %v1954 = vmul.f32 %v548, %v1948
        %v1955 = vmul.f32 %v552, %v1944
        %v1956 = vmul.f32 %v554, %v1948
        %v1957 = vmul.f32 %v558, %v1944
        %v1958 = vmul.f32 %v560, %v1948
        %v1959 = vmul.f32 %v564, %v1944
        %v1960 = vmul.f32 %v566, %v1948
        %v1961 = vmul.f32 %v570, %v1944
        %v1962 = vmul.f32 %v572, %v1948
        %v1963 = vmul.f32 %v576, %v1944
        %v1964 = vmul.f32 %v578, %v1948
        %v1965 = vmul.f32 %v582, %v1944
        %v1966 = vmul.f32 %v584, %v1948
        %v1967 = vmul.f32 %v588, %v1944
        %v1968 = vmul.f32 %v590, %v1948
        %v1969 = vmul.f32 %v594, %v1944
        %v1970 = vmul.f32 %v596, %v1948
        %v1971 = vmul.f32 %v600, %v1944
        %v1972 = vmul.f32 %v602, %v1948
        %v1973 = vmul.f32 %v606, %v1944
        %v1974 = vmul.f32 %v608, %v1948
        %v1975 = vmul.f32 %v612, %v1944
        %v1976 = vmul.f32 %v614, %v1948
        %v1977 = vmul.f32 %v618, %v1944
        %v1978 = vmul.f32 %v620, %v1948
        %v1979 = vmul.f32 %v624, %v1944
        %v1980 = vmul.f32 %v626, %v1948
        %v1981 = vmul.f32 %v630, %v1944
        %v1982 = vmul.f32 %v632, %v1948
        %v1983 = vmul.f32 %v636, %v1944
        %v1984 = vmul.f32 %v638, %v1948
        %v1985 = vmul.f32 %v642, %v1944
        %v1986 = vmul.f32 %v644, %v1948
        %v1987 = vmul.f32 %v648, %v1944
        %v1988 = vmul.f32 %v650, %v1948
        %v1989 = vmul.f32 %v654, %v1944
        %v1990 = vmul.f32 %v656, %v1948
        %v1991 = vmul.f32 %v660, %v1944
        %v1992 = vmul.f32 %v662, %v1948
        %v1993 = vmul.f32 %v666, %v1944
        %v1994 = vmul.f32 %v668, %v1948
        %v1995 = vmul.f32 %v672, %v1944
        %v1996 = vmul.f32 %v674, %v1948
        %v1997 = vmul.f32 %v678, %v1944
        %v1998 = vmul.f32 %v680, %v1948
        %v1999 = vmul.f32 %v684, %v1944
        %v2000 = vmul.f32 %v686, %v1948
        %v2001 = vmul.f32 %v690, %v1944
        %v2002 = vmul.f32 %v692, %v1948
        %v2003 = vmul.f32 %v696, %v1944
        %v2004 = vmul.f32 %v698, %v1948
        %v2005 = vmul.f32 %v702, %v1944
        %v2006 = vmul.f32 %v704, %v1948
        %v2007 = vmul.f32 %v708, %v1944
        %v2008 = vmul.f32 %v710, %v1948
        %v2009 = vmul.f32 %v714, %v1944
        %v2010 = vmul.f32 %v716, %v1948
        %v2011 = vadd.f32 %v1878, %v1951
        %v2012 = vadd.f32 %v1879, %v1952
        %v2013 = vadd.f32 %v1880, %v1953
        %v2014 = vadd.f32 %v1881, %v1954
        %v2015 = vadd.f32 %v1882, %v1955
        %v2016 = vadd.f32 %v1883, %v1956
        %v2017 = vadd.f32 %v1884, %v1957
        %v2018 = vadd.f32 %v1885, %v1958
        %v2019 = vadd.f32 %v1886, %v1959
        %v2020 = vadd.f32 %v1887, %v1960
        %v2021 = vadd.f32 %v1888, %v1961
        %v2022 = vadd.f32 %v1889, %v1962
        %v2023 = vadd.f32 %v1890, %v1963
        %v2024 = vadd.f32 %v1891, %v1964
        %v2025 = vadd.f32 %v1892, %v1965
        %v2026 = vadd.f32 %v1893, %v1966
        %v2027 = vadd.f32 %v1894, %v1967
        %v2028 = vadd.f32 %v1895, %v1968
        %v2029 = vadd.f32 %v1896, %v1969
        %v2030 = vadd.f32 %v1897, %v1970
        %v2031 = vadd.f32 %v1898, %v1971
        %v2032 = vadd.f32 %v1899, %v1972
        %v2033 = vadd.f32 %v1900, %v1973
        %v2034 = vadd.f32 %v1901, %v1974
        %v2035 = vadd.f32 %v1902, %v1975
        %v2036 = vadd.f32 %v1903, %v1976
        %v2037 = vadd.f32 %v1904, %v1977
        %v2038 = vadd.f32 %v1905, %v1978
        %v2039 = vadd.f32 %v1906, %v1979
        %v2040 = vadd.f32 %v1907, %v1980
        %v2041 = vadd.f32 %v1908, %v1981
        %v2042 = vadd.f32 %v1909, %v1982
        %v2043 = vadd.f32 %v1910, %v1983
        %v2044 = vadd.f32 %v1911, %v1984
        %v2045 = vadd.f32 %v1912, %v1985
        %v2046 = vadd.f32 %v1913, %v1986
        %v2047 = vadd.f32 %v1914, %v1987
        %v2048 = vadd.f32 %v1915, %v1988
        %v2049 = vadd.f32 %v1916, %v1989
        %v2050 = vadd.f32 %v1917, %v1990
        %v2051 = vadd.f32 %v1918, %v1991
        %v2052 = vadd.f32 %v1919, %v1992
        %v2053 = vadd.f32 %v1920, %v1993
        %v2054 = vadd.f32 %v1921, %v1994
        %v2055 = vadd.f32 %v1922, %v1995
        %v2056 = vadd.f32 %v1923, %v1996
        %v2057 = vadd.f32 %v1924, %v1997
        %v2058 = vadd.f32 %v1925, %v1998
        %v2059 = vadd.f32 %v1926, %v1999
        %v2060 = vadd.f32 %v1927, %v2000
        %v2061 = vadd.f32 %v1928, %v2001
        %v2062 = vadd.f32 %v1929, %v2002
        %v2063 = vadd.f32 %v1930, %v2003
        %v2064 = vadd.f32 %v1931, %v2004
        %v2065 = vadd.f32 %v1932, %v2005
        %v2066 = vadd.f32 %v1933, %v2006
        %v2067 = vadd.f32 %v1934, %v2007
        %v2068 = vadd.f32 %v1935, %v2008
        %v2069 = vadd.f32 %v1936, %v2009
        %v2070 = vadd.f32 %v1937, %v2010
        %s2071 = scalar_lea.vmem %s3, 16
        %v2072 = vld [vmem:[%s2071] ss:$8 sm:$0x3]
        %v2074 = vlaneseq
        %v2075 = vshrl.u32 %v2074, 7
        %v2076 = vsub.s32 0, %v2075
        %v2077 = vrot.slane %v2072, %v2076
        %v2078 = vlaneseq
        %v2079 = vshrl.u32 %v2078, 7
        %v2080 = vsub.s32 1, %v2079
        %v2081 = vrot.slane %v2072, %v2080
        %v2084 = vmul.f32 %v984, %v2077
        %v2085 = vmul.f32 %v987, %v2081
        %v2086 = vmul.f32 %v1138, %v2077
        %v2087 = vmul.f32 %v1139, %v2081
        %v2088 = vmul.f32 %v990, %v2077
        %v2089 = vmul.f32 %v993, %v2081
        %v2090 = vmul.f32 %v1140, %v2077
        %v2091 = vmul.f32 %v1141, %v2081
        %v2092 = vmul.f32 %v996, %v2077
        %v2093 = vmul.f32 %v999, %v2081
        %v2094 = vmul.f32 %v1142, %v2077
        %v2095 = vmul.f32 %v1143, %v2081
        %v2096 = vmul.f32 %v1002, %v2077
        %v2097 = vmul.f32 %v1005, %v2081
        %v2098 = vmul.f32 %v1144, %v2077
        %v2099 = vmul.f32 %v1145, %v2081
        %v2100 = vmul.f32 %v1008, %v2077
        %v2101 = vmul.f32 %v1011, %v2081
        %v2102 = vmul.f32 %v1146, %v2077
        %v2103 = vmul.f32 %v1147, %v2081
        %v2104 = vmul.f32 %v1014, %v2077
        %v2105 = vmul.f32 %v1017, %v2081
        %v2106 = vmul.f32 %v1148, %v2077
        %v2107 = vmul.f32 %v1149, %v2081
        %v2108 = vmul.f32 %v1020, %v2077
        %v2109 = vmul.f32 %v1023, %v2081
        %v2110 = vmul.f32 %v1150, %v2077
        %v2111 = vmul.f32 %v1151, %v2081
        %v2112 = vmul.f32 %v1026, %v2077
        %v2113 = vmul.f32 %v1029, %v2081
        %v2114 = vmul.f32 %v1152, %v2077
        %v2115 = vmul.f32 %v1153, %v2081
        %v2116 = vmul.f32 %v1032, %v2077
        %v2117 = vmul.f32 %v1035, %v2081
        %v2118 = vmul.f32 %v1154, %v2077
        %v2119 = vmul.f32 %v1155, %v2081
        %v2120 = vmul.f32 %v1038, %v2077
        %v2121 = vmul.f32 %v1041, %v2081
        %v2122 = vmul.f32 %v1156, %v2077
        %v2123 = vmul.f32 %v1157, %v2081
        %v2124 = vmul.f32 %v1044, %v2077
        %v2125 = vmul.f32 %v1047, %v2081
        %v2126 = vmul.f32 %v1158, %v2077
        %v2127 = vmul.f32 %v1159, %v2081
        %v2128 = vmul.f32 %v1050, %v2077
        %v2129 = vmul.f32 %v1053, %v2081
        %v2130 = vmul.f32 %v1160, %v2077
        %v2131 = vmul.f32 %v1161, %v2081
        %v2132 = vmul.f32 %v1056, %v2077
        %v2133 = vmul.f32 %v1059, %v2081
        %v2134 = vmul.f32 %v1162, %v2077
        %v2135 = vmul.f32 %v1163, %v2081
        %v2136 = vmul.f32 %v1062, %v2077
        %v2137 = vmul.f32 %v1065, %v2081
        %v2138 = vmul.f32 %v1164, %v2077
        %v2139 = vmul.f32 %v1165, %v2081
        %v2140 = vmul.f32 %v1068, %v2077
        %v2141 = vmul.f32 %v1071, %v2081
        %v2142 = vmul.f32 %v1166, %v2077
        %v2143 = vmul.f32 %v1167, %v2081
        %v2144 = vadd.f32 %v2011, %v2084
        %v2145 = vadd.f32 %v2012, %v2085
        %v2146 = vadd.f32 %v2013, %v2086
        %v2147 = vadd.f32 %v2014, %v2087
        %v2148 = vadd.f32 %v2015, %v2088
        %v2149 = vadd.f32 %v2016, %v2089
        %v2150 = vadd.f32 %v2017, %v2090
        %v2151 = vadd.f32 %v2018, %v2091
        %v2152 = vadd.f32 %v2019, %v2092
        %v2153 = vadd.f32 %v2020, %v2093
        %v2154 = vadd.f32 %v2021, %v2094
        %v2155 = vadd.f32 %v2022, %v2095
        %v2156 = vadd.f32 %v2023, %v2096
        %v2157 = vadd.f32 %v2024, %v2097
        %v2158 = vadd.f32 %v2025, %v2098
        %v2159 = vadd.f32 %v2026, %v2099
        %v2160 = vadd.f32 %v2027, %v2100
        %v2161 = vadd.f32 %v2028, %v2101
        %v2162 = vadd.f32 %v2029, %v2102
        %v2163 = vadd.f32 %v2030, %v2103
        %v2164 = vadd.f32 %v2031, %v2104
        %v2165 = vadd.f32 %v2032, %v2105
        %v2166 = vadd.f32 %v2033, %v2106
        %v2167 = vadd.f32 %v2034, %v2107
        %v2168 = vadd.f32 %v2035, %v2108
        %v2169 = vadd.f32 %v2036, %v2109
        %v2170 = vadd.f32 %v2037, %v2110
        %v2171 = vadd.f32 %v2038, %v2111
        %v2172 = vadd.f32 %v2039, %v2112
        %v2173 = vadd.f32 %v2040, %v2113
        %v2174 = vadd.f32 %v2041, %v2114
        %v2175 = vadd.f32 %v2042, %v2115
        %v2176 = vadd.f32 %v2043, %v2116
        %v2177 = vadd.f32 %v2044, %v2117
        %v2178 = vadd.f32 %v2045, %v2118
        %v2179 = vadd.f32 %v2046, %v2119
        %v2180 = vadd.f32 %v2047, %v2120
        %v2181 = vadd.f32 %v2048, %v2121
        %v2182 = vadd.f32 %v2049, %v2122
        %v2183 = vadd.f32 %v2050, %v2123
        %v2184 = vadd.f32 %v2051, %v2124
        %v2185 = vadd.f32 %v2052, %v2125
        %v2186 = vadd.f32 %v2053, %v2126
        %v2187 = vadd.f32 %v2054, %v2127
        %v2188 = vadd.f32 %v2055, %v2128
        %v2189 = vadd.f32 %v2056, %v2129
        %v2190 = vadd.f32 %v2057, %v2130
        %v2191 = vadd.f32 %v2058, %v2131
        %v2192 = vadd.f32 %v2059, %v2132
        %v2193 = vadd.f32 %v2060, %v2133
        %v2194 = vadd.f32 %v2061, %v2134
        %v2195 = vadd.f32 %v2062, %v2135
        %v2196 = vadd.f32 %v2063, %v2136
        %v2197 = vadd.f32 %v2064, %v2137
        %v2198 = vadd.f32 %v2065, %v2138
        %v2199 = vadd.f32 %v2066, %v2139
        %v2200 = vadd.f32 %v2067, %v2140
        %v2201 = vadd.f32 %v2068, %v2141
        %v2202 = vadd.f32 %v2069, %v2142
        %v2203 = vadd.f32 %v2070, %v2143
        %v2204 = vadd.f32 %v1801, 0.0
        %v2205 = vadd.f32 %v1802, 0.0
        %v2206 = vadd.f32 %v1803, 0.0
        %v2207 = vadd.f32 %v1804, 0.0
        %v2208 = vadd.f32 %v1446, %v1805
        %v2209 = vadd.f32 %v1447, %v1806
        %v2210 = vadd.f32 %v1448, %v1807
        %v2211 = vadd.f32 %v1449, %v1808
        %v2212 = vadd.f32 %v1450, %v1809
        %v2213 = vadd.f32 %v1451, %v1810
        %v2214 = vadd.f32 %v1452, %v1811
        %v2215 = vadd.f32 %v1453, %v1812
        %v2216 = vadd.f32 %v1454, %v1813
        %v2217 = vadd.f32 %v1455, %v1814
        %v2218 = vadd.f32 %v1456, %v1815
        %v2219 = vadd.f32 %v1457, %v1816
        %v2220 = vadd.f32 %v1458, %v1817
        %v2221 = vadd.f32 %v1459, %v1818
        %v2222 = vadd.f32 %v1460, %v1819
        %v2223 = vadd.f32 %v1461, %v1820
        %v2224 = vadd.f32 %v1462, %v1821
        %v2225 = vadd.f32 %v1463, %v1822
        %v2226 = vadd.f32 %v1464, %v1823
        %v2227 = vadd.f32 %v1465, %v1824
        %v2228 = vadd.f32 %v1466, %v1825
        %v2229 = vadd.f32 %v1467, %v1826
        %v2230 = vadd.f32 %v1468, %v1827
        %v2231 = vadd.f32 %v1469, %v1828
        %v2232 = vadd.f32 %v1470, %v1829
        %v2233 = vadd.f32 %v1471, %v1830
        %v2234 = vadd.f32 %v1472, %v1831
        %v2235 = vadd.f32 %v1473, %v1832
        %v2236 = vadd.f32 %v1474, %v1833
        %v2237 = vadd.f32 %v1475, %v1834
        %v2238 = vadd.f32 %v1476, %v1835
        %v2239 = vadd.f32 %v1477, %v1836
        %v2240 = vadd.f32 %v1478, %v1837
        %v2241 = vadd.f32 %v1479, %v1838
        %v2242 = vadd.f32 %v1480, %v1839
        %v2243 = vadd.f32 %v1481, %v1840
        %v2244 = vadd.f32 %v1482, %v1841
        %v2245 = vadd.f32 %v1483, %v1842
        %v2246 = vadd.f32 %v1484, %v1843
        %v2247 = vadd.f32 %v1485, %v1844
        %v2248 = vadd.f32 %v1486, %v1845
        %v2249 = vadd.f32 %v1487, %v1846
        %v2250 = vadd.f32 %v1488, %v1847
        %v2251 = vadd.f32 %v1489, %v1848
        %v2252 = vadd.f32 %v1490, %v1849
        %v2253 = vadd.f32 %v1491, %v1850
        %v2254 = vadd.f32 %v1492, %v1851
        %v2255 = vadd.f32 %v1493, %v1852
        %v2256 = vadd.f32 %v1494, %v1853
        %v2257 = vadd.f32 %v1495, %v1854
        %v2258 = vadd.f32 %v1496, %v1855
        %v2259 = vadd.f32 %v1497, %v1856
        %v2260 = vadd.f32 %v1498, %v1857
        %v2261 = vadd.f32 %v1499, %v1858
        %v2262 = vadd.f32 %v1500, %v1859
        %v2263 = vadd.f32 %v1501, %v1860
        %v2264 = vadd.f32 %v1502, %v1861
        %v2265 = vadd.f32 %v1503, %v1862
        %v2266 = vadd.f32 %v1504, %v1863
        %v2267 = vadd.f32 %v1505, %v1864
        %v2268 = vadd.f32 %v2204, %v2144
        %v2269 = vadd.f32 %v2205, %v2145
        %v2270 = vadd.f32 %v2206, %v2146
        %v2271 = vadd.f32 %v2207, %v2147
        %v2272 = vadd.f32 %v2208, %v2148
        %v2273 = vadd.f32 %v2209, %v2149
        %v2274 = vadd.f32 %v2210, %v2150
        %v2275 = vadd.f32 %v2211, %v2151
        %v2276 = vadd.f32 %v2212, %v2152
        %v2277 = vadd.f32 %v2213, %v2153
        %v2278 = vadd.f32 %v2214, %v2154
        %v2279 = vadd.f32 %v2215, %v2155
        %v2280 = vadd.f32 %v2216, %v2156
        %v2281 = vadd.f32 %v2217, %v2157
        %v2282 = vadd.f32 %v2218, %v2158
        %v2283 = vadd.f32 %v2219, %v2159
        %v2284 = vadd.f32 %v2220, %v2160
        %v2285 = vadd.f32 %v2221, %v2161
        %v2286 = vadd.f32 %v2222, %v2162
        %v2287 = vadd.f32 %v2223, %v2163
        %v2288 = vadd.f32 %v2224, %v2164
        %v2289 = vadd.f32 %v2225, %v2165
        %v2290 = vadd.f32 %v2226, %v2166
        %v2291 = vadd.f32 %v2227, %v2167
        %v2292 = vadd.f32 %v2228, %v2168
        %v2293 = vadd.f32 %v2229, %v2169
        %v2294 = vadd.f32 %v2230, %v2170
        %v2295 = vadd.f32 %v2231, %v2171
        %v2296 = vadd.f32 %v2232, %v2172
        %v2297 = vadd.f32 %v2233, %v2173
        %v2298 = vadd.f32 %v2234, %v2174
        %v2299 = vadd.f32 %v2235, %v2175
        %v2300 = vadd.f32 %v2236, %v2176
        %v2301 = vadd.f32 %v2237, %v2177
        %v2302 = vadd.f32 %v2238, %v2178
        %v2303 = vadd.f32 %v2239, %v2179
        %v2304 = vadd.f32 %v2240, %v2180
        %v2305 = vadd.f32 %v2241, %v2181
        %v2306 = vadd.f32 %v2242, %v2182
        %v2307 = vadd.f32 %v2243, %v2183
        %v2308 = vadd.f32 %v2244, %v2184
        %v2309 = vadd.f32 %v2245, %v2185
        %v2310 = vadd.f32 %v2246, %v2186
        %v2311 = vadd.f32 %v2247, %v2187
        %v2312 = vadd.f32 %v2248, %v2188
        %v2313 = vadd.f32 %v2249, %v2189
        %v2314 = vadd.f32 %v2250, %v2190
        %v2315 = vadd.f32 %v2251, %v2191
        %v2316 = vadd.f32 %v2252, %v2192
        %v2317 = vadd.f32 %v2253, %v2193
        %v2318 = vadd.f32 %v2254, %v2194
        %v2319 = vadd.f32 %v2255, %v2195
        %v2320 = vadd.f32 %v2256, %v2196
        %v2321 = vadd.f32 %v2257, %v2197
        %v2322 = vadd.f32 %v2258, %v2198
        %v2323 = vadd.f32 %v2259, %v2199
        %v2324 = vadd.f32 %v2260, %v2200
        %v2325 = vadd.f32 %v2261, %v2201
        %v2326 = vadd.f32 %v2262, %v2202
        %v2327 = vadd.f32 %v2263, %v2203
        %v2328 = vadd.f32 %v2264, 0.0
        %v2329 = vadd.f32 %v2265, 0.0
        %v2330 = vadd.f32 %v2266, 0.0
        %v2331 = vadd.f32 %v2267, 0.0
        %v2332 = vld [vmem:[%s4] sm:$0x3]
        %v2334 = vlaneseq
        %v2335 = vshrl.u32 %v2334, 7
        %v2336 = vsub.s32 0, %v2335
        %v2337 = vrot.slane %v2332, %v2336
        %v2338 = vlaneseq
        %v2339 = vshrl.u32 %v2338, 7
        %v2340 = vsub.s32 1, %v2339
        %v2341 = vrot.slane %v2332, %v2340
        %v2344 = vadd.f32 %v2268, %v2337
        %v2345 = vadd.f32 %v2269, %v2341
        %v2346 = vadd.f32 %v2270, %v2337
        %v2347 = vadd.f32 %v2271, %v2341
        %v2348 = vadd.f32 %v2272, %v2337
        %v2349 = vadd.f32 %v2273, %v2341
        %v2350 = vadd.f32 %v2274, %v2337
        %v2351 = vadd.f32 %v2275, %v2341
        %v2352 = vadd.f32 %v2276, %v2337
        %v2353 = vadd.f32 %v2277, %v2341
        %v2354 = vadd.f32 %v2278, %v2337
        %v2355 = vadd.f32 %v2279, %v2341
        %v2356 = vadd.f32 %v2280, %v2337
        %v2357 = vadd.f32 %v2281, %v2341
        %v2358 = vadd.f32 %v2282, %v2337
        %v2359 = vadd.f32 %v2283, %v2341
        %v2360 = vadd.f32 %v2284, %v2337
        %v2361 = vadd.f32 %v2285, %v2341
        %v2362 = vadd.f32 %v2286, %v2337
        %v2363 = vadd.f32 %v2287, %v2341
        %v2364 = vadd.f32 %v2288, %v2337
        %v2365 = vadd.f32 %v2289, %v2341
        %v2366 = vadd.f32 %v2290, %v2337
        %v2367 = vadd.f32 %v2291, %v2341
        %v2368 = vadd.f32 %v2292, %v2337
        %v2369 = vadd.f32 %v2293, %v2341
        %v2370 = vadd.f32 %v2294, %v2337
        %v2371 = vadd.f32 %v2295, %v2341
        %v2372 = vadd.f32 %v2296, %v2337
        %v2373 = vadd.f32 %v2297, %v2341
        %v2374 = vadd.f32 %v2298, %v2337
        %v2375 = vadd.f32 %v2299, %v2341
        %v2376 = vadd.f32 %v2300, %v2337
        %v2377 = vadd.f32 %v2301, %v2341
        %v2378 = vadd.f32 %v2302, %v2337
        %v2379 = vadd.f32 %v2303, %v2341
        %v2380 = vadd.f32 %v2304, %v2337
        %v2381 = vadd.f32 %v2305, %v2341
        %v2382 = vadd.f32 %v2306, %v2337
        %v2383 = vadd.f32 %v2307, %v2341
        %v2384 = vadd.f32 %v2308, %v2337
        %v2385 = vadd.f32 %v2309, %v2341
        %v2386 = vadd.f32 %v2310, %v2337
        %v2387 = vadd.f32 %v2311, %v2341
        %v2388 = vadd.f32 %v2312, %v2337
        %v2389 = vadd.f32 %v2313, %v2341
        %v2390 = vadd.f32 %v2314, %v2337
        %v2391 = vadd.f32 %v2315, %v2341
        %v2392 = vadd.f32 %v2316, %v2337
        %v2393 = vadd.f32 %v2317, %v2341
        %v2394 = vadd.f32 %v2318, %v2337
        %v2395 = vadd.f32 %v2319, %v2341
        %v2396 = vadd.f32 %v2320, %v2337
        %v2397 = vadd.f32 %v2321, %v2341
        %v2398 = vadd.f32 %v2322, %v2337
        %v2399 = vadd.f32 %v2323, %v2341
        %v2400 = vadd.f32 %v2324, %v2337
        %v2401 = vadd.f32 %v2325, %v2341
        %v2402 = vadd.f32 %v2326, %v2337
        %v2403 = vadd.f32 %v2327, %v2341
        %v2404 = vadd.f32 %v2328, %v2337
        %v2405 = vadd.f32 %v2329, %v2341
        %v2406 = vadd.f32 %v2330, %v2337
        %v2407 = vadd.f32 %v2331, %v2341
        %2440 = vrot.lane.b32.xlu0 %v2344, 64
        %v2441 = vpop.permute.xlu0 %2440
        %2442 = vrot.lane.b32.xlu0 %v2348, 64
        %v2443 = vpop.permute.xlu0 %2442
        %2444 = vrot.lane.b32.xlu0 %v2352, 64
        %v2445 = vpop.permute.xlu0 %2444
        %2446 = vrot.lane.b32.xlu0 %v2356, 64
        %v2447 = vpop.permute.xlu0 %2446
        %2448 = vrot.lane.b32.xlu0 %v2360, 64
        %v2449 = vpop.permute.xlu0 %2448
        %2450 = vrot.lane.b32.xlu0 %v2364, 64
        %v2451 = vpop.permute.xlu0 %2450
        %2452 = vrot.lane.b32.xlu0 %v2368, 64
        %v2453 = vpop.permute.xlu0 %2452
        %2454 = vrot.lane.b32.xlu0 %v2372, 64
        %v2455 = vpop.permute.xlu0 %2454
        %2456 = vrot.lane.b32.xlu0 %v2346, 64
        %v2457 = vpop.permute.xlu0 %2456
        %2458 = vrot.lane.b32.xlu0 %v2350, 64
        %v2459 = vpop.permute.xlu0 %2458
        %2460 = vrot.lane.b32.xlu0 %v2354, 64
        %v2461 = vpop.permute.xlu0 %2460
        %2462 = vrot.lane.b32.xlu0 %v2358, 64
        %v2463 = vpop.permute.xlu0 %2462
        %2464 = vrot.lane.b32.xlu0 %v2362, 64
        %v2465 = vpop.permute.xlu0 %2464
        %2466 = vrot.lane.b32.xlu0 %v2366, 64
        %v2467 = vpop.permute.xlu0 %2466
        %2468 = vrot.lane.b32.xlu0 %v2370, 64
        %v2469 = vpop.permute.xlu0 %2468
        %2470 = vrot.lane.b32.xlu0 %v2374, 64
        %v2471 = vpop.permute.xlu0 %2470
        %2472 = vrot.lane.b32.xlu0 %v2376, 64
        %v2473 = vpop.permute.xlu0 %2472
        %2474 = vrot.lane.b32.xlu0 %v2380, 64
        %v2475 = vpop.permute.xlu0 %2474
        %2476 = vrot.lane.b32.xlu0 %v2384, 64
        %v2477 = vpop.permute.xlu0 %2476
        %2478 = vrot.lane.b32.xlu0 %v2388, 64
        %v2479 = vpop.permute.xlu0 %2478
        %2480 = vrot.lane.b32.xlu0 %v2392, 64
        %v2481 = vpop.permute.xlu0 %2480
        %2482 = vrot.lane.b32.xlu0 %v2396, 64
        %v2483 = vpop.permute.xlu0 %2482
        %2484 = vrot.lane.b32.xlu0 %v2400, 64
        %v2485 = vpop.permute.xlu0 %2484
        %2486 = vrot.lane.b32.xlu0 %v2404, 64
        %v2487 = vpop.permute.xlu0 %2486
        %2488 = vrot.lane.b32.xlu0 %v2378, 64
        %v2489 = vpop.permute.xlu0 %2488
        %2490 = vrot.lane.b32.xlu0 %v2382, 64
        %v2491 = vpop.permute.xlu0 %2490
        %2492 = vrot.lane.b32.xlu0 %v2386, 64
        %v2493 = vpop.permute.xlu0 %2492
        %2494 = vrot.lane.b32.xlu0 %v2390, 64
        %v2495 = vpop.permute.xlu0 %2494
        %2496 = vrot.lane.b32.xlu0 %v2394, 64
        %v2497 = vpop.permute.xlu0 %2496
        %2498 = vrot.lane.b32.xlu0 %v2398, 64
        %v2499 = vpop.permute.xlu0 %2498
        %2500 = vrot.lane.b32.xlu0 %v2402, 64
        %v2501 = vpop.permute.xlu0 %2500
        %2502 = vrot.lane.b32.xlu0 %v2406, 64
        %v2503 = vpop.permute.xlu0 %2502
        %v2536 = vadd.f32 %v2344, %v2441
        %v2537 = vadd.f32 %v2348, %v2443
        %v2538 = vadd.f32 %v2352, %v2445
        %v2539 = vadd.f32 %v2356, %v2447
        %v2540 = vadd.f32 %v2360, %v2449
        %v2541 = vadd.f32 %v2364, %v2451
        %v2542 = vadd.f32 %v2368, %v2453
        %v2543 = vadd.f32 %v2372, %v2455
        %v2544 = vadd.f32 %v2346, %v2457
        %v2545 = vadd.f32 %v2350, %v2459
        %v2546 = vadd.f32 %v2354, %v2461
        %v2547 = vadd.f32 %v2358, %v2463
        %v2548 = vadd.f32 %v2362, %v2465
        %v2549 = vadd.f32 %v2366, %v2467
        %v2550 = vadd.f32 %v2370, %v2469
        %v2551 = vadd.f32 %v2374, %v2471
        %v2552 = vadd.f32 %v2376, %v2473
        %v2553 = vadd.f32 %v2380, %v2475
        %v2554 = vadd.f32 %v2384, %v2477
        %v2555 = vadd.f32 %v2388, %v2479
        %v2556 = vadd.f32 %v2392, %v2481
        %v2557 = vadd.f32 %v2396, %v2483
        %v2558 = vadd.f32 %v2400, %v2485
        %v2559 = vadd.f32 %v2404, %v2487
        %v2560 = vadd.f32 %v2378, %v2489
        %v2561 = vadd.f32 %v2382, %v2491
        %v2562 = vadd.f32 %v2386, %v2493
        %v2563 = vadd.f32 %v2390, %v2495
        %v2564 = vadd.f32 %v2394, %v2497
        %v2565 = vadd.f32 %v2398, %v2499
        %v2566 = vadd.f32 %v2402, %v2501
        %v2567 = vadd.f32 %v2406, %v2503
        %2600 = vrot.lane.b32.xlu0 %v2345, 64
        %v2601 = vpop.permute.xlu0 %2600
        %2602 = vrot.lane.b32.xlu0 %v2349, 64
        %v2603 = vpop.permute.xlu0 %2602
        %2604 = vrot.lane.b32.xlu0 %v2353, 64
        %v2605 = vpop.permute.xlu0 %2604
        %2606 = vrot.lane.b32.xlu0 %v2357, 64
        %v2607 = vpop.permute.xlu0 %2606
        %2608 = vrot.lane.b32.xlu0 %v2361, 64
        %v2609 = vpop.permute.xlu0 %2608
        %2610 = vrot.lane.b32.xlu0 %v2365, 64
        %v2611 = vpop.permute.xlu0 %2610
        %2612 = vrot.lane.b32.xlu0 %v2369, 64
        %v2613 = vpop.permute.xlu0 %2612
        %2614 = vrot.lane.b32.xlu0 %v2373, 64
        %v2615 = vpop.permute.xlu0 %2614
        %2616 = vrot.lane.b32.xlu0 %v2347, 64
        %v2617 = vpop.permute.xlu0 %2616
        %2618 = vrot.lane.b32.xlu0 %v2351, 64
        %v2619 = vpop.permute.xlu0 %2618
        %2620 = vrot.lane.b32.xlu0 %v2355, 64
        %v2621 = vpop.permute.xlu0 %2620
        %2622 = vrot.lane.b32.xlu0 %v2359, 64
        %v2623 = vpop.permute.xlu0 %2622
        %2624 = vrot.lane.b32.xlu0 %v2363, 64
        %v2625 = vpop.permute.xlu0 %2624
        %2626 = vrot.lane.b32.xlu0 %v2367, 64
        %v2627 = vpop.permute.xlu0 %2626
        %2628 = vrot.lane.b32.xlu0 %v2371, 64
        %v2629 = vpop.permute.xlu0 %2628
        %2630 = vrot.lane.b32.xlu0 %v2375, 64
        %v2631 = vpop.permute.xlu0 %2630
        %2632 = vrot.lane.b32.xlu0 %v2377, 64
        %v2633 = vpop.permute.xlu0 %2632
        %2634 = vrot.lane.b32.xlu0 %v2381, 64
        %v2635 = vpop.permute.xlu0 %2634
        %2636 = vrot.lane.b32.xlu0 %v2385, 64
        %v2637 = vpop.permute.xlu0 %2636
        %2638 = vrot.lane.b32.xlu0 %v2389, 64
        %v2639 = vpop.permute.xlu0 %2638
        %2640 = vrot.lane.b32.xlu0 %v2393, 64
        %v2641 = vpop.permute.xlu0 %2640
        %2642 = vrot.lane.b32.xlu0 %v2397, 64
        %v2643 = vpop.permute.xlu0 %2642
        %2644 = vrot.lane.b32.xlu0 %v2401, 64
        %v2645 = vpop.permute.xlu0 %2644
        %2646 = vrot.lane.b32.xlu0 %v2405, 64
        %v2647 = vpop.permute.xlu0 %2646
        %2648 = vrot.lane.b32.xlu0 %v2379, 64
        %v2649 = vpop.permute.xlu0 %2648
        %2650 = vrot.lane.b32.xlu0 %v2383, 64
        %v2651 = vpop.permute.xlu0 %2650
        %2652 = vrot.lane.b32.xlu0 %v2387, 64
        %v2653 = vpop.permute.xlu0 %2652
        %2654 = vrot.lane.b32.xlu0 %v2391, 64
        %v2655 = vpop.permute.xlu0 %2654
        %2656 = vrot.lane.b32.xlu0 %v2395, 64
        %v2657 = vpop.permute.xlu0 %2656
        %2658 = vrot.lane.b32.xlu0 %v2399, 64
        %v2659 = vpop.permute.xlu0 %2658
        %2660 = vrot.lane.b32.xlu0 %v2403, 64
        %v2661 = vpop.permute.xlu0 %2660
        %2662 = vrot.lane.b32.xlu0 %v2407, 64
        %v2663 = vpop.permute.xlu0 %2662
        %v2696 = vadd.f32 %v2344, %v2601
        %v2697 = vadd.f32 %v2348, %v2603
        %v2698 = vadd.f32 %v2352, %v2605
        %v2699 = vadd.f32 %v2356, %v2607
        %v2700 = vadd.f32 %v2360, %v2609
        %v2701 = vadd.f32 %v2364, %v2611
        %v2702 = vadd.f32 %v2368, %v2613
        %v2703 = vadd.f32 %v2372, %v2615
        %v2704 = vadd.f32 %v2346, %v2617
        %v2705 = vadd.f32 %v2350, %v2619
        %v2706 = vadd.f32 %v2354, %v2621
        %v2707 = vadd.f32 %v2358, %v2623
        %v2708 = vadd.f32 %v2362, %v2625
        %v2709 = vadd.f32 %v2366, %v2627
        %v2710 = vadd.f32 %v2370, %v2629
        %v2711 = vadd.f32 %v2374, %v2631
        %v2712 = vadd.f32 %v2376, %v2633
        %v2713 = vadd.f32 %v2380, %v2635
        %v2714 = vadd.f32 %v2384, %v2637
        %v2715 = vadd.f32 %v2388, %v2639
        %v2716 = vadd.f32 %v2392, %v2641
        %v2717 = vadd.f32 %v2396, %v2643
        %v2718 = vadd.f32 %v2400, %v2645
        %v2719 = vadd.f32 %v2404, %v2647
        %v2720 = vadd.f32 %v2378, %v2649
        %v2721 = vadd.f32 %v2382, %v2651
        %v2722 = vadd.f32 %v2386, %v2653
        %v2723 = vadd.f32 %v2390, %v2655
        %v2724 = vadd.f32 %v2394, %v2657
        %v2725 = vadd.f32 %v2398, %v2659
        %v2726 = vadd.f32 %v2402, %v2661
        %v2727 = vadd.f32 %v2406, %v2663
        %2728 = vrot.lane.b32.xlu0 %v2344, 120
        %v2729 = vpop.permute.xlu0 %2728
        %2730 = vrot.lane.b32.xlu0 %v2348, 120
        %v2731 = vpop.permute.xlu0 %2730
        %2732 = vrot.lane.b32.xlu0 %v2352, 120
        %v2733 = vpop.permute.xlu0 %2732
        %2734 = vrot.lane.b32.xlu0 %v2356, 120
        %v2735 = vpop.permute.xlu0 %2734
        %2736 = vrot.lane.b32.xlu0 %v2360, 120
        %v2737 = vpop.permute.xlu0 %2736
        %2738 = vrot.lane.b32.xlu0 %v2364, 120
        %v2739 = vpop.permute.xlu0 %2738
        %2740 = vrot.lane.b32.xlu0 %v2368, 120
        %v2741 = vpop.permute.xlu0 %2740
        %2742 = vrot.lane.b32.xlu0 %v2372, 120
        %v2743 = vpop.permute.xlu0 %2742
        %2744 = vrot.lane.b32.xlu0 %v2346, 120
        %v2745 = vpop.permute.xlu0 %2744
        %2746 = vrot.lane.b32.xlu0 %v2350, 120
        %v2747 = vpop.permute.xlu0 %2746
        %2748 = vrot.lane.b32.xlu0 %v2354, 120
        %v2749 = vpop.permute.xlu0 %2748
        %2750 = vrot.lane.b32.xlu0 %v2358, 120
        %v2751 = vpop.permute.xlu0 %2750
        %2752 = vrot.lane.b32.xlu0 %v2362, 120
        %v2753 = vpop.permute.xlu0 %2752
        %2754 = vrot.lane.b32.xlu0 %v2366, 120
        %v2755 = vpop.permute.xlu0 %2754
        %2756 = vrot.lane.b32.xlu0 %v2370, 120
        %v2757 = vpop.permute.xlu0 %2756
        %2758 = vrot.lane.b32.xlu0 %v2374, 120
        %v2759 = vpop.permute.xlu0 %2758
        %2760 = vrot.lane.b32.xlu0 %v2376, 120
        %v2761 = vpop.permute.xlu0 %2760
        %2762 = vrot.lane.b32.xlu0 %v2380, 120
        %v2763 = vpop.permute.xlu0 %2762
        %2764 = vrot.lane.b32.xlu0 %v2384, 120
        %v2765 = vpop.permute.xlu0 %2764
        %2766 = vrot.lane.b32.xlu0 %v2388, 120
        %v2767 = vpop.permute.xlu0 %2766
        %2768 = vrot.lane.b32.xlu0 %v2392, 120
        %v2769 = vpop.permute.xlu0 %2768
        %2770 = vrot.lane.b32.xlu0 %v2396, 120
        %v2771 = vpop.permute.xlu0 %2770
        %2772 = vrot.lane.b32.xlu0 %v2400, 120
        %v2773 = vpop.permute.xlu0 %2772
        %2774 = vrot.lane.b32.xlu0 %v2404, 120
        %v2775 = vpop.permute.xlu0 %2774
        %2776 = vrot.lane.b32.xlu0 %v2378, 120
        %v2777 = vpop.permute.xlu0 %2776
        %2778 = vrot.lane.b32.xlu0 %v2382, 120
        %v2779 = vpop.permute.xlu0 %2778
        %2780 = vrot.lane.b32.xlu0 %v2386, 120
        %v2781 = vpop.permute.xlu0 %2780
        %2782 = vrot.lane.b32.xlu0 %v2390, 120
        %v2783 = vpop.permute.xlu0 %2782
        %2784 = vrot.lane.b32.xlu0 %v2394, 120
        %v2785 = vpop.permute.xlu0 %2784
        %2786 = vrot.lane.b32.xlu0 %v2398, 120
        %v2787 = vpop.permute.xlu0 %2786
        %2788 = vrot.lane.b32.xlu0 %v2402, 120
        %v2789 = vpop.permute.xlu0 %2788
        %2790 = vrot.lane.b32.xlu0 %v2406, 120
        %v2791 = vpop.permute.xlu0 %2790
        %2792 = vrot.lane.b32.xlu0 %v2344, 112
        %v2793 = vpop.permute.xlu0 %2792
        %2794 = vrot.lane.b32.xlu0 %v2348, 112
        %v2795 = vpop.permute.xlu0 %2794
        %2796 = vrot.lane.b32.xlu0 %v2352, 112
        %v2797 = vpop.permute.xlu0 %2796
        %2798 = vrot.lane.b32.xlu0 %v2356, 112
        %v2799 = vpop.permute.xlu0 %2798
        %2800 = vrot.lane.b32.xlu0 %v2360, 112
        %v2801 = vpop.permute.xlu0 %2800
        %2802 = vrot.lane.b32.xlu0 %v2364, 112
        %v2803 = vpop.permute.xlu0 %2802
        %2804 = vrot.lane.b32.xlu0 %v2368, 112
        %v2805 = vpop.permute.xlu0 %2804
        %2806 = vrot.lane.b32.xlu0 %v2372, 112
        %v2807 = vpop.permute.xlu0 %2806
        %2808 = vrot.lane.b32.xlu0 %v2346, 112
        %v2809 = vpop.permute.xlu0 %2808
        %2810 = vrot.lane.b32.xlu0 %v2350, 112
        %v2811 = vpop.permute.xlu0 %2810
        %2812 = vrot.lane.b32.xlu0 %v2354, 112
        %v2813 = vpop.permute.xlu0 %2812
        %2814 = vrot.lane.b32.xlu0 %v2358, 112
        %v2815 = vpop.permute.xlu0 %2814
        %2816 = vrot.lane.b32.xlu0 %v2362, 112
        %v2817 = vpop.permute.xlu0 %2816
        %2818 = vrot.lane.b32.xlu0 %v2366, 112
        %v2819 = vpop.permute.xlu0 %2818
        %2820 = vrot.lane.b32.xlu0 %v2370, 112
        %v2821 = vpop.permute.xlu0 %2820
        %2822 = vrot.lane.b32.xlu0 %v2374, 112
        %v2823 = vpop.permute.xlu0 %2822
        %2824 = vrot.lane.b32.xlu0 %v2376, 112
        %v2825 = vpop.permute.xlu0 %2824
        %2826 = vrot.lane.b32.xlu0 %v2380, 112
        %v2827 = vpop.permute.xlu0 %2826
        %2828 = vrot.lane.b32.xlu0 %v2384, 112
        %v2829 = vpop.permute.xlu0 %2828
        %2830 = vrot.lane.b32.xlu0 %v2388, 112
        %v2831 = vpop.permute.xlu0 %2830
        %2832 = vrot.lane.b32.xlu0 %v2392, 112
        %v2833 = vpop.permute.xlu0 %2832
        %2834 = vrot.lane.b32.xlu0 %v2396, 112
        %v2835 = vpop.permute.xlu0 %2834
        %2836 = vrot.lane.b32.xlu0 %v2400, 112
        %v2837 = vpop.permute.xlu0 %2836
        %2838 = vrot.lane.b32.xlu0 %v2404, 112
        %v2839 = vpop.permute.xlu0 %2838
        %2840 = vrot.lane.b32.xlu0 %v2378, 112
        %v2841 = vpop.permute.xlu0 %2840
        %2842 = vrot.lane.b32.xlu0 %v2382, 112
        %v2843 = vpop.permute.xlu0 %2842
        %2844 = vrot.lane.b32.xlu0 %v2386, 112
        %v2845 = vpop.permute.xlu0 %2844
        %2846 = vrot.lane.b32.xlu0 %v2390, 112
        %v2847 = vpop.permute.xlu0 %2846
        %2848 = vrot.lane.b32.xlu0 %v2394, 112
        %v2849 = vpop.permute.xlu0 %2848
        %2850 = vrot.lane.b32.xlu0 %v2398, 112
        %v2851 = vpop.permute.xlu0 %2850
        %2852 = vrot.lane.b32.xlu0 %v2402, 112
        %v2853 = vpop.permute.xlu0 %2852
        %2854 = vrot.lane.b32.xlu0 %v2406, 112
        %v2855 = vpop.permute.xlu0 %2854
        %2856 = vrot.lane.b32.xlu0 %v2344, 104
        %v2857 = vpop.permute.xlu0 %2856
        %2858 = vrot.lane.b32.xlu0 %v2348, 104
        %v2859 = vpop.permute.xlu0 %2858
        %2860 = vrot.lane.b32.xlu0 %v2352, 104
        %v2861 = vpop.permute.xlu0 %2860
        %2862 = vrot.lane.b32.xlu0 %v2356, 104
        %v2863 = vpop.permute.xlu0 %2862
        %2864 = vrot.lane.b32.xlu0 %v2360, 104
        %v2865 = vpop.permute.xlu0 %2864
        %2866 = vrot.lane.b32.xlu0 %v2364, 104
        %v2867 = vpop.permute.xlu0 %2866
        %2868 = vrot.lane.b32.xlu0 %v2368, 104
        %v2869 = vpop.permute.xlu0 %2868
        %2870 = vrot.lane.b32.xlu0 %v2372, 104
        %v2871 = vpop.permute.xlu0 %2870
        %2872 = vrot.lane.b32.xlu0 %v2346, 104
        %v2873 = vpop.permute.xlu0 %2872
        %2874 = vrot.lane.b32.xlu0 %v2350, 104
        %v2875 = vpop.permute.xlu0 %2874
        %2876 = vrot.lane.b32.xlu0 %v2354, 104
        %v2877 = vpop.permute.xlu0 %2876
        %2878 = vrot.lane.b32.xlu0 %v2358, 104
        %v2879 = vpop.permute.xlu0 %2878
        %2880 = vrot.lane.b32.xlu0 %v2362, 104
        %v2881 = vpop.permute.xlu0 %2880
        %2882 = vrot.lane.b32.xlu0 %v2366, 104
        %v2883 = vpop.permute.xlu0 %2882
        %2884 = vrot.lane.b32.xlu0 %v2370, 104
        %v2885 = vpop.permute.xlu0 %2884
        %2886 = vrot.lane.b32.xlu0 %v2374, 104
        %v2887 = vpop.permute.xlu0 %2886
        %2888 = vrot.lane.b32.xlu0 %v2376, 104
        %v2889 = vpop.permute.xlu0 %2888
        %2890 = vrot.lane.b32.xlu0 %v2380, 104
        %v2891 = vpop.permute.xlu0 %2890
        %2892 = vrot.lane.b32.xlu0 %v2384, 104
        %v2893 = vpop.permute.xlu0 %2892
        %2894 = vrot.lane.b32.xlu0 %v2388, 104
        %v2895 = vpop.permute.xlu0 %2894
        %2896 = vrot.lane.b32.xlu0 %v2392, 104
        %v2897 = vpop.permute.xlu0 %2896
        %2898 = vrot.lane.b32.xlu0 %v2396, 104
        %v2899 = vpop.permute.xlu0 %2898
        %2900 = vrot.lane.b32.xlu0 %v2400, 104
        %v2901 = vpop.permute.xlu0 %2900
        %2902 = vrot.lane.b32.xlu0 %v2404, 104
        %v2903 = vpop.permute.xlu0 %2902
        %2904 = vrot.lane.b32.xlu0 %v2378, 104
        %v2905 = vpop.permute.xlu0 %2904
        %2906 = vrot.lane.b32.xlu0 %v2382, 104
        %v2907 = vpop.permute.xlu0 %2906
        %2908 = vrot.lane.b32.xlu0 %v2386, 104
        %v2909 = vpop.permute.xlu0 %2908
        %2910 = vrot.lane.b32.xlu0 %v2390, 104
        %v2911 = vpop.permute.xlu0 %2910
        %2912 = vrot.lane.b32.xlu0 %v2394, 104
        %v2913 = vpop.permute.xlu0 %2912
        %2914 = vrot.lane.b32.xlu0 %v2398, 104
        %v2915 = vpop.permute.xlu0 %2914
        %2916 = vrot.lane.b32.xlu0 %v2402, 104
        %v2917 = vpop.permute.xlu0 %2916
        %2918 = vrot.lane.b32.xlu0 %v2406, 104
        %v2919 = vpop.permute.xlu0 %2918
        %2952 = vrot.lane.b32.xlu0 %v2536, 120
        %v2953 = vpop.permute.xlu0 %2952
        %2954 = vrot.lane.b32.xlu0 %v2537, 120
        %v2955 = vpop.permute.xlu0 %2954
        %2956 = vrot.lane.b32.xlu0 %v2538, 120
        %v2957 = vpop.permute.xlu0 %2956
        %2958 = vrot.lane.b32.xlu0 %v2539, 120
        %v2959 = vpop.permute.xlu0 %2958
        %2960 = vrot.lane.b32.xlu0 %v2540, 120
        %v2961 = vpop.permute.xlu0 %2960
        %2962 = vrot.lane.b32.xlu0 %v2541, 120
        %v2963 = vpop.permute.xlu0 %2962
        %2964 = vrot.lane.b32.xlu0 %v2542, 120
        %v2965 = vpop.permute.xlu0 %2964
        %2966 = vrot.lane.b32.xlu0 %v2543, 120
        %v2967 = vpop.permute.xlu0 %2966
        %2968 = vrot.lane.b32.xlu0 %v2544, 120
        %v2969 = vpop.permute.xlu0 %2968
        %2970 = vrot.lane.b32.xlu0 %v2545, 120
        %v2971 = vpop.permute.xlu0 %2970
        %2972 = vrot.lane.b32.xlu0 %v2546, 120
        %v2973 = vpop.permute.xlu0 %2972
        %2974 = vrot.lane.b32.xlu0 %v2547, 120
        %v2975 = vpop.permute.xlu0 %2974
        %2976 = vrot.lane.b32.xlu0 %v2548, 120
        %v2977 = vpop.permute.xlu0 %2976
        %2978 = vrot.lane.b32.xlu0 %v2549, 120
        %v2979 = vpop.permute.xlu0 %2978
        %2980 = vrot.lane.b32.xlu0 %v2550, 120
        %v2981 = vpop.permute.xlu0 %2980
        %2982 = vrot.lane.b32.xlu0 %v2551, 120
        %v2983 = vpop.permute.xlu0 %2982
        %2984 = vrot.lane.b32.xlu0 %v2552, 120
        %v2985 = vpop.permute.xlu0 %2984
        %2986 = vrot.lane.b32.xlu0 %v2553, 120
        %v2987 = vpop.permute.xlu0 %2986
        %2988 = vrot.lane.b32.xlu0 %v2554, 120
        %v2989 = vpop.permute.xlu0 %2988
        %2990 = vrot.lane.b32.xlu0 %v2555, 120
        %v2991 = vpop.permute.xlu0 %2990
        %2992 = vrot.lane.b32.xlu0 %v2556, 120
        %v2993 = vpop.permute.xlu0 %2992
        %2994 = vrot.lane.b32.xlu0 %v2557, 120
        %v2995 = vpop.permute.xlu0 %2994
        %2996 = vrot.lane.b32.xlu0 %v2558, 120
        %v2997 = vpop.permute.xlu0 %2996
        %2998 = vrot.lane.b32.xlu0 %v2559, 120
        %v2999 = vpop.permute.xlu0 %2998
        %3000 = vrot.lane.b32.xlu0 %v2560, 120
        %v3001 = vpop.permute.xlu0 %3000
        %3002 = vrot.lane.b32.xlu0 %v2561, 120
        %v3003 = vpop.permute.xlu0 %3002
        %3004 = vrot.lane.b32.xlu0 %v2562, 120
        %v3005 = vpop.permute.xlu0 %3004
        %3006 = vrot.lane.b32.xlu0 %v2563, 120
        %v3007 = vpop.permute.xlu0 %3006
        %3008 = vrot.lane.b32.xlu0 %v2564, 120
        %v3009 = vpop.permute.xlu0 %3008
        %3010 = vrot.lane.b32.xlu0 %v2565, 120
        %v3011 = vpop.permute.xlu0 %3010
        %3012 = vrot.lane.b32.xlu0 %v2566, 120
        %v3013 = vpop.permute.xlu0 %3012
        %3014 = vrot.lane.b32.xlu0 %v2567, 120
        %v3015 = vpop.permute.xlu0 %3014
        %3016 = vrot.lane.b32.xlu0 %v2536, 112
        %v3017 = vpop.permute.xlu0 %3016
        %3018 = vrot.lane.b32.xlu0 %v2537, 112
        %v3019 = vpop.permute.xlu0 %3018
        %3020 = vrot.lane.b32.xlu0 %v2538, 112
        %v3021 = vpop.permute.xlu0 %3020
        %3022 = vrot.lane.b32.xlu0 %v2539, 112
        %v3023 = vpop.permute.xlu0 %3022
        %3024 = vrot.lane.b32.xlu0 %v2540, 112
        %v3025 = vpop.permute.xlu0 %3024
        %3026 = vrot.lane.b32.xlu0 %v2541, 112
        %v3027 = vpop.permute.xlu0 %3026
        %3028 = vrot.lane.b32.xlu0 %v2542, 112
        %v3029 = vpop.permute.xlu0 %3028
        %3030 = vrot.lane.b32.xlu0 %v2543, 112
        %v3031 = vpop.permute.xlu0 %3030
        %3032 = vrot.lane.b32.xlu0 %v2544, 112
        %v3033 = vpop.permute.xlu0 %3032
        %3034 = vrot.lane.b32.xlu0 %v2545, 112
        %v3035 = vpop.permute.xlu0 %3034
        %3036 = vrot.lane.b32.xlu0 %v2546, 112
        %v3037 = vpop.permute.xlu0 %3036
        %3038 = vrot.lane.b32.xlu0 %v2547, 112
        %v3039 = vpop.permute.xlu0 %3038
        %3040 = vrot.lane.b32.xlu0 %v2548, 112
        %v3041 = vpop.permute.xlu0 %3040
        %3042 = vrot.lane.b32.xlu0 %v2549, 112
        %v3043 = vpop.permute.xlu0 %3042
        %3044 = vrot.lane.b32.xlu0 %v2550, 112
        %v3045 = vpop.permute.xlu0 %3044
        %3046 = vrot.lane.b32.xlu0 %v2551, 112
        %v3047 = vpop.permute.xlu0 %3046
        %3048 = vrot.lane.b32.xlu0 %v2552, 112
        %v3049 = vpop.permute.xlu0 %3048
        %3050 = vrot.lane.b32.xlu0 %v2553, 112
        %v3051 = vpop.permute.xlu0 %3050
        %3052 = vrot.lane.b32.xlu0 %v2554, 112
        %v3053 = vpop.permute.xlu0 %3052
        %3054 = vrot.lane.b32.xlu0 %v2555, 112
        %v3055 = vpop.permute.xlu0 %3054
        %3056 = vrot.lane.b32.xlu0 %v2556, 112
        %v3057 = vpop.permute.xlu0 %3056
        %3058 = vrot.lane.b32.xlu0 %v2557, 112
        %v3059 = vpop.permute.xlu0 %3058
        %3060 = vrot.lane.b32.xlu0 %v2558, 112
        %v3061 = vpop.permute.xlu0 %3060
        %3062 = vrot.lane.b32.xlu0 %v2559, 112
        %v3063 = vpop.permute.xlu0 %3062
        %3064 = vrot.lane.b32.xlu0 %v2560, 112
        %v3065 = vpop.permute.xlu0 %3064
        %3066 = vrot.lane.b32.xlu0 %v2561, 112
        %v3067 = vpop.permute.xlu0 %3066
        %3068 = vrot.lane.b32.xlu0 %v2562, 112
        %v3069 = vpop.permute.xlu0 %3068
        %3070 = vrot.lane.b32.xlu0 %v2563, 112
        %v3071 = vpop.permute.xlu0 %3070
        %3072 = vrot.lane.b32.xlu0 %v2564, 112
        %v3073 = vpop.permute.xlu0 %3072
        %3074 = vrot.lane.b32.xlu0 %v2565, 112
        %v3075 = vpop.permute.xlu0 %3074
        %3076 = vrot.lane.b32.xlu0 %v2566, 112
        %v3077 = vpop.permute.xlu0 %3076
        %3078 = vrot.lane.b32.xlu0 %v2567, 112
        %v3079 = vpop.permute.xlu0 %3078
        %3080 = vrot.lane.b32.xlu0 %v2536, 104
        %v3081 = vpop.permute.xlu0 %3080
        %3082 = vrot.lane.b32.xlu0 %v2537, 104
        %v3083 = vpop.permute.xlu0 %3082
        %3084 = vrot.lane.b32.xlu0 %v2538, 104
        %v3085 = vpop.permute.xlu0 %3084
        %3086 = vrot.lane.b32.xlu0 %v2539, 104
        %v3087 = vpop.permute.xlu0 %3086
        %3088 = vrot.lane.b32.xlu0 %v2540, 104
        %v3089 = vpop.permute.xlu0 %3088
        %3090 = vrot.lane.b32.xlu0 %v2541, 104
        %v3091 = vpop.permute.xlu0 %3090
        %3092 = vrot.lane.b32.xlu0 %v2542, 104
        %v3093 = vpop.permute.xlu0 %3092
        %3094 = vrot.lane.b32.xlu0 %v2543, 104
        %v3095 = vpop.permute.xlu0 %3094
        %3096 = vrot.lane.b32.xlu0 %v2544, 104
        %v3097 = vpop.permute.xlu0 %3096
        %3098 = vrot.lane.b32.xlu0 %v2545, 104
        %v3099 = vpop.permute.xlu0 %3098
        %3100 = vrot.lane.b32.xlu0 %v2546, 104
        %v3101 = vpop.permute.xlu0 %3100
        %3102 = vrot.lane.b32.xlu0 %v2547, 104
        %v3103 = vpop.permute.xlu0 %3102
        %3104 = vrot.lane.b32.xlu0 %v2548, 104
        %v3105 = vpop.permute.xlu0 %3104
        %3106 = vrot.lane.b32.xlu0 %v2549, 104
        %v3107 = vpop.permute.xlu0 %3106
        %3108 = vrot.lane.b32.xlu0 %v2550, 104
        %v3109 = vpop.permute.xlu0 %3108
        %3110 = vrot.lane.b32.xlu0 %v2551, 104
        %v3111 = vpop.permute.xlu0 %3110
        %3112 = vrot.lane.b32.xlu0 %v2552, 104
        %v3113 = vpop.permute.xlu0 %3112
        %3114 = vrot.lane.b32.xlu0 %v2553, 104
        %v3115 = vpop.permute.xlu0 %3114
        %3116 = vrot.lane.b32.xlu0 %v2554, 104
        %v3117 = vpop.permute.xlu0 %3116
        %3118 = vrot.lane.b32.xlu0 %v2555, 104
        %v3119 = vpop.permute.xlu0 %3118
        %3120 = vrot.lane.b32.xlu0 %v2556, 104
        %v3121 = vpop.permute.xlu0 %3120
        %3122 = vrot.lane.b32.xlu0 %v2557, 104
        %v3123 = vpop.permute.xlu0 %3122
        %3124 = vrot.lane.b32.xlu0 %v2558, 104
        %v3125 = vpop.permute.xlu0 %3124
        %3126 = vrot.lane.b32.xlu0 %v2559, 104
        %v3127 = vpop.permute.xlu0 %3126
        %3128 = vrot.lane.b32.xlu0 %v2560, 104
        %v3129 = vpop.permute.xlu0 %3128
        %3130 = vrot.lane.b32.xlu0 %v2561, 104
        %v3131 = vpop.permute.xlu0 %3130
        %3132 = vrot.lane.b32.xlu0 %v2562, 104
        %v3133 = vpop.permute.xlu0 %3132
        %3134 = vrot.lane.b32.xlu0 %v2563, 104
        %v3135 = vpop.permute.xlu0 %3134
        %3136 = vrot.lane.b32.xlu0 %v2564, 104
        %v3137 = vpop.permute.xlu0 %3136
        %3138 = vrot.lane.b32.xlu0 %v2565, 104
        %v3139 = vpop.permute.xlu0 %3138
        %3140 = vrot.lane.b32.xlu0 %v2566, 104
        %v3141 = vpop.permute.xlu0 %3140
        %3142 = vrot.lane.b32.xlu0 %v2567, 104
        %v3143 = vpop.permute.xlu0 %3142
        %3176 = vrot.lane.b32.xlu0 %v2696, 120
        %v3177 = vpop.permute.xlu0 %3176
        %3178 = vrot.lane.b32.xlu0 %v2697, 120
        %v3179 = vpop.permute.xlu0 %3178
        %3180 = vrot.lane.b32.xlu0 %v2698, 120
        %v3181 = vpop.permute.xlu0 %3180
        %3182 = vrot.lane.b32.xlu0 %v2699, 120
        %v3183 = vpop.permute.xlu0 %3182
        %3184 = vrot.lane.b32.xlu0 %v2700, 120
        %v3185 = vpop.permute.xlu0 %3184
        %3186 = vrot.lane.b32.xlu0 %v2701, 120
        %v3187 = vpop.permute.xlu0 %3186
        %3188 = vrot.lane.b32.xlu0 %v2702, 120
        %v3189 = vpop.permute.xlu0 %3188
        %3190 = vrot.lane.b32.xlu0 %v2703, 120
        %v3191 = vpop.permute.xlu0 %3190
        %3192 = vrot.lane.b32.xlu0 %v2704, 120
        %v3193 = vpop.permute.xlu0 %3192
        %3194 = vrot.lane.b32.xlu0 %v2705, 120
        %v3195 = vpop.permute.xlu0 %3194
        %3196 = vrot.lane.b32.xlu0 %v2706, 120
        %v3197 = vpop.permute.xlu0 %3196
        %3198 = vrot.lane.b32.xlu0 %v2707, 120
        %v3199 = vpop.permute.xlu0 %3198
        %3200 = vrot.lane.b32.xlu0 %v2708, 120
        %v3201 = vpop.permute.xlu0 %3200
        %3202 = vrot.lane.b32.xlu0 %v2709, 120
        %v3203 = vpop.permute.xlu0 %3202
        %3204 = vrot.lane.b32.xlu0 %v2710, 120
        %v3205 = vpop.permute.xlu0 %3204
        %3206 = vrot.lane.b32.xlu0 %v2711, 120
        %v3207 = vpop.permute.xlu0 %3206
        %3208 = vrot.lane.b32.xlu0 %v2712, 120
        %v3209 = vpop.permute.xlu0 %3208
        %3210 = vrot.lane.b32.xlu0 %v2713, 120
        %v3211 = vpop.permute.xlu0 %3210
        %3212 = vrot.lane.b32.xlu0 %v2714, 120
        %v3213 = vpop.permute.xlu0 %3212
        %3214 = vrot.lane.b32.xlu0 %v2715, 120
        %v3215 = vpop.permute.xlu0 %3214
        %3216 = vrot.lane.b32.xlu0 %v2716, 120
        %v3217 = vpop.permute.xlu0 %3216
        %3218 = vrot.lane.b32.xlu0 %v2717, 120
        %v3219 = vpop.permute.xlu0 %3218
        %3220 = vrot.lane.b32.xlu0 %v2718, 120
        %v3221 = vpop.permute.xlu0 %3220
        %3222 = vrot.lane.b32.xlu0 %v2719, 120
        %v3223 = vpop.permute.xlu0 %3222
        %3224 = vrot.lane.b32.xlu0 %v2720, 120
        %v3225 = vpop.permute.xlu0 %3224
        %3226 = vrot.lane.b32.xlu0 %v2721, 120
        %v3227 = vpop.permute.xlu0 %3226
        %3228 = vrot.lane.b32.xlu0 %v2722, 120
        %v3229 = vpop.permute.xlu0 %3228
        %3230 = vrot.lane.b32.xlu0 %v2723, 120
        %v3231 = vpop.permute.xlu0 %3230
        %3232 = vrot.lane.b32.xlu0 %v2724, 120
        %v3233 = vpop.permute.xlu0 %3232
        %3234 = vrot.lane.b32.xlu0 %v2725, 120
        %v3235 = vpop.permute.xlu0 %3234
        %3236 = vrot.lane.b32.xlu0 %v2726, 120
        %v3237 = vpop.permute.xlu0 %3236
        %3238 = vrot.lane.b32.xlu0 %v2727, 120
        %v3239 = vpop.permute.xlu0 %3238
        %3240 = vrot.lane.b32.xlu0 %v2696, 112
        %v3241 = vpop.permute.xlu0 %3240
        %3242 = vrot.lane.b32.xlu0 %v2697, 112
        %v3243 = vpop.permute.xlu0 %3242
        %3244 = vrot.lane.b32.xlu0 %v2698, 112
        %v3245 = vpop.permute.xlu0 %3244
        %3246 = vrot.lane.b32.xlu0 %v2699, 112
        %v3247 = vpop.permute.xlu0 %3246
        %3248 = vrot.lane.b32.xlu0 %v2700, 112
        %v3249 = vpop.permute.xlu0 %3248
        %3250 = vrot.lane.b32.xlu0 %v2701, 112
        %v3251 = vpop.permute.xlu0 %3250
        %3252 = vrot.lane.b32.xlu0 %v2702, 112
        %v3253 = vpop.permute.xlu0 %3252
        %3254 = vrot.lane.b32.xlu0 %v2703, 112
        %v3255 = vpop.permute.xlu0 %3254
        %3256 = vrot.lane.b32.xlu0 %v2704, 112
        %v3257 = vpop.permute.xlu0 %3256
        %3258 = vrot.lane.b32.xlu0 %v2705, 112
        %v3259 = vpop.permute.xlu0 %3258
        %3260 = vrot.lane.b32.xlu0 %v2706, 112
        %v3261 = vpop.permute.xlu0 %3260
        %3262 = vrot.lane.b32.xlu0 %v2707, 112
        %v3263 = vpop.permute.xlu0 %3262
        %3264 = vrot.lane.b32.xlu0 %v2708, 112
        %v3265 = vpop.permute.xlu0 %3264
        %3266 = vrot.lane.b32.xlu0 %v2709, 112
        %v3267 = vpop.permute.xlu0 %3266
        %3268 = vrot.lane.b32.xlu0 %v2710, 112
        %v3269 = vpop.permute.xlu0 %3268
        %3270 = vrot.lane.b32.xlu0 %v2711, 112
        %v3271 = vpop.permute.xlu0 %3270
        %3272 = vrot.lane.b32.xlu0 %v2712, 112
        %v3273 = vpop.permute.xlu0 %3272
        %3274 = vrot.lane.b32.xlu0 %v2713, 112
        %v3275 = vpop.permute.xlu0 %3274
        %3276 = vrot.lane.b32.xlu0 %v2714, 112
        %v3277 = vpop.permute.xlu0 %3276
        %3278 = vrot.lane.b32.xlu0 %v2715, 112
        %v3279 = vpop.permute.xlu0 %3278
        %3280 = vrot.lane.b32.xlu0 %v2716, 112
        %v3281 = vpop.permute.xlu0 %3280
        %3282 = vrot.lane.b32.xlu0 %v2717, 112
        %v3283 = vpop.permute.xlu0 %3282
        %3284 = vrot.lane.b32.xlu0 %v2718, 112
        %v3285 = vpop.permute.xlu0 %3284
        %3286 = vrot.lane.b32.xlu0 %v2719, 112
        %v3287 = vpop.permute.xlu0 %3286
        %3288 = vrot.lane.b32.xlu0 %v2720, 112
        %v3289 = vpop.permute.xlu0 %3288
        %3290 = vrot.lane.b32.xlu0 %v2721, 112
        %v3291 = vpop.permute.xlu0 %3290
        %3292 = vrot.lane.b32.xlu0 %v2722, 112
        %v3293 = vpop.permute.xlu0 %3292
        %3294 = vrot.lane.b32.xlu0 %v2723, 112
        %v3295 = vpop.permute.xlu0 %3294
        %3296 = vrot.lane.b32.xlu0 %v2724, 112
        %v3297 = vpop.permute.xlu0 %3296
        %3298 = vrot.lane.b32.xlu0 %v2725, 112
        %v3299 = vpop.permute.xlu0 %3298
        %3300 = vrot.lane.b32.xlu0 %v2726, 112
        %v3301 = vpop.permute.xlu0 %3300
        %3302 = vrot.lane.b32.xlu0 %v2727, 112
        %v3303 = vpop.permute.xlu0 %3302
        %3304 = vrot.lane.b32.xlu0 %v2696, 104
        %v3305 = vpop.permute.xlu0 %3304
        %3306 = vrot.lane.b32.xlu0 %v2697, 104
        %v3307 = vpop.permute.xlu0 %3306
        %3308 = vrot.lane.b32.xlu0 %v2698, 104
        %v3309 = vpop.permute.xlu0 %3308
        %3310 = vrot.lane.b32.xlu0 %v2699, 104
        %v3311 = vpop.permute.xlu0 %3310
        %3312 = vrot.lane.b32.xlu0 %v2700, 104
        %v3313 = vpop.permute.xlu0 %3312
        %3314 = vrot.lane.b32.xlu0 %v2701, 104
        %v3315 = vpop.permute.xlu0 %3314
        %3316 = vrot.lane.b32.xlu0 %v2702, 104
        %v3317 = vpop.permute.xlu0 %3316
        %3318 = vrot.lane.b32.xlu0 %v2703, 104
        %v3319 = vpop.permute.xlu0 %3318
        %3320 = vrot.lane.b32.xlu0 %v2704, 104
        %v3321 = vpop.permute.xlu0 %3320
        %3322 = vrot.lane.b32.xlu0 %v2705, 104
        %v3323 = vpop.permute.xlu0 %3322
        %3324 = vrot.lane.b32.xlu0 %v2706, 104
        %v3325 = vpop.permute.xlu0 %3324
        %3326 = vrot.lane.b32.xlu0 %v2707, 104
        %v3327 = vpop.permute.xlu0 %3326
        %3328 = vrot.lane.b32.xlu0 %v2708, 104
        %v3329 = vpop.permute.xlu0 %3328
        %3330 = vrot.lane.b32.xlu0 %v2709, 104
        %v3331 = vpop.permute.xlu0 %3330
        %3332 = vrot.lane.b32.xlu0 %v2710, 104
        %v3333 = vpop.permute.xlu0 %3332
        %3334 = vrot.lane.b32.xlu0 %v2711, 104
        %v3335 = vpop.permute.xlu0 %3334
        %3336 = vrot.lane.b32.xlu0 %v2712, 104
        %v3337 = vpop.permute.xlu0 %3336
        %3338 = vrot.lane.b32.xlu0 %v2713, 104
        %v3339 = vpop.permute.xlu0 %3338
        %3340 = vrot.lane.b32.xlu0 %v2714, 104
        %v3341 = vpop.permute.xlu0 %3340
        %3342 = vrot.lane.b32.xlu0 %v2715, 104
        %v3343 = vpop.permute.xlu0 %3342
        %3344 = vrot.lane.b32.xlu0 %v2716, 104
        %v3345 = vpop.permute.xlu0 %3344
        %3346 = vrot.lane.b32.xlu0 %v2717, 104
        %v3347 = vpop.permute.xlu0 %3346
        %3348 = vrot.lane.b32.xlu0 %v2718, 104
        %v3349 = vpop.permute.xlu0 %3348
        %3350 = vrot.lane.b32.xlu0 %v2719, 104
        %v3351 = vpop.permute.xlu0 %3350
        %3352 = vrot.lane.b32.xlu0 %v2720, 104
        %v3353 = vpop.permute.xlu0 %3352
        %3354 = vrot.lane.b32.xlu0 %v2721, 104
        %v3355 = vpop.permute.xlu0 %3354
        %3356 = vrot.lane.b32.xlu0 %v2722, 104
        %v3357 = vpop.permute.xlu0 %3356
        %3358 = vrot.lane.b32.xlu0 %v2723, 104
        %v3359 = vpop.permute.xlu0 %3358
        %3360 = vrot.lane.b32.xlu0 %v2724, 104
        %v3361 = vpop.permute.xlu0 %3360
        %3362 = vrot.lane.b32.xlu0 %v2725, 104
        %v3363 = vpop.permute.xlu0 %3362
        %3364 = vrot.lane.b32.xlu0 %v2726, 104
        %v3365 = vpop.permute.xlu0 %3364
        %3366 = vrot.lane.b32.xlu0 %v2727, 104
        %v3367 = vpop.permute.xlu0 %3366
        %3368 = vrot.lane.b32.xlu0 %v2536, 96
        %v3369 = vpop.permute.xlu0 %3368
        %3370 = vrot.lane.b32.xlu0 %v2537, 96
        %v3371 = vpop.permute.xlu0 %3370
        %3372 = vrot.lane.b32.xlu0 %v2538, 96
        %v3373 = vpop.permute.xlu0 %3372
        %3374 = vrot.lane.b32.xlu0 %v2539, 96
        %v3375 = vpop.permute.xlu0 %3374
        %3376 = vrot.lane.b32.xlu0 %v2540, 96
        %v3377 = vpop.permute.xlu0 %3376
        %3378 = vrot.lane.b32.xlu0 %v2541, 96
        %v3379 = vpop.permute.xlu0 %3378
        %3380 = vrot.lane.b32.xlu0 %v2542, 96
        %v3381 = vpop.permute.xlu0 %3380
        %3382 = vrot.lane.b32.xlu0 %v2543, 96
        %v3383 = vpop.permute.xlu0 %3382
        %vm3384 = vcmask 64512
        %v3385 = vsel %vm3384, %v2344, 0
        %v3387 = vsel %vm3384, %v2348, 0
        %v3389 = vsel %vm3384, %v2352, 0
        %v3391 = vsel %vm3384, %v2356, 0
        %v3393 = vsel %vm3384, %v2360, 0
        %v3395 = vsel %vm3384, %v2364, 0
        %v3397 = vsel %vm3384, %v2368, 0
        %v3399 = vsel %vm3384, %v2372, 0
        %v3401 = vsel %vm3384, %v3369, 0
        %v3403 = vsel %vm3384, %v3371, 0
        %v3405 = vsel %vm3384, %v3373, 0
        %v3407 = vsel %vm3384, %v3375, 0
        %v3409 = vsel %vm3384, %v3377, 0
        %v3411 = vsel %vm3384, %v3379, 0
        %v3413 = vsel %vm3384, %v3381, 0
        %v3415 = vsel %vm3384, %v3383, 0
        %3417 = vmatprep.subr.mxu0 0.0
        %3418 = vmatpush1.xpose.msra.mxu0 %v3401
        %3419 = vmatprep.subr.mxu0 0.0
        %3420 = vmatpush1.xpose.msra.mxu0 %v3403
        %3421 = vmatprep.subr.mxu0 0.0
        %3422 = vmatpush1.xpose.msra.mxu0 %v3405
        %3423 = vmatprep.subr.mxu0 0.0
        %3424 = vmatpush1.xpose.msra.mxu0 %v3407
        %3425 = vmatprep.subr.mxu0 0.0
        %3426 = vmatpush1.xpose.msra.mxu0 %v3409
        %3427 = vmatprep.subr.mxu0 0.0
        %3428 = vmatpush1.xpose.msra.mxu0 %v3411
        %3429 = vmatprep.subr.mxu0 0.0
        %3430 = vmatpush1.xpose.msra.mxu0 %v3413
        %3431 = vmatprep.subr.mxu0 0.0
        %3432 = vmatpush1.xpose.msra.mxu0 %v3415
        %3433 = vmatprep.subr.mxu0 0.0
        %3434 = vmatpush1.xpose.msra.mxu0 0.0
        %3435 = vmatprep.subr.mxu0 0.0
        %3436 = vmatpush1.xpose.msra.mxu0 0.0
        %3437 = vmatprep.subr.mxu0 0.0
        %3438 = vmatpush1.xpose.msra.mxu0 0.0
        %3439 = vmatprep.subr.mxu0 0.0
        %3440 = vmatpush1.xpose.msra.mxu0 0.0
        %3441 = vmatprep.subr.mxu0 0.0
        %3442 = vmatpush1.xpose.msra.mxu0 0.0
        %3443 = vmatprep.subr.mxu0 0.0
        %3444 = vmatpush1.xpose.msra.mxu0 0.0
        %3445 = vmatprep.subr.mxu0 0.0
        %3446 = vmatpush1.xpose.msra.mxu0 0.0
        %3447 = vmatprep.subr.mxu0 0.0
        %3448 = vmatpush1.xpose.msra.mxu0 0.0
        %3449 = vmatprep.subr.mxu0 0.0
        %3450 = vmatpush1.xpose.msra.mxu0 0.0
        %3451 = vmatprep.subr.mxu0 0.0
        %3452 = vmatpush1.xpose.msra.mxu0 0.0
        %3453 = vmatprep.subr.mxu0 0.0
        %3454 = vmatpush1.xpose.msra.mxu0 0.0
        %3455 = vmatprep.subr.mxu0 0.0
        %3456 = vmatpush1.xpose.msra.mxu0 0.0
        %3457 = vmatprep.subr.mxu0 0.0
        %3458 = vmatpush1.xpose.msra.mxu0 0.0
        %3459 = vmatprep.subr.mxu0 0.0
        %3460 = vmatpush1.xpose.msra.mxu0 0.0
        %3461 = vmatprep.subr.mxu0 0.0
        %3462 = vmatpush1.xpose.msra.mxu0 0.0
        %3463 = vmatprep.subr.mxu0 0.0
        %3464 = vmatpush1.xpose.msra.mxu0 0.0
        %3465 = vmatprep.subr.mxu0 0.0
        %3466 = vmatpush1.xpose.msra.mxu0 0.0
        %3467 = vmatprep.subr.mxu0 0.0
        %3468 = vmatpush1.xpose.msra.mxu0 0.0
        %3469 = vmatprep.subr.mxu0 0.0
        %3470 = vmatpush1.xpose.msra.mxu0 0.0
        %3471 = vmatprep.subr.mxu0 0.0
        %3472 = vmatpush1.xpose.msra.mxu0 0.0
        %3473 = vmatprep.subr.mxu0 0.0
        %3474 = vmatpush1.xpose.msra.mxu0 0.0
        %3475 = vmatprep.subr.mxu0 0.0
        %3476 = vmatpush1.xpose.msra.mxu0 0.0
        %3477 = vmatprep.subr.mxu0 0.0
        %3478 = vmatpush1.xpose.msra.mxu0 0.0
        %3479 = vmatprep.subr.mxu0 0.0
        %3480 = vmatpush1.xpose.msra.mxu0 0.0
        %3481 = vmatprep.mubr.f32.mxu0 0.0
        %3482 = vmatmul.mubr.f32.gmra.mrb[0].mxu0 %v3385
        %v3483 = vpop.f32.mrb[0].mxu0
        %v3484 = vadd.f32 0.0, %v3483
        %v3485 = vpop.f32.mrb[0].mxu0
        %3486 = vmatprep.mubr.f32.mxu0 0.0
        %3487 = vmatmul.mubr.f32.gmra.mrb[0].mxu0 %v3387
        %v3488 = vpop.f32.mrb[0].mxu0
        %v3489 = vadd.f32 0.0, %v3488
        %v3490 = vpop.f32.mrb[0].mxu0
        %3491 = vmatprep.mubr.f32.mxu0 0.0
        %3492 = vmatmul.mubr.f32.gmra.mrb[0].mxu0 %v3389
        %v3493 = vpop.f32.mrb[0].mxu0
        %v3494 = vadd.f32 0.0, %v3493
        %v3495 = vpop.f32.mrb[0].mxu0
        %3496 = vmatprep.mubr.f32.mxu0 0.0
        %3497 = vmatmul.mubr.f32.gmra.mrb[0].mxu0 %v3391
        %v3498 = vpop.f32.mrb[0].mxu0
        %v3499 = vadd.f32 0.0, %v3498
        %v3500 = vpop.f32.mrb[0].mxu0
        %3501 = vmatprep.mubr.f32.mxu0 0.0
        %3502 = vmatmul.mubr.f32.gmra.mrb[0].mxu0 %v3393
        %v3503 = vpop.f32.mrb[0].mxu0
        %v3504 = vadd.f32 0.0, %v3503
        %v3505 = vpop.f32.mrb[0].mxu0
        %3506 = vmatprep.mubr.f32.mxu0 0.0
        %3507 = vmatmul.mubr.f32.gmra.mrb[0].mxu0 %v3395
        %v3508 = vpop.f32.mrb[0].mxu0
        %v3509 = vadd.f32 0.0, %v3508
        %v3510 = vpop.f32.mrb[0].mxu0
        %3511 = vmatprep.mubr.f32.mxu0 0.0
        %3512 = vmatmul.mubr.f32.gmra.mrb[0].mxu0 %v3397
        %v3513 = vpop.f32.mrb[0].mxu0
        %v3514 = vadd.f32 0.0, %v3513
        %v3515 = vpop.f32.mrb[0].mxu0
        %3516 = vmatprep.mubr.f32.mxu0 0.0
        %3517 = vmatmul.mubr.f32.gmra.mrb[0].mxu0 %v3399
        %v3518 = vpop.f32.mrb[0].mxu0
        %v3519 = vadd.f32 0.0, %v3518
        %v3520 = vpop.f32.mrb[0].mxu0
        %3521 = vdwg.mxu0
        %3522 = vrot.lane.b32.xlu0 %v2544, 96
        %v3523 = vpop.permute.xlu0 %3522
        %3524 = vrot.lane.b32.xlu0 %v2545, 96
        %v3525 = vpop.permute.xlu0 %3524
        %3526 = vrot.lane.b32.xlu0 %v2546, 96
        %v3527 = vpop.permute.xlu0 %3526
        %3528 = vrot.lane.b32.xlu0 %v2547, 96
        %v3529 = vpop.permute.xlu0 %3528
        %3530 = vrot.lane.b32.xlu0 %v2548, 96
        %v3531 = vpop.permute.xlu0 %3530
        %3532 = vrot.lane.b32.xlu0 %v2549, 96
        %v3533 = vpop.permute.xlu0 %3532
        %3534 = vrot.lane.b32.xlu0 %v2550, 96
        %v3535 = vpop.permute.xlu0 %3534
        %3536 = vrot.lane.b32.xlu0 %v2551, 96
        %v3537 = vpop.permute.xlu0 %3536
        %v3538 = vsel %vm3384, %v2346, 0
        %v3540 = vsel %vm3384, %v2350, 0
        %v3542 = vsel %vm3384, %v2354, 0
        %v3544 = vsel %vm3384, %v2358, 0
        %v3546 = vsel %vm3384, %v2362, 0
        %v3548 = vsel %vm3384, %v2366, 0
        %v3550 = vsel %vm3384, %v2370, 0
        %v3552 = vsel %vm3384, %v2374, 0
        %v3554 = vsel %vm3384, %v3523, 0
        %v3556 = vsel %vm3384, %v3525, 0
        %v3558 = vsel %vm3384, %v3527, 0
        %v3560 = vsel %vm3384, %v3529, 0
        %v3562 = vsel %vm3384, %v3531, 0
        %v3564 = vsel %vm3384, %v3533, 0
        %v3566 = vsel %vm3384, %v3535, 0
        %v3568 = vsel %vm3384, %v3537, 0
        %3570 = vmatprep.subr.mxu0 0.0
        %3571 = vmatpush1.xpose.msra.mxu0 %v3554
        %3572 = vmatprep.subr.mxu0 0.0
        %3573 = vmatpush1.xpose.msra.mxu0 %v3556
        %3574 = vmatprep.subr.mxu0 0.0
        %3575 = vmatpush1.xpose.msra.mxu0 %v3558
        %3576 = vmatprep.subr.mxu0 0.0
        %3577 = vmatpush1.xpose.msra.mxu0 %v3560
        %3578 = vmatprep.subr.mxu0 0.0
        %3579 = vmatpush1.xpose.msra.mxu0 %v3562
        %3580 = vmatprep.subr.mxu0 0.0
        %3581 = vmatpush1.xpose.msra.mxu0 %v3564
        %3582 = vmatprep.subr.mxu0 0.0
        %3583 = vmatpush1.xpose.msra.mxu0 %v3566
        %3584 = vmatprep.subr.mxu0 0.0
        %3585 = vmatpush1.xpose.msra.mxu0 %v3568
        %3586 = vmatprep.subr.mxu0 0.0
        %3587 = vmatpush1.xpose.msra.mxu0 0.0
        %3588 = vmatprep.subr.mxu0 0.0
        %3589 = vmatpush1.xpose.msra.mxu0 0.0
        %3590 = vmatprep.subr.mxu0 0.0
        %3591 = vmatpush1.xpose.msra.mxu0 0.0
        %3592 = vmatprep.subr.mxu0 0.0
        %3593 = vmatpush1.xpose.msra.mxu0 0.0
        %3594 = vmatprep.subr.mxu0 0.0
        %3595 = vmatpush1.xpose.msra.mxu0 0.0
        %3596 = vmatprep.subr.mxu0 0.0
        %3597 = vmatpush1.xpose.msra.mxu0 0.0
        %3598 = vmatprep.subr.mxu0 0.0
        %3599 = vmatpush1.xpose.msra.mxu0 0.0
        %3600 = vmatprep.subr.mxu0 0.0
        %3601 = vmatpush1.xpose.msra.mxu0 0.0
        %3602 = vmatprep.subr.mxu0 0.0
        %3603 = vmatpush1.xpose.msra.mxu0 0.0
        %3604 = vmatprep.subr.mxu0 0.0
        %3605 = vmatpush1.xpose.msra.mxu0 0.0
        %3606 = vmatprep.subr.mxu0 0.0
        %3607 = vmatpush1.xpose.msra.mxu0 0.0
        %3608 = vmatprep.subr.mxu0 0.0
        %3609 = vmatpush1.xpose.msra.mxu0 0.0
        %3610 = vmatprep.subr.mxu0 0.0
        %3611 = vmatpush1.xpose.msra.mxu0 0.0
        %3612 = vmatprep.subr.mxu0 0.0
        %3613 = vmatpush1.xpose.msra.mxu0 0.0
        %3614 = vmatprep.subr.mxu0 0.0
        %3615 = vmatpush1.xpose.msra.mxu0 0.0
        %3616 = vmatprep.subr.mxu0 0.0
        %3617 = vmatpush1.xpose.msra.mxu0 0.0
        %3618 = vmatprep.subr.mxu0 0.0
        %3619 = vmatpush1.xpose.msra.mxu0 0.0
        %3620 = vmatprep.subr.mxu0 0.0
        %3621 = vmatpush1.xpose.msra.mxu0 0.0
        %3622 = vmatprep.subr.mxu0 0.0
        %3623 = vmatpush1.xpose.msra.mxu0 0.0
        %3624 = vmatprep.subr.mxu0 0.0
        %3625 = vmatpush1.xpose.msra.mxu0 0.0
        %3626 = vmatprep.subr.mxu0 0.0
        %3627 = vmatpush1.xpose.msra.mxu0 0.0
        %3628 = vmatprep.subr.mxu0 0.0
        %3629 = vmatpush1.xpose.msra.mxu0 0.0
        %3630 = vmatprep.subr.mxu0 0.0
        %3631 = vmatpush1.xpose.msra.mxu0 0.0
        %3632 = vmatprep.subr.mxu0 0.0
        %3633 = vmatpush1.xpose.msra.mxu0 0.0
        %3634 = vmatprep.mubr.f32.mxu0 0.0
        %3635 = vmatmul.mubr.f32.gmra.mrb[0].mxu0 %v3538
        %v3636 = vpop.f32.mrb[0].mxu0
        %v3637 = vadd.f32 0.0, %v3636
        %v3638 = vpop.f32.mrb[0].mxu0
        %3639 = vmatprep.mubr.f32.mxu0 0.0
        %3640 = vmatmul.mubr.f32.gmra.mrb[0].mxu0 %v3540
        %v3641 = vpop.f32.mrb[0].mxu0
        %v3642 = vadd.f32 0.0, %v3641
        %v3643 = vpop.f32.mrb[0].mxu0
        %3644 = vmatprep.mubr.f32.mxu0 0.0
        %3645 = vmatmul.mubr.f32.gmra.mrb[0].mxu0 %v3542
        %v3646 = vpop.f32.mrb[0].mxu0
        %v3647 = vadd.f32 0.0, %v3646
        %v3648 = vpop.f32.mrb[0].mxu0
        %3649 = vmatprep.mubr.f32.mxu0 0.0
        %3650 = vmatmul.mubr.f32.gmra.mrb[0].mxu0 %v3544
        %v3651 = vpop.f32.mrb[0].mxu0
        %v3652 = vadd.f32 0.0, %v3651
        %v3653 = vpop.f32.mrb[0].mxu0
        %3654 = vmatprep.mubr.f32.mxu0 0.0
        %3655 = vmatmul.mubr.f32.gmra.mrb[0].mxu0 %v3546
        %v3656 = vpop.f32.mrb[0].mxu0
        %v3657 = vadd.f32 0.0, %v3656
        %v3658 = vpop.f32.mrb[0].mxu0
        %3659 = vmatprep.mubr.f32.mxu0 0.0
        %3660 = vmatmul.mubr.f32.gmra.mrb[0].mxu0 %v3548
        %v3661 = vpop.f32.mrb[0].mxu0
        %v3662 = vadd.f32 0.0, %v3661
        %v3663 = vpop.f32.mrb[0].mxu0
        %3664 = vmatprep.mubr.f32.mxu0 0.0
        %3665 = vmatmul.mubr.f32.gmra.mrb[0].mxu0 %v3550
        %v3666 = vpop.f32.mrb[0].mxu0
        %v3667 = vadd.f32 0.0, %v3666
        %v3668 = vpop.f32.mrb[0].mxu0
        %3669 = vmatprep.mubr.f32.mxu0 0.0
        %3670 = vmatmul.mubr.f32.gmra.mrb[0].mxu0 %v3552
        %v3671 = vpop.f32.mrb[0].mxu0
        %v3672 = vadd.f32 0.0, %v3671
        %v3673 = vpop.f32.mrb[0].mxu0
        %3674 = vdwg.mxu0
        %3675 = vrot.lane.b32.xlu0 %v2552, 96
        %v3676 = vpop.permute.xlu0 %3675
        %3677 = vrot.lane.b32.xlu0 %v2553, 96
        %v3678 = vpop.permute.xlu0 %3677
        %3679 = vrot.lane.b32.xlu0 %v2554, 96
        %v3680 = vpop.permute.xlu0 %3679
        %3681 = vrot.lane.b32.xlu0 %v2555, 96
        %v3682 = vpop.permute.xlu0 %3681
        %3683 = vrot.lane.b32.xlu0 %v2556, 96
        %v3684 = vpop.permute.xlu0 %3683
        %3685 = vrot.lane.b32.xlu0 %v2557, 96
        %v3686 = vpop.permute.xlu0 %3685
        %3687 = vrot.lane.b32.xlu0 %v2558, 96
        %v3688 = vpop.permute.xlu0 %3687
        %3689 = vrot.lane.b32.xlu0 %v2559, 96
        %v3690 = vpop.permute.xlu0 %3689
        %v3691 = vsel %vm3384, %v2376, 0
        %v3693 = vsel %vm3384, %v2380, 0
        %v3695 = vsel %vm3384, %v2384, 0
        %v3697 = vsel %vm3384, %v2388, 0
        %v3699 = vsel %vm3384, %v2392, 0
        %v3701 = vsel %vm3384, %v2396, 0
        %v3703 = vsel %vm3384, %v2400, 0
        %v3705 = vsel %vm3384, %v2404, 0
        %v3707 = vsel %vm3384, %v3676, 0
        %v3709 = vsel %vm3384, %v3678, 0
        %v3711 = vsel %vm3384, %v3680, 0
        %v3713 = vsel %vm3384, %v3682, 0
        %v3715 = vsel %vm3384, %v3684, 0
        %v3717 = vsel %vm3384, %v3686, 0
        %v3719 = vsel %vm3384, %v3688, 0
        %v3721 = vsel %vm3384, %v3690, 0
        %3723 = vmatprep.subr.mxu0 0.0
        %3724 = vmatpush1.xpose.msra.mxu0 %v3707
        %3725 = vmatprep.subr.mxu0 0.0
        %3726 = vmatpush1.xpose.msra.mxu0 %v3709
        %3727 = vmatprep.subr.mxu0 0.0
        %3728 = vmatpush1.xpose.msra.mxu0 %v3711
        %3729 = vmatprep.subr.mxu0 0.0
        %3730 = vmatpush1.xpose.msra.mxu0 %v3713
        %3731 = vmatprep.subr.mxu0 0.0
        %3732 = vmatpush1.xpose.msra.mxu0 %v3715
        %3733 = vmatprep.subr.mxu0 0.0
        %3734 = vmatpush1.xpose.msra.mxu0 %v3717
        %3735 = vmatprep.subr.mxu0 0.0
        %3736 = vmatpush1.xpose.msra.mxu0 %v3719
        %3737 = vmatprep.subr.mxu0 0.0
        %3738 = vmatpush1.xpose.msra.mxu0 %v3721
        %3739 = vmatprep.subr.mxu0 0.0
        %3740 = vmatpush1.xpose.msra.mxu0 0.0
        %3741 = vmatprep.subr.mxu0 0.0
        %3742 = vmatpush1.xpose.msra.mxu0 0.0
        %3743 = vmatprep.subr.mxu0 0.0
        %3744 = vmatpush1.xpose.msra.mxu0 0.0
        %3745 = vmatprep.subr.mxu0 0.0
        %3746 = vmatpush1.xpose.msra.mxu0 0.0
        %3747 = vmatprep.subr.mxu0 0.0
        %3748 = vmatpush1.xpose.msra.mxu0 0.0
        %3749 = vmatprep.subr.mxu0 0.0
        %3750 = vmatpush1.xpose.msra.mxu0 0.0
        %3751 = vmatprep.subr.mxu0 0.0
        %3752 = vmatpush1.xpose.msra.mxu0 0.0
        %3753 = vmatprep.subr.mxu0 0.0
        %3754 = vmatpush1.xpose.msra.mxu0 0.0
        %3755 = vmatprep.subr.mxu0 0.0
        %3756 = vmatpush1.xpose.msra.mxu0 0.0
        %3757 = vmatprep.subr.mxu0 0.0
        %3758 = vmatpush1.xpose.msra.mxu0 0.0
        %3759 = vmatprep.subr.mxu0 0.0
        %3760 = vmatpush1.xpose.msra.mxu0 0.0
        %3761 = vmatprep.subr.mxu0 0.0
        %3762 = vmatpush1.xpose.msra.mxu0 0.0
        %3763 = vmatprep.subr.mxu0 0.0
        %3764 = vmatpush1.xpose.msra.mxu0 0.0
        %3765 = vmatprep.subr.mxu0 0.0
        %3766 = vmatpush1.xpose.msra.mxu0 0.0
        %3767 = vmatprep.subr.mxu0 0.0
        %3768 = vmatpush1.xpose.msra.mxu0 0.0
        %3769 = vmatprep.subr.mxu0 0.0
        %3770 = vmatpush1.xpose.msra.mxu0 0.0
        %3771 = vmatprep.subr.mxu0 0.0
        %3772 = vmatpush1.xpose.msra.mxu0 0.0
        %3773 = vmatprep.subr.mxu0 0.0
        %3774 = vmatpush1.xpose.msra.mxu0 0.0
        %3775 = vmatprep.subr.mxu0 0.0
        %3776 = vmatpush1.xpose.msra.mxu0 0.0
        %3777 = vmatprep.subr.mxu0 0.0
        %3778 = vmatpush1.xpose.msra.mxu0 0.0
        %3779 = vmatprep.subr.mxu0 0.0
        %3780 = vmatpush1.xpose.msra.mxu0 0.0
        %3781 = vmatprep.subr.mxu0 0.0
        %3782 = vmatpush1.xpose.msra.mxu0 0.0
        %3783 = vmatprep.subr.mxu0 0.0
        %3784 = vmatpush1.xpose.msra.mxu0 0.0
        %3785 = vmatprep.subr.mxu0 0.0
        %3786 = vmatpush1.xpose.msra.mxu0 0.0
        %3787 = vmatprep.mubr.f32.mxu0 0.0
        %3788 = vmatmul.mubr.f32.gmra.mrb[0].mxu0 %v3691
        %v3789 = vpop.f32.mrb[0].mxu0
        %v3790 = vadd.f32 0.0, %v3789
        %v3791 = vpop.f32.mrb[0].mxu0
        %3792 = vmatprep.mubr.f32.mxu0 0.0
        %3793 = vmatmul.mubr.f32.gmra.mrb[0].mxu0 %v3693
        %v3794 = vpop.f32.mrb[0].mxu0
        %v3795 = vadd.f32 0.0, %v3794
        %v3796 = vpop.f32.mrb[0].mxu0
        %3797 = vmatprep.mubr.f32.mxu0 0.0
        %3798 = vmatmul.mubr.f32.gmra.mrb[0].mxu0 %v3695
        %v3799 = vpop.f32.mrb[0].mxu0
        %v3800 = vadd.f32 0.0, %v3799
        %v3801 = vpop.f32.mrb[0].mxu0
        %3802 = vmatprep.mubr.f32.mxu0 0.0
        %3803 = vmatmul.mubr.f32.gmra.mrb[0].mxu0 %v3697
        %v3804 = vpop.f32.mrb[0].mxu0
        %v3805 = vadd.f32 0.0, %v3804
        %v3806 = vpop.f32.mrb[0].mxu0
        %3807 = vmatprep.mubr.f32.mxu0 0.0
        %3808 = vmatmul.mubr.f32.gmra.mrb[0].mxu0 %v3699
        %v3809 = vpop.f32.mrb[0].mxu0
        %v3810 = vadd.f32 0.0, %v3809
        %v3811 = vpop.f32.mrb[0].mxu0
        %3812 = vmatprep.mubr.f32.mxu0 0.0
        %3813 = vmatmul.mubr.f32.gmra.mrb[0].mxu0 %v3701
        %v3814 = vpop.f32.mrb[0].mxu0
        %v3815 = vadd.f32 0.0, %v3814
        %v3816 = vpop.f32.mrb[0].mxu0
        %3817 = vmatprep.mubr.f32.mxu0 0.0
        %3818 = vmatmul.mubr.f32.gmra.mrb[0].mxu0 %v3703
        %v3819 = vpop.f32.mrb[0].mxu0
        %v3820 = vadd.f32 0.0, %v3819
        %v3821 = vpop.f32.mrb[0].mxu0
        %3822 = vmatprep.mubr.f32.mxu0 0.0
        %3823 = vmatmul.mubr.f32.gmra.mrb[0].mxu0 %v3705
        %v3824 = vpop.f32.mrb[0].mxu0
        %v3825 = vadd.f32 0.0, %v3824
        %v3826 = vpop.f32.mrb[0].mxu0
        %3827 = vdwg.mxu0
        %3828 = vrot.lane.b32.xlu0 %v2560, 96
        %v3829 = vpop.permute.xlu0 %3828
        %3830 = vrot.lane.b32.xlu0 %v2561, 96
        %v3831 = vpop.permute.xlu0 %3830
        %3832 = vrot.lane.b32.xlu0 %v2562, 96
        %v3833 = vpop.permute.xlu0 %3832
        %3834 = vrot.lane.b32.xlu0 %v2563, 96
        %v3835 = vpop.permute.xlu0 %3834
        %3836 = vrot.lane.b32.xlu0 %v2564, 96
        %v3837 = vpop.permute.xlu0 %3836
        %3838 = vrot.lane.b32.xlu0 %v2565, 96
        %v3839 = vpop.permute.xlu0 %3838
        %3840 = vrot.lane.b32.xlu0 %v2566, 96
        %v3841 = vpop.permute.xlu0 %3840
        %3842 = vrot.lane.b32.xlu0 %v2567, 96
        %v3843 = vpop.permute.xlu0 %3842
        %v3844 = vsel %vm3384, %v2378, 0
        %v3846 = vsel %vm3384, %v2382, 0
        %v3848 = vsel %vm3384, %v2386, 0
        %v3850 = vsel %vm3384, %v2390, 0
        %v3852 = vsel %vm3384, %v2394, 0
        %v3854 = vsel %vm3384, %v2398, 0
        %v3856 = vsel %vm3384, %v2402, 0
        %v3858 = vsel %vm3384, %v2406, 0
        %v3860 = vsel %vm3384, %v3829, 0
        %v3862 = vsel %vm3384, %v3831, 0
        %v3864 = vsel %vm3384, %v3833, 0
        %v3866 = vsel %vm3384, %v3835, 0
        %v3868 = vsel %vm3384, %v3837, 0
        %v3870 = vsel %vm3384, %v3839, 0
        %v3872 = vsel %vm3384, %v3841, 0
        %v3874 = vsel %vm3384, %v3843, 0
        %3876 = vmatprep.subr.mxu0 0.0
        %3877 = vmatpush1.xpose.msra.mxu0 %v3860
        %3878 = vmatprep.subr.mxu0 0.0
        %3879 = vmatpush1.xpose.msra.mxu0 %v3862
        %3880 = vmatprep.subr.mxu0 0.0
        %3881 = vmatpush1.xpose.msra.mxu0 %v3864
        %3882 = vmatprep.subr.mxu0 0.0
        %3883 = vmatpush1.xpose.msra.mxu0 %v3866
        %3884 = vmatprep.subr.mxu0 0.0
        %3885 = vmatpush1.xpose.msra.mxu0 %v3868
        %3886 = vmatprep.subr.mxu0 0.0
        %3887 = vmatpush1.xpose.msra.mxu0 %v3870
        %3888 = vmatprep.subr.mxu0 0.0
        %3889 = vmatpush1.xpose.msra.mxu0 %v3872
        %3890 = vmatprep.subr.mxu0 0.0
        %3891 = vmatpush1.xpose.msra.mxu0 %v3874
        %3892 = vmatprep.subr.mxu0 0.0
        %3893 = vmatpush1.xpose.msra.mxu0 0.0
        %3894 = vmatprep.subr.mxu0 0.0
        %3895 = vmatpush1.xpose.msra.mxu0 0.0
        %3896 = vmatprep.subr.mxu0 0.0
        %3897 = vmatpush1.xpose.msra.mxu0 0.0
        %3898 = vmatprep.subr.mxu0 0.0
        %3899 = vmatpush1.xpose.msra.mxu0 0.0
        %3900 = vmatprep.subr.mxu0 0.0
        %3901 = vmatpush1.xpose.msra.mxu0 0.0
        %3902 = vmatprep.subr.mxu0 0.0
        %3903 = vmatpush1.xpose.msra.mxu0 0.0
        %3904 = vmatprep.subr.mxu0 0.0
        %3905 = vmatpush1.xpose.msra.mxu0 0.0
        %3906 = vmatprep.subr.mxu0 0.0
        %3907 = vmatpush1.xpose.msra.mxu0 0.0
        %3908 = vmatprep.subr.mxu0 0.0
        %3909 = vmatpush1.xpose.msra.mxu0 0.0
        %3910 = vmatprep.subr.mxu0 0.0
        %3911 = vmatpush1.xpose.msra.mxu0 0.0
        %3912 = vmatprep.subr.mxu0 0.0
        %3913 = vmatpush1.xpose.msra.mxu0 0.0
        %3914 = vmatprep.subr.mxu0 0.0
        %3915 = vmatpush1.xpose.msra.mxu0 0.0
        %3916 = vmatprep.subr.mxu0 0.0
        %3917 = vmatpush1.xpose.msra.mxu0 0.0
        %3918 = vmatprep.subr.mxu0 0.0
        %3919 = vmatpush1.xpose.msra.mxu0 0.0
        %3920 = vmatprep.subr.mxu0 0.0
        %3921 = vmatpush1.xpose.msra.mxu0 0.0
        %3922 = vmatprep.subr.mxu0 0.0
        %3923 = vmatpush1.xpose.msra.mxu0 0.0
        %3924 = vmatprep.subr.mxu0 0.0
        %3925 = vmatpush1.xpose.msra.mxu0 0.0
        %3926 = vmatprep.subr.mxu0 0.0
        %3927 = vmatpush1.xpose.msra.mxu0 0.0
        %3928 = vmatprep.subr.mxu0 0.0
        %3929 = vmatpush1.xpose.msra.mxu0 0.0
        %3930 = vmatprep.subr.mxu0 0.0
        %3931 = vmatpush1.xpose.msra.mxu0 0.0
        %3932 = vmatprep.subr.mxu0 0.0
        %3933 = vmatpush1.xpose.msra.mxu0 0.0
        %3934 = vmatprep.subr.mxu0 0.0
        %3935 = vmatpush1.xpose.msra.mxu0 0.0
        %3936 = vmatprep.subr.mxu0 0.0
        %3937 = vmatpush1.xpose.msra.mxu0 0.0
        %3938 = vmatprep.subr.mxu0 0.0
        %3939 = vmatpush1.xpose.msra.mxu0 0.0
        %3940 = vmatprep.mubr.f32.mxu0 0.0
        %3941 = vmatmul.mubr.f32.gmra.mrb[0].mxu0 %v3844
        %v3942 = vpop.f32.mrb[0].mxu0
        %v3943 = vadd.f32 0.0, %v3942
        %v3944 = vpop.f32.mrb[0].mxu0
        %3945 = vmatprep.mubr.f32.mxu0 0.0
        %3946 = vmatmul.mubr.f32.gmra.mrb[0].mxu0 %v3846
        %v3947 = vpop.f32.mrb[0].mxu0
        %v3948 = vadd.f32 0.0, %v3947
        %v3949 = vpop.f32.mrb[0].mxu0
        %3950 = vmatprep.mubr.f32.mxu0 0.0
        %3951 = vmatmul.mubr.f32.gmra.mrb[0].mxu0 %v3848
        %v3952 = vpop.f32.mrb[0].mxu0
        %v3953 = vadd.f32 0.0, %v3952
        %v3954 = vpop.f32.mrb[0].mxu0
        %3955 = vmatprep.mubr.f32.mxu0 0.0
        %3956 = vmatmul.mubr.f32.gmra.mrb[0].mxu0 %v3850
        %v3957 = vpop.f32.mrb[0].mxu0
        %v3958 = vadd.f32 0.0, %v3957
        %v3959 = vpop.f32.mrb[0].mxu0
        %3960 = vmatprep.mubr.f32.mxu0 0.0
        %3961 = vmatmul.mubr.f32.gmra.mrb[0].mxu0 %v3852
        %v3962 = vpop.f32.mrb[0].mxu0
        %v3963 = vadd.f32 0.0, %v3962
        %v3964 = vpop.f32.mrb[0].mxu0
        %3965 = vmatprep.mubr.f32.mxu0 0.0
        %3966 = vmatmul.mubr.f32.gmra.mrb[0].mxu0 %v3854
        %v3967 = vpop.f32.mrb[0].mxu0
        %v3968 = vadd.f32 0.0, %v3967
        %v3969 = vpop.f32.mrb[0].mxu0
        %3970 = vmatprep.mubr.f32.mxu0 0.0
        %3971 = vmatmul.mubr.f32.gmra.mrb[0].mxu0 %v3856
        %v3972 = vpop.f32.mrb[0].mxu0
        %v3973 = vadd.f32 0.0, %v3972
        %v3974 = vpop.f32.mrb[0].mxu0
        %3975 = vmatprep.mubr.f32.mxu0 0.0
        %3976 = vmatmul.mubr.f32.gmra.mrb[0].mxu0 %v3858
        %v3977 = vpop.f32.mrb[0].mxu0
        %v3978 = vadd.f32 0.0, %v3977
        %v3979 = vpop.f32.mrb[0].mxu0
        %3980 = vdwg.mxu0
        %3981 = vrot.lane.b32.xlu0 %v2953, 96
        %v3982 = vpop.permute.xlu0 %3981
        %3983 = vrot.lane.b32.xlu0 %v2955, 96
        %v3984 = vpop.permute.xlu0 %3983
        %3985 = vrot.lane.b32.xlu0 %v2957, 96
        %v3986 = vpop.permute.xlu0 %3985
        %3987 = vrot.lane.b32.xlu0 %v2959, 96
        %v3988 = vpop.permute.xlu0 %3987
        %3989 = vrot.lane.b32.xlu0 %v2961, 96
        %v3990 = vpop.permute.xlu0 %3989
        %3991 = vrot.lane.b32.xlu0 %v2963, 96
        %v3992 = vpop.permute.xlu0 %3991
        %3993 = vrot.lane.b32.xlu0 %v2965, 96
        %v3994 = vpop.permute.xlu0 %3993
        %3995 = vrot.lane.b32.xlu0 %v2967, 96
        %v3996 = vpop.permute.xlu0 %3995
        %v3997 = vsel %vm3384, %v2729, 0
        %v3999 = vsel %vm3384, %v2731, 0
        %v4001 = vsel %vm3384, %v2733, 0
        %v4003 = vsel %vm3384, %v2735, 0
        %v4005 = vsel %vm3384, %v2737, 0
        %v4007 = vsel %vm3384, %v2739, 0
        %v4009 = vsel %vm3384, %v2741, 0
        %v4011 = vsel %vm3384, %v2743, 0
        %v4013 = vsel %vm3384, %v3982, 0
        %v4015 = vsel %vm3384, %v3984, 0
        %v4017 = vsel %vm3384, %v3986, 0
        %v4019 = vsel %vm3384, %v3988, 0
        %v4021 = vsel %vm3384, %v3990, 0
        %v4023 = vsel %vm3384, %v3992, 0
        %v4025 = vsel %vm3384, %v3994, 0
        %v4027 = vsel %vm3384, %v3996, 0
        %4029 = vmatprep.subr.mxu0 0.0
        %4030 = vmatpush1.xpose.msra.mxu0 %v4013
        %4031 = vmatprep.subr.mxu0 0.0
        %4032 = vmatpush1.xpose.msra.mxu0 %v4015
        %4033 = vmatprep.subr.mxu0 0.0
        %4034 = vmatpush1.xpose.msra.mxu0 %v4017
        %4035 = vmatprep.subr.mxu0 0.0
        %4036 = vmatpush1.xpose.msra.mxu0 %v4019
        %4037 = vmatprep.subr.mxu0 0.0
        %4038 = vmatpush1.xpose.msra.mxu0 %v4021
        %4039 = vmatprep.subr.mxu0 0.0
        %4040 = vmatpush1.xpose.msra.mxu0 %v4023
        %4041 = vmatprep.subr.mxu0 0.0
        %4042 = vmatpush1.xpose.msra.mxu0 %v4025
        %4043 = vmatprep.subr.mxu0 0.0
        %4044 = vmatpush1.xpose.msra.mxu0 %v4027
        %4045 = vmatprep.subr.mxu0 0.0
        %4046 = vmatpush1.xpose.msra.mxu0 0.0
        %4047 = vmatprep.subr.mxu0 0.0
        %4048 = vmatpush1.xpose.msra.mxu0 0.0
        %4049 = vmatprep.subr.mxu0 0.0
        %4050 = vmatpush1.xpose.msra.mxu0 0.0
        %4051 = vmatprep.subr.mxu0 0.0
        %4052 = vmatpush1.xpose.msra.mxu0 0.0
        %4053 = vmatprep.subr.mxu0 0.0
        %4054 = vmatpush1.xpose.msra.mxu0 0.0
        %4055 = vmatprep.subr.mxu0 0.0
        %4056 = vmatpush1.xpose.msra.mxu0 0.0
        %4057 = vmatprep.subr.mxu0 0.0
        %4058 = vmatpush1.xpose.msra.mxu0 0.0
        %4059 = vmatprep.subr.mxu0 0.0
        %4060 = vmatpush1.xpose.msra.mxu0 0.0
        %4061 = vmatprep.subr.mxu0 0.0
        %4062 = vmatpush1.xpose.msra.mxu0 0.0
        %4063 = vmatprep.subr.mxu0 0.0
        %4064 = vmatpush1.xpose.msra.mxu0 0.0
        %4065 = vmatprep.subr.mxu0 0.0
        %4066 = vmatpush1.xpose.msra.mxu0 0.0
        %4067 = vmatprep.subr.mxu0 0.0
        %4068 = vmatpush1.xpose.msra.mxu0 0.0
        %4069 = vmatprep.subr.mxu0 0.0
        %4070 = vmatpush1.xpose.msra.mxu0 0.0
        %4071 = vmatprep.subr.mxu0 0.0
        %4072 = vmatpush1.xpose.msra.mxu0 0.0
        %4073 = vmatprep.subr.mxu0 0.0
        %4074 = vmatpush1.xpose.msra.mxu0 0.0
        %4075 = vmatprep.subr.mxu0 0.0
        %4076 = vmatpush1.xpose.msra.mxu0 0.0
        %4077 = vmatprep.subr.mxu0 0.0
        %4078 = vmatpush1.xpose.msra.mxu0 0.0
        %4079 = vmatprep.subr.mxu0 0.0
        %4080 = vmatpush1.xpose.msra.mxu0 0.0
        %4081 = vmatprep.subr.mxu0 0.0
        %4082 = vmatpush1.xpose.msra.mxu0 0.0
        %4083 = vmatprep.subr.mxu0 0.0
        %4084 = vmatpush1.xpose.msra.mxu0 0.0
        %4085 = vmatprep.subr.mxu0 0.0
        %4086 = vmatpush1.xpose.msra.mxu0 0.0
        %4087 = vmatprep.subr.mxu0 0.0
        %4088 = vmatpush1.xpose.msra.mxu0 0.0
        %4089 = vmatprep.subr.mxu0 0.0
        %4090 = vmatpush1.xpose.msra.mxu0 0.0
        %4091 = vmatprep.subr.mxu0 0.0
        %4092 = vmatpush1.xpose.msra.mxu0 0.0
        %4093 = vmatprep.mubr.f32.mxu0 0.0
        %4094 = vmatmul.mubr.f32.gmra.mrb[0].mxu0 %v3997
        %v4095 = vpop.f32.mrb[0].mxu0
        %v4096 = vadd.f32 0.0, %v4095
        %v4097 = vpop.f32.mrb[0].mxu0
        %4098 = vmatprep.mubr.f32.mxu0 0.0
        %4099 = vmatmul.mubr.f32.gmra.mrb[0].mxu0 %v3999
        %v4100 = vpop.f32.mrb[0].mxu0
        %v4101 = vadd.f32 0.0, %v4100
        %v4102 = vpop.f32.mrb[0].mxu0
        %4103 = vmatprep.mubr.f32.mxu0 0.0
        %4104 = vmatmul.mubr.f32.gmra.mrb[0].mxu0 %v4001
        %v4105 = vpop.f32.mrb[0].mxu0
        %v4106 = vadd.f32 0.0, %v4105
        %v4107 = vpop.f32.mrb[0].mxu0
        %4108 = vmatprep.mubr.f32.mxu0 0.0
        %4109 = vmatmul.mubr.f32.gmra.mrb[0].mxu0 %v4003
        %v4110 = vpop.f32.mrb[0].mxu0
        %v4111 = vadd.f32 0.0, %v4110
        %v4112 = vpop.f32.mrb[0].mxu0
        %4113 = vmatprep.mubr.f32.mxu0 0.0
        %4114 = vmatmul.mubr.f32.gmra.mrb[0].mxu0 %v4005
        %v4115 = vpop.f32.mrb[0].mxu0
        %v4116 = vadd.f32 0.0, %v4115
        %v4117 = vpop.f32.mrb[0].mxu0
        %4118 = vmatprep.mubr.f32.mxu0 0.0
        %4119 = vmatmul.mubr.f32.gmra.mrb[0].mxu0 %v4007
        %v4120 = vpop.f32.mrb[0].mxu0
        %v4121 = vadd.f32 0.0, %v4120
        %v4122 = vpop.f32.mrb[0].mxu0
        %4123 = vmatprep.mubr.f32.mxu0 0.0
        %4124 = vmatmul.mubr.f32.gmra.mrb[0].mxu0 %v4009
        %v4125 = vpop.f32.mrb[0].mxu0
        %v4126 = vadd.f32 0.0, %v4125
        %v4127 = vpop.f32.mrb[0].mxu0
        %4128 = vmatprep.mubr.f32.mxu0 0.0
        %4129 = vmatmul.mubr.f32.gmra.mrb[0].mxu0 %v4011
        %v4130 = vpop.f32.mrb[0].mxu0
        %v4131 = vadd.f32 0.0, %v4130
        %v4132 = vpop.f32.mrb[0].mxu0
        %4133 = vdwg.mxu0
        %4134 = vrot.lane.b32.xlu0 %v2969, 96
        %v4135 = vpop.permute.xlu0 %4134
        %4136 = vrot.lane.b32.xlu0 %v2971, 96
        %v4137 = vpop.permute.xlu0 %4136
        %4138 = vrot.lane.b32.xlu0 %v2973, 96
        %v4139 = vpop.permute.xlu0 %4138
        %4140 = vrot.lane.b32.xlu0 %v2975, 96
        %v4141 = vpop.permute.xlu0 %4140
        %4142 = vrot.lane.b32.xlu0 %v2977, 96
        %v4143 = vpop.permute.xlu0 %4142
        %4144 = vrot.lane.b32.xlu0 %v2979, 96
        %v4145 = vpop.permute.xlu0 %4144
        %4146 = vrot.lane.b32.xlu0 %v2981, 96
        %v4147 = vpop.permute.xlu0 %4146
        %4148 = vrot.lane.b32.xlu0 %v2983, 96
        %v4149 = vpop.permute.xlu0 %4148
        %v4150 = vsel %vm3384, %v2745, 0
        %v4152 = vsel %vm3384, %v2747, 0
        %v4154 = vsel %vm3384, %v2749, 0
        %v4156 = vsel %vm3384, %v2751, 0
        %v4158 = vsel %vm3384, %v2753, 0
        %v4160 = vsel %vm3384, %v2755, 0
        %v4162 = vsel %vm3384, %v2757, 0
        %v4164 = vsel %vm3384, %v2759, 0
        %v4166 = vsel %vm3384, %v4135, 0
        %v4168 = vsel %vm3384, %v4137, 0
        %v4170 = vsel %vm3384, %v4139, 0
        %v4172 = vsel %vm3384, %v4141, 0
        %v4174 = vsel %vm3384, %v4143, 0
        %v4176 = vsel %vm3384, %v4145, 0
        %v4178 = vsel %vm3384, %v4147, 0
        %v4180 = vsel %vm3384, %v4149, 0
        %4182 = vmatprep.subr.mxu0 0.0
        %4183 = vmatpush1.xpose.msra.mxu0 %v4166
        %4184 = vmatprep.subr.mxu0 0.0
        %4185 = vmatpush1.xpose.msra.mxu0 %v4168
        %4186 = vmatprep.subr.mxu0 0.0
        %4187 = vmatpush1.xpose.msra.mxu0 %v4170
        %4188 = vmatprep.subr.mxu0 0.0
        %4189 = vmatpush1.xpose.msra.mxu0 %v4172
        %4190 = vmatprep.subr.mxu0 0.0
        %4191 = vmatpush1.xpose.msra.mxu0 %v4174
        %4192 = vmatprep.subr.mxu0 0.0
        %4193 = vmatpush1.xpose.msra.mxu0 %v4176
        %4194 = vmatprep.subr.mxu0 0.0
        %4195 = vmatpush1.xpose.msra.mxu0 %v4178
        %4196 = vmatprep.subr.mxu0 0.0
        %4197 = vmatpush1.xpose.msra.mxu0 %v4180
        %4198 = vmatprep.subr.mxu0 0.0
        %4199 = vmatpush1.xpose.msra.mxu0 0.0
        %4200 = vmatprep.subr.mxu0 0.0
        %4201 = vmatpush1.xpose.msra.mxu0 0.0
        %4202 = vmatprep.subr.mxu0 0.0
        %4203 = vmatpush1.xpose.msra.mxu0 0.0
        %4204 = vmatprep.subr.mxu0 0.0
        %4205 = vmatpush1.xpose.msra.mxu0 0.0
        %4206 = vmatprep.subr.mxu0 0.0
        %4207 = vmatpush1.xpose.msra.mxu0 0.0
        %4208 = vmatprep.subr.mxu0 0.0
        %4209 = vmatpush1.xpose.msra.mxu0 0.0
        %4210 = vmatprep.subr.mxu0 0.0
        %4211 = vmatpush1.xpose.msra.mxu0 0.0
        %4212 = vmatprep.subr.mxu0 0.0
        %4213 = vmatpush1.xpose.msra.mxu0 0.0
        %4214 = vmatprep.subr.mxu0 0.0
        %4215 = vmatpush1.xpose.msra.mxu0 0.0
        %4216 = vmatprep.subr.mxu0 0.0
        %4217 = vmatpush1.xpose.msra.mxu0 0.0
        %4218 = vmatprep.subr.mxu0 0.0
        %4219 = vmatpush1.xpose.msra.mxu0 0.0
        %4220 = vmatprep.subr.mxu0 0.0
        %4221 = vmatpush1.xpose.msra.mxu0 0.0
        %4222 = vmatprep.subr.mxu0 0.0
        %4223 = vmatpush1.xpose.msra.mxu0 0.0
        %4224 = vmatprep.subr.mxu0 0.0
        %4225 = vmatpush1.xpose.msra.mxu0 0.0
        %4226 = vmatprep.subr.mxu0 0.0
        %4227 = vmatpush1.xpose.msra.mxu0 0.0
        %4228 = vmatprep.subr.mxu0 0.0
        %4229 = vmatpush1.xpose.msra.mxu0 0.0
        %4230 = vmatprep.subr.mxu0 0.0
        %4231 = vmatpush1.xpose.msra.mxu0 0.0
        %4232 = vmatprep.subr.mxu0 0.0
        %4233 = vmatpush1.xpose.msra.mxu0 0.0
        %4234 = vmatprep.subr.mxu0 0.0
        %4235 = vmatpush1.xpose.msra.mxu0 0.0
        %4236 = vmatprep.subr.mxu0 0.0
        %4237 = vmatpush1.xpose.msra.mxu0 0.0
        %4238 = vmatprep.subr.mxu0 0.0
        %4239 = vmatpush1.xpose.msra.mxu0 0.0
        %4240 = vmatprep.subr.mxu0 0.0
        %4241 = vmatpush1.xpose.msra.mxu0 0.0
        %4242 = vmatprep.subr.mxu0 0.0
        %4243 = vmatpush1.xpose.msra.mxu0 0.0
        %4244 = vmatprep.subr.mxu0 0.0
        %4245 = vmatpush1.xpose.msra.mxu0 0.0
        %4246 = vmatprep.mubr.f32.mxu0 0.0
        %4247 = vmatmul.mubr.f32.gmra.mrb[0].mxu0 %v4150
        %v4248 = vpop.f32.mrb[0].mxu0
        %v4249 = vadd.f32 0.0, %v4248
        %v4250 = vpop.f32.mrb[0].mxu0
        %4251 = vmatprep.mubr.f32.mxu0 0.0
        %4252 = vmatmul.mubr.f32.gmra.mrb[0].mxu0 %v4152
        %v4253 = vpop.f32.mrb[0].mxu0
        %v4254 = vadd.f32 0.0, %v4253
        %v4255 = vpop.f32.mrb[0].mxu0
        %4256 = vmatprep.mubr.f32.mxu0 0.0
        %4257 = vmatmul.mubr.f32.gmra.mrb[0].mxu0 %v4154
        %v4258 = vpop.f32.mrb[0].mxu0
        %v4259 = vadd.f32 0.0, %v4258
        %v4260 = vpop.f32.mrb[0].mxu0
        %4261 = vmatprep.mubr.f32.mxu0 0.0
        %4262 = vmatmul.mubr.f32.gmra.mrb[0].mxu0 %v4156
        %v4263 = vpop.f32.mrb[0].mxu0
        %v4264 = vadd.f32 0.0, %v4263
        %v4265 = vpop.f32.mrb[0].mxu0
        %4266 = vmatprep.mubr.f32.mxu0 0.0
        %4267 = vmatmul.mubr.f32.gmra.mrb[0].mxu0 %v4158
        %v4268 = vpop.f32.mrb[0].mxu0
        %v4269 = vadd.f32 0.0, %v4268
        %v4270 = vpop.f32.mrb[0].mxu0
        %4271 = vmatprep.mubr.f32.mxu0 0.0
        %4272 = vmatmul.mubr.f32.gmra.mrb[0].mxu0 %v4160
        %v4273 = vpop.f32.mrb[0].mxu0
        %v4274 = vadd.f32 0.0, %v4273
        %v4275 = vpop.f32.mrb[0].mxu0
        %4276 = vmatprep.mubr.f32.mxu0 0.0
        %4277 = vmatmul.mubr.f32.gmra.mrb[0].mxu0 %v4162
        %v4278 = vpop.f32.mrb[0].mxu0
        %v4279 = vadd.f32 0.0, %v4278
        %v4280 = vpop.f32.mrb[0].mxu0
        %4281 = vmatprep.mubr.f32.mxu0 0.0
        %4282 = vmatmul.mubr.f32.gmra.mrb[0].mxu0 %v4164
        %v4283 = vpop.f32.mrb[0].mxu0
        %v4284 = vadd.f32 0.0, %v4283
        %v4285 = vpop.f32.mrb[0].mxu0
        %4286 = vdwg.mxu0
        %4287 = vrot.lane.b32.xlu0 %v2985, 96
        %v4288 = vpop.permute.xlu0 %4287
        %4289 = vrot.lane.b32.xlu0 %v2987, 96
        %v4290 = vpop.permute.xlu0 %4289
        %4291 = vrot.lane.b32.xlu0 %v2989, 96
        %v4292 = vpop.permute.xlu0 %4291
        %4293 = vrot.lane.b32.xlu0 %v2991, 96
        %v4294 = vpop.permute.xlu0 %4293
        %4295 = vrot.lane.b32.xlu0 %v2993, 96
        %v4296 = vpop.permute.xlu0 %4295
        %4297 = vrot.lane.b32.xlu0 %v2995, 96
        %v4298 = vpop.permute.xlu0 %4297
        %4299 = vrot.lane.b32.xlu0 %v2997, 96
        %v4300 = vpop.permute.xlu0 %4299
        %4301 = vrot.lane.b32.xlu0 %v2999, 96
        %v4302 = vpop.permute.xlu0 %4301
        %v4303 = vsel %vm3384, %v2761, 0
        %v4305 = vsel %vm3384, %v2763, 0
        %v4307 = vsel %vm3384, %v2765, 0
        %v4309 = vsel %vm3384, %v2767, 0
        %v4311 = vsel %vm3384, %v2769, 0
        %v4313 = vsel %vm3384, %v2771, 0
        %v4315 = vsel %vm3384, %v2773, 0
        %v4317 = vsel %vm3384, %v2775, 0
        %v4319 = vsel %vm3384, %v4288, 0
        %v4321 = vsel %vm3384, %v4290, 0
        %v4323 = vsel %vm3384, %v4292, 0
        %v4325 = vsel %vm3384, %v4294, 0
        %v4327 = vsel %vm3384, %v4296, 0
        %v4329 = vsel %vm3384, %v4298, 0
        %v4331 = vsel %vm3384, %v4300, 0
        %v4333 = vsel %vm3384, %v4302, 0
        %4335 = vmatprep.subr.mxu0 0.0
        %4336 = vmatpush1.xpose.msra.mxu0 %v4319
        %4337 = vmatprep.subr.mxu0 0.0
        %4338 = vmatpush1.xpose.msra.mxu0 %v4321
        %4339 = vmatprep.subr.mxu0 0.0
        %4340 = vmatpush1.xpose.msra.mxu0 %v4323
        %4341 = vmatprep.subr.mxu0 0.0
        %4342 = vmatpush1.xpose.msra.mxu0 %v4325
        %4343 = vmatprep.subr.mxu0 0.0
        %4344 = vmatpush1.xpose.msra.mxu0 %v4327
        %4345 = vmatprep.subr.mxu0 0.0
        %4346 = vmatpush1.xpose.msra.mxu0 %v4329
        %4347 = vmatprep.subr.mxu0 0.0
        %4348 = vmatpush1.xpose.msra.mxu0 %v4331
        %4349 = vmatprep.subr.mxu0 0.0
        %4350 = vmatpush1.xpose.msra.mxu0 %v4333
        %4351 = vmatprep.subr.mxu0 0.0
        %4352 = vmatpush1.xpose.msra.mxu0 0.0
        %4353 = vmatprep.subr.mxu0 0.0
        %4354 = vmatpush1.xpose.msra.mxu0 0.0
        %4355 = vmatprep.subr.mxu0 0.0
        %4356 = vmatpush1.xpose.msra.mxu0 0.0
        %4357 = vmatprep.subr.mxu0 0.0
        %4358 = vmatpush1.xpose.msra.mxu0 0.0
        %4359 = vmatprep.subr.mxu0 0.0
        %4360 = vmatpush1.xpose.msra.mxu0 0.0
        %4361 = vmatprep.subr.mxu0 0.0
        %4362 = vmatpush1.xpose.msra.mxu0 0.0
        %4363 = vmatprep.subr.mxu0 0.0
        %4364 = vmatpush1.xpose.msra.mxu0 0.0
        %4365 = vmatprep.subr.mxu0 0.0
        %4366 = vmatpush1.xpose.msra.mxu0 0.0
        %4367 = vmatprep.subr.mxu0 0.0
        %4368 = vmatpush1.xpose.msra.mxu0 0.0
        %4369 = vmatprep.subr.mxu0 0.0
        %4370 = vmatpush1.xpose.msra.mxu0 0.0
        %4371 = vmatprep.subr.mxu0 0.0
        %4372 = vmatpush1.xpose.msra.mxu0 0.0
        %4373 = vmatprep.subr.mxu0 0.0
        %4374 = vmatpush1.xpose.msra.mxu0 0.0
        %4375 = vmatprep.subr.mxu0 0.0
        %4376 = vmatpush1.xpose.msra.mxu0 0.0
        %4377 = vmatprep.subr.mxu0 0.0
        %4378 = vmatpush1.xpose.msra.mxu0 0.0
        %4379 = vmatprep.subr.mxu0 0.0
        %4380 = vmatpush1.xpose.msra.mxu0 0.0
        %4381 = vmatprep.subr.mxu0 0.0
        %4382 = vmatpush1.xpose.msra.mxu0 0.0
        %4383 = vmatprep.subr.mxu0 0.0
        %4384 = vmatpush1.xpose.msra.mxu0 0.0
        %4385 = vmatprep.subr.mxu0 0.0
        %4386 = vmatpush1.xpose.msra.mxu0 0.0
        %4387 = vmatprep.subr.mxu0 0.0
        %4388 = vmatpush1.xpose.msra.mxu0 0.0
        %4389 = vmatprep.subr.mxu0 0.0
        %4390 = vmatpush1.xpose.msra.mxu0 0.0
        %4391 = vmatprep.subr.mxu0 0.0
        %4392 = vmatpush1.xpose.msra.mxu0 0.0
        %4393 = vmatprep.subr.mxu0 0.0
        %4394 = vmatpush1.xpose.msra.mxu0 0.0
        %4395 = vmatprep.subr.mxu0 0.0
        %4396 = vmatpush1.xpose.msra.mxu0 0.0
        %4397 = vmatprep.subr.mxu0 0.0
        %4398 = vmatpush1.xpose.msra.mxu0 0.0
        %4399 = vmatprep.mubr.f32.mxu0 0.0
        %4400 = vmatmul.mubr.f32.gmra.mrb[0].mxu0 %v4303
        %v4401 = vpop.f32.mrb[0].mxu0
        %v4402 = vadd.f32 0.0, %v4401
        %v4403 = vpop.f32.mrb[0].mxu0
        %4404 = vmatprep.mubr.f32.mxu0 0.0
        %4405 = vmatmul.mubr.f32.gmra.mrb[0].mxu0 %v4305
        %v4406 = vpop.f32.mrb[0].mxu0
        %v4407 = vadd.f32 0.0, %v4406
        %v4408 = vpop.f32.mrb[0].mxu0
        %4409 = vmatprep.mubr.f32.mxu0 0.0
        %4410 = vmatmul.mubr.f32.gmra.mrb[0].mxu0 %v4307
        %v4411 = vpop.f32.mrb[0].mxu0
        %v4412 = vadd.f32 0.0, %v4411
        %v4413 = vpop.f32.mrb[0].mxu0
        %4414 = vmatprep.mubr.f32.mxu0 0.0
        %4415 = vmatmul.mubr.f32.gmra.mrb[0].mxu0 %v4309
        %v4416 = vpop.f32.mrb[0].mxu0
        %v4417 = vadd.f32 0.0, %v4416
        %v4418 = vpop.f32.mrb[0].mxu0
        %4419 = vmatprep.mubr.f32.mxu0 0.0
        %4420 = vmatmul.mubr.f32.gmra.mrb[0].mxu0 %v4311
        %v4421 = vpop.f32.mrb[0].mxu0
        %v4422 = vadd.f32 0.0, %v4421
        %v4423 = vpop.f32.mrb[0].mxu0
        %4424 = vmatprep.mubr.f32.mxu0 0.0
        %4425 = vmatmul.mubr.f32.gmra.mrb[0].mxu0 %v4313
        %v4426 = vpop.f32.mrb[0].mxu0
        %v4427 = vadd.f32 0.0, %v4426
        %v4428 = vpop.f32.mrb[0].mxu0
        %4429 = vmatprep.mubr.f32.mxu0 0.0
        %4430 = vmatmul.mubr.f32.gmra.mrb[0].mxu0 %v4315
        %v4431 = vpop.f32.mrb[0].mxu0
        %v4432 = vadd.f32 0.0, %v4431
        %v4433 = vpop.f32.mrb[0].mxu0
        %4434 = vmatprep.mubr.f32.mxu0 0.0
        %4435 = vmatmul.mubr.f32.gmra.mrb[0].mxu0 %v4317
        %v4436 = vpop.f32.mrb[0].mxu0
        %v4437 = vadd.f32 0.0, %v4436
        %v4438 = vpop.f32.mrb[0].mxu0
        %4439 = vdwg.mxu0
        %4440 = vrot.lane.b32.xlu0 %v3001, 96
        %v4441 = vpop.permute.xlu0 %4440
        %4442 = vrot.lane.b32.xlu0 %v3003, 96
        %v4443 = vpop.permute.xlu0 %4442
        %4444 = vrot.lane.b32.xlu0 %v3005, 96
        %v4445 = vpop.permute.xlu0 %4444
        %4446 = vrot.lane.b32.xlu0 %v3007, 96
        %v4447 = vpop.permute.xlu0 %4446
        %4448 = vrot.lane.b32.xlu0 %v3009, 96
        %v4449 = vpop.permute.xlu0 %4448
        %4450 = vrot.lane.b32.xlu0 %v3011, 96
        %v4451 = vpop.permute.xlu0 %4450
        %4452 = vrot.lane.b32.xlu0 %v3013, 96
        %v4453 = vpop.permute.xlu0 %4452
        %4454 = vrot.lane.b32.xlu0 %v3015, 96
        %v4455 = vpop.permute.xlu0 %4454
        %v4456 = vsel %vm3384, %v2777, 0
        %v4458 = vsel %vm3384, %v2779, 0
        %v4460 = vsel %vm3384, %v2781, 0
        %v4462 = vsel %vm3384, %v2783, 0
        %v4464 = vsel %vm3384, %v2785, 0
        %v4466 = vsel %vm3384, %v2787, 0
        %v4468 = vsel %vm3384, %v2789, 0
        %v4470 = vsel %vm3384, %v2791, 0
        %v4472 = vsel %vm3384, %v4441, 0
        %v4474 = vsel %vm3384, %v4443, 0
        %v4476 = vsel %vm3384, %v4445, 0
        %v4478 = vsel %vm3384, %v4447, 0
        %v4480 = vsel %vm3384, %v4449, 0
        %v4482 = vsel %vm3384, %v4451, 0
        %v4484 = vsel %vm3384, %v4453, 0
        %v4486 = vsel %vm3384, %v4455, 0
        %4488 = vmatprep.subr.mxu0 0.0
        %4489 = vmatpush1.xpose.msra.mxu0 %v4472
        %4490 = vmatprep.subr.mxu0 0.0
        %4491 = vmatpush1.xpose.msra.mxu0 %v4474
        %4492 = vmatprep.subr.mxu0 0.0
        %4493 = vmatpush1.xpose.msra.mxu0 %v4476
        %4494 = vmatprep.subr.mxu0 0.0
        %4495 = vmatpush1.xpose.msra.mxu0 %v4478
        %4496 = vmatprep.subr.mxu0 0.0
        %4497 = vmatpush1.xpose.msra.mxu0 %v4480
        %4498 = vmatprep.subr.mxu0 0.0
        %4499 = vmatpush1.xpose.msra.mxu0 %v4482
        %4500 = vmatprep.subr.mxu0 0.0
        %4501 = vmatpush1.xpose.msra.mxu0 %v4484
        %4502 = vmatprep.subr.mxu0 0.0
        %4503 = vmatpush1.xpose.msra.mxu0 %v4486
        %4504 = vmatprep.subr.mxu0 0.0
        %4505 = vmatpush1.xpose.msra.mxu0 0.0
        %4506 = vmatprep.subr.mxu0 0.0
        %4507 = vmatpush1.xpose.msra.mxu0 0.0
        %4508 = vmatprep.subr.mxu0 0.0
        %4509 = vmatpush1.xpose.msra.mxu0 0.0
        %4510 = vmatprep.subr.mxu0 0.0
        %4511 = vmatpush1.xpose.msra.mxu0 0.0
        %4512 = vmatprep.subr.mxu0 0.0
        %4513 = vmatpush1.xpose.msra.mxu0 0.0
        %4514 = vmatprep.subr.mxu0 0.0
        %4515 = vmatpush1.xpose.msra.mxu0 0.0
        %4516 = vmatprep.subr.mxu0 0.0
        %4517 = vmatpush1.xpose.msra.mxu0 0.0
        %4518 = vmatprep.subr.mxu0 0.0
        %4519 = vmatpush1.xpose.msra.mxu0 0.0
        %4520 = vmatprep.subr.mxu0 0.0
        %4521 = vmatpush1.xpose.msra.mxu0 0.0
        %4522 = vmatprep.subr.mxu0 0.0
        %4523 = vmatpush1.xpose.msra.mxu0 0.0
        %4524 = vmatprep.subr.mxu0 0.0
        %4525 = vmatpush1.xpose.msra.mxu0 0.0
        %4526 = vmatprep.subr.mxu0 0.0
        %4527 = vmatpush1.xpose.msra.mxu0 0.0
        %4528 = vmatprep.subr.mxu0 0.0
        %4529 = vmatpush1.xpose.msra.mxu0 0.0
        %4530 = vmatprep.subr.mxu0 0.0
        %4531 = vmatpush1.xpose.msra.mxu0 0.0
        %4532 = vmatprep.subr.mxu0 0.0
        %4533 = vmatpush1.xpose.msra.mxu0 0.0
        %4534 = vmatprep.subr.mxu0 0.0
        %4535 = vmatpush1.xpose.msra.mxu0 0.0
        %4536 = vmatprep.subr.mxu0 0.0
        %4537 = vmatpush1.xpose.msra.mxu0 0.0
        %4538 = vmatprep.subr.mxu0 0.0
        %4539 = vmatpush1.xpose.msra.mxu0 0.0
        %4540 = vmatprep.subr.mxu0 0.0
        %4541 = vmatpush1.xpose.msra.mxu0 0.0
        %4542 = vmatprep.subr.mxu0 0.0
        %4543 = vmatpush1.xpose.msra.mxu0 0.0
        %4544 = vmatprep.subr.mxu0 0.0
        %4545 = vmatpush1.xpose.msra.mxu0 0.0
        %4546 = vmatprep.subr.mxu0 0.0
        %4547 = vmatpush1.xpose.msra.mxu0 0.0
        %4548 = vmatprep.subr.mxu0 0.0
        %4549 = vmatpush1.xpose.msra.mxu0 0.0
        %4550 = vmatprep.subr.mxu0 0.0
        %4551 = vmatpush1.xpose.msra.mxu0 0.0
        %4552 = vmatprep.mubr.f32.mxu0 0.0
        %4553 = vmatmul.mubr.f32.gmra.mrb[0].mxu0 %v4456
        %v4554 = vpop.f32.mrb[0].mxu0
        %v4555 = vadd.f32 0.0, %v4554
        %v4556 = vpop.f32.mrb[0].mxu0
        %4557 = vmatprep.mubr.f32.mxu0 0.0
        %4558 = vmatmul.mubr.f32.gmra.mrb[0].mxu0 %v4458
        %v4559 = vpop.f32.mrb[0].mxu0
        %v4560 = vadd.f32 0.0, %v4559
        %v4561 = vpop.f32.mrb[0].mxu0
        %4562 = vmatprep.mubr.f32.mxu0 0.0
        %4563 = vmatmul.mubr.f32.gmra.mrb[0].mxu0 %v4460
        %v4564 = vpop.f32.mrb[0].mxu0
        %v4565 = vadd.f32 0.0, %v4564
        %v4566 = vpop.f32.mrb[0].mxu0
        %4567 = vmatprep.mubr.f32.mxu0 0.0
        %4568 = vmatmul.mubr.f32.gmra.mrb[0].mxu0 %v4462
        %v4569 = vpop.f32.mrb[0].mxu0
        %v4570 = vadd.f32 0.0, %v4569
        %v4571 = vpop.f32.mrb[0].mxu0
        %4572 = vmatprep.mubr.f32.mxu0 0.0
        %4573 = vmatmul.mubr.f32.gmra.mrb[0].mxu0 %v4464
        %v4574 = vpop.f32.mrb[0].mxu0
        %v4575 = vadd.f32 0.0, %v4574
        %v4576 = vpop.f32.mrb[0].mxu0
        %4577 = vmatprep.mubr.f32.mxu0 0.0
        %4578 = vmatmul.mubr.f32.gmra.mrb[0].mxu0 %v4466
        %v4579 = vpop.f32.mrb[0].mxu0
        %v4580 = vadd.f32 0.0, %v4579
        %v4581 = vpop.f32.mrb[0].mxu0
        %4582 = vmatprep.mubr.f32.mxu0 0.0
        %4583 = vmatmul.mubr.f32.gmra.mrb[0].mxu0 %v4468
        %v4584 = vpop.f32.mrb[0].mxu0
        %v4585 = vadd.f32 0.0, %v4584
        %v4586 = vpop.f32.mrb[0].mxu0
        %4587 = vmatprep.mubr.f32.mxu0 0.0
        %4588 = vmatmul.mubr.f32.gmra.mrb[0].mxu0 %v4470
        %v4589 = vpop.f32.mrb[0].mxu0
        %v4590 = vadd.f32 0.0, %v4589
        %v4591 = vpop.f32.mrb[0].mxu0
        %4592 = vdwg.mxu0
        %4593 = vrot.lane.b32.xlu0 %v3017, 96
        %v4594 = vpop.permute.xlu0 %4593
        %4595 = vrot.lane.b32.xlu0 %v3019, 96
        %v4596 = vpop.permute.xlu0 %4595
        %4597 = vrot.lane.b32.xlu0 %v3021, 96
        %v4598 = vpop.permute.xlu0 %4597
        %4599 = vrot.lane.b32.xlu0 %v3023, 96
        %v4600 = vpop.permute.xlu0 %4599
        %4601 = vrot.lane.b32.xlu0 %v3025, 96
        %v4602 = vpop.permute.xlu0 %4601
        %4603 = vrot.lane.b32.xlu0 %v3027, 96
        %v4604 = vpop.permute.xlu0 %4603
        %4605 = vrot.lane.b32.xlu0 %v3029, 96
        %v4606 = vpop.permute.xlu0 %4605
        %4607 = vrot.lane.b32.xlu0 %v3031, 96
        %v4608 = vpop.permute.xlu0 %4607
        %v4609 = vsel %vm3384, %v2793, 0
        %v4611 = vsel %vm3384, %v2795, 0
        %v4613 = vsel %vm3384, %v2797, 0
        %v4615 = vsel %vm3384, %v2799, 0
        %v4617 = vsel %vm3384, %v2801, 0
        %v4619 = vsel %vm3384, %v2803, 0
        %v4621 = vsel %vm3384, %v2805, 0
        %v4623 = vsel %vm3384, %v2807, 0
        %v4625 = vsel %vm3384, %v4594, 0
        %v4627 = vsel %vm3384, %v4596, 0
        %v4629 = vsel %vm3384, %v4598, 0
        %v4631 = vsel %vm3384, %v4600, 0
        %v4633 = vsel %vm3384, %v4602, 0
        %v4635 = vsel %vm3384, %v4604, 0
        %v4637 = vsel %vm3384, %v4606, 0
        %v4639 = vsel %vm3384, %v4608, 0
        %4641 = vmatprep.subr.mxu0 0.0
        %4642 = vmatpush1.xpose.msra.mxu0 %v4625
        %4643 = vmatprep.subr.mxu0 0.0
        %4644 = vmatpush1.xpose.msra.mxu0 %v4627
        %4645 = vmatprep.subr.mxu0 0.0
        %4646 = vmatpush1.xpose.msra.mxu0 %v4629
        %4647 = vmatprep.subr.mxu0 0.0
        %4648 = vmatpush1.xpose.msra.mxu0 %v4631
        %4649 = vmatprep.subr.mxu0 0.0
        %4650 = vmatpush1.xpose.msra.mxu0 %v4633
        %4651 = vmatprep.subr.mxu0 0.0
        %4652 = vmatpush1.xpose.msra.mxu0 %v4635
        %4653 = vmatprep.subr.mxu0 0.0
        %4654 = vmatpush1.xpose.msra.mxu0 %v4637
        %4655 = vmatprep.subr.mxu0 0.0
        %4656 = vmatpush1.xpose.msra.mxu0 %v4639
        %4657 = vmatprep.subr.mxu0 0.0
        %4658 = vmatpush1.xpose.msra.mxu0 0.0
        %4659 = vmatprep.subr.mxu0 0.0
        %4660 = vmatpush1.xpose.msra.mxu0 0.0
        %4661 = vmatprep.subr.mxu0 0.0
        %4662 = vmatpush1.xpose.msra.mxu0 0.0
        %4663 = vmatprep.subr.mxu0 0.0
        %4664 = vmatpush1.xpose.msra.mxu0 0.0
        %4665 = vmatprep.subr.mxu0 0.0
        %4666 = vmatpush1.xpose.msra.mxu0 0.0
        %4667 = vmatprep.subr.mxu0 0.0
        %4668 = vmatpush1.xpose.msra.mxu0 0.0
        %4669 = vmatprep.subr.mxu0 0.0
        %4670 = vmatpush1.xpose.msra.mxu0 0.0
        %4671 = vmatprep.subr.mxu0 0.0
        %4672 = vmatpush1.xpose.msra.mxu0 0.0
        %4673 = vmatprep.subr.mxu0 0.0
        %4674 = vmatpush1.xpose.msra.mxu0 0.0
        %4675 = vmatprep.subr.mxu0 0.0
        %4676 = vmatpush1.xpose.msra.mxu0 0.0
        %4677 = vmatprep.subr.mxu0 0.0
        %4678 = vmatpush1.xpose.msra.mxu0 0.0
        %4679 = vmatprep.subr.mxu0 0.0
        %4680 = vmatpush1.xpose.msra.mxu0 0.0
        %4681 = vmatprep.subr.mxu0 0.0
        %4682 = vmatpush1.xpose.msra.mxu0 0.0
        %4683 = vmatprep.subr.mxu0 0.0
        %4684 = vmatpush1.xpose.msra.mxu0 0.0
        %4685 = vmatprep.subr.mxu0 0.0
        %4686 = vmatpush1.xpose.msra.mxu0 0.0
        %4687 = vmatprep.subr.mxu0 0.0
        %4688 = vmatpush1.xpose.msra.mxu0 0.0
        %4689 = vmatprep.subr.mxu0 0.0
        %4690 = vmatpush1.xpose.msra.mxu0 0.0
        %4691 = vmatprep.subr.mxu0 0.0
        %4692 = vmatpush1.xpose.msra.mxu0 0.0
        %4693 = vmatprep.subr.mxu0 0.0
        %4694 = vmatpush1.xpose.msra.mxu0 0.0
        %4695 = vmatprep.subr.mxu0 0.0
        %4696 = vmatpush1.xpose.msra.mxu0 0.0
        %4697 = vmatprep.subr.mxu0 0.0
        %4698 = vmatpush1.xpose.msra.mxu0 0.0
        %4699 = vmatprep.subr.mxu0 0.0
        %4700 = vmatpush1.xpose.msra.mxu0 0.0
        %4701 = vmatprep.subr.mxu0 0.0
        %4702 = vmatpush1.xpose.msra.mxu0 0.0
        %4703 = vmatprep.subr.mxu0 0.0
        %4704 = vmatpush1.xpose.msra.mxu0 0.0
        %4705 = vmatprep.mubr.f32.mxu0 0.0
        %4706 = vmatmul.mubr.f32.gmra.mrb[0].mxu0 %v4609
        %v4707 = vpop.f32.mrb[0].mxu0
        %v4708 = vadd.f32 0.0, %v4707
        %v4709 = vpop.f32.mrb[0].mxu0
        %4710 = vmatprep.mubr.f32.mxu0 0.0
        %4711 = vmatmul.mubr.f32.gmra.mrb[0].mxu0 %v4611
        %v4712 = vpop.f32.mrb[0].mxu0
        %v4713 = vadd.f32 0.0, %v4712
        %v4714 = vpop.f32.mrb[0].mxu0
        %4715 = vmatprep.mubr.f32.mxu0 0.0
        %4716 = vmatmul.mubr.f32.gmra.mrb[0].mxu0 %v4613
        %v4717 = vpop.f32.mrb[0].mxu0
        %v4718 = vadd.f32 0.0, %v4717
        %v4719 = vpop.f32.mrb[0].mxu0
        %4720 = vmatprep.mubr.f32.mxu0 0.0
        %4721 = vmatmul.mubr.f32.gmra.mrb[0].mxu0 %v4615
        %v4722 = vpop.f32.mrb[0].mxu0
        %v4723 = vadd.f32 0.0, %v4722
        %v4724 = vpop.f32.mrb[0].mxu0
        %4725 = vmatprep.mubr.f32.mxu0 0.0
        %4726 = vmatmul.mubr.f32.gmra.mrb[0].mxu0 %v4617
        %v4727 = vpop.f32.mrb[0].mxu0
        %v4728 = vadd.f32 0.0, %v4727
        %v4729 = vpop.f32.mrb[0].mxu0
        %4730 = vmatprep.mubr.f32.mxu0 0.0
        %4731 = vmatmul.mubr.f32.gmra.mrb[0].mxu0 %v4619
        %v4732 = vpop.f32.mrb[0].mxu0
        %v4733 = vadd.f32 0.0, %v4732
        %v4734 = vpop.f32.mrb[0].mxu0
        %4735 = vmatprep.mubr.f32.mxu0 0.0
        %4736 = vmatmul.mubr.f32.gmra.mrb[0].mxu0 %v4621
        %v4737 = vpop.f32.mrb[0].mxu0
        %v4738 = vadd.f32 0.0, %v4737
        %v4739 = vpop.f32.mrb[0].mxu0
        %4740 = vmatprep.mubr.f32.mxu0 0.0
        %4741 = vmatmul.mubr.f32.gmra.mrb[0].mxu0 %v4623
        %v4742 = vpop.f32.mrb[0].mxu0
        %v4743 = vadd.f32 0.0, %v4742
        %v4744 = vpop.f32.mrb[0].mxu0
        %4745 = vdwg.mxu0
        %4746 = vrot.lane.b32.xlu0 %v3033, 96
        %v4747 = vpop.permute.xlu0 %4746
        %4748 = vrot.lane.b32.xlu0 %v3035, 96
        %v4749 = vpop.permute.xlu0 %4748
        %4750 = vrot.lane.b32.xlu0 %v3037, 96
        %v4751 = vpop.permute.xlu0 %4750
        %4752 = vrot.lane.b32.xlu0 %v3039, 96
        %v4753 = vpop.permute.xlu0 %4752
        %4754 = vrot.lane.b32.xlu0 %v3041, 96
        %v4755 = vpop.permute.xlu0 %4754
        %4756 = vrot.lane.b32.xlu0 %v3043, 96
        %v4757 = vpop.permute.xlu0 %4756
        %4758 = vrot.lane.b32.xlu0 %v3045, 96
        %v4759 = vpop.permute.xlu0 %4758
        %4760 = vrot.lane.b32.xlu0 %v3047, 96
        %v4761 = vpop.permute.xlu0 %4760
        %v4762 = vsel %vm3384, %v2809, 0
        %v4764 = vsel %vm3384, %v2811, 0
        %v4766 = vsel %vm3384, %v2813, 0
        %v4768 = vsel %vm3384, %v2815, 0
        %v4770 = vsel %vm3384, %v2817, 0
        %v4772 = vsel %vm3384, %v2819, 0
        %v4774 = vsel %vm3384, %v2821, 0
        %v4776 = vsel %vm3384, %v2823, 0
        %v4778 = vsel %vm3384, %v4747, 0
        %v4780 = vsel %vm3384, %v4749, 0
        %v4782 = vsel %vm3384, %v4751, 0
        %v4784 = vsel %vm3384, %v4753, 0
        %v4786 = vsel %vm3384, %v4755, 0
        %v4788 = vsel %vm3384, %v4757, 0
        %v4790 = vsel %vm3384, %v4759, 0
        %v4792 = vsel %vm3384, %v4761, 0
        %4794 = vmatprep.subr.mxu0 0.0
        %4795 = vmatpush1.xpose.msra.mxu0 %v4778
        %4796 = vmatprep.subr.mxu0 0.0
        %4797 = vmatpush1.xpose.msra.mxu0 %v4780
        %4798 = vmatprep.subr.mxu0 0.0
        %4799 = vmatpush1.xpose.msra.mxu0 %v4782
        %4800 = vmatprep.subr.mxu0 0.0
        %4801 = vmatpush1.xpose.msra.mxu0 %v4784
        %4802 = vmatprep.subr.mxu0 0.0
        %4803 = vmatpush1.xpose.msra.mxu0 %v4786
        %4804 = vmatprep.subr.mxu0 0.0
        %4805 = vmatpush1.xpose.msra.mxu0 %v4788
        %4806 = vmatprep.subr.mxu0 0.0
        %4807 = vmatpush1.xpose.msra.mxu0 %v4790
        %4808 = vmatprep.subr.mxu0 0.0
        %4809 = vmatpush1.xpose.msra.mxu0 %v4792
        %4810 = vmatprep.subr.mxu0 0.0
        %4811 = vmatpush1.xpose.msra.mxu0 0.0
        %4812 = vmatprep.subr.mxu0 0.0
        %4813 = vmatpush1.xpose.msra.mxu0 0.0
        %4814 = vmatprep.subr.mxu0 0.0
        %4815 = vmatpush1.xpose.msra.mxu0 0.0
        %4816 = vmatprep.subr.mxu0 0.0
        %4817 = vmatpush1.xpose.msra.mxu0 0.0
        %4818 = vmatprep.subr.mxu0 0.0
        %4819 = vmatpush1.xpose.msra.mxu0 0.0
        %4820 = vmatprep.subr.mxu0 0.0
        %4821 = vmatpush1.xpose.msra.mxu0 0.0
        %4822 = vmatprep.subr.mxu0 0.0
        %4823 = vmatpush1.xpose.msra.mxu0 0.0
        %4824 = vmatprep.subr.mxu0 0.0
        %4825 = vmatpush1.xpose.msra.mxu0 0.0
        %4826 = vmatprep.subr.mxu0 0.0
        %4827 = vmatpush1.xpose.msra.mxu0 0.0
        %4828 = vmatprep.subr.mxu0 0.0
        %4829 = vmatpush1.xpose.msra.mxu0 0.0
        %4830 = vmatprep.subr.mxu0 0.0
        %4831 = vmatpush1.xpose.msra.mxu0 0.0
        %4832 = vmatprep.subr.mxu0 0.0
        %4833 = vmatpush1.xpose.msra.mxu0 0.0
        %4834 = vmatprep.subr.mxu0 0.0
        %4835 = vmatpush1.xpose.msra.mxu0 0.0
        %4836 = vmatprep.subr.mxu0 0.0
        %4837 = vmatpush1.xpose.msra.mxu0 0.0
        %4838 = vmatprep.subr.mxu0 0.0
        %4839 = vmatpush1.xpose.msra.mxu0 0.0
        %4840 = vmatprep.subr.mxu0 0.0
        %4841 = vmatpush1.xpose.msra.mxu0 0.0
        %4842 = vmatprep.subr.mxu0 0.0
        %4843 = vmatpush1.xpose.msra.mxu0 0.0
        %4844 = vmatprep.subr.mxu0 0.0
        %4845 = vmatpush1.xpose.msra.mxu0 0.0
        %4846 = vmatprep.subr.mxu0 0.0
        %4847 = vmatpush1.xpose.msra.mxu0 0.0
        %4848 = vmatprep.subr.mxu0 0.0
        %4849 = vmatpush1.xpose.msra.mxu0 0.0
        %4850 = vmatprep.subr.mxu0 0.0
        %4851 = vmatpush1.xpose.msra.mxu0 0.0
        %4852 = vmatprep.subr.mxu0 0.0
        %4853 = vmatpush1.xpose.msra.mxu0 0.0
        %4854 = vmatprep.subr.mxu0 0.0
        %4855 = vmatpush1.xpose.msra.mxu0 0.0
        %4856 = vmatprep.subr.mxu0 0.0
        %4857 = vmatpush1.xpose.msra.mxu0 0.0
        %4858 = vmatprep.mubr.f32.mxu0 0.0
        %4859 = vmatmul.mubr.f32.gmra.mrb[0].mxu0 %v4762
        %v4860 = vpop.f32.mrb[0].mxu0
        %v4861 = vadd.f32 0.0, %v4860
        %v4862 = vpop.f32.mrb[0].mxu0
        %4863 = vmatprep.mubr.f32.mxu0 0.0
        %4864 = vmatmul.mubr.f32.gmra.mrb[0].mxu0 %v4764
        %v4865 = vpop.f32.mrb[0].mxu0
        %v4866 = vadd.f32 0.0, %v4865
        %v4867 = vpop.f32.mrb[0].mxu0
        %4868 = vmatprep.mubr.f32.mxu0 0.0
        %4869 = vmatmul.mubr.f32.gmra.mrb[0].mxu0 %v4766
        %v4870 = vpop.f32.mrb[0].mxu0
        %v4871 = vadd.f32 0.0, %v4870
        %v4872 = vpop.f32.mrb[0].mxu0
        %4873 = vmatprep.mubr.f32.mxu0 0.0
        %4874 = vmatmul.mubr.f32.gmra.mrb[0].mxu0 %v4768
        %v4875 = vpop.f32.mrb[0].mxu0
        %v4876 = vadd.f32 0.0, %v4875
        %v4877 = vpop.f32.mrb[0].mxu0
        %4878 = vmatprep.mubr.f32.mxu0 0.0
        %4879 = vmatmul.mubr.f32.gmra.mrb[0].mxu0 %v4770
        %v4880 = vpop.f32.mrb[0].mxu0
        %v4881 = vadd.f32 0.0, %v4880
        %v4882 = vpop.f32.mrb[0].mxu0
        %4883 = vmatprep.mubr.f32.mxu0 0.0
        %4884 = vmatmul.mubr.f32.gmra.mrb[0].mxu0 %v4772
        %v4885 = vpop.f32.mrb[0].mxu0
        %v4886 = vadd.f32 0.0, %v4885
        %v4887 = vpop.f32.mrb[0].mxu0
        %4888 = vmatprep.mubr.f32.mxu0 0.0
        %4889 = vmatmul.mubr.f32.gmra.mrb[0].mxu0 %v4774
        %v4890 = vpop.f32.mrb[0].mxu0
        %v4891 = vadd.f32 0.0, %v4890
        %v4892 = vpop.f32.mrb[0].mxu0
        %4893 = vmatprep.mubr.f32.mxu0 0.0
        %4894 = vmatmul.mubr.f32.gmra.mrb[0].mxu0 %v4776
        %v4895 = vpop.f32.mrb[0].mxu0
        %v4896 = vadd.f32 0.0, %v4895
        %v4897 = vpop.f32.mrb[0].mxu0
        %4898 = vdwg.mxu0
        %4899 = vrot.lane.b32.xlu0 %v3049, 96
        %v4900 = vpop.permute.xlu0 %4899
        %4901 = vrot.lane.b32.xlu0 %v3051, 96
        %v4902 = vpop.permute.xlu0 %4901
        %4903 = vrot.lane.b32.xlu0 %v3053, 96
        %v4904 = vpop.permute.xlu0 %4903
        %4905 = vrot.lane.b32.xlu0 %v3055, 96
        %v4906 = vpop.permute.xlu0 %4905
        %4907 = vrot.lane.b32.xlu0 %v3057, 96
        %v4908 = vpop.permute.xlu0 %4907
        %4909 = vrot.lane.b32.xlu0 %v3059, 96
        %v4910 = vpop.permute.xlu0 %4909
        %4911 = vrot.lane.b32.xlu0 %v3061, 96
        %v4912 = vpop.permute.xlu0 %4911
        %4913 = vrot.lane.b32.xlu0 %v3063, 96
        %v4914 = vpop.permute.xlu0 %4913
        %v4915 = vsel %vm3384, %v2825, 0
        %v4917 = vsel %vm3384, %v2827, 0
        %v4919 = vsel %vm3384, %v2829, 0
        %v4921 = vsel %vm3384, %v2831, 0
        %v4923 = vsel %vm3384, %v2833, 0
        %v4925 = vsel %vm3384, %v2835, 0
        %v4927 = vsel %vm3384, %v2837, 0
        %v4929 = vsel %vm3384, %v2839, 0
        %v4931 = vsel %vm3384, %v4900, 0
        %v4933 = vsel %vm3384, %v4902, 0
        %v4935 = vsel %vm3384, %v4904, 0
        %v4937 = vsel %vm3384, %v4906, 0
        %v4939 = vsel %vm3384, %v4908, 0
        %v4941 = vsel %vm3384, %v4910, 0
        %v4943 = vsel %vm3384, %v4912, 0
        %v4945 = vsel %vm3384, %v4914, 0
        %4947 = vmatprep.subr.mxu0 0.0
        %4948 = vmatpush1.xpose.msra.mxu0 %v4931
        %4949 = vmatprep.subr.mxu0 0.0
        %4950 = vmatpush1.xpose.msra.mxu0 %v4933
        %4951 = vmatprep.subr.mxu0 0.0
        %4952 = vmatpush1.xpose.msra.mxu0 %v4935
        %4953 = vmatprep.subr.mxu0 0.0
        %4954 = vmatpush1.xpose.msra.mxu0 %v4937
        %4955 = vmatprep.subr.mxu0 0.0
        %4956 = vmatpush1.xpose.msra.mxu0 %v4939
        %4957 = vmatprep.subr.mxu0 0.0
        %4958 = vmatpush1.xpose.msra.mxu0 %v4941
        %4959 = vmatprep.subr.mxu0 0.0
        %4960 = vmatpush1.xpose.msra.mxu0 %v4943
        %4961 = vmatprep.subr.mxu0 0.0
        %4962 = vmatpush1.xpose.msra.mxu0 %v4945
        %4963 = vmatprep.subr.mxu0 0.0
        %4964 = vmatpush1.xpose.msra.mxu0 0.0
        %4965 = vmatprep.subr.mxu0 0.0
        %4966 = vmatpush1.xpose.msra.mxu0 0.0
        %4967 = vmatprep.subr.mxu0 0.0
        %4968 = vmatpush1.xpose.msra.mxu0 0.0
        %4969 = vmatprep.subr.mxu0 0.0
        %4970 = vmatpush1.xpose.msra.mxu0 0.0
        %4971 = vmatprep.subr.mxu0 0.0
        %4972 = vmatpush1.xpose.msra.mxu0 0.0
        %4973 = vmatprep.subr.mxu0 0.0
        %4974 = vmatpush1.xpose.msra.mxu0 0.0
        %4975 = vmatprep.subr.mxu0 0.0
        %4976 = vmatpush1.xpose.msra.mxu0 0.0
        %4977 = vmatprep.subr.mxu0 0.0
        %4978 = vmatpush1.xpose.msra.mxu0 0.0
        %4979 = vmatprep.subr.mxu0 0.0
        %4980 = vmatpush1.xpose.msra.mxu0 0.0
        %4981 = vmatprep.subr.mxu0 0.0
        %4982 = vmatpush1.xpose.msra.mxu0 0.0
        %4983 = vmatprep.subr.mxu0 0.0
        %4984 = vmatpush1.xpose.msra.mxu0 0.0
        %4985 = vmatprep.subr.mxu0 0.0
        %4986 = vmatpush1.xpose.msra.mxu0 0.0
        %4987 = vmatprep.subr.mxu0 0.0
        %4988 = vmatpush1.xpose.msra.mxu0 0.0
        %4989 = vmatprep.subr.mxu0 0.0
        %4990 = vmatpush1.xpose.msra.mxu0 0.0
        %4991 = vmatprep.subr.mxu0 0.0
        %4992 = vmatpush1.xpose.msra.mxu0 0.0
        %4993 = vmatprep.subr.mxu0 0.0
        %4994 = vmatpush1.xpose.msra.mxu0 0.0
        %4995 = vmatprep.subr.mxu0 0.0
        %4996 = vmatpush1.xpose.msra.mxu0 0.0
        %4997 = vmatprep.subr.mxu0 0.0
        %4998 = vmatpush1.xpose.msra.mxu0 0.0
        %4999 = vmatprep.subr.mxu0 0.0
        %5000 = vmatpush1.xpose.msra.mxu0 0.0
        %5001 = vmatprep.subr.mxu0 0.0
        %5002 = vmatpush1.xpose.msra.mxu0 0.0
        %5003 = vmatprep.subr.mxu0 0.0
        %5004 = vmatpush1.xpose.msra.mxu0 0.0
        %5005 = vmatprep.subr.mxu0 0.0
        %5006 = vmatpush1.xpose.msra.mxu0 0.0
        %5007 = vmatprep.subr.mxu0 0.0
        %5008 = vmatpush1.xpose.msra.mxu0 0.0
        %5009 = vmatprep.subr.mxu0 0.0
        %5010 = vmatpush1.xpose.msra.mxu0 0.0
        %5011 = vmatprep.mubr.f32.mxu0 0.0
        %5012 = vmatmul.mubr.f32.gmra.mrb[0].mxu0 %v4915
        %v5013 = vpop.f32.mrb[0].mxu0
        %v5014 = vadd.f32 0.0, %v5013
        %v5015 = vpop.f32.mrb[0].mxu0
        %5016 = vmatprep.mubr.f32.mxu0 0.0
        %5017 = vmatmul.mubr.f32.gmra.mrb[0].mxu0 %v4917
        %v5018 = vpop.f32.mrb[0].mxu0
        %v5019 = vadd.f32 0.0, %v5018
        %v5020 = vpop.f32.mrb[0].mxu0
        %5021 = vmatprep.mubr.f32.mxu0 0.0
        %5022 = vmatmul.mubr.f32.gmra.mrb[0].mxu0 %v4919
        %v5023 = vpop.f32.mrb[0].mxu0
        %v5024 = vadd.f32 0.0, %v5023
        %v5025 = vpop.f32.mrb[0].mxu0
        %5026 = vmatprep.mubr.f32.mxu0 0.0
        %5027 = vmatmul.mubr.f32.gmra.mrb[0].mxu0 %v4921
        %v5028 = vpop.f32.mrb[0].mxu0
        %v5029 = vadd.f32 0.0, %v5028
        %v5030 = vpop.f32.mrb[0].mxu0
        %5031 = vmatprep.mubr.f32.mxu0 0.0
        %5032 = vmatmul.mubr.f32.gmra.mrb[0].mxu0 %v4923
        %v5033 = vpop.f32.mrb[0].mxu0
        %v5034 = vadd.f32 0.0, %v5033
        %v5035 = vpop.f32.mrb[0].mxu0
        %5036 = vmatprep.mubr.f32.mxu0 0.0
        %5037 = vmatmul.mubr.f32.gmra.mrb[0].mxu0 %v4925
        %v5038 = vpop.f32.mrb[0].mxu0
        %v5039 = vadd.f32 0.0, %v5038
        %v5040 = vpop.f32.mrb[0].mxu0
        %5041 = vmatprep.mubr.f32.mxu0 0.0
        %5042 = vmatmul.mubr.f32.gmra.mrb[0].mxu0 %v4927
        %v5043 = vpop.f32.mrb[0].mxu0
        %v5044 = vadd.f32 0.0, %v5043
        %v5045 = vpop.f32.mrb[0].mxu0
        %5046 = vmatprep.mubr.f32.mxu0 0.0
        %5047 = vmatmul.mubr.f32.gmra.mrb[0].mxu0 %v4929
        %v5048 = vpop.f32.mrb[0].mxu0
        %v5049 = vadd.f32 0.0, %v5048
        %v5050 = vpop.f32.mrb[0].mxu0
        %5051 = vdwg.mxu0
        %5052 = vrot.lane.b32.xlu0 %v3065, 96
        %v5053 = vpop.permute.xlu0 %5052
        %5054 = vrot.lane.b32.xlu0 %v3067, 96
        %v5055 = vpop.permute.xlu0 %5054
        %5056 = vrot.lane.b32.xlu0 %v3069, 96
        %v5057 = vpop.permute.xlu0 %5056
        %5058 = vrot.lane.b32.xlu0 %v3071, 96
        %v5059 = vpop.permute.xlu0 %5058
        %5060 = vrot.lane.b32.xlu0 %v3073, 96
        %v5061 = vpop.permute.xlu0 %5060
        %5062 = vrot.lane.b32.xlu0 %v3075, 96
        %v5063 = vpop.permute.xlu0 %5062
        %5064 = vrot.lane.b32.xlu0 %v3077, 96
        %v5065 = vpop.permute.xlu0 %5064
        %5066 = vrot.lane.b32.xlu0 %v3079, 96
        %v5067 = vpop.permute.xlu0 %5066
        %v5068 = vsel %vm3384, %v2841, 0
        %v5070 = vsel %vm3384, %v2843, 0
        %v5072 = vsel %vm3384, %v2845, 0
        %v5074 = vsel %vm3384, %v2847, 0
        %v5076 = vsel %vm3384, %v2849, 0
        %v5078 = vsel %vm3384, %v2851, 0
        %v5080 = vsel %vm3384, %v2853, 0
        %v5082 = vsel %vm3384, %v2855, 0
        %v5084 = vsel %vm3384, %v5053, 0
        %v5086 = vsel %vm3384, %v5055, 0
        %v5088 = vsel %vm3384, %v5057, 0
        %v5090 = vsel %vm3384, %v5059, 0
        %v5092 = vsel %vm3384, %v5061, 0
        %v5094 = vsel %vm3384, %v5063, 0
        %v5096 = vsel %vm3384, %v5065, 0
        %v5098 = vsel %vm3384, %v5067, 0
        %5100 = vmatprep.subr.mxu0 0.0
        %5101 = vmatpush1.xpose.msra.mxu0 %v5084
        %5102 = vmatprep.subr.mxu0 0.0
        %5103 = vmatpush1.xpose.msra.mxu0 %v5086
        %5104 = vmatprep.subr.mxu0 0.0
        %5105 = vmatpush1.xpose.msra.mxu0 %v5088
        %5106 = vmatprep.subr.mxu0 0.0
        %5107 = vmatpush1.xpose.msra.mxu0 %v5090
        %5108 = vmatprep.subr.mxu0 0.0
        %5109 = vmatpush1.xpose.msra.mxu0 %v5092
        %5110 = vmatprep.subr.mxu0 0.0
        %5111 = vmatpush1.xpose.msra.mxu0 %v5094
        %5112 = vmatprep.subr.mxu0 0.0
        %5113 = vmatpush1.xpose.msra.mxu0 %v5096
        %5114 = vmatprep.subr.mxu0 0.0
        %5115 = vmatpush1.xpose.msra.mxu0 %v5098
        %5116 = vmatprep.subr.mxu0 0.0
        %5117 = vmatpush1.xpose.msra.mxu0 0.0
        %5118 = vmatprep.subr.mxu0 0.0
        %5119 = vmatpush1.xpose.msra.mxu0 0.0
        %5120 = vmatprep.subr.mxu0 0.0
        %5121 = vmatpush1.xpose.msra.mxu0 0.0
        %5122 = vmatprep.subr.mxu0 0.0
        %5123 = vmatpush1.xpose.msra.mxu0 0.0
        %5124 = vmatprep.subr.mxu0 0.0
        %5125 = vmatpush1.xpose.msra.mxu0 0.0
        %5126 = vmatprep.subr.mxu0 0.0
        %5127 = vmatpush1.xpose.msra.mxu0 0.0
        %5128 = vmatprep.subr.mxu0 0.0
        %5129 = vmatpush1.xpose.msra.mxu0 0.0
        %5130 = vmatprep.subr.mxu0 0.0
        %5131 = vmatpush1.xpose.msra.mxu0 0.0
        %5132 = vmatprep.subr.mxu0 0.0
        %5133 = vmatpush1.xpose.msra.mxu0 0.0
        %5134 = vmatprep.subr.mxu0 0.0
        %5135 = vmatpush1.xpose.msra.mxu0 0.0
        %5136 = vmatprep.subr.mxu0 0.0
        %5137 = vmatpush1.xpose.msra.mxu0 0.0
        %5138 = vmatprep.subr.mxu0 0.0
        %5139 = vmatpush1.xpose.msra.mxu0 0.0
        %5140 = vmatprep.subr.mxu0 0.0
        %5141 = vmatpush1.xpose.msra.mxu0 0.0
        %5142 = vmatprep.subr.mxu0 0.0
        %5143 = vmatpush1.xpose.msra.mxu0 0.0
        %5144 = vmatprep.subr.mxu0 0.0
        %5145 = vmatpush1.xpose.msra.mxu0 0.0
        %5146 = vmatprep.subr.mxu0 0.0
        %5147 = vmatpush1.xpose.msra.mxu0 0.0
        %5148 = vmatprep.subr.mxu0 0.0
        %5149 = vmatpush1.xpose.msra.mxu0 0.0
        %5150 = vmatprep.subr.mxu0 0.0
        %5151 = vmatpush1.xpose.msra.mxu0 0.0
        %5152 = vmatprep.subr.mxu0 0.0
        %5153 = vmatpush1.xpose.msra.mxu0 0.0
        %5154 = vmatprep.subr.mxu0 0.0
        %5155 = vmatpush1.xpose.msra.mxu0 0.0
        %5156 = vmatprep.subr.mxu0 0.0
        %5157 = vmatpush1.xpose.msra.mxu0 0.0
        %5158 = vmatprep.subr.mxu0 0.0
        %5159 = vmatpush1.xpose.msra.mxu0 0.0
        %5160 = vmatprep.subr.mxu0 0.0
        %5161 = vmatpush1.xpose.msra.mxu0 0.0
        %5162 = vmatprep.subr.mxu0 0.0
        %5163 = vmatpush1.xpose.msra.mxu0 0.0
        %5164 = vmatprep.mubr.f32.mxu0 0.0
        %5165 = vmatmul.mubr.f32.gmra.mrb[0].mxu0 %v5068
        %v5166 = vpop.f32.mrb[0].mxu0
        %v5167 = vadd.f32 0.0, %v5166
        %v5168 = vpop.f32.mrb[0].mxu0
        %5169 = vmatprep.mubr.f32.mxu0 0.0
        %5170 = vmatmul.mubr.f32.gmra.mrb[0].mxu0 %v5070
        %v5171 = vpop.f32.mrb[0].mxu0
        %v5172 = vadd.f32 0.0, %v5171
        %v5173 = vpop.f32.mrb[0].mxu0
        %5174 = vmatprep.mubr.f32.mxu0 0.0
        %5175 = vmatmul.mubr.f32.gmra.mrb[0].mxu0 %v5072
        %v5176 = vpop.f32.mrb[0].mxu0
        %v5177 = vadd.f32 0.0, %v5176
        %v5178 = vpop.f32.mrb[0].mxu0
        %5179 = vmatprep.mubr.f32.mxu0 0.0
        %5180 = vmatmul.mubr.f32.gmra.mrb[0].mxu0 %v5074
        %v5181 = vpop.f32.mrb[0].mxu0
        %v5182 = vadd.f32 0.0, %v5181
        %v5183 = vpop.f32.mrb[0].mxu0
        %5184 = vmatprep.mubr.f32.mxu0 0.0
        %5185 = vmatmul.mubr.f32.gmra.mrb[0].mxu0 %v5076
        %v5186 = vpop.f32.mrb[0].mxu0
        %v5187 = vadd.f32 0.0, %v5186
        %v5188 = vpop.f32.mrb[0].mxu0
        %5189 = vmatprep.mubr.f32.mxu0 0.0
        %5190 = vmatmul.mubr.f32.gmra.mrb[0].mxu0 %v5078
        %v5191 = vpop.f32.mrb[0].mxu0
        %v5192 = vadd.f32 0.0, %v5191
        %v5193 = vpop.f32.mrb[0].mxu0
        %5194 = vmatprep.mubr.f32.mxu0 0.0
        %5195 = vmatmul.mubr.f32.gmra.mrb[0].mxu0 %v5080
        %v5196 = vpop.f32.mrb[0].mxu0
        %v5197 = vadd.f32 0.0, %v5196
        %v5198 = vpop.f32.mrb[0].mxu0
        %5199 = vmatprep.mubr.f32.mxu0 0.0
        %5200 = vmatmul.mubr.f32.gmra.mrb[0].mxu0 %v5082
        %v5201 = vpop.f32.mrb[0].mxu0
        %v5202 = vadd.f32 0.0, %v5201
        %v5203 = vpop.f32.mrb[0].mxu0
        %5204 = vdwg.mxu0
        %5205 = vrot.lane.b32.xlu0 %v3081, 96
        %v5206 = vpop.permute.xlu0 %5205
        %5207 = vrot.lane.b32.xlu0 %v3083, 96
        %v5208 = vpop.permute.xlu0 %5207
        %5209 = vrot.lane.b32.xlu0 %v3085, 96
        %v5210 = vpop.permute.xlu0 %5209
        %5211 = vrot.lane.b32.xlu0 %v3087, 96
        %v5212 = vpop.permute.xlu0 %5211
        %5213 = vrot.lane.b32.xlu0 %v3089, 96
        %v5214 = vpop.permute.xlu0 %5213
        %5215 = vrot.lane.b32.xlu0 %v3091, 96
        %v5216 = vpop.permute.xlu0 %5215
        %5217 = vrot.lane.b32.xlu0 %v3093, 96
        %v5218 = vpop.permute.xlu0 %5217
        %5219 = vrot.lane.b32.xlu0 %v3095, 96
        %v5220 = vpop.permute.xlu0 %5219
        %v5221 = vsel %vm3384, %v2857, 0
        %v5223 = vsel %vm3384, %v2859, 0
        %v5225 = vsel %vm3384, %v2861, 0
        %v5227 = vsel %vm3384, %v2863, 0
        %v5229 = vsel %vm3384, %v2865, 0
        %v5231 = vsel %vm3384, %v2867, 0
        %v5233 = vsel %vm3384, %v2869, 0
        %v5235 = vsel %vm3384, %v2871, 0
        %v5237 = vsel %vm3384, %v5206, 0
        %v5239 = vsel %vm3384, %v5208, 0
        %v5241 = vsel %vm3384, %v5210, 0
        %v5243 = vsel %vm3384, %v5212, 0
        %v5245 = vsel %vm3384, %v5214, 0
        %v5247 = vsel %vm3384, %v5216, 0
        %v5249 = vsel %vm3384, %v5218, 0
        %v5251 = vsel %vm3384, %v5220, 0
        %5253 = vmatprep.subr.mxu0 0.0
        %5254 = vmatpush1.xpose.msra.mxu0 %v5237
        %5255 = vmatprep.subr.mxu0 0.0
        %5256 = vmatpush1.xpose.msra.mxu0 %v5239
        %5257 = vmatprep.subr.mxu0 0.0
        %5258 = vmatpush1.xpose.msra.mxu0 %v5241
        %5259 = vmatprep.subr.mxu0 0.0
        %5260 = vmatpush1.xpose.msra.mxu0 %v5243
        %5261 = vmatprep.subr.mxu0 0.0
        %5262 = vmatpush1.xpose.msra.mxu0 %v5245
        %5263 = vmatprep.subr.mxu0 0.0
        %5264 = vmatpush1.xpose.msra.mxu0 %v5247
        %5265 = vmatprep.subr.mxu0 0.0
        %5266 = vmatpush1.xpose.msra.mxu0 %v5249
        %5267 = vmatprep.subr.mxu0 0.0
        %5268 = vmatpush1.xpose.msra.mxu0 %v5251
        %5269 = vmatprep.subr.mxu0 0.0
        %5270 = vmatpush1.xpose.msra.mxu0 0.0
        %5271 = vmatprep.subr.mxu0 0.0
        %5272 = vmatpush1.xpose.msra.mxu0 0.0
        %5273 = vmatprep.subr.mxu0 0.0
        %5274 = vmatpush1.xpose.msra.mxu0 0.0
        %5275 = vmatprep.subr.mxu0 0.0
        %5276 = vmatpush1.xpose.msra.mxu0 0.0
        %5277 = vmatprep.subr.mxu0 0.0
        %5278 = vmatpush1.xpose.msra.mxu0 0.0
        %5279 = vmatprep.subr.mxu0 0.0
        %5280 = vmatpush1.xpose.msra.mxu0 0.0
        %5281 = vmatprep.subr.mxu0 0.0
        %5282 = vmatpush1.xpose.msra.mxu0 0.0
        %5283 = vmatprep.subr.mxu0 0.0
        %5284 = vmatpush1.xpose.msra.mxu0 0.0
        %5285 = vmatprep.subr.mxu0 0.0
        %5286 = vmatpush1.xpose.msra.mxu0 0.0
        %5287 = vmatprep.subr.mxu0 0.0
        %5288 = vmatpush1.xpose.msra.mxu0 0.0
        %5289 = vmatprep.subr.mxu0 0.0
        %5290 = vmatpush1.xpose.msra.mxu0 0.0
        %5291 = vmatprep.subr.mxu0 0.0
        %5292 = vmatpush1.xpose.msra.mxu0 0.0
        %5293 = vmatprep.subr.mxu0 0.0
        %5294 = vmatpush1.xpose.msra.mxu0 0.0
        %5295 = vmatprep.subr.mxu0 0.0
        %5296 = vmatpush1.xpose.msra.mxu0 0.0
        %5297 = vmatprep.subr.mxu0 0.0
        %5298 = vmatpush1.xpose.msra.mxu0 0.0
        %5299 = vmatprep.subr.mxu0 0.0
        %5300 = vmatpush1.xpose.msra.mxu0 0.0
        %5301 = vmatprep.subr.mxu0 0.0
        %5302 = vmatpush1.xpose.msra.mxu0 0.0
        %5303 = vmatprep.subr.mxu0 0.0
        %5304 = vmatpush1.xpose.msra.mxu0 0.0
        %5305 = vmatprep.subr.mxu0 0.0
        %5306 = vmatpush1.xpose.msra.mxu0 0.0
        %5307 = vmatprep.subr.mxu0 0.0
        %5308 = vmatpush1.xpose.msra.mxu0 0.0
        %5309 = vmatprep.subr.mxu0 0.0
        %5310 = vmatpush1.xpose.msra.mxu0 0.0
        %5311 = vmatprep.subr.mxu0 0.0
        %5312 = vmatpush1.xpose.msra.mxu0 0.0
        %5313 = vmatprep.subr.mxu0 0.0
        %5314 = vmatpush1.xpose.msra.mxu0 0.0
        %5315 = vmatprep.subr.mxu0 0.0
        %5316 = vmatpush1.xpose.msra.mxu0 0.0
        %5317 = vmatprep.mubr.f32.mxu0 0.0
        %5318 = vmatmul.mubr.f32.gmra.mrb[0].mxu0 %v5221
        %v5319 = vpop.f32.mrb[0].mxu0
        %v5320 = vadd.f32 0.0, %v5319
        %v5321 = vpop.f32.mrb[0].mxu0
        %5322 = vmatprep.mubr.f32.mxu0 0.0
        %5323 = vmatmul.mubr.f32.gmra.mrb[0].mxu0 %v5223
        %v5324 = vpop.f32.mrb[0].mxu0
        %v5325 = vadd.f32 0.0, %v5324
        %v5326 = vpop.f32.mrb[0].mxu0
        %5327 = vmatprep.mubr.f32.mxu0 0.0
        %5328 = vmatmul.mubr.f32.gmra.mrb[0].mxu0 %v5225
        %v5329 = vpop.f32.mrb[0].mxu0
        %v5330 = vadd.f32 0.0, %v5329
        %v5331 = vpop.f32.mrb[0].mxu0
        %5332 = vmatprep.mubr.f32.mxu0 0.0
        %5333 = vmatmul.mubr.f32.gmra.mrb[0].mxu0 %v5227
        %v5334 = vpop.f32.mrb[0].mxu0
        %v5335 = vadd.f32 0.0, %v5334
        %v5336 = vpop.f32.mrb[0].mxu0
        %5337 = vmatprep.mubr.f32.mxu0 0.0
        %5338 = vmatmul.mubr.f32.gmra.mrb[0].mxu0 %v5229
        %v5339 = vpop.f32.mrb[0].mxu0
        %v5340 = vadd.f32 0.0, %v5339
        %v5341 = vpop.f32.mrb[0].mxu0
        %5342 = vmatprep.mubr.f32.mxu0 0.0
        %5343 = vmatmul.mubr.f32.gmra.mrb[0].mxu0 %v5231
        %v5344 = vpop.f32.mrb[0].mxu0
        %v5345 = vadd.f32 0.0, %v5344
        %v5346 = vpop.f32.mrb[0].mxu0
        %5347 = vmatprep.mubr.f32.mxu0 0.0
        %5348 = vmatmul.mubr.f32.gmra.mrb[0].mxu0 %v5233
        %v5349 = vpop.f32.mrb[0].mxu0
        %v5350 = vadd.f32 0.0, %v5349
        %v5351 = vpop.f32.mrb[0].mxu0
        %5352 = vmatprep.mubr.f32.mxu0 0.0
        %5353 = vmatmul.mubr.f32.gmra.mrb[0].mxu0 %v5235
        %v5354 = vpop.f32.mrb[0].mxu0
        %v5355 = vadd.f32 0.0, %v5354
        %v5356 = vpop.f32.mrb[0].mxu0
        %5357 = vdwg.mxu0
        %5358 = vrot.lane.b32.xlu0 %v3097, 96
        %v5359 = vpop.permute.xlu0 %5358
        %5360 = vrot.lane.b32.xlu0 %v3099, 96
        %v5361 = vpop.permute.xlu0 %5360
        %5362 = vrot.lane.b32.xlu0 %v3101, 96
        %v5363 = vpop.permute.xlu0 %5362
        %5364 = vrot.lane.b32.xlu0 %v3103, 96
        %v5365 = vpop.permute.xlu0 %5364
        %5366 = vrot.lane.b32.xlu0 %v3105, 96
        %v5367 = vpop.permute.xlu0 %5366
        %5368 = vrot.lane.b32.xlu0 %v3107, 96
        %v5369 = vpop.permute.xlu0 %5368
        %5370 = vrot.lane.b32.xlu0 %v3109, 96
        %v5371 = vpop.permute.xlu0 %5370
        %5372 = vrot.lane.b32.xlu0 %v3111, 96
        %v5373 = vpop.permute.xlu0 %5372
        %v5374 = vsel %vm3384, %v2873, 0
        %v5376 = vsel %vm3384, %v2875, 0
        %v5378 = vsel %vm3384, %v2877, 0
        %v5380 = vsel %vm3384, %v2879, 0
        %v5382 = vsel %vm3384, %v2881, 0
        %v5384 = vsel %vm3384, %v2883, 0
        %v5386 = vsel %vm3384, %v2885, 0
        %v5388 = vsel %vm3384, %v2887, 0
        %v5390 = vsel %vm3384, %v5359, 0
        %v5392 = vsel %vm3384, %v5361, 0
        %v5394 = vsel %vm3384, %v5363, 0
        %v5396 = vsel %vm3384, %v5365, 0
        %v5398 = vsel %vm3384, %v5367, 0
        %v5400 = vsel %vm3384, %v5369, 0
        %v5402 = vsel %vm3384, %v5371, 0
        %v5404 = vsel %vm3384, %v5373, 0
        %5406 = vmatprep.subr.mxu0 0.0
        %5407 = vmatpush1.xpose.msra.mxu0 %v5390
        %5408 = vmatprep.subr.mxu0 0.0
        %5409 = vmatpush1.xpose.msra.mxu0 %v5392
        %5410 = vmatprep.subr.mxu0 0.0
        %5411 = vmatpush1.xpose.msra.mxu0 %v5394
        %5412 = vmatprep.subr.mxu0 0.0
        %5413 = vmatpush1.xpose.msra.mxu0 %v5396
        %5414 = vmatprep.subr.mxu0 0.0
        %5415 = vmatpush1.xpose.msra.mxu0 %v5398
        %5416 = vmatprep.subr.mxu0 0.0
        %5417 = vmatpush1.xpose.msra.mxu0 %v5400
        %5418 = vmatprep.subr.mxu0 0.0
        %5419 = vmatpush1.xpose.msra.mxu0 %v5402
        %5420 = vmatprep.subr.mxu0 0.0
        %5421 = vmatpush1.xpose.msra.mxu0 %v5404
        %5422 = vmatprep.subr.mxu0 0.0
        %5423 = vmatpush1.xpose.msra.mxu0 0.0
        %5424 = vmatprep.subr.mxu0 0.0
        %5425 = vmatpush1.xpose.msra.mxu0 0.0
        %5426 = vmatprep.subr.mxu0 0.0
        %5427 = vmatpush1.xpose.msra.mxu0 0.0
        %5428 = vmatprep.subr.mxu0 0.0
        %5429 = vmatpush1.xpose.msra.mxu0 0.0
        %5430 = vmatprep.subr.mxu0 0.0
        %5431 = vmatpush1.xpose.msra.mxu0 0.0
        %5432 = vmatprep.subr.mxu0 0.0
        %5433 = vmatpush1.xpose.msra.mxu0 0.0
        %5434 = vmatprep.subr.mxu0 0.0
        %5435 = vmatpush1.xpose.msra.mxu0 0.0
        %5436 = vmatprep.subr.mxu0 0.0
        %5437 = vmatpush1.xpose.msra.mxu0 0.0
        %5438 = vmatprep.subr.mxu0 0.0
        %5439 = vmatpush1.xpose.msra.mxu0 0.0
        %5440 = vmatprep.subr.mxu0 0.0
        %5441 = vmatpush1.xpose.msra.mxu0 0.0
        %5442 = vmatprep.subr.mxu0 0.0
        %5443 = vmatpush1.xpose.msra.mxu0 0.0
        %5444 = vmatprep.subr.mxu0 0.0
        %5445 = vmatpush1.xpose.msra.mxu0 0.0
        %5446 = vmatprep.subr.mxu0 0.0
        %5447 = vmatpush1.xpose.msra.mxu0 0.0
        %5448 = vmatprep.subr.mxu0 0.0
        %5449 = vmatpush1.xpose.msra.mxu0 0.0
        %5450 = vmatprep.subr.mxu0 0.0
        %5451 = vmatpush1.xpose.msra.mxu0 0.0
        %5452 = vmatprep.subr.mxu0 0.0
        %5453 = vmatpush1.xpose.msra.mxu0 0.0
        %5454 = vmatprep.subr.mxu0 0.0
        %5455 = vmatpush1.xpose.msra.mxu0 0.0
        %5456 = vmatprep.subr.mxu0 0.0
        %5457 = vmatpush1.xpose.msra.mxu0 0.0
        %5458 = vmatprep.subr.mxu0 0.0
        %5459 = vmatpush1.xpose.msra.mxu0 0.0
        %5460 = vmatprep.subr.mxu0 0.0
        %5461 = vmatpush1.xpose.msra.mxu0 0.0
        %5462 = vmatprep.subr.mxu0 0.0
        %5463 = vmatpush1.xpose.msra.mxu0 0.0
        %5464 = vmatprep.subr.mxu0 0.0
        %5465 = vmatpush1.xpose.msra.mxu0 0.0
        %5466 = vmatprep.subr.mxu0 0.0
        %5467 = vmatpush1.xpose.msra.mxu0 0.0
        %5468 = vmatprep.subr.mxu0 0.0
        %5469 = vmatpush1.xpose.msra.mxu0 0.0
        %5470 = vmatprep.mubr.f32.mxu0 0.0
        %5471 = vmatmul.mubr.f32.gmra.mrb[0].mxu0 %v5374
        %v5472 = vpop.f32.mrb[0].mxu0
        %v5473 = vadd.f32 0.0, %v5472
        %v5474 = vpop.f32.mrb[0].mxu0
        %5475 = vmatprep.mubr.f32.mxu0 0.0
        %5476 = vmatmul.mubr.f32.gmra.mrb[0].mxu0 %v5376
        %v5477 = vpop.f32.mrb[0].mxu0
        %v5478 = vadd.f32 0.0, %v5477
        %v5479 = vpop.f32.mrb[0].mxu0
        %5480 = vmatprep.mubr.f32.mxu0 0.0
        %5481 = vmatmul.mubr.f32.gmra.mrb[0].mxu0 %v5378
        %v5482 = vpop.f32.mrb[0].mxu0
        %v5483 = vadd.f32 0.0, %v5482
        %v5484 = vpop.f32.mrb[0].mxu0
        %5485 = vmatprep.mubr.f32.mxu0 0.0
        %5486 = vmatmul.mubr.f32.gmra.mrb[0].mxu0 %v5380
        %v5487 = vpop.f32.mrb[0].mxu0
        %v5488 = vadd.f32 0.0, %v5487
        %v5489 = vpop.f32.mrb[0].mxu0
        %5490 = vmatprep.mubr.f32.mxu0 0.0
        %5491 = vmatmul.mubr.f32.gmra.mrb[0].mxu0 %v5382
        %v5492 = vpop.f32.mrb[0].mxu0
        %v5493 = vadd.f32 0.0, %v5492
        %v5494 = vpop.f32.mrb[0].mxu0
        %5495 = vmatprep.mubr.f32.mxu0 0.0
        %5496 = vmatmul.mubr.f32.gmra.mrb[0].mxu0 %v5384
        %v5497 = vpop.f32.mrb[0].mxu0
        %v5498 = vadd.f32 0.0, %v5497
        %v5499 = vpop.f32.mrb[0].mxu0
        %5500 = vmatprep.mubr.f32.mxu0 0.0
        %5501 = vmatmul.mubr.f32.gmra.mrb[0].mxu0 %v5386
        %v5502 = vpop.f32.mrb[0].mxu0
        %v5503 = vadd.f32 0.0, %v5502
        %v5504 = vpop.f32.mrb[0].mxu0
        %5505 = vmatprep.mubr.f32.mxu0 0.0
        %5506 = vmatmul.mubr.f32.gmra.mrb[0].mxu0 %v5388
        %v5507 = vpop.f32.mrb[0].mxu0
        %v5508 = vadd.f32 0.0, %v5507
        %v5509 = vpop.f32.mrb[0].mxu0
        %5510 = vdwg.mxu0
        %5511 = vrot.lane.b32.xlu0 %v3113, 96
        %v5512 = vpop.permute.xlu0 %5511
        %5513 = vrot.lane.b32.xlu0 %v3115, 96
        %v5514 = vpop.permute.xlu0 %5513
        %5515 = vrot.lane.b32.xlu0 %v3117, 96
        %v5516 = vpop.permute.xlu0 %5515
        %5517 = vrot.lane.b32.xlu0 %v3119, 96
        %v5518 = vpop.permute.xlu0 %5517
        %5519 = vrot.lane.b32.xlu0 %v3121, 96
        %v5520 = vpop.permute.xlu0 %5519
        %5521 = vrot.lane.b32.xlu0 %v3123, 96
        %v5522 = vpop.permute.xlu0 %5521
        %5523 = vrot.lane.b32.xlu0 %v3125, 96
        %v5524 = vpop.permute.xlu0 %5523
        %5525 = vrot.lane.b32.xlu0 %v3127, 96
        %v5526 = vpop.permute.xlu0 %5525
        %v5527 = vsel %vm3384, %v2889, 0
        %v5529 = vsel %vm3384, %v2891, 0
        %v5531 = vsel %vm3384, %v2893, 0
        %v5533 = vsel %vm3384, %v2895, 0
        %v5535 = vsel %vm3384, %v2897, 0
        %v5537 = vsel %vm3384, %v2899, 0
        %v5539 = vsel %vm3384, %v2901, 0
        %v5541 = vsel %vm3384, %v2903, 0
        %v5543 = vsel %vm3384, %v5512, 0
        %v5545 = vsel %vm3384, %v5514, 0
        %v5547 = vsel %vm3384, %v5516, 0
        %v5549 = vsel %vm3384, %v5518, 0
        %v5551 = vsel %vm3384, %v5520, 0
        %v5553 = vsel %vm3384, %v5522, 0
        %v5555 = vsel %vm3384, %v5524, 0
        %v5557 = vsel %vm3384, %v5526, 0
        %5559 = vmatprep.subr.mxu0 0.0
        %5560 = vmatpush1.xpose.msra.mxu0 %v5543
        %5561 = vmatprep.subr.mxu0 0.0
        %5562 = vmatpush1.xpose.msra.mxu0 %v5545
        %5563 = vmatprep.subr.mxu0 0.0
        %5564 = vmatpush1.xpose.msra.mxu0 %v5547
        %5565 = vmatprep.subr.mxu0 0.0
        %5566 = vmatpush1.xpose.msra.mxu0 %v5549
        %5567 = vmatprep.subr.mxu0 0.0
        %5568 = vmatpush1.xpose.msra.mxu0 %v5551
        %5569 = vmatprep.subr.mxu0 0.0
        %5570 = vmatpush1.xpose.msra.mxu0 %v5553
        %5571 = vmatprep.subr.mxu0 0.0
        %5572 = vmatpush1.xpose.msra.mxu0 %v5555
        %5573 = vmatprep.subr.mxu0 0.0
        %5574 = vmatpush1.xpose.msra.mxu0 %v5557
        %5575 = vmatprep.subr.mxu0 0.0
        %5576 = vmatpush1.xpose.msra.mxu0 0.0
        %5577 = vmatprep.subr.mxu0 0.0
        %5578 = vmatpush1.xpose.msra.mxu0 0.0
        %5579 = vmatprep.subr.mxu0 0.0
        %5580 = vmatpush1.xpose.msra.mxu0 0.0
        %5581 = vmatprep.subr.mxu0 0.0
        %5582 = vmatpush1.xpose.msra.mxu0 0.0
        %5583 = vmatprep.subr.mxu0 0.0
        %5584 = vmatpush1.xpose.msra.mxu0 0.0
        %5585 = vmatprep.subr.mxu0 0.0
        %5586 = vmatpush1.xpose.msra.mxu0 0.0
        %5587 = vmatprep.subr.mxu0 0.0
        %5588 = vmatpush1.xpose.msra.mxu0 0.0
        %5589 = vmatprep.subr.mxu0 0.0
        %5590 = vmatpush1.xpose.msra.mxu0 0.0
        %5591 = vmatprep.subr.mxu0 0.0
        %5592 = vmatpush1.xpose.msra.mxu0 0.0
        %5593 = vmatprep.subr.mxu0 0.0
        %5594 = vmatpush1.xpose.msra.mxu0 0.0
        %5595 = vmatprep.subr.mxu0 0.0
        %5596 = vmatpush1.xpose.msra.mxu0 0.0
        %5597 = vmatprep.subr.mxu0 0.0
        %5598 = vmatpush1.xpose.msra.mxu0 0.0
        %5599 = vmatprep.subr.mxu0 0.0
        %5600 = vmatpush1.xpose.msra.mxu0 0.0
        %5601 = vmatprep.subr.mxu0 0.0
        %5602 = vmatpush1.xpose.msra.mxu0 0.0
        %5603 = vmatprep.subr.mxu0 0.0
        %5604 = vmatpush1.xpose.msra.mxu0 0.0
        %5605 = vmatprep.subr.mxu0 0.0
        %5606 = vmatpush1.xpose.msra.mxu0 0.0
        %5607 = vmatprep.subr.mxu0 0.0
        %5608 = vmatpush1.xpose.msra.mxu0 0.0
        %5609 = vmatprep.subr.mxu0 0.0
        %5610 = vmatpush1.xpose.msra.mxu0 0.0
        %5611 = vmatprep.subr.mxu0 0.0
        %5612 = vmatpush1.xpose.msra.mxu0 0.0
        %5613 = vmatprep.subr.mxu0 0.0
        %5614 = vmatpush1.xpose.msra.mxu0 0.0
        %5615 = vmatprep.subr.mxu0 0.0
        %5616 = vmatpush1.xpose.msra.mxu0 0.0
        %5617 = vmatprep.subr.mxu0 0.0
        %5618 = vmatpush1.xpose.msra.mxu0 0.0
        %5619 = vmatprep.subr.mxu0 0.0
        %5620 = vmatpush1.xpose.msra.mxu0 0.0
        %5621 = vmatprep.subr.mxu0 0.0
        %5622 = vmatpush1.xpose.msra.mxu0 0.0
        %5623 = vmatprep.mubr.f32.mxu0 0.0
        %5624 = vmatmul.mubr.f32.gmra.mrb[0].mxu0 %v5527
        %v5625 = vpop.f32.mrb[0].mxu0
        %v5626 = vadd.f32 0.0, %v5625
        %v5627 = vpop.f32.mrb[0].mxu0
        %5628 = vmatprep.mubr.f32.mxu0 0.0
        %5629 = vmatmul.mubr.f32.gmra.mrb[0].mxu0 %v5529
        %v5630 = vpop.f32.mrb[0].mxu0
        %v5631 = vadd.f32 0.0, %v5630
        %v5632 = vpop.f32.mrb[0].mxu0
        %5633 = vmatprep.mubr.f32.mxu0 0.0
        %5634 = vmatmul.mubr.f32.gmra.mrb[0].mxu0 %v5531
        %v5635 = vpop.f32.mrb[0].mxu0
        %v5636 = vadd.f32 0.0, %v5635
        %v5637 = vpop.f32.mrb[0].mxu0
        %5638 = vmatprep.mubr.f32.mxu0 0.0
        %5639 = vmatmul.mubr.f32.gmra.mrb[0].mxu0 %v5533
        %v5640 = vpop.f32.mrb[0].mxu0
        %v5641 = vadd.f32 0.0, %v5640
        %v5642 = vpop.f32.mrb[0].mxu0
        %5643 = vmatprep.mubr.f32.mxu0 0.0
        %5644 = vmatmul.mubr.f32.gmra.mrb[0].mxu0 %v5535
        %v5645 = vpop.f32.mrb[0].mxu0
        %v5646 = vadd.f32 0.0, %v5645
        %v5647 = vpop.f32.mrb[0].mxu0
        %5648 = vmatprep.mubr.f32.mxu0 0.0
        %5649 = vmatmul.mubr.f32.gmra.mrb[0].mxu0 %v5537
        %v5650 = vpop.f32.mrb[0].mxu0
        %v5651 = vadd.f32 0.0, %v5650
        %v5652 = vpop.f32.mrb[0].mxu0
        %5653 = vmatprep.mubr.f32.mxu0 0.0
        %5654 = vmatmul.mubr.f32.gmra.mrb[0].mxu0 %v5539
        %v5655 = vpop.f32.mrb[0].mxu0
        %v5656 = vadd.f32 0.0, %v5655
        %v5657 = vpop.f32.mrb[0].mxu0
        %5658 = vmatprep.mubr.f32.mxu0 0.0
        %5659 = vmatmul.mubr.f32.gmra.mrb[0].mxu0 %v5541
        %v5660 = vpop.f32.mrb[0].mxu0
        %v5661 = vadd.f32 0.0, %v5660
        %v5662 = vpop.f32.mrb[0].mxu0
        %5663 = vdwg.mxu0
        %5664 = vrot.lane.b32.xlu0 %v3129, 96
        %v5665 = vpop.permute.xlu0 %5664
        %5666 = vrot.lane.b32.xlu0 %v3131, 96
        %v5667 = vpop.permute.xlu0 %5666
        %5668 = vrot.lane.b32.xlu0 %v3133, 96
        %v5669 = vpop.permute.xlu0 %5668
        %5670 = vrot.lane.b32.xlu0 %v3135, 96
        %v5671 = vpop.permute.xlu0 %5670
        %5672 = vrot.lane.b32.xlu0 %v3137, 96
        %v5673 = vpop.permute.xlu0 %5672
        %5674 = vrot.lane.b32.xlu0 %v3139, 96
        %v5675 = vpop.permute.xlu0 %5674
        %5676 = vrot.lane.b32.xlu0 %v3141, 96
        %v5677 = vpop.permute.xlu0 %5676
        %5678 = vrot.lane.b32.xlu0 %v3143, 96
        %v5679 = vpop.permute.xlu0 %5678
        %v5680 = vsel %vm3384, %v2905, 0
        %v5682 = vsel %vm3384, %v2907, 0
        %v5684 = vsel %vm3384, %v2909, 0
        %v5686 = vsel %vm3384, %v2911, 0
        %v5688 = vsel %vm3384, %v2913, 0
        %v5690 = vsel %vm3384, %v2915, 0
        %v5692 = vsel %vm3384, %v2917, 0
        %v5694 = vsel %vm3384, %v2919, 0
        %v5696 = vsel %vm3384, %v5665, 0
        %v5698 = vsel %vm3384, %v5667, 0
        %v5700 = vsel %vm3384, %v5669, 0
        %v5702 = vsel %vm3384, %v5671, 0
        %v5704 = vsel %vm3384, %v5673, 0
        %v5706 = vsel %vm3384, %v5675, 0
        %v5708 = vsel %vm3384, %v5677, 0
        %v5710 = vsel %vm3384, %v5679, 0
        %5712 = vmatprep.subr.mxu0 0.0
        %5713 = vmatpush1.xpose.msra.mxu0 %v5696
        %5714 = vmatprep.subr.mxu0 0.0
        %5715 = vmatpush1.xpose.msra.mxu0 %v5698
        %5716 = vmatprep.subr.mxu0 0.0
        %5717 = vmatpush1.xpose.msra.mxu0 %v5700
        %5718 = vmatprep.subr.mxu0 0.0
        %5719 = vmatpush1.xpose.msra.mxu0 %v5702
        %5720 = vmatprep.subr.mxu0 0.0
        %5721 = vmatpush1.xpose.msra.mxu0 %v5704
        %5722 = vmatprep.subr.mxu0 0.0
        %5723 = vmatpush1.xpose.msra.mxu0 %v5706
        %5724 = vmatprep.subr.mxu0 0.0
        %5725 = vmatpush1.xpose.msra.mxu0 %v5708
        %5726 = vmatprep.subr.mxu0 0.0
        %5727 = vmatpush1.xpose.msra.mxu0 %v5710
        %5728 = vmatprep.subr.mxu0 0.0
        %5729 = vmatpush1.xpose.msra.mxu0 0.0
        %5730 = vmatprep.subr.mxu0 0.0
        %5731 = vmatpush1.xpose.msra.mxu0 0.0
        %5732 = vmatprep.subr.mxu0 0.0
        %5733 = vmatpush1.xpose.msra.mxu0 0.0
        %5734 = vmatprep.subr.mxu0 0.0
        %5735 = vmatpush1.xpose.msra.mxu0 0.0
        %5736 = vmatprep.subr.mxu0 0.0
        %5737 = vmatpush1.xpose.msra.mxu0 0.0
        %5738 = vmatprep.subr.mxu0 0.0
        %5739 = vmatpush1.xpose.msra.mxu0 0.0
        %5740 = vmatprep.subr.mxu0 0.0
        %5741 = vmatpush1.xpose.msra.mxu0 0.0
        %5742 = vmatprep.subr.mxu0 0.0
        %5743 = vmatpush1.xpose.msra.mxu0 0.0
        %5744 = vmatprep.subr.mxu0 0.0
        %5745 = vmatpush1.xpose.msra.mxu0 0.0
        %5746 = vmatprep.subr.mxu0 0.0
        %5747 = vmatpush1.xpose.msra.mxu0 0.0
        %5748 = vmatprep.subr.mxu0 0.0
        %5749 = vmatpush1.xpose.msra.mxu0 0.0
        %5750 = vmatprep.subr.mxu0 0.0
        %5751 = vmatpush1.xpose.msra.mxu0 0.0
        %5752 = vmatprep.subr.mxu0 0.0
        %5753 = vmatpush1.xpose.msra.mxu0 0.0
        %5754 = vmatprep.subr.mxu0 0.0
        %5755 = vmatpush1.xpose.msra.mxu0 0.0
        %5756 = vmatprep.subr.mxu0 0.0
        %5757 = vmatpush1.xpose.msra.mxu0 0.0
        %5758 = vmatprep.subr.mxu0 0.0
        %5759 = vmatpush1.xpose.msra.mxu0 0.0
        %5760 = vmatprep.subr.mxu0 0.0
        %5761 = vmatpush1.xpose.msra.mxu0 0.0
        %5762 = vmatprep.subr.mxu0 0.0
        %5763 = vmatpush1.xpose.msra.mxu0 0.0
        %5764 = vmatprep.subr.mxu0 0.0
        %5765 = vmatpush1.xpose.msra.mxu0 0.0
        %5766 = vmatprep.subr.mxu0 0.0
        %5767 = vmatpush1.xpose.msra.mxu0 0.0
        %5768 = vmatprep.subr.mxu0 0.0
        %5769 = vmatpush1.xpose.msra.mxu0 0.0
        %5770 = vmatprep.subr.mxu0 0.0
        %5771 = vmatpush1.xpose.msra.mxu0 0.0
        %5772 = vmatprep.subr.mxu0 0.0
        %5773 = vmatpush1.xpose.msra.mxu0 0.0
        %5774 = vmatprep.subr.mxu0 0.0
        %5775 = vmatpush1.xpose.msra.mxu0 0.0
        %5776 = vmatprep.mubr.f32.mxu0 0.0
        %5777 = vmatmul.mubr.f32.gmra.mrb[0].mxu0 %v5680
        %v5778 = vpop.f32.mrb[0].mxu0
        %v5779 = vadd.f32 0.0, %v5778
        %v5780 = vpop.f32.mrb[0].mxu0
        %5781 = vmatprep.mubr.f32.mxu0 0.0
        %5782 = vmatmul.mubr.f32.gmra.mrb[0].mxu0 %v5682
        %v5783 = vpop.f32.mrb[0].mxu0
        %v5784 = vadd.f32 0.0, %v5783
        %v5785 = vpop.f32.mrb[0].mxu0
        %5786 = vmatprep.mubr.f32.mxu0 0.0
        %5787 = vmatmul.mubr.f32.gmra.mrb[0].mxu0 %v5684
        %v5788 = vpop.f32.mrb[0].mxu0
        %v5789 = vadd.f32 0.0, %v5788
        %v5790 = vpop.f32.mrb[0].mxu0
        %5791 = vmatprep.mubr.f32.mxu0 0.0
        %5792 = vmatmul.mubr.f32.gmra.mrb[0].mxu0 %v5686
        %v5793 = vpop.f32.mrb[0].mxu0
        %v5794 = vadd.f32 0.0, %v5793
        %v5795 = vpop.f32.mrb[0].mxu0
        %5796 = vmatprep.mubr.f32.mxu0 0.0
        %5797 = vmatmul.mubr.f32.gmra.mrb[0].mxu0 %v5688
        %v5798 = vpop.f32.mrb[0].mxu0
        %v5799 = vadd.f32 0.0, %v5798
        %v5800 = vpop.f32.mrb[0].mxu0
        %5801 = vmatprep.mubr.f32.mxu0 0.0
        %5802 = vmatmul.mubr.f32.gmra.mrb[0].mxu0 %v5690
        %v5803 = vpop.f32.mrb[0].mxu0
        %v5804 = vadd.f32 0.0, %v5803
        %v5805 = vpop.f32.mrb[0].mxu0
        %5806 = vmatprep.mubr.f32.mxu0 0.0
        %5807 = vmatmul.mubr.f32.gmra.mrb[0].mxu0 %v5692
        %v5808 = vpop.f32.mrb[0].mxu0
        %v5809 = vadd.f32 0.0, %v5808
        %v5810 = vpop.f32.mrb[0].mxu0
        %5811 = vmatprep.mubr.f32.mxu0 0.0
        %5812 = vmatmul.mubr.f32.gmra.mrb[0].mxu0 %v5694
        %v5813 = vpop.f32.mrb[0].mxu0
        %v5814 = vadd.f32 0.0, %v5813
        %v5815 = vpop.f32.mrb[0].mxu0
        %5816 = vdwg.mxu0
        %v5817 = vld [vmem:[%s5] sm:$0xff]
        %v5818 = vld [vmem:[%s5 + $0x8] sm:$0xff]
        %v5819 = vld [vmem:[%s5 + $0x10] sm:$0xff]
        %v5820 = vld [vmem:[%s5 + $0x18] sm:$0xff]
        %v5821 = vld [vmem:[%s5 + $0x20] sm:$0xff]
        %v5822 = vld [vmem:[%s5 + $0x28] sm:$0xff]
        %v5823 = vld [vmem:[%s5 + $0x30] sm:$0xff]
        %v5824 = vld [vmem:[%s5 + $0x38] sm:$0xff]
        %v5825 = vld [vmem:[%s5 + $0x40] sm:$0xff]
        %v5826 = vld [vmem:[%s5 + $0x48] sm:$0xff]
        %v5827 = vld [vmem:[%s5 + $0x50] sm:$0xff]
        %v5828 = vld [vmem:[%s5 + $0x58] sm:$0xff]
        %v5829 = vld [vmem:[%s5 + $0x60] sm:$0xff]
        %v5830 = vld [vmem:[%s5 + $0x68] sm:$0xff]
        %v5831 = vld [vmem:[%s5 + $0x70] sm:$0xff]
        %v5832 = vld [vmem:[%s5 + $0x78] sm:$0xff]
        %v5833 = vld [vmem:[%s5 + $0x80] sm:$0xff]
        %v5834 = vld [vmem:[%s5 + $0x88] sm:$0xff]
        %v5835 = vld [vmem:[%s5 + $0x90] sm:$0xff]
        %v5836 = vld [vmem:[%s5 + $0x98] sm:$0xff]
        %v5837 = vld [vmem:[%s5 + $0xa0] sm:$0xff]
        %v5838 = vld [vmem:[%s5 + $0xa8] sm:$0xff]
        %v5839 = vld [vmem:[%s5 + $0xb0] sm:$0xff]
        %v5840 = vld [vmem:[%s5 + $0xb8] sm:$0xff]
        %v5841 = vld [vmem:[%s5 + $0xc0] sm:$0xff]
        %v5842 = vld [vmem:[%s5 + $0xc8] sm:$0xff]
        %v5843 = vld [vmem:[%s5 + $0xd0] sm:$0xff]
        %v5844 = vld [vmem:[%s5 + $0xd8] sm:$0xff]
        %v5845 = vld [vmem:[%s5 + $0xe0] sm:$0xff]
        %v5846 = vld [vmem:[%s5 + $0xe8] sm:$0xff]
        %v5847 = vld [vmem:[%s5 + $0xf0] sm:$0xff]
        %v5848 = vld [vmem:[%s5 + $0xf8] sm:$0xff]
        %v5849 = vadd.f32 %v3484, %v5817
        %v5850 = vadd.f32 %v3489, %v5818
        %v5851 = vadd.f32 %v3494, %v5819
        %v5852 = vadd.f32 %v3499, %v5820
        %v5853 = vadd.f32 %v3504, %v5821
        %v5854 = vadd.f32 %v3509, %v5822
        %v5855 = vadd.f32 %v3514, %v5823
        %v5856 = vadd.f32 %v3519, %v5824
        %v5857 = vadd.f32 %v3637, %v5817
        %v5858 = vadd.f32 %v3642, %v5818
        %v5859 = vadd.f32 %v3647, %v5819
        %v5860 = vadd.f32 %v3652, %v5820
        %v5861 = vadd.f32 %v3657, %v5821
        %v5862 = vadd.f32 %v3662, %v5822
        %v5863 = vadd.f32 %v3667, %v5823
        %v5864 = vadd.f32 %v3672, %v5824
        %v5865 = vadd.f32 %v3790, %v5817
        %v5866 = vadd.f32 %v3795, %v5818
        %v5867 = vadd.f32 %v3800, %v5819
        %v5868 = vadd.f32 %v3805, %v5820
        %v5869 = vadd.f32 %v3810, %v5821
        %v5870 = vadd.f32 %v3815, %v5822
        %v5871 = vadd.f32 %v3820, %v5823
        %v5872 = vadd.f32 %v3825, %v5824
        %v5873 = vadd.f32 %v3943, %v5817
        %v5874 = vadd.f32 %v3948, %v5818
        %v5875 = vadd.f32 %v3953, %v5819
        %v5876 = vadd.f32 %v3958, %v5820
        %v5877 = vadd.f32 %v3963, %v5821
        %v5878 = vadd.f32 %v3968, %v5822
        %v5879 = vadd.f32 %v3973, %v5823
        %v5880 = vadd.f32 %v3978, %v5824
        %v5881 = vadd.f32 %v4096, %v5825
        %v5882 = vadd.f32 %v4101, %v5826
        %v5883 = vadd.f32 %v4106, %v5827
        %v5884 = vadd.f32 %v4111, %v5828
        %v5885 = vadd.f32 %v4116, %v5829
        %v5886 = vadd.f32 %v4121, %v5830
        %v5887 = vadd.f32 %v4126, %v5831
        %v5888 = vadd.f32 %v4131, %v5832
        %v5889 = vadd.f32 %v4249, %v5825
        %v5890 = vadd.f32 %v4254, %v5826
        %v5891 = vadd.f32 %v4259, %v5827
        %v5892 = vadd.f32 %v4264, %v5828
        %v5893 = vadd.f32 %v4269, %v5829
        %v5894 = vadd.f32 %v4274, %v5830
        %v5895 = vadd.f32 %v4279, %v5831
        %v5896 = vadd.f32 %v4284, %v5832
        %v5897 = vadd.f32 %v4402, %v5825
        %v5898 = vadd.f32 %v4407, %v5826
        %v5899 = vadd.f32 %v4412, %v5827
        %v5900 = vadd.f32 %v4417, %v5828
        %v5901 = vadd.f32 %v4422, %v5829
        %v5902 = vadd.f32 %v4427, %v5830
        %v5903 = vadd.f32 %v4432, %v5831
        %v5904 = vadd.f32 %v4437, %v5832
        %v5905 = vadd.f32 %v4555, %v5825
        %v5906 = vadd.f32 %v4560, %v5826
        %v5907 = vadd.f32 %v4565, %v5827
        %v5908 = vadd.f32 %v4570, %v5828
        %v5909 = vadd.f32 %v4575, %v5829
        %v5910 = vadd.f32 %v4580, %v5830
        %v5911 = vadd.f32 %v4585, %v5831
        %v5912 = vadd.f32 %v4590, %v5832
        %v5913 = vadd.f32 %v4708, %v5833
        %v5914 = vadd.f32 %v4713, %v5834
        %v5915 = vadd.f32 %v4718, %v5835
        %v5916 = vadd.f32 %v4723, %v5836
        %v5917 = vadd.f32 %v4728, %v5837
        %v5918 = vadd.f32 %v4733, %v5838
        %v5919 = vadd.f32 %v4738, %v5839
        %v5920 = vadd.f32 %v4743, %v5840
        %v5921 = vadd.f32 %v4861, %v5833
        %v5922 = vadd.f32 %v4866, %v5834
        %v5923 = vadd.f32 %v4871, %v5835
        %v5924 = vadd.f32 %v4876, %v5836
        %v5925 = vadd.f32 %v4881, %v5837
        %v5926 = vadd.f32 %v4886, %v5838
        %v5927 = vadd.f32 %v4891, %v5839
        %v5928 = vadd.f32 %v4896, %v5840
        %v5929 = vadd.f32 %v5014, %v5833
        %v5930 = vadd.f32 %v5019, %v5834
        %v5931 = vadd.f32 %v5024, %v5835
        %v5932 = vadd.f32 %v5029, %v5836
        %v5933 = vadd.f32 %v5034, %v5837
        %v5934 = vadd.f32 %v5039, %v5838
        %v5935 = vadd.f32 %v5044, %v5839
        %v5936 = vadd.f32 %v5049, %v5840
        %v5937 = vadd.f32 %v5167, %v5833
        %v5938 = vadd.f32 %v5172, %v5834
        %v5939 = vadd.f32 %v5177, %v5835
        %v5940 = vadd.f32 %v5182, %v5836
        %v5941 = vadd.f32 %v5187, %v5837
        %v5942 = vadd.f32 %v5192, %v5838
        %v5943 = vadd.f32 %v5197, %v5839
        %v5944 = vadd.f32 %v5202, %v5840
        %v5945 = vadd.f32 %v5320, %v5841
        %v5946 = vadd.f32 %v5325, %v5842
        %v5947 = vadd.f32 %v5330, %v5843
        %v5948 = vadd.f32 %v5335, %v5844
        %v5949 = vadd.f32 %v5340, %v5845
        %v5950 = vadd.f32 %v5345, %v5846
        %v5951 = vadd.f32 %v5350, %v5847
        %v5952 = vadd.f32 %v5355, %v5848
        %v5953 = vadd.f32 %v5473, %v5841
        %v5954 = vadd.f32 %v5478, %v5842
        %v5955 = vadd.f32 %v5483, %v5843
        %v5956 = vadd.f32 %v5488, %v5844
        %v5957 = vadd.f32 %v5493, %v5845
        %v5958 = vadd.f32 %v5498, %v5846
        %v5959 = vadd.f32 %v5503, %v5847
        %v5960 = vadd.f32 %v5508, %v5848
        %v5961 = vadd.f32 %v5626, %v5841
        %v5962 = vadd.f32 %v5631, %v5842
        %v5963 = vadd.f32 %v5636, %v5843
        %v5964 = vadd.f32 %v5641, %v5844
        %v5965 = vadd.f32 %v5646, %v5845
        %v5966 = vadd.f32 %v5651, %v5846
        %v5967 = vadd.f32 %v5656, %v5847
        %v5968 = vadd.f32 %v5661, %v5848
        %v5969 = vadd.f32 %v5779, %v5841
        %v5970 = vadd.f32 %v5784, %v5842
        %v5971 = vadd.f32 %v5789, %v5843
        %v5972 = vadd.f32 %v5794, %v5844
        %v5973 = vadd.f32 %v5799, %v5845
        %v5974 = vadd.f32 %v5804, %v5846
        %v5975 = vadd.f32 %v5809, %v5847
        %v5976 = vadd.f32 %v5814, %v5848
        %v5977 = vsel %vm364, %v5849, -inf
        %5978 = vmax.xlane.f32.xlu0 %v5977
        %v5979 = vpop.xlane.xlu0 %5978
        %v5980 = vsel %vm364, %v5850, -inf
        %5981 = vmax.xlane.f32.xlu0 %v5980
        %v5982 = vpop.xlane.xlu0 %5981
        %v5983 = vsel %vm364, %v5851, -inf
        %5984 = vmax.xlane.f32.xlu0 %v5983
        %v5985 = vpop.xlane.xlu0 %5984
        %v5986 = vsel %vm364, %v5852, -inf
        %5987 = vmax.xlane.f32.xlu0 %v5986
        %v5988 = vpop.xlane.xlu0 %5987
        %v5989 = vsel %vm364, %v5853, -inf
        %5990 = vmax.xlane.f32.xlu0 %v5989
        %v5991 = vpop.xlane.xlu0 %5990
        %v5992 = vsel %vm364, %v5854, -inf
        %5993 = vmax.xlane.f32.xlu0 %v5992
        %v5994 = vpop.xlane.xlu0 %5993
        %v5995 = vsel %vm364, %v5855, -inf
        %5996 = vmax.xlane.f32.xlu0 %v5995
        %v5997 = vpop.xlane.xlu0 %5996
        %v5998 = vsel %vm364, %v5856, -inf
        %5999 = vmax.xlane.f32.xlu0 %v5998
        %v6000 = vpop.xlane.xlu0 %5999
        %v6001 = vsel %vm364, %v5857, -inf
        %6002 = vmax.xlane.f32.xlu0 %v6001
        %v6003 = vpop.xlane.xlu0 %6002
        %v6004 = vsel %vm364, %v5858, -inf
        %6005 = vmax.xlane.f32.xlu0 %v6004
        %v6006 = vpop.xlane.xlu0 %6005
        %v6007 = vsel %vm364, %v5859, -inf
        %6008 = vmax.xlane.f32.xlu0 %v6007
        %v6009 = vpop.xlane.xlu0 %6008
        %v6010 = vsel %vm364, %v5860, -inf
        %6011 = vmax.xlane.f32.xlu0 %v6010
        %v6012 = vpop.xlane.xlu0 %6011
        %v6013 = vsel %vm364, %v5861, -inf
        %6014 = vmax.xlane.f32.xlu0 %v6013
        %v6015 = vpop.xlane.xlu0 %6014
        %v6016 = vsel %vm364, %v5862, -inf
        %6017 = vmax.xlane.f32.xlu0 %v6016
        %v6018 = vpop.xlane.xlu0 %6017
        %v6019 = vsel %vm364, %v5863, -inf
        %6020 = vmax.xlane.f32.xlu0 %v6019
        %v6021 = vpop.xlane.xlu0 %6020
        %v6022 = vsel %vm364, %v5864, -inf
        %6023 = vmax.xlane.f32.xlu0 %v6022
        %v6024 = vpop.xlane.xlu0 %6023
        %v6025 = vsel %vm364, %v5865, -inf
        %6026 = vmax.xlane.f32.xlu0 %v6025
        %v6027 = vpop.xlane.xlu0 %6026
        %v6028 = vsel %vm364, %v5866, -inf
        %6029 = vmax.xlane.f32.xlu0 %v6028
        %v6030 = vpop.xlane.xlu0 %6029
        %v6031 = vsel %vm364, %v5867, -inf
        %6032 = vmax.xlane.f32.xlu0 %v6031
        %v6033 = vpop.xlane.xlu0 %6032
        %v6034 = vsel %vm364, %v5868, -inf
        %6035 = vmax.xlane.f32.xlu0 %v6034
        %v6036 = vpop.xlane.xlu0 %6035
        %v6037 = vsel %vm364, %v5869, -inf
        %6038 = vmax.xlane.f32.xlu0 %v6037
        %v6039 = vpop.xlane.xlu0 %6038
        %v6040 = vsel %vm364, %v5870, -inf
        %6041 = vmax.xlane.f32.xlu0 %v6040
        %v6042 = vpop.xlane.xlu0 %6041
        %v6043 = vsel %vm364, %v5871, -inf
        %6044 = vmax.xlane.f32.xlu0 %v6043
        %v6045 = vpop.xlane.xlu0 %6044
        %v6046 = vsel %vm364, %v5872, -inf
        %6047 = vmax.xlane.f32.xlu0 %v6046
        %v6048 = vpop.xlane.xlu0 %6047
        %v6049 = vsel %vm364, %v5873, -inf
        %6050 = vmax.xlane.f32.xlu0 %v6049
        %v6051 = vpop.xlane.xlu0 %6050
        %v6052 = vsel %vm364, %v5874, -inf
        %6053 = vmax.xlane.f32.xlu0 %v6052
        %v6054 = vpop.xlane.xlu0 %6053
        %v6055 = vsel %vm364, %v5875, -inf
        %6056 = vmax.xlane.f32.xlu0 %v6055
        %v6057 = vpop.xlane.xlu0 %6056
        %v6058 = vsel %vm364, %v5876, -inf
        %6059 = vmax.xlane.f32.xlu0 %v6058
        %v6060 = vpop.xlane.xlu0 %6059
        %v6061 = vsel %vm364, %v5877, -inf
        %6062 = vmax.xlane.f32.xlu0 %v6061
        %v6063 = vpop.xlane.xlu0 %6062
        %v6064 = vsel %vm364, %v5878, -inf
        %6065 = vmax.xlane.f32.xlu0 %v6064
        %v6066 = vpop.xlane.xlu0 %6065
        %v6067 = vsel %vm364, %v5879, -inf
        %6068 = vmax.xlane.f32.xlu0 %v6067
        %v6069 = vpop.xlane.xlu0 %6068
        %v6070 = vsel %vm364, %v5880, -inf
        %6071 = vmax.xlane.f32.xlu0 %v6070
        %v6072 = vpop.xlane.xlu0 %6071
        %v6073 = vsel %vm364, %v5881, -inf
        %6074 = vmax.xlane.f32.xlu0 %v6073
        %v6075 = vpop.xlane.xlu0 %6074
        %v6076 = vsel %vm364, %v5882, -inf
        %6077 = vmax.xlane.f32.xlu0 %v6076
        %v6078 = vpop.xlane.xlu0 %6077
        %v6079 = vsel %vm364, %v5883, -inf
        %6080 = vmax.xlane.f32.xlu0 %v6079
        %v6081 = vpop.xlane.xlu0 %6080
        %v6082 = vsel %vm364, %v5884, -inf
        %6083 = vmax.xlane.f32.xlu0 %v6082
        %v6084 = vpop.xlane.xlu0 %6083
        %v6085 = vsel %vm364, %v5885, -inf
        %6086 = vmax.xlane.f32.xlu0 %v6085
        %v6087 = vpop.xlane.xlu0 %6086
        %v6088 = vsel %vm364, %v5886, -inf
        %6089 = vmax.xlane.f32.xlu0 %v6088
        %v6090 = vpop.xlane.xlu0 %6089
        %v6091 = vsel %vm364, %v5887, -inf
        %6092 = vmax.xlane.f32.xlu0 %v6091
        %v6093 = vpop.xlane.xlu0 %6092
        %v6094 = vsel %vm364, %v5888, -inf
        %6095 = vmax.xlane.f32.xlu0 %v6094
        %v6096 = vpop.xlane.xlu0 %6095
        %v6097 = vsel %vm364, %v5889, -inf
        %6098 = vmax.xlane.f32.xlu0 %v6097
        %v6099 = vpop.xlane.xlu0 %6098
        %v6100 = vsel %vm364, %v5890, -inf
        %6101 = vmax.xlane.f32.xlu0 %v6100
        %v6102 = vpop.xlane.xlu0 %6101
        %v6103 = vsel %vm364, %v5891, -inf
        %6104 = vmax.xlane.f32.xlu0 %v6103
        %v6105 = vpop.xlane.xlu0 %6104
        %v6106 = vsel %vm364, %v5892, -inf
        %6107 = vmax.xlane.f32.xlu0 %v6106
        %v6108 = vpop.xlane.xlu0 %6107
        %v6109 = vsel %vm364, %v5893, -inf
        %6110 = vmax.xlane.f32.xlu0 %v6109
        %v6111 = vpop.xlane.xlu0 %6110
        %v6112 = vsel %vm364, %v5894, -inf
        %6113 = vmax.xlane.f32.xlu0 %v6112
        %v6114 = vpop.xlane.xlu0 %6113
        %v6115 = vsel %vm364, %v5895, -inf
        %6116 = vmax.xlane.f32.xlu0 %v6115
        %v6117 = vpop.xlane.xlu0 %6116
        %v6118 = vsel %vm364, %v5896, -inf
        %6119 = vmax.xlane.f32.xlu0 %v6118
        %v6120 = vpop.xlane.xlu0 %6119
        %v6121 = vsel %vm364, %v5897, -inf
        %6122 = vmax.xlane.f32.xlu0 %v6121
        %v6123 = vpop.xlane.xlu0 %6122
        %v6124 = vsel %vm364, %v5898, -inf
        %6125 = vmax.xlane.f32.xlu0 %v6124
        %v6126 = vpop.xlane.xlu0 %6125
        %v6127 = vsel %vm364, %v5899, -inf
        %6128 = vmax.xlane.f32.xlu0 %v6127
        %v6129 = vpop.xlane.xlu0 %6128
        %v6130 = vsel %vm364, %v5900, -inf
        %6131 = vmax.xlane.f32.xlu0 %v6130
        %v6132 = vpop.xlane.xlu0 %6131
        %v6133 = vsel %vm364, %v5901, -inf
        %6134 = vmax.xlane.f32.xlu0 %v6133
        %v6135 = vpop.xlane.xlu0 %6134
        %v6136 = vsel %vm364, %v5902, -inf
        %6137 = vmax.xlane.f32.xlu0 %v6136
        %v6138 = vpop.xlane.xlu0 %6137
        %v6139 = vsel %vm364, %v5903, -inf
        %6140 = vmax.xlane.f32.xlu0 %v6139
        %v6141 = vpop.xlane.xlu0 %6140
        %v6142 = vsel %vm364, %v5904, -inf
        %6143 = vmax.xlane.f32.xlu0 %v6142
        %v6144 = vpop.xlane.xlu0 %6143
        %v6145 = vsel %vm364, %v5905, -inf
        %6146 = vmax.xlane.f32.xlu0 %v6145
        %v6147 = vpop.xlane.xlu0 %6146
        %v6148 = vsel %vm364, %v5906, -inf
        %6149 = vmax.xlane.f32.xlu0 %v6148
        %v6150 = vpop.xlane.xlu0 %6149
        %v6151 = vsel %vm364, %v5907, -inf
        %6152 = vmax.xlane.f32.xlu0 %v6151
        %v6153 = vpop.xlane.xlu0 %6152
        %v6154 = vsel %vm364, %v5908, -inf
        %6155 = vmax.xlane.f32.xlu0 %v6154
        %v6156 = vpop.xlane.xlu0 %6155
        %v6157 = vsel %vm364, %v5909, -inf
        %6158 = vmax.xlane.f32.xlu0 %v6157
        %v6159 = vpop.xlane.xlu0 %6158
        %v6160 = vsel %vm364, %v5910, -inf
        %6161 = vmax.xlane.f32.xlu0 %v6160
        %v6162 = vpop.xlane.xlu0 %6161
        %v6163 = vsel %vm364, %v5911, -inf
        %6164 = vmax.xlane.f32.xlu0 %v6163
        %v6165 = vpop.xlane.xlu0 %6164
        %v6166 = vsel %vm364, %v5912, -inf
        %6167 = vmax.xlane.f32.xlu0 %v6166
        %v6168 = vpop.xlane.xlu0 %6167
        %v6169 = vsel %vm364, %v5913, -inf
        %6170 = vmax.xlane.f32.xlu0 %v6169
        %v6171 = vpop.xlane.xlu0 %6170
        %v6172 = vsel %vm364, %v5914, -inf
        %6173 = vmax.xlane.f32.xlu0 %v6172
        %v6174 = vpop.xlane.xlu0 %6173
        %v6175 = vsel %vm364, %v5915, -inf
        %6176 = vmax.xlane.f32.xlu0 %v6175
        %v6177 = vpop.xlane.xlu0 %6176
        %v6178 = vsel %vm364, %v5916, -inf
        %6179 = vmax.xlane.f32.xlu0 %v6178
        %v6180 = vpop.xlane.xlu0 %6179
        %v6181 = vsel %vm364, %v5917, -inf
        %6182 = vmax.xlane.f32.xlu0 %v6181
        %v6183 = vpop.xlane.xlu0 %6182
        %v6184 = vsel %vm364, %v5918, -inf
        %6185 = vmax.xlane.f32.xlu0 %v6184
        %v6186 = vpop.xlane.xlu0 %6185
        %v6187 = vsel %vm364, %v5919, -inf
        %6188 = vmax.xlane.f32.xlu0 %v6187
        %v6189 = vpop.xlane.xlu0 %6188
        %v6190 = vsel %vm364, %v5920, -inf
        %6191 = vmax.xlane.f32.xlu0 %v6190
        %v6192 = vpop.xlane.xlu0 %6191
        %v6193 = vsel %vm364, %v5921, -inf
        %6194 = vmax.xlane.f32.xlu0 %v6193
        %v6195 = vpop.xlane.xlu0 %6194
        %v6196 = vsel %vm364, %v5922, -inf
        %6197 = vmax.xlane.f32.xlu0 %v6196
        %v6198 = vpop.xlane.xlu0 %6197
        %v6199 = vsel %vm364, %v5923, -inf
        %6200 = vmax.xlane.f32.xlu0 %v6199
        %v6201 = vpop.xlane.xlu0 %6200
        %v6202 = vsel %vm364, %v5924, -inf
        %6203 = vmax.xlane.f32.xlu0 %v6202
        %v6204 = vpop.xlane.xlu0 %6203
        %v6205 = vsel %vm364, %v5925, -inf
        %6206 = vmax.xlane.f32.xlu0 %v6205
        %v6207 = vpop.xlane.xlu0 %6206
        %v6208 = vsel %vm364, %v5926, -inf
        %6209 = vmax.xlane.f32.xlu0 %v6208
        %v6210 = vpop.xlane.xlu0 %6209
        %v6211 = vsel %vm364, %v5927, -inf
        %6212 = vmax.xlane.f32.xlu0 %v6211
        %v6213 = vpop.xlane.xlu0 %6212
        %v6214 = vsel %vm364, %v5928, -inf
        %6215 = vmax.xlane.f32.xlu0 %v6214
        %v6216 = vpop.xlane.xlu0 %6215
        %v6217 = vsel %vm364, %v5929, -inf
        %6218 = vmax.xlane.f32.xlu0 %v6217
        %v6219 = vpop.xlane.xlu0 %6218
        %v6220 = vsel %vm364, %v5930, -inf
        %6221 = vmax.xlane.f32.xlu0 %v6220
        %v6222 = vpop.xlane.xlu0 %6221
        %v6223 = vsel %vm364, %v5931, -inf
        %6224 = vmax.xlane.f32.xlu0 %v6223
        %v6225 = vpop.xlane.xlu0 %6224
        %v6226 = vsel %vm364, %v5932, -inf
        %6227 = vmax.xlane.f32.xlu0 %v6226
        %v6228 = vpop.xlane.xlu0 %6227
        %v6229 = vsel %vm364, %v5933, -inf
        %6230 = vmax.xlane.f32.xlu0 %v6229
        %v6231 = vpop.xlane.xlu0 %6230
        %v6232 = vsel %vm364, %v5934, -inf
        %6233 = vmax.xlane.f32.xlu0 %v6232
        %v6234 = vpop.xlane.xlu0 %6233
        %v6235 = vsel %vm364, %v5935, -inf
        %6236 = vmax.xlane.f32.xlu0 %v6235
        %v6237 = vpop.xlane.xlu0 %6236
        %v6238 = vsel %vm364, %v5936, -inf
        %6239 = vmax.xlane.f32.xlu0 %v6238
        %v6240 = vpop.xlane.xlu0 %6239
        %v6241 = vsel %vm364, %v5937, -inf
        %6242 = vmax.xlane.f32.xlu0 %v6241
        %v6243 = vpop.xlane.xlu0 %6242
        %v6244 = vsel %vm364, %v5938, -inf
        %6245 = vmax.xlane.f32.xlu0 %v6244
        %v6246 = vpop.xlane.xlu0 %6245
        %v6247 = vsel %vm364, %v5939, -inf
        %6248 = vmax.xlane.f32.xlu0 %v6247
        %v6249 = vpop.xlane.xlu0 %6248
        %v6250 = vsel %vm364, %v5940, -inf
        %6251 = vmax.xlane.f32.xlu0 %v6250
        %v6252 = vpop.xlane.xlu0 %6251
        %v6253 = vsel %vm364, %v5941, -inf
        %6254 = vmax.xlane.f32.xlu0 %v6253
        %v6255 = vpop.xlane.xlu0 %6254
        %v6256 = vsel %vm364, %v5942, -inf
        %6257 = vmax.xlane.f32.xlu0 %v6256
        %v6258 = vpop.xlane.xlu0 %6257
        %v6259 = vsel %vm364, %v5943, -inf
        %6260 = vmax.xlane.f32.xlu0 %v6259
        %v6261 = vpop.xlane.xlu0 %6260
        %v6262 = vsel %vm364, %v5944, -inf
        %6263 = vmax.xlane.f32.xlu0 %v6262
        %v6264 = vpop.xlane.xlu0 %6263
        %v6265 = vsel %vm364, %v5945, -inf
        %6266 = vmax.xlane.f32.xlu0 %v6265
        %v6267 = vpop.xlane.xlu0 %6266
        %v6268 = vsel %vm364, %v5946, -inf
        %6269 = vmax.xlane.f32.xlu0 %v6268
        %v6270 = vpop.xlane.xlu0 %6269
        %v6271 = vsel %vm364, %v5947, -inf
        %6272 = vmax.xlane.f32.xlu0 %v6271
        %v6273 = vpop.xlane.xlu0 %6272
        %v6274 = vsel %vm364, %v5948, -inf
        %6275 = vmax.xlane.f32.xlu0 %v6274
        %v6276 = vpop.xlane.xlu0 %6275
        %v6277 = vsel %vm364, %v5949, -inf
        %6278 = vmax.xlane.f32.xlu0 %v6277
        %v6279 = vpop.xlane.xlu0 %6278
        %v6280 = vsel %vm364, %v5950, -inf
        %6281 = vmax.xlane.f32.xlu0 %v6280
        %v6282 = vpop.xlane.xlu0 %6281
        %v6283 = vsel %vm364, %v5951, -inf
        %6284 = vmax.xlane.f32.xlu0 %v6283
        %v6285 = vpop.xlane.xlu0 %6284
        %v6286 = vsel %vm364, %v5952, -inf
        %6287 = vmax.xlane.f32.xlu0 %v6286
        %v6288 = vpop.xlane.xlu0 %6287
        %v6289 = vsel %vm364, %v5953, -inf
        %6290 = vmax.xlane.f32.xlu0 %v6289
        %v6291 = vpop.xlane.xlu0 %6290
        %v6292 = vsel %vm364, %v5954, -inf
        %6293 = vmax.xlane.f32.xlu0 %v6292
        %v6294 = vpop.xlane.xlu0 %6293
        %v6295 = vsel %vm364, %v5955, -inf
        %6296 = vmax.xlane.f32.xlu0 %v6295
        %v6297 = vpop.xlane.xlu0 %6296
        %v6298 = vsel %vm364, %v5956, -inf
        %6299 = vmax.xlane.f32.xlu0 %v6298
        %v6300 = vpop.xlane.xlu0 %6299
        %v6301 = vsel %vm364, %v5957, -inf
        %6302 = vmax.xlane.f32.xlu0 %v6301
        %v6303 = vpop.xlane.xlu0 %6302
        %v6304 = vsel %vm364, %v5958, -inf
        %6305 = vmax.xlane.f32.xlu0 %v6304
        %v6306 = vpop.xlane.xlu0 %6305
        %v6307 = vsel %vm364, %v5959, -inf
        %6308 = vmax.xlane.f32.xlu0 %v6307
        %v6309 = vpop.xlane.xlu0 %6308
        %v6310 = vsel %vm364, %v5960, -inf
        %6311 = vmax.xlane.f32.xlu0 %v6310
        %v6312 = vpop.xlane.xlu0 %6311
        %v6313 = vsel %vm364, %v5961, -inf
        %6314 = vmax.xlane.f32.xlu0 %v6313
        %v6315 = vpop.xlane.xlu0 %6314
        %v6316 = vsel %vm364, %v5962, -inf
        %6317 = vmax.xlane.f32.xlu0 %v6316
        %v6318 = vpop.xlane.xlu0 %6317
        %v6319 = vsel %vm364, %v5963, -inf
        %6320 = vmax.xlane.f32.xlu0 %v6319
        %v6321 = vpop.xlane.xlu0 %6320
        %v6322 = vsel %vm364, %v5964, -inf
        %6323 = vmax.xlane.f32.xlu0 %v6322
        %v6324 = vpop.xlane.xlu0 %6323
        %v6325 = vsel %vm364, %v5965, -inf
        %6326 = vmax.xlane.f32.xlu0 %v6325
        %v6327 = vpop.xlane.xlu0 %6326
        %v6328 = vsel %vm364, %v5966, -inf
        %6329 = vmax.xlane.f32.xlu0 %v6328
        %v6330 = vpop.xlane.xlu0 %6329
        %v6331 = vsel %vm364, %v5967, -inf
        %6332 = vmax.xlane.f32.xlu0 %v6331
        %v6333 = vpop.xlane.xlu0 %6332
        %v6334 = vsel %vm364, %v5968, -inf
        %6335 = vmax.xlane.f32.xlu0 %v6334
        %v6336 = vpop.xlane.xlu0 %6335
        %v6337 = vsel %vm364, %v5969, -inf
        %6338 = vmax.xlane.f32.xlu0 %v6337
        %v6339 = vpop.xlane.xlu0 %6338
        %v6340 = vsel %vm364, %v5970, -inf
        %6341 = vmax.xlane.f32.xlu0 %v6340
        %v6342 = vpop.xlane.xlu0 %6341
        %v6343 = vsel %vm364, %v5971, -inf
        %6344 = vmax.xlane.f32.xlu0 %v6343
        %v6345 = vpop.xlane.xlu0 %6344
        %v6346 = vsel %vm364, %v5972, -inf
        %6347 = vmax.xlane.f32.xlu0 %v6346
        %v6348 = vpop.xlane.xlu0 %6347
        %v6349 = vsel %vm364, %v5973, -inf
        %6350 = vmax.xlane.f32.xlu0 %v6349
        %v6351 = vpop.xlane.xlu0 %6350
        %v6352 = vsel %vm364, %v5974, -inf
        %6353 = vmax.xlane.f32.xlu0 %v6352
        %v6354 = vpop.xlane.xlu0 %6353
        %v6355 = vsel %vm364, %v5975, -inf
        %6356 = vmax.xlane.f32.xlu0 %v6355
        %v6357 = vpop.xlane.xlu0 %6356
        %v6358 = vsel %vm364, %v5976, -inf
        %6359 = vmax.xlane.f32.xlu0 %v6358
        %v6360 = vpop.xlane.xlu0 %6359
        %v6361 = vsub.f32 %v5849, %v5979
        %v6362 = vsub.f32 %v5850, %v5982
        %v6363 = vsub.f32 %v5851, %v5985
        %v6364 = vsub.f32 %v5852, %v5988
        %v6365 = vsub.f32 %v5853, %v5991
        %v6366 = vsub.f32 %v5854, %v5994
        %v6367 = vsub.f32 %v5855, %v5997
        %v6368 = vsub.f32 %v5856, %v6000
        %v6369 = vsub.f32 %v5857, %v6003
        %v6370 = vsub.f32 %v5858, %v6006
        %v6371 = vsub.f32 %v5859, %v6009
        %v6372 = vsub.f32 %v5860, %v6012
        %v6373 = vsub.f32 %v5861, %v6015
        %v6374 = vsub.f32 %v5862, %v6018
        %v6375 = vsub.f32 %v5863, %v6021
        %v6376 = vsub.f32 %v5864, %v6024
        %v6377 = vsub.f32 %v5865, %v6027
        %v6378 = vsub.f32 %v5866, %v6030
        %v6379 = vsub.f32 %v5867, %v6033
        %v6380 = vsub.f32 %v5868, %v6036
        %v6381 = vsub.f32 %v5869, %v6039
        %v6382 = vsub.f32 %v5870, %v6042
        %v6383 = vsub.f32 %v5871, %v6045
        %v6384 = vsub.f32 %v5872, %v6048
        %v6385 = vsub.f32 %v5873, %v6051
        %v6386 = vsub.f32 %v5874, %v6054
        %v6387 = vsub.f32 %v5875, %v6057
        %v6388 = vsub.f32 %v5876, %v6060
        %v6389 = vsub.f32 %v5877, %v6063
        %v6390 = vsub.f32 %v5878, %v6066
        %v6391 = vsub.f32 %v5879, %v6069
        %v6392 = vsub.f32 %v5880, %v6072
        %v6393 = vsub.f32 %v5881, %v6075
        %v6394 = vsub.f32 %v5882, %v6078
        %v6395 = vsub.f32 %v5883, %v6081
        %v6396 = vsub.f32 %v5884, %v6084
        %v6397 = vsub.f32 %v5885, %v6087
        %v6398 = vsub.f32 %v5886, %v6090
        %v6399 = vsub.f32 %v5887, %v6093
        %v6400 = vsub.f32 %v5888, %v6096
        %v6401 = vsub.f32 %v5889, %v6099
        %v6402 = vsub.f32 %v5890, %v6102
        %v6403 = vsub.f32 %v5891, %v6105
        %v6404 = vsub.f32 %v5892, %v6108
        %v6405 = vsub.f32 %v5893, %v6111
        %v6406 = vsub.f32 %v5894, %v6114
        %v6407 = vsub.f32 %v5895, %v6117
        %v6408 = vsub.f32 %v5896, %v6120
        %v6409 = vsub.f32 %v5897, %v6123
        %v6410 = vsub.f32 %v5898, %v6126
        %v6411 = vsub.f32 %v5899, %v6129
        %v6412 = vsub.f32 %v5900, %v6132
        %v6413 = vsub.f32 %v5901, %v6135
        %v6414 = vsub.f32 %v5902, %v6138
        %v6415 = vsub.f32 %v5903, %v6141
        %v6416 = vsub.f32 %v5904, %v6144
        %v6417 = vsub.f32 %v5905, %v6147
        %v6418 = vsub.f32 %v5906, %v6150
        %v6419 = vsub.f32 %v5907, %v6153
        %v6420 = vsub.f32 %v5908, %v6156
        %v6421 = vsub.f32 %v5909, %v6159
        %v6422 = vsub.f32 %v5910, %v6162
        %v6423 = vsub.f32 %v5911, %v6165
        %v6424 = vsub.f32 %v5912, %v6168
        %v6425 = vsub.f32 %v5913, %v6171
        %v6426 = vsub.f32 %v5914, %v6174
        %v6427 = vsub.f32 %v5915, %v6177
        %v6428 = vsub.f32 %v5916, %v6180
        %v6429 = vsub.f32 %v5917, %v6183
        %v6430 = vsub.f32 %v5918, %v6186
        %v6431 = vsub.f32 %v5919, %v6189
        %v6432 = vsub.f32 %v5920, %v6192
        %v6433 = vsub.f32 %v5921, %v6195
        %v6434 = vsub.f32 %v5922, %v6198
        %v6435 = vsub.f32 %v5923, %v6201
        %v6436 = vsub.f32 %v5924, %v6204
        %v6437 = vsub.f32 %v5925, %v6207
        %v6438 = vsub.f32 %v5926, %v6210
        %v6439 = vsub.f32 %v5927, %v6213
        %v6440 = vsub.f32 %v5928, %v6216
        %v6441 = vsub.f32 %v5929, %v6219
        %v6442 = vsub.f32 %v5930, %v6222
        %v6443 = vsub.f32 %v5931, %v6225
        %v6444 = vsub.f32 %v5932, %v6228
        %v6445 = vsub.f32 %v5933, %v6231
        %v6446 = vsub.f32 %v5934, %v6234
        %v6447 = vsub.f32 %v5935, %v6237
        %v6448 = vsub.f32 %v5936, %v6240
        %v6449 = vsub.f32 %v5937, %v6243
        %v6450 = vsub.f32 %v5938, %v6246
        %v6451 = vsub.f32 %v5939, %v6249
        %v6452 = vsub.f32 %v5940, %v6252
        %v6453 = vsub.f32 %v5941, %v6255
        %v6454 = vsub.f32 %v5942, %v6258
        %v6455 = vsub.f32 %v5943, %v6261
        %v6456 = vsub.f32 %v5944, %v6264
        %v6457 = vsub.f32 %v5945, %v6267
        %v6458 = vsub.f32 %v5946, %v6270
        %v6459 = vsub.f32 %v5947, %v6273
        %v6460 = vsub.f32 %v5948, %v6276
        %v6461 = vsub.f32 %v5949, %v6279
        %v6462 = vsub.f32 %v5950, %v6282
        %v6463 = vsub.f32 %v5951, %v6285
        %v6464 = vsub.f32 %v5952, %v6288
        %v6465 = vsub.f32 %v5953, %v6291
        %v6466 = vsub.f32 %v5954, %v6294
        %v6467 = vsub.f32 %v5955, %v6297
        %v6468 = vsub.f32 %v5956, %v6300
        %v6469 = vsub.f32 %v5957, %v6303
        %v6470 = vsub.f32 %v5958, %v6306
        %v6471 = vsub.f32 %v5959, %v6309
        %v6472 = vsub.f32 %v5960, %v6312
        %v6473 = vsub.f32 %v5961, %v6315
        %v6474 = vsub.f32 %v5962, %v6318
        %v6475 = vsub.f32 %v5963, %v6321
        %v6476 = vsub.f32 %v5964, %v6324
        %v6477 = vsub.f32 %v5965, %v6327
        %v6478 = vsub.f32 %v5966, %v6330
        %v6479 = vsub.f32 %v5967, %v6333
        %v6480 = vsub.f32 %v5968, %v6336
        %v6481 = vsub.f32 %v5969, %v6339
        %v6482 = vsub.f32 %v5970, %v6342
        %v6483 = vsub.f32 %v5971, %v6345
        %v6484 = vsub.f32 %v5972, %v6348
        %v6485 = vsub.f32 %v5973, %v6351
        %v6486 = vsub.f32 %v5974, %v6354
        %v6487 = vsub.f32 %v5975, %v6357
        %v6488 = vsub.f32 %v5976, %v6360
        %v6489 = vmul.f32 %v6361, 1.442695
        %v6490 = vpow.pop %v6489
        %v6491 = vmul.f32 %v6362, 1.442695
        %v6492 = vpow.pop %v6491
        %v6493 = vmul.f32 %v6363, 1.442695
        %v6494 = vpow.pop %v6493
        %v6495 = vmul.f32 %v6364, 1.442695
        %v6496 = vpow.pop %v6495
        %v6497 = vmul.f32 %v6365, 1.442695
        %v6498 = vpow.pop %v6497
        %v6499 = vmul.f32 %v6366, 1.442695
        %v6500 = vpow.pop %v6499
        %v6501 = vmul.f32 %v6367, 1.442695
        %v6502 = vpow.pop %v6501
        %v6503 = vmul.f32 %v6368, 1.442695
        %v6504 = vpow.pop %v6503
        %v6505 = vmul.f32 %v6369, 1.442695
        %v6506 = vpow.pop %v6505
        %v6507 = vmul.f32 %v6370, 1.442695
        %v6508 = vpow.pop %v6507
        %v6509 = vmul.f32 %v6371, 1.442695
        %v6510 = vpow.pop %v6509
        %v6511 = vmul.f32 %v6372, 1.442695
        %v6512 = vpow.pop %v6511
        %v6513 = vmul.f32 %v6373, 1.442695
        %v6514 = vpow.pop %v6513
        %v6515 = vmul.f32 %v6374, 1.442695
        %v6516 = vpow.pop %v6515
        %v6517 = vmul.f32 %v6375, 1.442695
        %v6518 = vpow.pop %v6517
        %v6519 = vmul.f32 %v6376, 1.442695
        %v6520 = vpow.pop %v6519
        %v6521 = vmul.f32 %v6377, 1.442695
        %v6522 = vpow.pop %v6521
        %v6523 = vmul.f32 %v6378, 1.442695
        %v6524 = vpow.pop %v6523
        %v6525 = vmul.f32 %v6379, 1.442695
        %v6526 = vpow.pop %v6525
        %v6527 = vmul.f32 %v6380, 1.442695
        %v6528 = vpow.pop %v6527
        %v6529 = vmul.f32 %v6381, 1.442695
        %v6530 = vpow.pop %v6529
        %v6531 = vmul.f32 %v6382, 1.442695
        %v6532 = vpow.pop %v6531
        %v6533 = vmul.f32 %v6383, 1.442695
        %v6534 = vpow.pop %v6533
        %v6535 = vmul.f32 %v6384, 1.442695
        %v6536 = vpow.pop %v6535
        %v6537 = vmul.f32 %v6385, 1.442695
        %v6538 = vpow.pop %v6537
        %v6539 = vmul.f32 %v6386, 1.442695
        %v6540 = vpow.pop %v6539
        %v6541 = vmul.f32 %v6387, 1.442695
        %v6542 = vpow.pop %v6541
        %v6543 = vmul.f32 %v6388, 1.442695
        %v6544 = vpow.pop %v6543
        %v6545 = vmul.f32 %v6389, 1.442695
        %v6546 = vpow.pop %v6545
        %v6547 = vmul.f32 %v6390, 1.442695
        %v6548 = vpow.pop %v6547
        %v6549 = vmul.f32 %v6391, 1.442695
        %v6550 = vpow.pop %v6549
        %v6551 = vmul.f32 %v6392, 1.442695
        %v6552 = vpow.pop %v6551
        %v6553 = vmul.f32 %v6393, 1.442695
        %v6554 = vpow.pop %v6553
        %v6555 = vmul.f32 %v6394, 1.442695
        %v6556 = vpow.pop %v6555
        %v6557 = vmul.f32 %v6395, 1.442695
        %v6558 = vpow.pop %v6557
        %v6559 = vmul.f32 %v6396, 1.442695
        %v6560 = vpow.pop %v6559
        %v6561 = vmul.f32 %v6397, 1.442695
        %v6562 = vpow.pop %v6561
        %v6563 = vmul.f32 %v6398, 1.442695
        %v6564 = vpow.pop %v6563
        %v6565 = vmul.f32 %v6399, 1.442695
        %v6566 = vpow.pop %v6565
        %v6567 = vmul.f32 %v6400, 1.442695
        %v6568 = vpow.pop %v6567
        %v6569 = vmul.f32 %v6401, 1.442695
        %v6570 = vpow.pop %v6569
        %v6571 = vmul.f32 %v6402, 1.442695
        %v6572 = vpow.pop %v6571
        %v6573 = vmul.f32 %v6403, 1.442695
        %v6574 = vpow.pop %v6573
        %v6575 = vmul.f32 %v6404, 1.442695
        %v6576 = vpow.pop %v6575
        %v6577 = vmul.f32 %v6405, 1.442695
        %v6578 = vpow.pop %v6577
        %v6579 = vmul.f32 %v6406, 1.442695
        %v6580 = vpow.pop %v6579
        %v6581 = vmul.f32 %v6407, 1.442695
        %v6582 = vpow.pop %v6581
        %v6583 = vmul.f32 %v6408, 1.442695
        %v6584 = vpow.pop %v6583
        %v6585 = vmul.f32 %v6409, 1.442695
        %v6586 = vpow.pop %v6585
        %v6587 = vmul.f32 %v6410, 1.442695
        %v6588 = vpow.pop %v6587
        %v6589 = vmul.f32 %v6411, 1.442695
        %v6590 = vpow.pop %v6589
        %v6591 = vmul.f32 %v6412, 1.442695
        %v6592 = vpow.pop %v6591
        %v6593 = vmul.f32 %v6413, 1.442695
        %v6594 = vpow.pop %v6593
        %v6595 = vmul.f32 %v6414, 1.442695
        %v6596 = vpow.pop %v6595
        %v6597 = vmul.f32 %v6415, 1.442695
        %v6598 = vpow.pop %v6597
        %v6599 = vmul.f32 %v6416, 1.442695
        %v6600 = vpow.pop %v6599
        %v6601 = vmul.f32 %v6417, 1.442695
        %v6602 = vpow.pop %v6601
        %v6603 = vmul.f32 %v6418, 1.442695
        %v6604 = vpow.pop %v6603
        %v6605 = vmul.f32 %v6419, 1.442695
        %v6606 = vpow.pop %v6605
        %v6607 = vmul.f32 %v6420, 1.442695
        %v6608 = vpow.pop %v6607
        %v6609 = vmul.f32 %v6421, 1.442695
        %v6610 = vpow.pop %v6609
        %v6611 = vmul.f32 %v6422, 1.442695
        %v6612 = vpow.pop %v6611
        %v6613 = vmul.f32 %v6423, 1.442695
        %v6614 = vpow.pop %v6613
        %v6615 = vmul.f32 %v6424, 1.442695
        %v6616 = vpow.pop %v6615
        %v6617 = vmul.f32 %v6425, 1.442695
        %v6618 = vpow.pop %v6617
        %v6619 = vmul.f32 %v6426, 1.442695
        %v6620 = vpow.pop %v6619
        %v6621 = vmul.f32 %v6427, 1.442695
        %v6622 = vpow.pop %v6621
        %v6623 = vmul.f32 %v6428, 1.442695
        %v6624 = vpow.pop %v6623
        %v6625 = vmul.f32 %v6429, 1.442695
        %v6626 = vpow.pop %v6625
        %v6627 = vmul.f32 %v6430, 1.442695
        %v6628 = vpow.pop %v6627
        %v6629 = vmul.f32 %v6431, 1.442695
        %v6630 = vpow.pop %v6629
        %v6631 = vmul.f32 %v6432, 1.442695
        %v6632 = vpow.pop %v6631
        %v6633 = vmul.f32 %v6433, 1.442695
        %v6634 = vpow.pop %v6633
        %v6635 = vmul.f32 %v6434, 1.442695
        %v6636 = vpow.pop %v6635
        %v6637 = vmul.f32 %v6435, 1.442695
        %v6638 = vpow.pop %v6637
        %v6639 = vmul.f32 %v6436, 1.442695
        %v6640 = vpow.pop %v6639
        %v6641 = vmul.f32 %v6437, 1.442695
        %v6642 = vpow.pop %v6641
        %v6643 = vmul.f32 %v6438, 1.442695
        %v6644 = vpow.pop %v6643
        %v6645 = vmul.f32 %v6439, 1.442695
        %v6646 = vpow.pop %v6645
        %v6647 = vmul.f32 %v6440, 1.442695
        %v6648 = vpow.pop %v6647
        %v6649 = vmul.f32 %v6441, 1.442695
        %v6650 = vpow.pop %v6649
        %v6651 = vmul.f32 %v6442, 1.442695
        %v6652 = vpow.pop %v6651
        %v6653 = vmul.f32 %v6443, 1.442695
        %v6654 = vpow.pop %v6653
        %v6655 = vmul.f32 %v6444, 1.442695
        %v6656 = vpow.pop %v6655
        %v6657 = vmul.f32 %v6445, 1.442695
        %v6658 = vpow.pop %v6657
        %v6659 = vmul.f32 %v6446, 1.442695
        %v6660 = vpow.pop %v6659
        %v6661 = vmul.f32 %v6447, 1.442695
        %v6662 = vpow.pop %v6661
        %v6663 = vmul.f32 %v6448, 1.442695
        %v6664 = vpow.pop %v6663
        %v6665 = vmul.f32 %v6449, 1.442695
        %v6666 = vpow.pop %v6665
        %v6667 = vmul.f32 %v6450, 1.442695
        %v6668 = vpow.pop %v6667
        %v6669 = vmul.f32 %v6451, 1.442695
        %v6670 = vpow.pop %v6669
        %v6671 = vmul.f32 %v6452, 1.442695
        %v6672 = vpow.pop %v6671
        %v6673 = vmul.f32 %v6453, 1.442695
        %v6674 = vpow.pop %v6673
        %v6675 = vmul.f32 %v6454, 1.442695
        %v6676 = vpow.pop %v6675
        %v6677 = vmul.f32 %v6455, 1.442695
        %v6678 = vpow.pop %v6677
        %v6679 = vmul.f32 %v6456, 1.442695
        %v6680 = vpow.pop %v6679
        %v6681 = vmul.f32 %v6457, 1.442695
        %v6682 = vpow.pop %v6681
        %v6683 = vmul.f32 %v6458, 1.442695
        %v6684 = vpow.pop %v6683
        %v6685 = vmul.f32 %v6459, 1.442695
        %v6686 = vpow.pop %v6685
        %v6687 = vmul.f32 %v6460, 1.442695
        %v6688 = vpow.pop %v6687
        %v6689 = vmul.f32 %v6461, 1.442695
        %v6690 = vpow.pop %v6689
        %v6691 = vmul.f32 %v6462, 1.442695
        %v6692 = vpow.pop %v6691
        %v6693 = vmul.f32 %v6463, 1.442695
        %v6694 = vpow.pop %v6693
        %v6695 = vmul.f32 %v6464, 1.442695
        %v6696 = vpow.pop %v6695
        %v6697 = vmul.f32 %v6465, 1.442695
        %v6698 = vpow.pop %v6697
        %v6699 = vmul.f32 %v6466, 1.442695
        %v6700 = vpow.pop %v6699
        %v6701 = vmul.f32 %v6467, 1.442695
        %v6702 = vpow.pop %v6701
        %v6703 = vmul.f32 %v6468, 1.442695
        %v6704 = vpow.pop %v6703
        %v6705 = vmul.f32 %v6469, 1.442695
        %v6706 = vpow.pop %v6705
        %v6707 = vmul.f32 %v6470, 1.442695
        %v6708 = vpow.pop %v6707
        %v6709 = vmul.f32 %v6471, 1.442695
        %v6710 = vpow.pop %v6709
        %v6711 = vmul.f32 %v6472, 1.442695
        %v6712 = vpow.pop %v6711
        %v6713 = vmul.f32 %v6473, 1.442695
        %v6714 = vpow.pop %v6713
        %v6715 = vmul.f32 %v6474, 1.442695
        %v6716 = vpow.pop %v6715
        %v6717 = vmul.f32 %v6475, 1.442695
        %v6718 = vpow.pop %v6717
        %v6719 = vmul.f32 %v6476, 1.442695
        %v6720 = vpow.pop %v6719
        %v6721 = vmul.f32 %v6477, 1.442695
        %v6722 = vpow.pop %v6721
        %v6723 = vmul.f32 %v6478, 1.442695
        %v6724 = vpow.pop %v6723
        %v6725 = vmul.f32 %v6479, 1.442695
        %v6726 = vpow.pop %v6725
        %v6727 = vmul.f32 %v6480, 1.442695
        %v6728 = vpow.pop %v6727
        %v6729 = vmul.f32 %v6481, 1.442695
        %v6730 = vpow.pop %v6729
        %v6731 = vmul.f32 %v6482, 1.442695
        %v6732 = vpow.pop %v6731
        %v6733 = vmul.f32 %v6483, 1.442695
        %v6734 = vpow.pop %v6733
        %v6735 = vmul.f32 %v6484, 1.442695
        %v6736 = vpow.pop %v6735
        %v6737 = vmul.f32 %v6485, 1.442695
        %v6738 = vpow.pop %v6737
        %v6739 = vmul.f32 %v6486, 1.442695
        %v6740 = vpow.pop %v6739
        %v6741 = vmul.f32 %v6487, 1.442695
        %v6742 = vpow.pop %v6741
        %v6743 = vmul.f32 %v6488, 1.442695
        %v6744 = vpow.pop %v6743
        %v6745 = vsel %vm364, %v6490, 0.0
        %6746 = vadd.xlane.f32.xlu0 %v6745
        %v6747 = vpop.xlane.xlu0 %6746
        %v6748 = vsel %vm364, %v6492, 0.0
        %6749 = vadd.xlane.f32.xlu0 %v6748
        %v6750 = vpop.xlane.xlu0 %6749
        %v6751 = vsel %vm364, %v6494, 0.0
        %6752 = vadd.xlane.f32.xlu0 %v6751
        %v6753 = vpop.xlane.xlu0 %6752
        %v6754 = vsel %vm364, %v6496, 0.0
        %6755 = vadd.xlane.f32.xlu0 %v6754
        %v6756 = vpop.xlane.xlu0 %6755
        %v6757 = vsel %vm364, %v6498, 0.0
        %6758 = vadd.xlane.f32.xlu0 %v6757
        %v6759 = vpop.xlane.xlu0 %6758
        %v6760 = vsel %vm364, %v6500, 0.0
        %6761 = vadd.xlane.f32.xlu0 %v6760
        %v6762 = vpop.xlane.xlu0 %6761
        %v6763 = vsel %vm364, %v6502, 0.0
        %6764 = vadd.xlane.f32.xlu0 %v6763
        %v6765 = vpop.xlane.xlu0 %6764
        %v6766 = vsel %vm364, %v6504, 0.0
        %6767 = vadd.xlane.f32.xlu0 %v6766
        %v6768 = vpop.xlane.xlu0 %6767
        %v6769 = vsel %vm364, %v6506, 0.0
        %6770 = vadd.xlane.f32.xlu0 %v6769
        %v6771 = vpop.xlane.xlu0 %6770
        %v6772 = vsel %vm364, %v6508, 0.0
        %6773 = vadd.xlane.f32.xlu0 %v6772
        %v6774 = vpop.xlane.xlu0 %6773
        %v6775 = vsel %vm364, %v6510, 0.0
        %6776 = vadd.xlane.f32.xlu0 %v6775
        %v6777 = vpop.xlane.xlu0 %6776
        %v6778 = vsel %vm364, %v6512, 0.0
        %6779 = vadd.xlane.f32.xlu0 %v6778
        %v6780 = vpop.xlane.xlu0 %6779
        %v6781 = vsel %vm364, %v6514, 0.0
        %6782 = vadd.xlane.f32.xlu0 %v6781
        %v6783 = vpop.xlane.xlu0 %6782
        %v6784 = vsel %vm364, %v6516, 0.0
        %6785 = vadd.xlane.f32.xlu0 %v6784
        %v6786 = vpop.xlane.xlu0 %6785
        %v6787 = vsel %vm364, %v6518, 0.0
        %6788 = vadd.xlane.f32.xlu0 %v6787
        %v6789 = vpop.xlane.xlu0 %6788
        %v6790 = vsel %vm364, %v6520, 0.0
        %6791 = vadd.xlane.f32.xlu0 %v6790
        %v6792 = vpop.xlane.xlu0 %6791
        %v6793 = vsel %vm364, %v6522, 0.0
        %6794 = vadd.xlane.f32.xlu0 %v6793
        %v6795 = vpop.xlane.xlu0 %6794
        %v6796 = vsel %vm364, %v6524, 0.0
        %6797 = vadd.xlane.f32.xlu0 %v6796
        %v6798 = vpop.xlane.xlu0 %6797
        %v6799 = vsel %vm364, %v6526, 0.0
        %6800 = vadd.xlane.f32.xlu0 %v6799
        %v6801 = vpop.xlane.xlu0 %6800
        %v6802 = vsel %vm364, %v6528, 0.0
        %6803 = vadd.xlane.f32.xlu0 %v6802
        %v6804 = vpop.xlane.xlu0 %6803
        %v6805 = vsel %vm364, %v6530, 0.0
        %6806 = vadd.xlane.f32.xlu0 %v6805
        %v6807 = vpop.xlane.xlu0 %6806
        %v6808 = vsel %vm364, %v6532, 0.0
        %6809 = vadd.xlane.f32.xlu0 %v6808
        %v6810 = vpop.xlane.xlu0 %6809
        %v6811 = vsel %vm364, %v6534, 0.0
        %6812 = vadd.xlane.f32.xlu0 %v6811
        %v6813 = vpop.xlane.xlu0 %6812
        %v6814 = vsel %vm364, %v6536, 0.0
        %6815 = vadd.xlane.f32.xlu0 %v6814
        %v6816 = vpop.xlane.xlu0 %6815
        %v6817 = vsel %vm364, %v6538, 0.0
        %6818 = vadd.xlane.f32.xlu0 %v6817
        %v6819 = vpop.xlane.xlu0 %6818
        %v6820 = vsel %vm364, %v6540, 0.0
        %6821 = vadd.xlane.f32.xlu0 %v6820
        %v6822 = vpop.xlane.xlu0 %6821
        %v6823 = vsel %vm364, %v6542, 0.0
        %6824 = vadd.xlane.f32.xlu0 %v6823
        %v6825 = vpop.xlane.xlu0 %6824
        %v6826 = vsel %vm364, %v6544, 0.0
        %6827 = vadd.xlane.f32.xlu0 %v6826
        %v6828 = vpop.xlane.xlu0 %6827
        %v6829 = vsel %vm364, %v6546, 0.0
        %6830 = vadd.xlane.f32.xlu0 %v6829
        %v6831 = vpop.xlane.xlu0 %6830
        %v6832 = vsel %vm364, %v6548, 0.0
        %6833 = vadd.xlane.f32.xlu0 %v6832
        %v6834 = vpop.xlane.xlu0 %6833
        %v6835 = vsel %vm364, %v6550, 0.0
        %6836 = vadd.xlane.f32.xlu0 %v6835
        %v6837 = vpop.xlane.xlu0 %6836
        %v6838 = vsel %vm364, %v6552, 0.0
        %6839 = vadd.xlane.f32.xlu0 %v6838
        %v6840 = vpop.xlane.xlu0 %6839
        %v6841 = vsel %vm364, %v6554, 0.0
        %6842 = vadd.xlane.f32.xlu0 %v6841
        %v6843 = vpop.xlane.xlu0 %6842
        %v6844 = vsel %vm364, %v6556, 0.0
        %6845 = vadd.xlane.f32.xlu0 %v6844
        %v6846 = vpop.xlane.xlu0 %6845
        %v6847 = vsel %vm364, %v6558, 0.0
        %6848 = vadd.xlane.f32.xlu0 %v6847
        %v6849 = vpop.xlane.xlu0 %6848
        %v6850 = vsel %vm364, %v6560, 0.0
        %6851 = vadd.xlane.f32.xlu0 %v6850
        %v6852 = vpop.xlane.xlu0 %6851
        %v6853 = vsel %vm364, %v6562, 0.0
        %6854 = vadd.xlane.f32.xlu0 %v6853
        %v6855 = vpop.xlane.xlu0 %6854
        %v6856 = vsel %vm364, %v6564, 0.0
        %6857 = vadd.xlane.f32.xlu0 %v6856
        %v6858 = vpop.xlane.xlu0 %6857
        %v6859 = vsel %vm364, %v6566, 0.0
        %6860 = vadd.xlane.f32.xlu0 %v6859
        %v6861 = vpop.xlane.xlu0 %6860
        %v6862 = vsel %vm364, %v6568, 0.0
        %6863 = vadd.xlane.f32.xlu0 %v6862
        %v6864 = vpop.xlane.xlu0 %6863
        %v6865 = vsel %vm364, %v6570, 0.0
        %6866 = vadd.xlane.f32.xlu0 %v6865
        %v6867 = vpop.xlane.xlu0 %6866
        %v6868 = vsel %vm364, %v6572, 0.0
        %6869 = vadd.xlane.f32.xlu0 %v6868
        %v6870 = vpop.xlane.xlu0 %6869
        %v6871 = vsel %vm364, %v6574, 0.0
        %6872 = vadd.xlane.f32.xlu0 %v6871
        %v6873 = vpop.xlane.xlu0 %6872
        %v6874 = vsel %vm364, %v6576, 0.0
        %6875 = vadd.xlane.f32.xlu0 %v6874
        %v6876 = vpop.xlane.xlu0 %6875
        %v6877 = vsel %vm364, %v6578, 0.0
        %6878 = vadd.xlane.f32.xlu0 %v6877
        %v6879 = vpop.xlane.xlu0 %6878
        %v6880 = vsel %vm364, %v6580, 0.0
        %6881 = vadd.xlane.f32.xlu0 %v6880
        %v6882 = vpop.xlane.xlu0 %6881
        %v6883 = vsel %vm364, %v6582, 0.0
        %6884 = vadd.xlane.f32.xlu0 %v6883
        %v6885 = vpop.xlane.xlu0 %6884
        %v6886 = vsel %vm364, %v6584, 0.0
        %6887 = vadd.xlane.f32.xlu0 %v6886
        %v6888 = vpop.xlane.xlu0 %6887
        %v6889 = vsel %vm364, %v6586, 0.0
        %6890 = vadd.xlane.f32.xlu0 %v6889
        %v6891 = vpop.xlane.xlu0 %6890
        %v6892 = vsel %vm364, %v6588, 0.0
        %6893 = vadd.xlane.f32.xlu0 %v6892
        %v6894 = vpop.xlane.xlu0 %6893
        %v6895 = vsel %vm364, %v6590, 0.0
        %6896 = vadd.xlane.f32.xlu0 %v6895
        %v6897 = vpop.xlane.xlu0 %6896
        %v6898 = vsel %vm364, %v6592, 0.0
        %6899 = vadd.xlane.f32.xlu0 %v6898
        %v6900 = vpop.xlane.xlu0 %6899
        %v6901 = vsel %vm364, %v6594, 0.0
        %6902 = vadd.xlane.f32.xlu0 %v6901
        %v6903 = vpop.xlane.xlu0 %6902
        %v6904 = vsel %vm364, %v6596, 0.0
        %6905 = vadd.xlane.f32.xlu0 %v6904
        %v6906 = vpop.xlane.xlu0 %6905
        %v6907 = vsel %vm364, %v6598, 0.0
        %6908 = vadd.xlane.f32.xlu0 %v6907
        %v6909 = vpop.xlane.xlu0 %6908
        %v6910 = vsel %vm364, %v6600, 0.0
        %6911 = vadd.xlane.f32.xlu0 %v6910
        %v6912 = vpop.xlane.xlu0 %6911
        %v6913 = vsel %vm364, %v6602, 0.0
        %6914 = vadd.xlane.f32.xlu0 %v6913
        %v6915 = vpop.xlane.xlu0 %6914
        %v6916 = vsel %vm364, %v6604, 0.0
        %6917 = vadd.xlane.f32.xlu0 %v6916
        %v6918 = vpop.xlane.xlu0 %6917
        %v6919 = vsel %vm364, %v6606, 0.0
        %6920 = vadd.xlane.f32.xlu0 %v6919
        %v6921 = vpop.xlane.xlu0 %6920
        %v6922 = vsel %vm364, %v6608, 0.0
        %6923 = vadd.xlane.f32.xlu0 %v6922
        %v6924 = vpop.xlane.xlu0 %6923
        %v6925 = vsel %vm364, %v6610, 0.0
        %6926 = vadd.xlane.f32.xlu0 %v6925
        %v6927 = vpop.xlane.xlu0 %6926
        %v6928 = vsel %vm364, %v6612, 0.0
        %6929 = vadd.xlane.f32.xlu0 %v6928
        %v6930 = vpop.xlane.xlu0 %6929
        %v6931 = vsel %vm364, %v6614, 0.0
        %6932 = vadd.xlane.f32.xlu0 %v6931
        %v6933 = vpop.xlane.xlu0 %6932
        %v6934 = vsel %vm364, %v6616, 0.0
        %6935 = vadd.xlane.f32.xlu0 %v6934
        %v6936 = vpop.xlane.xlu0 %6935
        %v6937 = vsel %vm364, %v6618, 0.0
        %6938 = vadd.xlane.f32.xlu0 %v6937
        %v6939 = vpop.xlane.xlu0 %6938
        %v6940 = vsel %vm364, %v6620, 0.0
        %6941 = vadd.xlane.f32.xlu0 %v6940
        %v6942 = vpop.xlane.xlu0 %6941
        %v6943 = vsel %vm364, %v6622, 0.0
        %6944 = vadd.xlane.f32.xlu0 %v6943
        %v6945 = vpop.xlane.xlu0 %6944
        %v6946 = vsel %vm364, %v6624, 0.0
        %6947 = vadd.xlane.f32.xlu0 %v6946
        %v6948 = vpop.xlane.xlu0 %6947
        %v6949 = vsel %vm364, %v6626, 0.0
        %6950 = vadd.xlane.f32.xlu0 %v6949
        %v6951 = vpop.xlane.xlu0 %6950
        %v6952 = vsel %vm364, %v6628, 0.0
        %6953 = vadd.xlane.f32.xlu0 %v6952
        %v6954 = vpop.xlane.xlu0 %6953
        %v6955 = vsel %vm364, %v6630, 0.0
        %6956 = vadd.xlane.f32.xlu0 %v6955
        %v6957 = vpop.xlane.xlu0 %6956
        %v6958 = vsel %vm364, %v6632, 0.0
        %6959 = vadd.xlane.f32.xlu0 %v6958
        %v6960 = vpop.xlane.xlu0 %6959
        %v6961 = vsel %vm364, %v6634, 0.0
        %6962 = vadd.xlane.f32.xlu0 %v6961
        %v6963 = vpop.xlane.xlu0 %6962
        %v6964 = vsel %vm364, %v6636, 0.0
        %6965 = vadd.xlane.f32.xlu0 %v6964
        %v6966 = vpop.xlane.xlu0 %6965
        %v6967 = vsel %vm364, %v6638, 0.0
        %6968 = vadd.xlane.f32.xlu0 %v6967
        %v6969 = vpop.xlane.xlu0 %6968
        %v6970 = vsel %vm364, %v6640, 0.0
        %6971 = vadd.xlane.f32.xlu0 %v6970
        %v6972 = vpop.xlane.xlu0 %6971
        %v6973 = vsel %vm364, %v6642, 0.0
        %6974 = vadd.xlane.f32.xlu0 %v6973
        %v6975 = vpop.xlane.xlu0 %6974
        %v6976 = vsel %vm364, %v6644, 0.0
        %6977 = vadd.xlane.f32.xlu0 %v6976
        %v6978 = vpop.xlane.xlu0 %6977
        %v6979 = vsel %vm364, %v6646, 0.0
        %6980 = vadd.xlane.f32.xlu0 %v6979
        %v6981 = vpop.xlane.xlu0 %6980
        %v6982 = vsel %vm364, %v6648, 0.0
        %6983 = vadd.xlane.f32.xlu0 %v6982
        %v6984 = vpop.xlane.xlu0 %6983
        %v6985 = vsel %vm364, %v6650, 0.0
        %6986 = vadd.xlane.f32.xlu0 %v6985
        %v6987 = vpop.xlane.xlu0 %6986
        %v6988 = vsel %vm364, %v6652, 0.0
        %6989 = vadd.xlane.f32.xlu0 %v6988
        %v6990 = vpop.xlane.xlu0 %6989
        %v6991 = vsel %vm364, %v6654, 0.0
        %6992 = vadd.xlane.f32.xlu0 %v6991
        %v6993 = vpop.xlane.xlu0 %6992
        %v6994 = vsel %vm364, %v6656, 0.0
        %6995 = vadd.xlane.f32.xlu0 %v6994
        %v6996 = vpop.xlane.xlu0 %6995
        %v6997 = vsel %vm364, %v6658, 0.0
        %6998 = vadd.xlane.f32.xlu0 %v6997
        %v6999 = vpop.xlane.xlu0 %6998
        %v7000 = vsel %vm364, %v6660, 0.0
        %7001 = vadd.xlane.f32.xlu0 %v7000
        %v7002 = vpop.xlane.xlu0 %7001
        %v7003 = vsel %vm364, %v6662, 0.0
        %7004 = vadd.xlane.f32.xlu0 %v7003
        %v7005 = vpop.xlane.xlu0 %7004
        %v7006 = vsel %vm364, %v6664, 0.0
        %7007 = vadd.xlane.f32.xlu0 %v7006
        %v7008 = vpop.xlane.xlu0 %7007
        %v7009 = vsel %vm364, %v6666, 0.0
        %7010 = vadd.xlane.f32.xlu0 %v7009
        %v7011 = vpop.xlane.xlu0 %7010
        %v7012 = vsel %vm364, %v6668, 0.0
        %7013 = vadd.xlane.f32.xlu0 %v7012
        %v7014 = vpop.xlane.xlu0 %7013
        %v7015 = vsel %vm364, %v6670, 0.0
        %7016 = vadd.xlane.f32.xlu0 %v7015
        %v7017 = vpop.xlane.xlu0 %7016
        %v7018 = vsel %vm364, %v6672, 0.0
        %7019 = vadd.xlane.f32.xlu0 %v7018
        %v7020 = vpop.xlane.xlu0 %7019
        %v7021 = vsel %vm364, %v6674, 0.0
        %7022 = vadd.xlane.f32.xlu0 %v7021
        %v7023 = vpop.xlane.xlu0 %7022
        %v7024 = vsel %vm364, %v6676, 0.0
        %7025 = vadd.xlane.f32.xlu0 %v7024
        %v7026 = vpop.xlane.xlu0 %7025
        %v7027 = vsel %vm364, %v6678, 0.0
        %7028 = vadd.xlane.f32.xlu0 %v7027
        %v7029 = vpop.xlane.xlu0 %7028
        %v7030 = vsel %vm364, %v6680, 0.0
        %7031 = vadd.xlane.f32.xlu0 %v7030
        %v7032 = vpop.xlane.xlu0 %7031
        %v7033 = vsel %vm364, %v6682, 0.0
        %7034 = vadd.xlane.f32.xlu0 %v7033
        %v7035 = vpop.xlane.xlu0 %7034
        %v7036 = vsel %vm364, %v6684, 0.0
        %7037 = vadd.xlane.f32.xlu0 %v7036
        %v7038 = vpop.xlane.xlu0 %7037
        %v7039 = vsel %vm364, %v6686, 0.0
        %7040 = vadd.xlane.f32.xlu0 %v7039
        %v7041 = vpop.xlane.xlu0 %7040
        %v7042 = vsel %vm364, %v6688, 0.0
        %7043 = vadd.xlane.f32.xlu0 %v7042
        %v7044 = vpop.xlane.xlu0 %7043
        %v7045 = vsel %vm364, %v6690, 0.0
        %7046 = vadd.xlane.f32.xlu0 %v7045
        %v7047 = vpop.xlane.xlu0 %7046
        %v7048 = vsel %vm364, %v6692, 0.0
        %7049 = vadd.xlane.f32.xlu0 %v7048
        %v7050 = vpop.xlane.xlu0 %7049
        %v7051 = vsel %vm364, %v6694, 0.0
        %7052 = vadd.xlane.f32.xlu0 %v7051
        %v7053 = vpop.xlane.xlu0 %7052
        %v7054 = vsel %vm364, %v6696, 0.0
        %7055 = vadd.xlane.f32.xlu0 %v7054
        %v7056 = vpop.xlane.xlu0 %7055
        %v7057 = vsel %vm364, %v6698, 0.0
        %7058 = vadd.xlane.f32.xlu0 %v7057
        %v7059 = vpop.xlane.xlu0 %7058
        %v7060 = vsel %vm364, %v6700, 0.0
        %7061 = vadd.xlane.f32.xlu0 %v7060
        %v7062 = vpop.xlane.xlu0 %7061
        %v7063 = vsel %vm364, %v6702, 0.0
        %7064 = vadd.xlane.f32.xlu0 %v7063
        %v7065 = vpop.xlane.xlu0 %7064
        %v7066 = vsel %vm364, %v6704, 0.0
        %7067 = vadd.xlane.f32.xlu0 %v7066
        %v7068 = vpop.xlane.xlu0 %7067
        %v7069 = vsel %vm364, %v6706, 0.0
        %7070 = vadd.xlane.f32.xlu0 %v7069
        %v7071 = vpop.xlane.xlu0 %7070
        %v7072 = vsel %vm364, %v6708, 0.0
        %7073 = vadd.xlane.f32.xlu0 %v7072
        %v7074 = vpop.xlane.xlu0 %7073
        %v7075 = vsel %vm364, %v6710, 0.0
        %7076 = vadd.xlane.f32.xlu0 %v7075
        %v7077 = vpop.xlane.xlu0 %7076
        %v7078 = vsel %vm364, %v6712, 0.0
        %7079 = vadd.xlane.f32.xlu0 %v7078
        %v7080 = vpop.xlane.xlu0 %7079
        %v7081 = vsel %vm364, %v6714, 0.0
        %7082 = vadd.xlane.f32.xlu0 %v7081
        %v7083 = vpop.xlane.xlu0 %7082
        %v7084 = vsel %vm364, %v6716, 0.0
        %7085 = vadd.xlane.f32.xlu0 %v7084
        %v7086 = vpop.xlane.xlu0 %7085
        %v7087 = vsel %vm364, %v6718, 0.0
        %7088 = vadd.xlane.f32.xlu0 %v7087
        %v7089 = vpop.xlane.xlu0 %7088
        %v7090 = vsel %vm364, %v6720, 0.0
        %7091 = vadd.xlane.f32.xlu0 %v7090
        %v7092 = vpop.xlane.xlu0 %7091
        %v7093 = vsel %vm364, %v6722, 0.0
        %7094 = vadd.xlane.f32.xlu0 %v7093
        %v7095 = vpop.xlane.xlu0 %7094
        %v7096 = vsel %vm364, %v6724, 0.0
        %7097 = vadd.xlane.f32.xlu0 %v7096
        %v7098 = vpop.xlane.xlu0 %7097
        %v7099 = vsel %vm364, %v6726, 0.0
        %7100 = vadd.xlane.f32.xlu0 %v7099
        %v7101 = vpop.xlane.xlu0 %7100
        %v7102 = vsel %vm364, %v6728, 0.0
        %7103 = vadd.xlane.f32.xlu0 %v7102
        %v7104 = vpop.xlane.xlu0 %7103
        %v7105 = vsel %vm364, %v6730, 0.0
        %7106 = vadd.xlane.f32.xlu0 %v7105
        %v7107 = vpop.xlane.xlu0 %7106
        %v7108 = vsel %vm364, %v6732, 0.0
        %7109 = vadd.xlane.f32.xlu0 %v7108
        %v7110 = vpop.xlane.xlu0 %7109
        %v7111 = vsel %vm364, %v6734, 0.0
        %7112 = vadd.xlane.f32.xlu0 %v7111
        %v7113 = vpop.xlane.xlu0 %7112
        %v7114 = vsel %vm364, %v6736, 0.0
        %7115 = vadd.xlane.f32.xlu0 %v7114
        %v7116 = vpop.xlane.xlu0 %7115
        %v7117 = vsel %vm364, %v6738, 0.0
        %7118 = vadd.xlane.f32.xlu0 %v7117
        %v7119 = vpop.xlane.xlu0 %7118
        %v7120 = vsel %vm364, %v6740, 0.0
        %7121 = vadd.xlane.f32.xlu0 %v7120
        %v7122 = vpop.xlane.xlu0 %7121
        %v7123 = vsel %vm364, %v6742, 0.0
        %7124 = vadd.xlane.f32.xlu0 %v7123
        %v7125 = vpop.xlane.xlu0 %7124
        %v7126 = vsel %vm364, %v6744, 0.0
        %7127 = vadd.xlane.f32.xlu0 %v7126
        %v7128 = vpop.xlane.xlu0 %7127
        %7129 = vrot.lane.b32.xlu0 %v2696, 64
        %v7130 = vpop.permute.xlu0 %7129
        %7131 = vrot.lane.b32.xlu0 %v2697, 64
        %v7132 = vpop.permute.xlu0 %7131
        %7133 = vrot.lane.b32.xlu0 %v2698, 64
        %v7134 = vpop.permute.xlu0 %7133
        %7135 = vrot.lane.b32.xlu0 %v2699, 64
        %v7136 = vpop.permute.xlu0 %7135
        %7137 = vrot.lane.b32.xlu0 %v2700, 64
        %v7138 = vpop.permute.xlu0 %7137
        %7139 = vrot.lane.b32.xlu0 %v2701, 64
        %v7140 = vpop.permute.xlu0 %7139
        %7141 = vrot.lane.b32.xlu0 %v2702, 64
        %v7142 = vpop.permute.xlu0 %7141
        %7143 = vrot.lane.b32.xlu0 %v2703, 64
        %v7144 = vpop.permute.xlu0 %7143
        %v7154 = vsel %vm364, %v6490, 0
        %v7157 = vsel %vm364, %v6492, 0
        %v7160 = vsel %vm364, %v6494, 0
        %v7163 = vsel %vm364, %v6496, 0
        %v7166 = vsel %vm364, %v6498, 0
        %v7169 = vsel %vm364, %v6500, 0
        %v7172 = vsel %vm364, %v6502, 0
        %v7175 = vsel %vm364, %v6504, 0
        %7177 = vmatprep.subr.mxu0 0.0
        %7178 = vmatpush1.msra.mxu0 %v7130
        %7179 = vmatprep.subr.mxu0 0.0
        %7180 = vmatpush1.msra.mxu0 %v7132
        %7181 = vmatprep.subr.mxu0 0.0
        %7182 = vmatpush1.msra.mxu0 %v7134
        %7183 = vmatprep.subr.mxu0 0.0
        %7184 = vmatpush1.msra.mxu0 %v7136
        %7185 = vmatprep.subr.mxu0 0.0
        %7186 = vmatpush1.msra.mxu0 %v7138
        %7187 = vmatprep.subr.mxu0 0.0
        %7188 = vmatpush1.msra.mxu0 %v7140
        %7189 = vmatprep.subr.mxu0 0.0
        %7190 = vmatpush1.msra.mxu0 %v7142
        %7191 = vmatprep.subr.mxu0 0.0
        %7192 = vmatpush1.msra.mxu0 %v7144
        %7193 = vmatprep.subr.mxu0 0.0
        %7194 = vmatpush1.msra.mxu0 0.0
        %7195 = vmatprep.subr.mxu0 0.0
        %7196 = vmatpush1.msra.mxu0 0.0
        %7197 = vmatprep.subr.mxu0 0.0
        %7198 = vmatpush1.msra.mxu0 0.0
        %7199 = vmatprep.subr.mxu0 0.0
        %7200 = vmatpush1.msra.mxu0 0.0
        %7201 = vmatprep.subr.mxu0 0.0
        %7202 = vmatpush1.msra.mxu0 0.0
        %7203 = vmatprep.subr.mxu0 0.0
        %7204 = vmatpush1.msra.mxu0 0.0
        %7205 = vmatprep.subr.mxu0 0.0
        %7206 = vmatpush1.msra.mxu0 0.0
        %7207 = vmatprep.subr.mxu0 0.0
        %7208 = vmatpush1.msra.mxu0 0.0
        %7209 = vmatprep.subr.mxu0 0.0
        %7210 = vmatpush1.msra.mxu0 0.0
        %7211 = vmatprep.subr.mxu0 0.0
        %7212 = vmatpush1.msra.mxu0 0.0
        %7213 = vmatprep.subr.mxu0 0.0
        %7214 = vmatpush1.msra.mxu0 0.0
        %7215 = vmatprep.subr.mxu0 0.0
        %7216 = vmatpush1.msra.mxu0 0.0
        %7217 = vmatprep.subr.mxu0 0.0
        %7218 = vmatpush1.msra.mxu0 0.0
        %7219 = vmatprep.subr.mxu0 0.0
        %7220 = vmatpush1.msra.mxu0 0.0
        %7221 = vmatprep.subr.mxu0 0.0
        %7222 = vmatpush1.msra.mxu0 0.0
        %7223 = vmatprep.subr.mxu0 0.0
        %7224 = vmatpush1.msra.mxu0 0.0
        %7225 = vmatprep.subr.mxu0 0.0
        %7226 = vmatpush1.msra.mxu0 0.0
        %7227 = vmatprep.subr.mxu0 0.0
        %7228 = vmatpush1.msra.mxu0 0.0
        %7229 = vmatprep.subr.mxu0 0.0
        %7230 = vmatpush1.msra.mxu0 0.0
        %7231 = vmatprep.subr.mxu0 0.0
        %7232 = vmatpush1.msra.mxu0 0.0
        %7233 = vmatprep.subr.mxu0 0.0
        %7234 = vmatpush1.msra.mxu0 0.0
        %7235 = vmatprep.subr.mxu0 0.0
        %7236 = vmatpush1.msra.mxu0 0.0
        %7237 = vmatprep.subr.mxu0 0.0
        %7238 = vmatpush1.msra.mxu0 0.0
        %7239 = vmatprep.subr.mxu0 0.0
        %7240 = vmatpush1.msra.mxu0 0.0
        %7241 = vmatprep.mubr.f32.mxu0 0.0
        %7242 = vmatmul.mubr.f32.gmra.mrb[0].mxu0 %v7154
        %v7243 = vpop.f32.mrb[0].mxu0
        %v7244 = vadd.f32 0.0, %v7243
        %v7245 = vpop.f32.mrb[0].mxu0
        %7246 = vmatprep.mubr.f32.mxu0 0.0
        %7247 = vmatmul.mubr.f32.gmra.mrb[0].mxu0 %v7157
        %v7248 = vpop.f32.mrb[0].mxu0
        %v7249 = vadd.f32 0.0, %v7248
        %v7250 = vpop.f32.mrb[0].mxu0
        %7251 = vmatprep.mubr.f32.mxu0 0.0
        %7252 = vmatmul.mubr.f32.gmra.mrb[0].mxu0 %v7160
        %v7253 = vpop.f32.mrb[0].mxu0
        %v7254 = vadd.f32 0.0, %v7253
        %v7255 = vpop.f32.mrb[0].mxu0
        %7256 = vmatprep.mubr.f32.mxu0 0.0
        %7257 = vmatmul.mubr.f32.gmra.mrb[0].mxu0 %v7163
        %v7258 = vpop.f32.mrb[0].mxu0
        %v7259 = vadd.f32 0.0, %v7258
        %v7260 = vpop.f32.mrb[0].mxu0
        %7261 = vmatprep.mubr.f32.mxu0 0.0
        %7262 = vmatmul.mubr.f32.gmra.mrb[0].mxu0 %v7166
        %v7263 = vpop.f32.mrb[0].mxu0
        %v7264 = vadd.f32 0.0, %v7263
        %v7265 = vpop.f32.mrb[0].mxu0
        %7266 = vmatprep.mubr.f32.mxu0 0.0
        %7267 = vmatmul.mubr.f32.gmra.mrb[0].mxu0 %v7169
        %v7268 = vpop.f32.mrb[0].mxu0
        %v7269 = vadd.f32 0.0, %v7268
        %v7270 = vpop.f32.mrb[0].mxu0
        %7271 = vmatprep.mubr.f32.mxu0 0.0
        %7272 = vmatmul.mubr.f32.gmra.mrb[0].mxu0 %v7172
        %v7273 = vpop.f32.mrb[0].mxu0
        %v7274 = vadd.f32 0.0, %v7273
        %v7275 = vpop.f32.mrb[0].mxu0
        %7276 = vmatprep.mubr.f32.mxu0 0.0
        %7277 = vmatmul.mubr.f32.gmra.mrb[0].mxu0 %v7175
        %v7278 = vpop.f32.mrb[0].mxu0
        %v7279 = vadd.f32 0.0, %v7278
        %v7280 = vpop.f32.mrb[0].mxu0
        %7281 = vdwg.mxu0
        %7282 = vrot.lane.b32.xlu0 %v2704, 64
        %v7283 = vpop.permute.xlu0 %7282
        %7284 = vrot.lane.b32.xlu0 %v2705, 64
        %v7285 = vpop.permute.xlu0 %7284
        %7286 = vrot.lane.b32.xlu0 %v2706, 64
        %v7287 = vpop.permute.xlu0 %7286
        %7288 = vrot.lane.b32.xlu0 %v2707, 64
        %v7289 = vpop.permute.xlu0 %7288
        %7290 = vrot.lane.b32.xlu0 %v2708, 64
        %v7291 = vpop.permute.xlu0 %7290
        %7292 = vrot.lane.b32.xlu0 %v2709, 64
        %v7293 = vpop.permute.xlu0 %7292
        %7294 = vrot.lane.b32.xlu0 %v2710, 64
        %v7295 = vpop.permute.xlu0 %7294
        %7296 = vrot.lane.b32.xlu0 %v2711, 64
        %v7297 = vpop.permute.xlu0 %7296
        %v7307 = vsel %vm364, %v6506, 0
        %v7310 = vsel %vm364, %v6508, 0
        %v7313 = vsel %vm364, %v6510, 0
        %v7316 = vsel %vm364, %v6512, 0
        %v7319 = vsel %vm364, %v6514, 0
        %v7322 = vsel %vm364, %v6516, 0
        %v7325 = vsel %vm364, %v6518, 0
        %v7328 = vsel %vm364, %v6520, 0
        %7330 = vmatprep.subr.mxu0 0.0
        %7331 = vmatpush1.msra.mxu0 %v7283
        %7332 = vmatprep.subr.mxu0 0.0
        %7333 = vmatpush1.msra.mxu0 %v7285
        %7334 = vmatprep.subr.mxu0 0.0
        %7335 = vmatpush1.msra.mxu0 %v7287
        %7336 = vmatprep.subr.mxu0 0.0
        %7337 = vmatpush1.msra.mxu0 %v7289
        %7338 = vmatprep.subr.mxu0 0.0
        %7339 = vmatpush1.msra.mxu0 %v7291
        %7340 = vmatprep.subr.mxu0 0.0
        %7341 = vmatpush1.msra.mxu0 %v7293
        %7342 = vmatprep.subr.mxu0 0.0
        %7343 = vmatpush1.msra.mxu0 %v7295
        %7344 = vmatprep.subr.mxu0 0.0
        %7345 = vmatpush1.msra.mxu0 %v7297
        %7346 = vmatprep.subr.mxu0 0.0
        %7347 = vmatpush1.msra.mxu0 0.0
        %7348 = vmatprep.subr.mxu0 0.0
        %7349 = vmatpush1.msra.mxu0 0.0
        %7350 = vmatprep.subr.mxu0 0.0
        %7351 = vmatpush1.msra.mxu0 0.0
        %7352 = vmatprep.subr.mxu0 0.0
        %7353 = vmatpush1.msra.mxu0 0.0
        %7354 = vmatprep.subr.mxu0 0.0
        %7355 = vmatpush1.msra.mxu0 0.0
        %7356 = vmatprep.subr.mxu0 0.0
        %7357 = vmatpush1.msra.mxu0 0.0
        %7358 = vmatprep.subr.mxu0 0.0
        %7359 = vmatpush1.msra.mxu0 0.0
        %7360 = vmatprep.subr.mxu0 0.0
        %7361 = vmatpush1.msra.mxu0 0.0
        %7362 = vmatprep.subr.mxu0 0.0
        %7363 = vmatpush1.msra.mxu0 0.0
        %7364 = vmatprep.subr.mxu0 0.0
        %7365 = vmatpush1.msra.mxu0 0.0
        %7366 = vmatprep.subr.mxu0 0.0
        %7367 = vmatpush1.msra.mxu0 0.0
        %7368 = vmatprep.subr.mxu0 0.0
        %7369 = vmatpush1.msra.mxu0 0.0
        %7370 = vmatprep.subr.mxu0 0.0
        %7371 = vmatpush1.msra.mxu0 0.0
        %7372 = vmatprep.subr.mxu0 0.0
        %7373 = vmatpush1.msra.mxu0 0.0
        %7374 = vmatprep.subr.mxu0 0.0
        %7375 = vmatpush1.msra.mxu0 0.0
        %7376 = vmatprep.subr.mxu0 0.0
        %7377 = vmatpush1.msra.mxu0 0.0
        %7378 = vmatprep.subr.mxu0 0.0
        %7379 = vmatpush1.msra.mxu0 0.0
        %7380 = vmatprep.subr.mxu0 0.0
        %7381 = vmatpush1.msra.mxu0 0.0
        %7382 = vmatprep.subr.mxu0 0.0
        %7383 = vmatpush1.msra.mxu0 0.0
        %7384 = vmatprep.subr.mxu0 0.0
        %7385 = vmatpush1.msra.mxu0 0.0
        %7386 = vmatprep.subr.mxu0 0.0
        %7387 = vmatpush1.msra.mxu0 0.0
        %7388 = vmatprep.subr.mxu0 0.0
        %7389 = vmatpush1.msra.mxu0 0.0
        %7390 = vmatprep.subr.mxu0 0.0
        %7391 = vmatpush1.msra.mxu0 0.0
        %7392 = vmatprep.subr.mxu0 0.0
        %7393 = vmatpush1.msra.mxu0 0.0
        %7394 = vmatprep.mubr.f32.mxu0 0.0
        %7395 = vmatmul.mubr.f32.gmra.mrb[0].mxu0 %v7307
        %v7396 = vpop.f32.mrb[0].mxu0
        %v7397 = vadd.f32 0.0, %v7396
        %v7398 = vpop.f32.mrb[0].mxu0
        %7399 = vmatprep.mubr.f32.mxu0 0.0
        %7400 = vmatmul.mubr.f32.gmra.mrb[0].mxu0 %v7310
        %v7401 = vpop.f32.mrb[0].mxu0
        %v7402 = vadd.f32 0.0, %v7401
        %v7403 = vpop.f32.mrb[0].mxu0
        %7404 = vmatprep.mubr.f32.mxu0 0.0
        %7405 = vmatmul.mubr.f32.gmra.mrb[0].mxu0 %v7313
        %v7406 = vpop.f32.mrb[0].mxu0
        %v7407 = vadd.f32 0.0, %v7406
        %v7408 = vpop.f32.mrb[0].mxu0
        %7409 = vmatprep.mubr.f32.mxu0 0.0
        %7410 = vmatmul.mubr.f32.gmra.mrb[0].mxu0 %v7316
        %v7411 = vpop.f32.mrb[0].mxu0
        %v7412 = vadd.f32 0.0, %v7411
        %v7413 = vpop.f32.mrb[0].mxu0
        %7414 = vmatprep.mubr.f32.mxu0 0.0
        %7415 = vmatmul.mubr.f32.gmra.mrb[0].mxu0 %v7319
        %v7416 = vpop.f32.mrb[0].mxu0
        %v7417 = vadd.f32 0.0, %v7416
        %v7418 = vpop.f32.mrb[0].mxu0
        %7419 = vmatprep.mubr.f32.mxu0 0.0
        %7420 = vmatmul.mubr.f32.gmra.mrb[0].mxu0 %v7322
        %v7421 = vpop.f32.mrb[0].mxu0
        %v7422 = vadd.f32 0.0, %v7421
        %v7423 = vpop.f32.mrb[0].mxu0
        %7424 = vmatprep.mubr.f32.mxu0 0.0
        %7425 = vmatmul.mubr.f32.gmra.mrb[0].mxu0 %v7325
        %v7426 = vpop.f32.mrb[0].mxu0
        %v7427 = vadd.f32 0.0, %v7426
        %v7428 = vpop.f32.mrb[0].mxu0
        %7429 = vmatprep.mubr.f32.mxu0 0.0
        %7430 = vmatmul.mubr.f32.gmra.mrb[0].mxu0 %v7328
        %v7431 = vpop.f32.mrb[0].mxu0
        %v7432 = vadd.f32 0.0, %v7431
        %v7433 = vpop.f32.mrb[0].mxu0
        %7434 = vdwg.mxu0
        %7435 = vrot.lane.b32.xlu0 %v2712, 64
        %v7436 = vpop.permute.xlu0 %7435
        %7437 = vrot.lane.b32.xlu0 %v2713, 64
        %v7438 = vpop.permute.xlu0 %7437
        %7439 = vrot.lane.b32.xlu0 %v2714, 64
        %v7440 = vpop.permute.xlu0 %7439
        %7441 = vrot.lane.b32.xlu0 %v2715, 64
        %v7442 = vpop.permute.xlu0 %7441
        %7443 = vrot.lane.b32.xlu0 %v2716, 64
        %v7444 = vpop.permute.xlu0 %7443
        %7445 = vrot.lane.b32.xlu0 %v2717, 64
        %v7446 = vpop.permute.xlu0 %7445
        %7447 = vrot.lane.b32.xlu0 %v2718, 64
        %v7448 = vpop.permute.xlu0 %7447
        %7449 = vrot.lane.b32.xlu0 %v2719, 64
        %v7450 = vpop.permute.xlu0 %7449
        %v7460 = vsel %vm364, %v6522, 0
        %v7463 = vsel %vm364, %v6524, 0
        %v7466 = vsel %vm364, %v6526, 0
        %v7469 = vsel %vm364, %v6528, 0
        %v7472 = vsel %vm364, %v6530, 0
        %v7475 = vsel %vm364, %v6532, 0
        %v7478 = vsel %vm364, %v6534, 0
        %v7481 = vsel %vm364, %v6536, 0
        %7483 = vmatprep.subr.mxu0 0.0
        %7484 = vmatpush1.msra.mxu0 %v7436
        %7485 = vmatprep.subr.mxu0 0.0
        %7486 = vmatpush1.msra.mxu0 %v7438
        %7487 = vmatprep.subr.mxu0 0.0
        %7488 = vmatpush1.msra.mxu0 %v7440
        %7489 = vmatprep.subr.mxu0 0.0
        %7490 = vmatpush1.msra.mxu0 %v7442
        %7491 = vmatprep.subr.mxu0 0.0
        %7492 = vmatpush1.msra.mxu0 %v7444
        %7493 = vmatprep.subr.mxu0 0.0
        %7494 = vmatpush1.msra.mxu0 %v7446
        %7495 = vmatprep.subr.mxu0 0.0
        %7496 = vmatpush1.msra.mxu0 %v7448
        %7497 = vmatprep.subr.mxu0 0.0
        %7498 = vmatpush1.msra.mxu0 %v7450
        %7499 = vmatprep.subr.mxu0 0.0
        %7500 = vmatpush1.msra.mxu0 0.0
        %7501 = vmatprep.subr.mxu0 0.0
        %7502 = vmatpush1.msra.mxu0 0.0
        %7503 = vmatprep.subr.mxu0 0.0
        %7504 = vmatpush1.msra.mxu0 0.0
        %7505 = vmatprep.subr.mxu0 0.0
        %7506 = vmatpush1.msra.mxu0 0.0
        %7507 = vmatprep.subr.mxu0 0.0
        %7508 = vmatpush1.msra.mxu0 0.0
        %7509 = vmatprep.subr.mxu0 0.0
        %7510 = vmatpush1.msra.mxu0 0.0
        %7511 = vmatprep.subr.mxu0 0.0
        %7512 = vmatpush1.msra.mxu0 0.0
        %7513 = vmatprep.subr.mxu0 0.0
        %7514 = vmatpush1.msra.mxu0 0.0
        %7515 = vmatprep.subr.mxu0 0.0
        %7516 = vmatpush1.msra.mxu0 0.0
        %7517 = vmatprep.subr.mxu0 0.0
        %7518 = vmatpush1.msra.mxu0 0.0
        %7519 = vmatprep.subr.mxu0 0.0
        %7520 = vmatpush1.msra.mxu0 0.0
        %7521 = vmatprep.subr.mxu0 0.0
        %7522 = vmatpush1.msra.mxu0 0.0
        %7523 = vmatprep.subr.mxu0 0.0
        %7524 = vmatpush1.msra.mxu0 0.0
        %7525 = vmatprep.subr.mxu0 0.0
        %7526 = vmatpush1.msra.mxu0 0.0
        %7527 = vmatprep.subr.mxu0 0.0
        %7528 = vmatpush1.msra.mxu0 0.0
        %7529 = vmatprep.subr.mxu0 0.0
        %7530 = vmatpush1.msra.mxu0 0.0
        %7531 = vmatprep.subr.mxu0 0.0
        %7532 = vmatpush1.msra.mxu0 0.0
        %7533 = vmatprep.subr.mxu0 0.0
        %7534 = vmatpush1.msra.mxu0 0.0
        %7535 = vmatprep.subr.mxu0 0.0
        %7536 = vmatpush1.msra.mxu0 0.0
        %7537 = vmatprep.subr.mxu0 0.0
        %7538 = vmatpush1.msra.mxu0 0.0
        %7539 = vmatprep.subr.mxu0 0.0
        %7540 = vmatpush1.msra.mxu0 0.0
        %7541 = vmatprep.subr.mxu0 0.0
        %7542 = vmatpush1.msra.mxu0 0.0
        %7543 = vmatprep.subr.mxu0 0.0
        %7544 = vmatpush1.msra.mxu0 0.0
        %7545 = vmatprep.subr.mxu0 0.0
        %7546 = vmatpush1.msra.mxu0 0.0
        %7547 = vmatprep.mubr.f32.mxu0 0.0
        %7548 = vmatmul.mubr.f32.gmra.mrb[0].mxu0 %v7460
        %v7549 = vpop.f32.mrb[0].mxu0
        %v7550 = vadd.f32 0.0, %v7549
        %v7551 = vpop.f32.mrb[0].mxu0
        %7552 = vmatprep.mubr.f32.mxu0 0.0
        %7553 = vmatmul.mubr.f32.gmra.mrb[0].mxu0 %v7463
        %v7554 = vpop.f32.mrb[0].mxu0
        %v7555 = vadd.f32 0.0, %v7554
        %v7556 = vpop.f32.mrb[0].mxu0
        %7557 = vmatprep.mubr.f32.mxu0 0.0
        %7558 = vmatmul.mubr.f32.gmra.mrb[0].mxu0 %v7466
        %v7559 = vpop.f32.mrb[0].mxu0
        %v7560 = vadd.f32 0.0, %v7559
        %v7561 = vpop.f32.mrb[0].mxu0
        %7562 = vmatprep.mubr.f32.mxu0 0.0
        %7563 = vmatmul.mubr.f32.gmra.mrb[0].mxu0 %v7469
        %v7564 = vpop.f32.mrb[0].mxu0
        %v7565 = vadd.f32 0.0, %v7564
        %v7566 = vpop.f32.mrb[0].mxu0
        %7567 = vmatprep.mubr.f32.mxu0 0.0
        %7568 = vmatmul.mubr.f32.gmra.mrb[0].mxu0 %v7472
        %v7569 = vpop.f32.mrb[0].mxu0
        %v7570 = vadd.f32 0.0, %v7569
        %v7571 = vpop.f32.mrb[0].mxu0
        %7572 = vmatprep.mubr.f32.mxu0 0.0
        %7573 = vmatmul.mubr.f32.gmra.mrb[0].mxu0 %v7475
        %v7574 = vpop.f32.mrb[0].mxu0
        %v7575 = vadd.f32 0.0, %v7574
        %v7576 = vpop.f32.mrb[0].mxu0
        %7577 = vmatprep.mubr.f32.mxu0 0.0
        %7578 = vmatmul.mubr.f32.gmra.mrb[0].mxu0 %v7478
        %v7579 = vpop.f32.mrb[0].mxu0
        %v7580 = vadd.f32 0.0, %v7579
        %v7581 = vpop.f32.mrb[0].mxu0
        %7582 = vmatprep.mubr.f32.mxu0 0.0
        %7583 = vmatmul.mubr.f32.gmra.mrb[0].mxu0 %v7481
        %v7584 = vpop.f32.mrb[0].mxu0
        %v7585 = vadd.f32 0.0, %v7584
        %v7586 = vpop.f32.mrb[0].mxu0
        %7587 = vdwg.mxu0
        %7588 = vrot.lane.b32.xlu0 %v2720, 64
        %v7589 = vpop.permute.xlu0 %7588
        %7590 = vrot.lane.b32.xlu0 %v2721, 64
        %v7591 = vpop.permute.xlu0 %7590
        %7592 = vrot.lane.b32.xlu0 %v2722, 64
        %v7593 = vpop.permute.xlu0 %7592
        %7594 = vrot.lane.b32.xlu0 %v2723, 64
        %v7595 = vpop.permute.xlu0 %7594
        %7596 = vrot.lane.b32.xlu0 %v2724, 64
        %v7597 = vpop.permute.xlu0 %7596
        %7598 = vrot.lane.b32.xlu0 %v2725, 64
        %v7599 = vpop.permute.xlu0 %7598
        %7600 = vrot.lane.b32.xlu0 %v2726, 64
        %v7601 = vpop.permute.xlu0 %7600
        %7602 = vrot.lane.b32.xlu0 %v2727, 64
        %v7603 = vpop.permute.xlu0 %7602
        %v7613 = vsel %vm364, %v6538, 0
        %v7616 = vsel %vm364, %v6540, 0
        %v7619 = vsel %vm364, %v6542, 0
        %v7622 = vsel %vm364, %v6544, 0
        %v7625 = vsel %vm364, %v6546, 0
        %v7628 = vsel %vm364, %v6548, 0
        %v7631 = vsel %vm364, %v6550, 0
        %v7634 = vsel %vm364, %v6552, 0
        %7636 = vmatprep.subr.mxu0 0.0
        %7637 = vmatpush1.msra.mxu0 %v7589
        %7638 = vmatprep.subr.mxu0 0.0
        %7639 = vmatpush1.msra.mxu0 %v7591
        %7640 = vmatprep.subr.mxu0 0.0
        %7641 = vmatpush1.msra.mxu0 %v7593
        %7642 = vmatprep.subr.mxu0 0.0
        %7643 = vmatpush1.msra.mxu0 %v7595
        %7644 = vmatprep.subr.mxu0 0.0
        %7645 = vmatpush1.msra.mxu0 %v7597
        %7646 = vmatprep.subr.mxu0 0.0
        %7647 = vmatpush1.msra.mxu0 %v7599
        %7648 = vmatprep.subr.mxu0 0.0
        %7649 = vmatpush1.msra.mxu0 %v7601
        %7650 = vmatprep.subr.mxu0 0.0
        %7651 = vmatpush1.msra.mxu0 %v7603
        %7652 = vmatprep.subr.mxu0 0.0
        %7653 = vmatpush1.msra.mxu0 0.0
        %7654 = vmatprep.subr.mxu0 0.0
        %7655 = vmatpush1.msra.mxu0 0.0
        %7656 = vmatprep.subr.mxu0 0.0
        %7657 = vmatpush1.msra.mxu0 0.0
        %7658 = vmatprep.subr.mxu0 0.0
        %7659 = vmatpush1.msra.mxu0 0.0
        %7660 = vmatprep.subr.mxu0 0.0
        %7661 = vmatpush1.msra.mxu0 0.0
        %7662 = vmatprep.subr.mxu0 0.0
        %7663 = vmatpush1.msra.mxu0 0.0
        %7664 = vmatprep.subr.mxu0 0.0
        %7665 = vmatpush1.msra.mxu0 0.0
        %7666 = vmatprep.subr.mxu0 0.0
        %7667 = vmatpush1.msra.mxu0 0.0
        %7668 = vmatprep.subr.mxu0 0.0
        %7669 = vmatpush1.msra.mxu0 0.0
        %7670 = vmatprep.subr.mxu0 0.0
        %7671 = vmatpush1.msra.mxu0 0.0
        %7672 = vmatprep.subr.mxu0 0.0
        %7673 = vmatpush1.msra.mxu0 0.0
        %7674 = vmatprep.subr.mxu0 0.0
        %7675 = vmatpush1.msra.mxu0 0.0
        %7676 = vmatprep.subr.mxu0 0.0
        %7677 = vmatpush1.msra.mxu0 0.0
        %7678 = vmatprep.subr.mxu0 0.0
        %7679 = vmatpush1.msra.mxu0 0.0
        %7680 = vmatprep.subr.mxu0 0.0
        %7681 = vmatpush1.msra.mxu0 0.0
        %7682 = vmatprep.subr.mxu0 0.0
        %7683 = vmatpush1.msra.mxu0 0.0
        %7684 = vmatprep.subr.mxu0 0.0
        %7685 = vmatpush1.msra.mxu0 0.0
        %7686 = vmatprep.subr.mxu0 0.0
        %7687 = vmatpush1.msra.mxu0 0.0
        %7688 = vmatprep.subr.mxu0 0.0
        %7689 = vmatpush1.msra.mxu0 0.0
        %7690 = vmatprep.subr.mxu0 0.0
        %7691 = vmatpush1.msra.mxu0 0.0
        %7692 = vmatprep.subr.mxu0 0.0
        %7693 = vmatpush1.msra.mxu0 0.0
        %7694 = vmatprep.subr.mxu0 0.0
        %7695 = vmatpush1.msra.mxu0 0.0
        %7696 = vmatprep.subr.mxu0 0.0
        %7697 = vmatpush1.msra.mxu0 0.0
        %7698 = vmatprep.subr.mxu0 0.0
        %7699 = vmatpush1.msra.mxu0 0.0
        %7700 = vmatprep.mubr.f32.mxu0 0.0
        %7701 = vmatmul.mubr.f32.gmra.mrb[0].mxu0 %v7613
        %v7702 = vpop.f32.mrb[0].mxu0
        %v7703 = vadd.f32 0.0, %v7702
        %v7704 = vpop.f32.mrb[0].mxu0
        %7705 = vmatprep.mubr.f32.mxu0 0.0
        %7706 = vmatmul.mubr.f32.gmra.mrb[0].mxu0 %v7616
        %v7707 = vpop.f32.mrb[0].mxu0
        %v7708 = vadd.f32 0.0, %v7707
        %v7709 = vpop.f32.mrb[0].mxu0
        %7710 = vmatprep.mubr.f32.mxu0 0.0
        %7711 = vmatmul.mubr.f32.gmra.mrb[0].mxu0 %v7619
        %v7712 = vpop.f32.mrb[0].mxu0
        %v7713 = vadd.f32 0.0, %v7712
        %v7714 = vpop.f32.mrb[0].mxu0
        %7715 = vmatprep.mubr.f32.mxu0 0.0
        %7716 = vmatmul.mubr.f32.gmra.mrb[0].mxu0 %v7622
        %v7717 = vpop.f32.mrb[0].mxu0
        %v7718 = vadd.f32 0.0, %v7717
        %v7719 = vpop.f32.mrb[0].mxu0
        %7720 = vmatprep.mubr.f32.mxu0 0.0
        %7721 = vmatmul.mubr.f32.gmra.mrb[0].mxu0 %v7625
        %v7722 = vpop.f32.mrb[0].mxu0
        %v7723 = vadd.f32 0.0, %v7722
        %v7724 = vpop.f32.mrb[0].mxu0
        %7725 = vmatprep.mubr.f32.mxu0 0.0
        %7726 = vmatmul.mubr.f32.gmra.mrb[0].mxu0 %v7628
        %v7727 = vpop.f32.mrb[0].mxu0
        %v7728 = vadd.f32 0.0, %v7727
        %v7729 = vpop.f32.mrb[0].mxu0
        %7730 = vmatprep.mubr.f32.mxu0 0.0
        %7731 = vmatmul.mubr.f32.gmra.mrb[0].mxu0 %v7631
        %v7732 = vpop.f32.mrb[0].mxu0
        %v7733 = vadd.f32 0.0, %v7732
        %v7734 = vpop.f32.mrb[0].mxu0
        %7735 = vmatprep.mubr.f32.mxu0 0.0
        %7736 = vmatmul.mubr.f32.gmra.mrb[0].mxu0 %v7634
        %v7737 = vpop.f32.mrb[0].mxu0
        %v7738 = vadd.f32 0.0, %v7737
        %v7739 = vpop.f32.mrb[0].mxu0
        %7740 = vdwg.mxu0
        %7741 = vrot.lane.b32.xlu0 %v3177, 64
        %v7742 = vpop.permute.xlu0 %7741
        %7743 = vrot.lane.b32.xlu0 %v3179, 64
        %v7744 = vpop.permute.xlu0 %7743
        %7745 = vrot.lane.b32.xlu0 %v3181, 64
        %v7746 = vpop.permute.xlu0 %7745
        %7747 = vrot.lane.b32.xlu0 %v3183, 64
        %v7748 = vpop.permute.xlu0 %7747
        %7749 = vrot.lane.b32.xlu0 %v3185, 64
        %v7750 = vpop.permute.xlu0 %7749
        %7751 = vrot.lane.b32.xlu0 %v3187, 64
        %v7752 = vpop.permute.xlu0 %7751
        %7753 = vrot.lane.b32.xlu0 %v3189, 64
        %v7754 = vpop.permute.xlu0 %7753
        %7755 = vrot.lane.b32.xlu0 %v3191, 64
        %v7756 = vpop.permute.xlu0 %7755
        %v7766 = vsel %vm364, %v6554, 0
        %v7769 = vsel %vm364, %v6556, 0
        %v7772 = vsel %vm364, %v6558, 0
        %v7775 = vsel %vm364, %v6560, 0
        %v7778 = vsel %vm364, %v6562, 0
        %v7781 = vsel %vm364, %v6564, 0
        %v7784 = vsel %vm364, %v6566, 0
        %v7787 = vsel %vm364, %v6568, 0
        %7789 = vmatprep.subr.mxu0 0.0
        %7790 = vmatpush1.msra.mxu0 %v7742
        %7791 = vmatprep.subr.mxu0 0.0
        %7792 = vmatpush1.msra.mxu0 %v7744
        %7793 = vmatprep.subr.mxu0 0.0
        %7794 = vmatpush1.msra.mxu0 %v7746
        %7795 = vmatprep.subr.mxu0 0.0
        %7796 = vmatpush1.msra.mxu0 %v7748
        %7797 = vmatprep.subr.mxu0 0.0
        %7798 = vmatpush1.msra.mxu0 %v7750
        %7799 = vmatprep.subr.mxu0 0.0
        %7800 = vmatpush1.msra.mxu0 %v7752
        %7801 = vmatprep.subr.mxu0 0.0
        %7802 = vmatpush1.msra.mxu0 %v7754
        %7803 = vmatprep.subr.mxu0 0.0
        %7804 = vmatpush1.msra.mxu0 %v7756
        %7805 = vmatprep.subr.mxu0 0.0
        %7806 = vmatpush1.msra.mxu0 0.0
        %7807 = vmatprep.subr.mxu0 0.0
        %7808 = vmatpush1.msra.mxu0 0.0
        %7809 = vmatprep.subr.mxu0 0.0
        %7810 = vmatpush1.msra.mxu0 0.0
        %7811 = vmatprep.subr.mxu0 0.0
        %7812 = vmatpush1.msra.mxu0 0.0
        %7813 = vmatprep.subr.mxu0 0.0
        %7814 = vmatpush1.msra.mxu0 0.0
        %7815 = vmatprep.subr.mxu0 0.0
        %7816 = vmatpush1.msra.mxu0 0.0
        %7817 = vmatprep.subr.mxu0 0.0
        %7818 = vmatpush1.msra.mxu0 0.0
        %7819 = vmatprep.subr.mxu0 0.0
        %7820 = vmatpush1.msra.mxu0 0.0
        %7821 = vmatprep.subr.mxu0 0.0
        %7822 = vmatpush1.msra.mxu0 0.0
        %7823 = vmatprep.subr.mxu0 0.0
        %7824 = vmatpush1.msra.mxu0 0.0
        %7825 = vmatprep.subr.mxu0 0.0
        %7826 = vmatpush1.msra.mxu0 0.0
        %7827 = vmatprep.subr.mxu0 0.0
        %7828 = vmatpush1.msra.mxu0 0.0
        %7829 = vmatprep.subr.mxu0 0.0
        %7830 = vmatpush1.msra.mxu0 0.0
        %7831 = vmatprep.subr.mxu0 0.0
        %7832 = vmatpush1.msra.mxu0 0.0
        %7833 = vmatprep.subr.mxu0 0.0
        %7834 = vmatpush1.msra.mxu0 0.0
        %7835 = vmatprep.subr.mxu0 0.0
        %7836 = vmatpush1.msra.mxu0 0.0
        %7837 = vmatprep.subr.mxu0 0.0
        %7838 = vmatpush1.msra.mxu0 0.0
        %7839 = vmatprep.subr.mxu0 0.0
        %7840 = vmatpush1.msra.mxu0 0.0
        %7841 = vmatprep.subr.mxu0 0.0
        %7842 = vmatpush1.msra.mxu0 0.0
        %7843 = vmatprep.subr.mxu0 0.0
        %7844 = vmatpush1.msra.mxu0 0.0
        %7845 = vmatprep.subr.mxu0 0.0
        %7846 = vmatpush1.msra.mxu0 0.0
        %7847 = vmatprep.subr.mxu0 0.0
        %7848 = vmatpush1.msra.mxu0 0.0
        %7849 = vmatprep.subr.mxu0 0.0
        %7850 = vmatpush1.msra.mxu0 0.0
        %7851 = vmatprep.subr.mxu0 0.0
        %7852 = vmatpush1.msra.mxu0 0.0
        %7853 = vmatprep.mubr.f32.mxu0 0.0
        %7854 = vmatmul.mubr.f32.gmra.mrb[0].mxu0 %v7766
        %v7855 = vpop.f32.mrb[0].mxu0
        %v7856 = vadd.f32 0.0, %v7855
        %v7857 = vpop.f32.mrb[0].mxu0
        %7858 = vmatprep.mubr.f32.mxu0 0.0
        %7859 = vmatmul.mubr.f32.gmra.mrb[0].mxu0 %v7769
        %v7860 = vpop.f32.mrb[0].mxu0
        %v7861 = vadd.f32 0.0, %v7860
        %v7862 = vpop.f32.mrb[0].mxu0
        %7863 = vmatprep.mubr.f32.mxu0 0.0
        %7864 = vmatmul.mubr.f32.gmra.mrb[0].mxu0 %v7772
        %v7865 = vpop.f32.mrb[0].mxu0
        %v7866 = vadd.f32 0.0, %v7865
        %v7867 = vpop.f32.mrb[0].mxu0
        %7868 = vmatprep.mubr.f32.mxu0 0.0
        %7869 = vmatmul.mubr.f32.gmra.mrb[0].mxu0 %v7775
        %v7870 = vpop.f32.mrb[0].mxu0
        %v7871 = vadd.f32 0.0, %v7870
        %v7872 = vpop.f32.mrb[0].mxu0
        %7873 = vmatprep.mubr.f32.mxu0 0.0
        %7874 = vmatmul.mubr.f32.gmra.mrb[0].mxu0 %v7778
        %v7875 = vpop.f32.mrb[0].mxu0
        %v7876 = vadd.f32 0.0, %v7875
        %v7877 = vpop.f32.mrb[0].mxu0
        %7878 = vmatprep.mubr.f32.mxu0 0.0
        %7879 = vmatmul.mubr.f32.gmra.mrb[0].mxu0 %v7781
        %v7880 = vpop.f32.mrb[0].mxu0
        %v7881 = vadd.f32 0.0, %v7880
        %v7882 = vpop.f32.mrb[0].mxu0
        %7883 = vmatprep.mubr.f32.mxu0 0.0
        %7884 = vmatmul.mubr.f32.gmra.mrb[0].mxu0 %v7784
        %v7885 = vpop.f32.mrb[0].mxu0
        %v7886 = vadd.f32 0.0, %v7885
        %v7887 = vpop.f32.mrb[0].mxu0
        %7888 = vmatprep.mubr.f32.mxu0 0.0
        %7889 = vmatmul.mubr.f32.gmra.mrb[0].mxu0 %v7787
        %v7890 = vpop.f32.mrb[0].mxu0
        %v7891 = vadd.f32 0.0, %v7890
        %v7892 = vpop.f32.mrb[0].mxu0
        %7893 = vdwg.mxu0
        %7894 = vrot.lane.b32.xlu0 %v3193, 64
        %v7895 = vpop.permute.xlu0 %7894
        %7896 = vrot.lane.b32.xlu0 %v3195, 64
        %v7897 = vpop.permute.xlu0 %7896
        %7898 = vrot.lane.b32.xlu0 %v3197, 64
        %v7899 = vpop.permute.xlu0 %7898
        %7900 = vrot.lane.b32.xlu0 %v3199, 64
        %v7901 = vpop.permute.xlu0 %7900
        %7902 = vrot.lane.b32.xlu0 %v3201, 64
        %v7903 = vpop.permute.xlu0 %7902
        %7904 = vrot.lane.b32.xlu0 %v3203, 64
        %v7905 = vpop.permute.xlu0 %7904
        %7906 = vrot.lane.b32.xlu0 %v3205, 64
        %v7907 = vpop.permute.xlu0 %7906
        %7908 = vrot.lane.b32.xlu0 %v3207, 64
        %v7909 = vpop.permute.xlu0 %7908
        %v7919 = vsel %vm364, %v6570, 0
        %v7922 = vsel %vm364, %v6572, 0
        %v7925 = vsel %vm364, %v6574, 0
        %v7928 = vsel %vm364, %v6576, 0
        %v7931 = vsel %vm364, %v6578, 0
        %v7934 = vsel %vm364, %v6580, 0
        %v7937 = vsel %vm364, %v6582, 0
        %v7940 = vsel %vm364, %v6584, 0
        %7942 = vmatprep.subr.mxu0 0.0
        %7943 = vmatpush1.msra.mxu0 %v7895
        %7944 = vmatprep.subr.mxu0 0.0
        %7945 = vmatpush1.msra.mxu0 %v7897
        %7946 = vmatprep.subr.mxu0 0.0
        %7947 = vmatpush1.msra.mxu0 %v7899
        %7948 = vmatprep.subr.mxu0 0.0
        %7949 = vmatpush1.msra.mxu0 %v7901
        %7950 = vmatprep.subr.mxu0 0.0
        %7951 = vmatpush1.msra.mxu0 %v7903
        %7952 = vmatprep.subr.mxu0 0.0
        %7953 = vmatpush1.msra.mxu0 %v7905
        %7954 = vmatprep.subr.mxu0 0.0
        %7955 = vmatpush1.msra.mxu0 %v7907
        %7956 = vmatprep.subr.mxu0 0.0
        %7957 = vmatpush1.msra.mxu0 %v7909
        %7958 = vmatprep.subr.mxu0 0.0
        %7959 = vmatpush1.msra.mxu0 0.0
        %7960 = vmatprep.subr.mxu0 0.0
        %7961 = vmatpush1.msra.mxu0 0.0
        %7962 = vmatprep.subr.mxu0 0.0
        %7963 = vmatpush1.msra.mxu0 0.0
        %7964 = vmatprep.subr.mxu0 0.0
        %7965 = vmatpush1.msra.mxu0 0.0
        %7966 = vmatprep.subr.mxu0 0.0
        %7967 = vmatpush1.msra.mxu0 0.0
        %7968 = vmatprep.subr.mxu0 0.0
        %7969 = vmatpush1.msra.mxu0 0.0
        %7970 = vmatprep.subr.mxu0 0.0
        %7971 = vmatpush1.msra.mxu0 0.0
        %7972 = vmatprep.subr.mxu0 0.0
        %7973 = vmatpush1.msra.mxu0 0.0
        %7974 = vmatprep.subr.mxu0 0.0
        %7975 = vmatpush1.msra.mxu0 0.0
        %7976 = vmatprep.subr.mxu0 0.0
        %7977 = vmatpush1.msra.mxu0 0.0
        %7978 = vmatprep.subr.mxu0 0.0
        %7979 = vmatpush1.msra.mxu0 0.0
        %7980 = vmatprep.subr.mxu0 0.0
        %7981 = vmatpush1.msra.mxu0 0.0
        %7982 = vmatprep.subr.mxu0 0.0
        %7983 = vmatpush1.msra.mxu0 0.0
        %7984 = vmatprep.subr.mxu0 0.0
        %7985 = vmatpush1.msra.mxu0 0.0
        %7986 = vmatprep.subr.mxu0 0.0
        %7987 = vmatpush1.msra.mxu0 0.0
        %7988 = vmatprep.subr.mxu0 0.0
        %7989 = vmatpush1.msra.mxu0 0.0
        %7990 = vmatprep.subr.mxu0 0.0
        %7991 = vmatpush1.msra.mxu0 0.0
        %7992 = vmatprep.subr.mxu0 0.0
        %7993 = vmatpush1.msra.mxu0 0.0
        %7994 = vmatprep.subr.mxu0 0.0
        %7995 = vmatpush1.msra.mxu0 0.0
        %7996 = vmatprep.subr.mxu0 0.0
        %7997 = vmatpush1.msra.mxu0 0.0
        %7998 = vmatprep.subr.mxu0 0.0
        %7999 = vmatpush1.msra.mxu0 0.0
        %8000 = vmatprep.subr.mxu0 0.0
        %8001 = vmatpush1.msra.mxu0 0.0
        %8002 = vmatprep.subr.mxu0 0.0
        %8003 = vmatpush1.msra.mxu0 0.0
        %8004 = vmatprep.subr.mxu0 0.0
        %8005 = vmatpush1.msra.mxu0 0.0
        %8006 = vmatprep.mubr.f32.mxu0 0.0
        %8007 = vmatmul.mubr.f32.gmra.mrb[0].mxu0 %v7919
        %v8008 = vpop.f32.mrb[0].mxu0
        %v8009 = vadd.f32 0.0, %v8008
        %v8010 = vpop.f32.mrb[0].mxu0
        %8011 = vmatprep.mubr.f32.mxu0 0.0
        %8012 = vmatmul.mubr.f32.gmra.mrb[0].mxu0 %v7922
        %v8013 = vpop.f32.mrb[0].mxu0
        %v8014 = vadd.f32 0.0, %v8013
        %v8015 = vpop.f32.mrb[0].mxu0
        %8016 = vmatprep.mubr.f32.mxu0 0.0
        %8017 = vmatmul.mubr.f32.gmra.mrb[0].mxu0 %v7925
        %v8018 = vpop.f32.mrb[0].mxu0
        %v8019 = vadd.f32 0.0, %v8018
        %v8020 = vpop.f32.mrb[0].mxu0
        %8021 = vmatprep.mubr.f32.mxu0 0.0
        %8022 = vmatmul.mubr.f32.gmra.mrb[0].mxu0 %v7928
        %v8023 = vpop.f32.mrb[0].mxu0
        %v8024 = vadd.f32 0.0, %v8023
        %v8025 = vpop.f32.mrb[0].mxu0
        %8026 = vmatprep.mubr.f32.mxu0 0.0
        %8027 = vmatmul.mubr.f32.gmra.mrb[0].mxu0 %v7931
        %v8028 = vpop.f32.mrb[0].mxu0
        %v8029 = vadd.f32 0.0, %v8028
        %v8030 = vpop.f32.mrb[0].mxu0
        %8031 = vmatprep.mubr.f32.mxu0 0.0
        %8032 = vmatmul.mubr.f32.gmra.mrb[0].mxu0 %v7934
        %v8033 = vpop.f32.mrb[0].mxu0
        %v8034 = vadd.f32 0.0, %v8033
        %v8035 = vpop.f32.mrb[0].mxu0
        %8036 = vmatprep.mubr.f32.mxu0 0.0
        %8037 = vmatmul.mubr.f32.gmra.mrb[0].mxu0 %v7937
        %v8038 = vpop.f32.mrb[0].mxu0
        %v8039 = vadd.f32 0.0, %v8038
        %v8040 = vpop.f32.mrb[0].mxu0
        %8041 = vmatprep.mubr.f32.mxu0 0.0
        %8042 = vmatmul.mubr.f32.gmra.mrb[0].mxu0 %v7940
        %v8043 = vpop.f32.mrb[0].mxu0
        %v8044 = vadd.f32 0.0, %v8043
        %v8045 = vpop.f32.mrb[0].mxu0
        %8046 = vdwg.mxu0
        %8047 = vrot.lane.b32.xlu0 %v3209, 64
        %v8048 = vpop.permute.xlu0 %8047
        %8049 = vrot.lane.b32.xlu0 %v3211, 64
        %v8050 = vpop.permute.xlu0 %8049
        %8051 = vrot.lane.b32.xlu0 %v3213, 64
        %v8052 = vpop.permute.xlu0 %8051
        %8053 = vrot.lane.b32.xlu0 %v3215, 64
        %v8054 = vpop.permute.xlu0 %8053
        %8055 = vrot.lane.b32.xlu0 %v3217, 64
        %v8056 = vpop.permute.xlu0 %8055
        %8057 = vrot.lane.b32.xlu0 %v3219, 64
        %v8058 = vpop.permute.xlu0 %8057
        %8059 = vrot.lane.b32.xlu0 %v3221, 64
        %v8060 = vpop.permute.xlu0 %8059
        %8061 = vrot.lane.b32.xlu0 %v3223, 64
        %v8062 = vpop.permute.xlu0 %8061
        %v8072 = vsel %vm364, %v6586, 0
        %v8075 = vsel %vm364, %v6588, 0
        %v8078 = vsel %vm364, %v6590, 0
        %v8081 = vsel %vm364, %v6592, 0
        %v8084 = vsel %vm364, %v6594, 0
        %v8087 = vsel %vm364, %v6596, 0
        %v8090 = vsel %vm364, %v6598, 0
        %v8093 = vsel %vm364, %v6600, 0
        %8095 = vmatprep.subr.mxu0 0.0
        %8096 = vmatpush1.msra.mxu0 %v8048
        %8097 = vmatprep.subr.mxu0 0.0
        %8098 = vmatpush1.msra.mxu0 %v8050
        %8099 = vmatprep.subr.mxu0 0.0
        %8100 = vmatpush1.msra.mxu0 %v8052
        %8101 = vmatprep.subr.mxu0 0.0
        %8102 = vmatpush1.msra.mxu0 %v8054
        %8103 = vmatprep.subr.mxu0 0.0
        %8104 = vmatpush1.msra.mxu0 %v8056
        %8105 = vmatprep.subr.mxu0 0.0
        %8106 = vmatpush1.msra.mxu0 %v8058
        %8107 = vmatprep.subr.mxu0 0.0
        %8108 = vmatpush1.msra.mxu0 %v8060
        %8109 = vmatprep.subr.mxu0 0.0
        %8110 = vmatpush1.msra.mxu0 %v8062
        %8111 = vmatprep.subr.mxu0 0.0
        %8112 = vmatpush1.msra.mxu0 0.0
        %8113 = vmatprep.subr.mxu0 0.0
        %8114 = vmatpush1.msra.mxu0 0.0
        %8115 = vmatprep.subr.mxu0 0.0
        %8116 = vmatpush1.msra.mxu0 0.0
        %8117 = vmatprep.subr.mxu0 0.0
        %8118 = vmatpush1.msra.mxu0 0.0
        %8119 = vmatprep.subr.mxu0 0.0
        %8120 = vmatpush1.msra.mxu0 0.0
        %8121 = vmatprep.subr.mxu0 0.0
        %8122 = vmatpush1.msra.mxu0 0.0
        %8123 = vmatprep.subr.mxu0 0.0
        %8124 = vmatpush1.msra.mxu0 0.0
        %8125 = vmatprep.subr.mxu0 0.0
        %8126 = vmatpush1.msra.mxu0 0.0
        %8127 = vmatprep.subr.mxu0 0.0
        %8128 = vmatpush1.msra.mxu0 0.0
        %8129 = vmatprep.subr.mxu0 0.0
        %8130 = vmatpush1.msra.mxu0 0.0
        %8131 = vmatprep.subr.mxu0 0.0
        %8132 = vmatpush1.msra.mxu0 0.0
        %8133 = vmatprep.subr.mxu0 0.0
        %8134 = vmatpush1.msra.mxu0 0.0
        %8135 = vmatprep.subr.mxu0 0.0
        %8136 = vmatpush1.msra.mxu0 0.0
        %8137 = vmatprep.subr.mxu0 0.0
        %8138 = vmatpush1.msra.mxu0 0.0
        %8139 = vmatprep.subr.mxu0 0.0
        %8140 = vmatpush1.msra.mxu0 0.0
        %8141 = vmatprep.subr.mxu0 0.0
        %8142 = vmatpush1.msra.mxu0 0.0
        %8143 = vmatprep.subr.mxu0 0.0
        %8144 = vmatpush1.msra.mxu0 0.0
        %8145 = vmatprep.subr.mxu0 0.0
        %8146 = vmatpush1.msra.mxu0 0.0
        %8147 = vmatprep.subr.mxu0 0.0
        %8148 = vmatpush1.msra.mxu0 0.0
        %8149 = vmatprep.subr.mxu0 0.0
        %8150 = vmatpush1.msra.mxu0 0.0
        %8151 = vmatprep.subr.mxu0 0.0
        %8152 = vmatpush1.msra.mxu0 0.0
        %8153 = vmatprep.subr.mxu0 0.0
        %8154 = vmatpush1.msra.mxu0 0.0
        %8155 = vmatprep.subr.mxu0 0.0
        %8156 = vmatpush1.msra.mxu0 0.0
        %8157 = vmatprep.subr.mxu0 0.0
        %8158 = vmatpush1.msra.mxu0 0.0
        %8159 = vmatprep.mubr.f32.mxu0 0.0
        %8160 = vmatmul.mubr.f32.gmra.mrb[0].mxu0 %v8072
        %v8161 = vpop.f32.mrb[0].mxu0
        %v8162 = vadd.f32 0.0, %v8161
        %v8163 = vpop.f32.mrb[0].mxu0
        %8164 = vmatprep.mubr.f32.mxu0 0.0
        %8165 = vmatmul.mubr.f32.gmra.mrb[0].mxu0 %v8075
        %v8166 = vpop.f32.mrb[0].mxu0
        %v8167 = vadd.f32 0.0, %v8166
        %v8168 = vpop.f32.mrb[0].mxu0
        %8169 = vmatprep.mubr.f32.mxu0 0.0
        %8170 = vmatmul.mubr.f32.gmra.mrb[0].mxu0 %v8078
        %v8171 = vpop.f32.mrb[0].mxu0
        %v8172 = vadd.f32 0.0, %v8171
        %v8173 = vpop.f32.mrb[0].mxu0
        %8174 = vmatprep.mubr.f32.mxu0 0.0
        %8175 = vmatmul.mubr.f32.gmra.mrb[0].mxu0 %v8081
        %v8176 = vpop.f32.mrb[0].mxu0
        %v8177 = vadd.f32 0.0, %v8176
        %v8178 = vpop.f32.mrb[0].mxu0
        %8179 = vmatprep.mubr.f32.mxu0 0.0
        %8180 = vmatmul.mubr.f32.gmra.mrb[0].mxu0 %v8084
        %v8181 = vpop.f32.mrb[0].mxu0
        %v8182 = vadd.f32 0.0, %v8181
        %v8183 = vpop.f32.mrb[0].mxu0
        %8184 = vmatprep.mubr.f32.mxu0 0.0
        %8185 = vmatmul.mubr.f32.gmra.mrb[0].mxu0 %v8087
        %v8186 = vpop.f32.mrb[0].mxu0
        %v8187 = vadd.f32 0.0, %v8186
        %v8188 = vpop.f32.mrb[0].mxu0
        %8189 = vmatprep.mubr.f32.mxu0 0.0
        %8190 = vmatmul.mubr.f32.gmra.mrb[0].mxu0 %v8090
        %v8191 = vpop.f32.mrb[0].mxu0
        %v8192 = vadd.f32 0.0, %v8191
        %v8193 = vpop.f32.mrb[0].mxu0
        %8194 = vmatprep.mubr.f32.mxu0 0.0
        %8195 = vmatmul.mubr.f32.gmra.mrb[0].mxu0 %v8093
        %v8196 = vpop.f32.mrb[0].mxu0
        %v8197 = vadd.f32 0.0, %v8196
        %v8198 = vpop.f32.mrb[0].mxu0
        %8199 = vdwg.mxu0
        %8200 = vrot.lane.b32.xlu0 %v3225, 64
        %v8201 = vpop.permute.xlu0 %8200
        %8202 = vrot.lane.b32.xlu0 %v3227, 64
        %v8203 = vpop.permute.xlu0 %8202
        %8204 = vrot.lane.b32.xlu0 %v3229, 64
        %v8205 = vpop.permute.xlu0 %8204
        %8206 = vrot.lane.b32.xlu0 %v3231, 64
        %v8207 = vpop.permute.xlu0 %8206
        %8208 = vrot.lane.b32.xlu0 %v3233, 64
        %v8209 = vpop.permute.xlu0 %8208
        %8210 = vrot.lane.b32.xlu0 %v3235, 64
        %v8211 = vpop.permute.xlu0 %8210
        %8212 = vrot.lane.b32.xlu0 %v3237, 64
        %v8213 = vpop.permute.xlu0 %8212
        %8214 = vrot.lane.b32.xlu0 %v3239, 64
        %v8215 = vpop.permute.xlu0 %8214
        %v8225 = vsel %vm364, %v6602, 0
        %v8228 = vsel %vm364, %v6604, 0
        %v8231 = vsel %vm364, %v6606, 0
        %v8234 = vsel %vm364, %v6608, 0
        %v8237 = vsel %vm364, %v6610, 0
        %v8240 = vsel %vm364, %v6612, 0
        %v8243 = vsel %vm364, %v6614, 0
        %v8246 = vsel %vm364, %v6616, 0
        %8248 = vmatprep.subr.mxu0 0.0
        %8249 = vmatpush1.msra.mxu0 %v8201
        %8250 = vmatprep.subr.mxu0 0.0
        %8251 = vmatpush1.msra.mxu0 %v8203
        %8252 = vmatprep.subr.mxu0 0.0
        %8253 = vmatpush1.msra.mxu0 %v8205
        %8254 = vmatprep.subr.mxu0 0.0
        %8255 = vmatpush1.msra.mxu0 %v8207
        %8256 = vmatprep.subr.mxu0 0.0
        %8257 = vmatpush1.msra.mxu0 %v8209
        %8258 = vmatprep.subr.mxu0 0.0
        %8259 = vmatpush1.msra.mxu0 %v8211
        %8260 = vmatprep.subr.mxu0 0.0
        %8261 = vmatpush1.msra.mxu0 %v8213
        %8262 = vmatprep.subr.mxu0 0.0
        %8263 = vmatpush1.msra.mxu0 %v8215
        %8264 = vmatprep.subr.mxu0 0.0
        %8265 = vmatpush1.msra.mxu0 0.0
        %8266 = vmatprep.subr.mxu0 0.0
        %8267 = vmatpush1.msra.mxu0 0.0
        %8268 = vmatprep.subr.mxu0 0.0
        %8269 = vmatpush1.msra.mxu0 0.0
        %8270 = vmatprep.subr.mxu0 0.0
        %8271 = vmatpush1.msra.mxu0 0.0
        %8272 = vmatprep.subr.mxu0 0.0
        %8273 = vmatpush1.msra.mxu0 0.0
        %8274 = vmatprep.subr.mxu0 0.0
        %8275 = vmatpush1.msra.mxu0 0.0
        %8276 = vmatprep.subr.mxu0 0.0
        %8277 = vmatpush1.msra.mxu0 0.0
        %8278 = vmatprep.subr.mxu0 0.0
        %8279 = vmatpush1.msra.mxu0 0.0
        %8280 = vmatprep.subr.mxu0 0.0
        %8281 = vmatpush1.msra.mxu0 0.0
        %8282 = vmatprep.subr.mxu0 0.0
        %8283 = vmatpush1.msra.mxu0 0.0
        %8284 = vmatprep.subr.mxu0 0.0
        %8285 = vmatpush1.msra.mxu0 0.0
        %8286 = vmatprep.subr.mxu0 0.0
        %8287 = vmatpush1.msra.mxu0 0.0
        %8288 = vmatprep.subr.mxu0 0.0
        %8289 = vmatpush1.msra.mxu0 0.0
        %8290 = vmatprep.subr.mxu0 0.0
        %8291 = vmatpush1.msra.mxu0 0.0
        %8292 = vmatprep.subr.mxu0 0.0
        %8293 = vmatpush1.msra.mxu0 0.0
        %8294 = vmatprep.subr.mxu0 0.0
        %8295 = vmatpush1.msra.mxu0 0.0
        %8296 = vmatprep.subr.mxu0 0.0
        %8297 = vmatpush1.msra.mxu0 0.0
        %8298 = vmatprep.subr.mxu0 0.0
        %8299 = vmatpush1.msra.mxu0 0.0
        %8300 = vmatprep.subr.mxu0 0.0
        %8301 = vmatpush1.msra.mxu0 0.0
        %8302 = vmatprep.subr.mxu0 0.0
        %8303 = vmatpush1.msra.mxu0 0.0
        %8304 = vmatprep.subr.mxu0 0.0
        %8305 = vmatpush1.msra.mxu0 0.0
        %8306 = vmatprep.subr.mxu0 0.0
        %8307 = vmatpush1.msra.mxu0 0.0
        %8308 = vmatprep.subr.mxu0 0.0
        %8309 = vmatpush1.msra.mxu0 0.0
        %8310 = vmatprep.subr.mxu0 0.0
        %8311 = vmatpush1.msra.mxu0 0.0
        %8312 = vmatprep.mubr.f32.mxu0 0.0
        %8313 = vmatmul.mubr.f32.gmra.mrb[0].mxu0 %v8225
        %v8314 = vpop.f32.mrb[0].mxu0
        %v8315 = vadd.f32 0.0, %v8314
        %v8316 = vpop.f32.mrb[0].mxu0
        %8317 = vmatprep.mubr.f32.mxu0 0.0
        %8318 = vmatmul.mubr.f32.gmra.mrb[0].mxu0 %v8228
        %v8319 = vpop.f32.mrb[0].mxu0
        %v8320 = vadd.f32 0.0, %v8319
        %v8321 = vpop.f32.mrb[0].mxu0
        %8322 = vmatprep.mubr.f32.mxu0 0.0
        %8323 = vmatmul.mubr.f32.gmra.mrb[0].mxu0 %v8231
        %v8324 = vpop.f32.mrb[0].mxu0
        %v8325 = vadd.f32 0.0, %v8324
        %v8326 = vpop.f32.mrb[0].mxu0
        %8327 = vmatprep.mubr.f32.mxu0 0.0
        %8328 = vmatmul.mubr.f32.gmra.mrb[0].mxu0 %v8234
        %v8329 = vpop.f32.mrb[0].mxu0
        %v8330 = vadd.f32 0.0, %v8329
        %v8331 = vpop.f32.mrb[0].mxu0
        %8332 = vmatprep.mubr.f32.mxu0 0.0
        %8333 = vmatmul.mubr.f32.gmra.mrb[0].mxu0 %v8237
        %v8334 = vpop.f32.mrb[0].mxu0
        %v8335 = vadd.f32 0.0, %v8334
        %v8336 = vpop.f32.mrb[0].mxu0
        %8337 = vmatprep.mubr.f32.mxu0 0.0
        %8338 = vmatmul.mubr.f32.gmra.mrb[0].mxu0 %v8240
        %v8339 = vpop.f32.mrb[0].mxu0
        %v8340 = vadd.f32 0.0, %v8339
        %v8341 = vpop.f32.mrb[0].mxu0
        %8342 = vmatprep.mubr.f32.mxu0 0.0
        %8343 = vmatmul.mubr.f32.gmra.mrb[0].mxu0 %v8243
        %v8344 = vpop.f32.mrb[0].mxu0
        %v8345 = vadd.f32 0.0, %v8344
        %v8346 = vpop.f32.mrb[0].mxu0
        %8347 = vmatprep.mubr.f32.mxu0 0.0
        %8348 = vmatmul.mubr.f32.gmra.mrb[0].mxu0 %v8246
        %v8349 = vpop.f32.mrb[0].mxu0
        %v8350 = vadd.f32 0.0, %v8349
        %v8351 = vpop.f32.mrb[0].mxu0
        %8352 = vdwg.mxu0
        %8353 = vrot.lane.b32.xlu0 %v3241, 64
        %v8354 = vpop.permute.xlu0 %8353
        %8355 = vrot.lane.b32.xlu0 %v3243, 64
        %v8356 = vpop.permute.xlu0 %8355
        %8357 = vrot.lane.b32.xlu0 %v3245, 64
        %v8358 = vpop.permute.xlu0 %8357
        %8359 = vrot.lane.b32.xlu0 %v3247, 64
        %v8360 = vpop.permute.xlu0 %8359
        %8361 = vrot.lane.b32.xlu0 %v3249, 64
        %v8362 = vpop.permute.xlu0 %8361
        %8363 = vrot.lane.b32.xlu0 %v3251, 64
        %v8364 = vpop.permute.xlu0 %8363
        %8365 = vrot.lane.b32.xlu0 %v3253, 64
        %v8366 = vpop.permute.xlu0 %8365
        %8367 = vrot.lane.b32.xlu0 %v3255, 64
        %v8368 = vpop.permute.xlu0 %8367
        %v8378 = vsel %vm364, %v6618, 0
        %v8381 = vsel %vm364, %v6620, 0
        %v8384 = vsel %vm364, %v6622, 0
        %v8387 = vsel %vm364, %v6624, 0
        %v8390 = vsel %vm364, %v6626, 0
        %v8393 = vsel %vm364, %v6628, 0
        %v8396 = vsel %vm364, %v6630, 0
        %v8399 = vsel %vm364, %v6632, 0
        %8401 = vmatprep.subr.mxu0 0.0
        %8402 = vmatpush1.msra.mxu0 %v8354
        %8403 = vmatprep.subr.mxu0 0.0
        %8404 = vmatpush1.msra.mxu0 %v8356
        %8405 = vmatprep.subr.mxu0 0.0
        %8406 = vmatpush1.msra.mxu0 %v8358
        %8407 = vmatprep.subr.mxu0 0.0
        %8408 = vmatpush1.msra.mxu0 %v8360
        %8409 = vmatprep.subr.mxu0 0.0
        %8410 = vmatpush1.msra.mxu0 %v8362
        %8411 = vmatprep.subr.mxu0 0.0
        %8412 = vmatpush1.msra.mxu0 %v8364
        %8413 = vmatprep.subr.mxu0 0.0
        %8414 = vmatpush1.msra.mxu0 %v8366
        %8415 = vmatprep.subr.mxu0 0.0
        %8416 = vmatpush1.msra.mxu0 %v8368
        %8417 = vmatprep.subr.mxu0 0.0
        %8418 = vmatpush1.msra.mxu0 0.0
        %8419 = vmatprep.subr.mxu0 0.0
        %8420 = vmatpush1.msra.mxu0 0.0
        %8421 = vmatprep.subr.mxu0 0.0
        %8422 = vmatpush1.msra.mxu0 0.0
        %8423 = vmatprep.subr.mxu0 0.0
        %8424 = vmatpush1.msra.mxu0 0.0
        %8425 = vmatprep.subr.mxu0 0.0
        %8426 = vmatpush1.msra.mxu0 0.0
        %8427 = vmatprep.subr.mxu0 0.0
        %8428 = vmatpush1.msra.mxu0 0.0
        %8429 = vmatprep.subr.mxu0 0.0
        %8430 = vmatpush1.msra.mxu0 0.0
        %8431 = vmatprep.subr.mxu0 0.0
        %8432 = vmatpush1.msra.mxu0 0.0
        %8433 = vmatprep.subr.mxu0 0.0
        %8434 = vmatpush1.msra.mxu0 0.0
        %8435 = vmatprep.subr.mxu0 0.0
        %8436 = vmatpush1.msra.mxu0 0.0
        %8437 = vmatprep.subr.mxu0 0.0
        %8438 = vmatpush1.msra.mxu0 0.0
        %8439 = vmatprep.subr.mxu0 0.0
        %8440 = vmatpush1.msra.mxu0 0.0
        %8441 = vmatprep.subr.mxu0 0.0
        %8442 = vmatpush1.msra.mxu0 0.0
        %8443 = vmatprep.subr.mxu0 0.0
        %8444 = vmatpush1.msra.mxu0 0.0
        %8445 = vmatprep.subr.mxu0 0.0
        %8446 = vmatpush1.msra.mxu0 0.0
        %8447 = vmatprep.subr.mxu0 0.0
        %8448 = vmatpush1.msra.mxu0 0.0
        %8449 = vmatprep.subr.mxu0 0.0
        %8450 = vmatpush1.msra.mxu0 0.0
        %8451 = vmatprep.subr.mxu0 0.0
        %8452 = vmatpush1.msra.mxu0 0.0
        %8453 = vmatprep.subr.mxu0 0.0
        %8454 = vmatpush1.msra.mxu0 0.0
        %8455 = vmatprep.subr.mxu0 0.0
        %8456 = vmatpush1.msra.mxu0 0.0
        %8457 = vmatprep.subr.mxu0 0.0
        %8458 = vmatpush1.msra.mxu0 0.0
        %8459 = vmatprep.subr.mxu0 0.0
        %8460 = vmatpush1.msra.mxu0 0.0
        %8461 = vmatprep.subr.mxu0 0.0
        %8462 = vmatpush1.msra.mxu0 0.0
        %8463 = vmatprep.subr.mxu0 0.0
        %8464 = vmatpush1.msra.mxu0 0.0
        %8465 = vmatprep.mubr.f32.mxu0 0.0
        %8466 = vmatmul.mubr.f32.gmra.mrb[0].mxu0 %v8378
        %v8467 = vpop.f32.mrb[0].mxu0
        %v8468 = vadd.f32 0.0, %v8467
        %v8469 = vpop.f32.mrb[0].mxu0
        %8470 = vmatprep.mubr.f32.mxu0 0.0
        %8471 = vmatmul.mubr.f32.gmra.mrb[0].mxu0 %v8381
        %v8472 = vpop.f32.mrb[0].mxu0
        %v8473 = vadd.f32 0.0, %v8472
        %v8474 = vpop.f32.mrb[0].mxu0
        %8475 = vmatprep.mubr.f32.mxu0 0.0
        %8476 = vmatmul.mubr.f32.gmra.mrb[0].mxu0 %v8384
        %v8477 = vpop.f32.mrb[0].mxu0
        %v8478 = vadd.f32 0.0, %v8477
        %v8479 = vpop.f32.mrb[0].mxu0
        %8480 = vmatprep.mubr.f32.mxu0 0.0
        %8481 = vmatmul.mubr.f32.gmra.mrb[0].mxu0 %v8387
        %v8482 = vpop.f32.mrb[0].mxu0
        %v8483 = vadd.f32 0.0, %v8482
        %v8484 = vpop.f32.mrb[0].mxu0
        %8485 = vmatprep.mubr.f32.mxu0 0.0
        %8486 = vmatmul.mubr.f32.gmra.mrb[0].mxu0 %v8390
        %v8487 = vpop.f32.mrb[0].mxu0
        %v8488 = vadd.f32 0.0, %v8487
        %v8489 = vpop.f32.mrb[0].mxu0
        %8490 = vmatprep.mubr.f32.mxu0 0.0
        %8491 = vmatmul.mubr.f32.gmra.mrb[0].mxu0 %v8393
        %v8492 = vpop.f32.mrb[0].mxu0
        %v8493 = vadd.f32 0.0, %v8492
        %v8494 = vpop.f32.mrb[0].mxu0
        %8495 = vmatprep.mubr.f32.mxu0 0.0
        %8496 = vmatmul.mubr.f32.gmra.mrb[0].mxu0 %v8396
        %v8497 = vpop.f32.mrb[0].mxu0
        %v8498 = vadd.f32 0.0, %v8497
        %v8499 = vpop.f32.mrb[0].mxu0
        %8500 = vmatprep.mubr.f32.mxu0 0.0
        %8501 = vmatmul.mubr.f32.gmra.mrb[0].mxu0 %v8399
        %v8502 = vpop.f32.mrb[0].mxu0
        %v8503 = vadd.f32 0.0, %v8502
        %v8504 = vpop.f32.mrb[0].mxu0
        %8505 = vdwg.mxu0
        %8506 = vrot.lane.b32.xlu0 %v3257, 64
        %v8507 = vpop.permute.xlu0 %8506
        %8508 = vrot.lane.b32.xlu0 %v3259, 64
        %v8509 = vpop.permute.xlu0 %8508
        %8510 = vrot.lane.b32.xlu0 %v3261, 64
        %v8511 = vpop.permute.xlu0 %8510
        %8512 = vrot.lane.b32.xlu0 %v3263, 64
        %v8513 = vpop.permute.xlu0 %8512
        %8514 = vrot.lane.b32.xlu0 %v3265, 64
        %v8515 = vpop.permute.xlu0 %8514
        %8516 = vrot.lane.b32.xlu0 %v3267, 64
        %v8517 = vpop.permute.xlu0 %8516
        %8518 = vrot.lane.b32.xlu0 %v3269, 64
        %v8519 = vpop.permute.xlu0 %8518
        %8520 = vrot.lane.b32.xlu0 %v3271, 64
        %v8521 = vpop.permute.xlu0 %8520
        %v8531 = vsel %vm364, %v6634, 0
        %v8534 = vsel %vm364, %v6636, 0
        %v8537 = vsel %vm364, %v6638, 0
        %v8540 = vsel %vm364, %v6640, 0
        %v8543 = vsel %vm364, %v6642, 0
        %v8546 = vsel %vm364, %v6644, 0
        %v8549 = vsel %vm364, %v6646, 0
        %v8552 = vsel %vm364, %v6648, 0
        %8554 = vmatprep.subr.mxu0 0.0
        %8555 = vmatpush1.msra.mxu0 %v8507
        %8556 = vmatprep.subr.mxu0 0.0
        %8557 = vmatpush1.msra.mxu0 %v8509
        %8558 = vmatprep.subr.mxu0 0.0
        %8559 = vmatpush1.msra.mxu0 %v8511
        %8560 = vmatprep.subr.mxu0 0.0
        %8561 = vmatpush1.msra.mxu0 %v8513
        %8562 = vmatprep.subr.mxu0 0.0
        %8563 = vmatpush1.msra.mxu0 %v8515
        %8564 = vmatprep.subr.mxu0 0.0
        %8565 = vmatpush1.msra.mxu0 %v8517
        %8566 = vmatprep.subr.mxu0 0.0
        %8567 = vmatpush1.msra.mxu0 %v8519
        %8568 = vmatprep.subr.mxu0 0.0
        %8569 = vmatpush1.msra.mxu0 %v8521
        %8570 = vmatprep.subr.mxu0 0.0
        %8571 = vmatpush1.msra.mxu0 0.0
        %8572 = vmatprep.subr.mxu0 0.0
        %8573 = vmatpush1.msra.mxu0 0.0
        %8574 = vmatprep.subr.mxu0 0.0
        %8575 = vmatpush1.msra.mxu0 0.0
        %8576 = vmatprep.subr.mxu0 0.0
        %8577 = vmatpush1.msra.mxu0 0.0
        %8578 = vmatprep.subr.mxu0 0.0
        %8579 = vmatpush1.msra.mxu0 0.0
        %8580 = vmatprep.subr.mxu0 0.0
        %8581 = vmatpush1.msra.mxu0 0.0
        %8582 = vmatprep.subr.mxu0 0.0
        %8583 = vmatpush1.msra.mxu0 0.0
        %8584 = vmatprep.subr.mxu0 0.0
        %8585 = vmatpush1.msra.mxu0 0.0
        %8586 = vmatprep.subr.mxu0 0.0
        %8587 = vmatpush1.msra.mxu0 0.0
        %8588 = vmatprep.subr.mxu0 0.0
        %8589 = vmatpush1.msra.mxu0 0.0
        %8590 = vmatprep.subr.mxu0 0.0
        %8591 = vmatpush1.msra.mxu0 0.0
        %8592 = vmatprep.subr.mxu0 0.0
        %8593 = vmatpush1.msra.mxu0 0.0
        %8594 = vmatprep.subr.mxu0 0.0
        %8595 = vmatpush1.msra.mxu0 0.0
        %8596 = vmatprep.subr.mxu0 0.0
        %8597 = vmatpush1.msra.mxu0 0.0
        %8598 = vmatprep.subr.mxu0 0.0
        %8599 = vmatpush1.msra.mxu0 0.0
        %8600 = vmatprep.subr.mxu0 0.0
        %8601 = vmatpush1.msra.mxu0 0.0
        %8602 = vmatprep.subr.mxu0 0.0
        %8603 = vmatpush1.msra.mxu0 0.0
        %8604 = vmatprep.subr.mxu0 0.0
        %8605 = vmatpush1.msra.mxu0 0.0
        %8606 = vmatprep.subr.mxu0 0.0
        %8607 = vmatpush1.msra.mxu0 0.0
        %8608 = vmatprep.subr.mxu0 0.0
        %8609 = vmatpush1.msra.mxu0 0.0
        %8610 = vmatprep.subr.mxu0 0.0
        %8611 = vmatpush1.msra.mxu0 0.0
        %8612 = vmatprep.subr.mxu0 0.0
        %8613 = vmatpush1.msra.mxu0 0.0
        %8614 = vmatprep.subr.mxu0 0.0
        %8615 = vmatpush1.msra.mxu0 0.0
        %8616 = vmatprep.subr.mxu0 0.0
        %8617 = vmatpush1.msra.mxu0 0.0
        %8618 = vmatprep.mubr.f32.mxu0 0.0
        %8619 = vmatmul.mubr.f32.gmra.mrb[0].mxu0 %v8531
        %v8620 = vpop.f32.mrb[0].mxu0
        %v8621 = vadd.f32 0.0, %v8620
        %v8622 = vpop.f32.mrb[0].mxu0
        %8623 = vmatprep.mubr.f32.mxu0 0.0
        %8624 = vmatmul.mubr.f32.gmra.mrb[0].mxu0 %v8534
        %v8625 = vpop.f32.mrb[0].mxu0
        %v8626 = vadd.f32 0.0, %v8625
        %v8627 = vpop.f32.mrb[0].mxu0
        %8628 = vmatprep.mubr.f32.mxu0 0.0
        %8629 = vmatmul.mubr.f32.gmra.mrb[0].mxu0 %v8537
        %v8630 = vpop.f32.mrb[0].mxu0
        %v8631 = vadd.f32 0.0, %v8630
        %v8632 = vpop.f32.mrb[0].mxu0
        %8633 = vmatprep.mubr.f32.mxu0 0.0
        %8634 = vmatmul.mubr.f32.gmra.mrb[0].mxu0 %v8540
        %v8635 = vpop.f32.mrb[0].mxu0
        %v8636 = vadd.f32 0.0, %v8635
        %v8637 = vpop.f32.mrb[0].mxu0
        %8638 = vmatprep.mubr.f32.mxu0 0.0
        %8639 = vmatmul.mubr.f32.gmra.mrb[0].mxu0 %v8543
        %v8640 = vpop.f32.mrb[0].mxu0
        %v8641 = vadd.f32 0.0, %v8640
        %v8642 = vpop.f32.mrb[0].mxu0
        %8643 = vmatprep.mubr.f32.mxu0 0.0
        %8644 = vmatmul.mubr.f32.gmra.mrb[0].mxu0 %v8546
        %v8645 = vpop.f32.mrb[0].mxu0
        %v8646 = vadd.f32 0.0, %v8645
        %v8647 = vpop.f32.mrb[0].mxu0
        %8648 = vmatprep.mubr.f32.mxu0 0.0
        %8649 = vmatmul.mubr.f32.gmra.mrb[0].mxu0 %v8549
        %v8650 = vpop.f32.mrb[0].mxu0
        %v8651 = vadd.f32 0.0, %v8650
        %v8652 = vpop.f32.mrb[0].mxu0
        %8653 = vmatprep.mubr.f32.mxu0 0.0
        %8654 = vmatmul.mubr.f32.gmra.mrb[0].mxu0 %v8552
        %v8655 = vpop.f32.mrb[0].mxu0
        %v8656 = vadd.f32 0.0, %v8655
        %v8657 = vpop.f32.mrb[0].mxu0
        %8658 = vdwg.mxu0
        %8659 = vrot.lane.b32.xlu0 %v3273, 64
        %v8660 = vpop.permute.xlu0 %8659
        %8661 = vrot.lane.b32.xlu0 %v3275, 64
        %v8662 = vpop.permute.xlu0 %8661
        %8663 = vrot.lane.b32.xlu0 %v3277, 64
        %v8664 = vpop.permute.xlu0 %8663
        %8665 = vrot.lane.b32.xlu0 %v3279, 64
        %v8666 = vpop.permute.xlu0 %8665
        %8667 = vrot.lane.b32.xlu0 %v3281, 64
        %v8668 = vpop.permute.xlu0 %8667
        %8669 = vrot.lane.b32.xlu0 %v3283, 64
        %v8670 = vpop.permute.xlu0 %8669
        %8671 = vrot.lane.b32.xlu0 %v3285, 64
        %v8672 = vpop.permute.xlu0 %8671
        %8673 = vrot.lane.b32.xlu0 %v3287, 64
        %v8674 = vpop.permute.xlu0 %8673
        %v8684 = vsel %vm364, %v6650, 0
        %v8687 = vsel %vm364, %v6652, 0
        %v8690 = vsel %vm364, %v6654, 0
        %v8693 = vsel %vm364, %v6656, 0
        %v8696 = vsel %vm364, %v6658, 0
        %v8699 = vsel %vm364, %v6660, 0
        %v8702 = vsel %vm364, %v6662, 0
        %v8705 = vsel %vm364, %v6664, 0
        %8707 = vmatprep.subr.mxu0 0.0
        %8708 = vmatpush1.msra.mxu0 %v8660
        %8709 = vmatprep.subr.mxu0 0.0
        %8710 = vmatpush1.msra.mxu0 %v8662
        %8711 = vmatprep.subr.mxu0 0.0
        %8712 = vmatpush1.msra.mxu0 %v8664
        %8713 = vmatprep.subr.mxu0 0.0
        %8714 = vmatpush1.msra.mxu0 %v8666
        %8715 = vmatprep.subr.mxu0 0.0
        %8716 = vmatpush1.msra.mxu0 %v8668
        %8717 = vmatprep.subr.mxu0 0.0
        %8718 = vmatpush1.msra.mxu0 %v8670
        %8719 = vmatprep.subr.mxu0 0.0
        %8720 = vmatpush1.msra.mxu0 %v8672
        %8721 = vmatprep.subr.mxu0 0.0
        %8722 = vmatpush1.msra.mxu0 %v8674
        %8723 = vmatprep.subr.mxu0 0.0
        %8724 = vmatpush1.msra.mxu0 0.0
        %8725 = vmatprep.subr.mxu0 0.0
        %8726 = vmatpush1.msra.mxu0 0.0
        %8727 = vmatprep.subr.mxu0 0.0
        %8728 = vmatpush1.msra.mxu0 0.0
        %8729 = vmatprep.subr.mxu0 0.0
        %8730 = vmatpush1.msra.mxu0 0.0
        %8731 = vmatprep.subr.mxu0 0.0
        %8732 = vmatpush1.msra.mxu0 0.0
        %8733 = vmatprep.subr.mxu0 0.0
        %8734 = vmatpush1.msra.mxu0 0.0
        %8735 = vmatprep.subr.mxu0 0.0
        %8736 = vmatpush1.msra.mxu0 0.0
        %8737 = vmatprep.subr.mxu0 0.0
        %8738 = vmatpush1.msra.mxu0 0.0
        %8739 = vmatprep.subr.mxu0 0.0
        %8740 = vmatpush1.msra.mxu0 0.0
        %8741 = vmatprep.subr.mxu0 0.0
        %8742 = vmatpush1.msra.mxu0 0.0
        %8743 = vmatprep.subr.mxu0 0.0
        %8744 = vmatpush1.msra.mxu0 0.0
        %8745 = vmatprep.subr.mxu0 0.0
        %8746 = vmatpush1.msra.mxu0 0.0
        %8747 = vmatprep.subr.mxu0 0.0
        %8748 = vmatpush1.msra.mxu0 0.0
        %8749 = vmatprep.subr.mxu0 0.0
        %8750 = vmatpush1.msra.mxu0 0.0
        %8751 = vmatprep.subr.mxu0 0.0
        %8752 = vmatpush1.msra.mxu0 0.0
        %8753 = vmatprep.subr.mxu0 0.0
        %8754 = vmatpush1.msra.mxu0 0.0
        %8755 = vmatprep.subr.mxu0 0.0
        %8756 = vmatpush1.msra.mxu0 0.0
        %8757 = vmatprep.subr.mxu0 0.0
        %8758 = vmatpush1.msra.mxu0 0.0
        %8759 = vmatprep.subr.mxu0 0.0
        %8760 = vmatpush1.msra.mxu0 0.0
        %8761 = vmatprep.subr.mxu0 0.0
        %8762 = vmatpush1.msra.mxu0 0.0
        %8763 = vmatprep.subr.mxu0 0.0
        %8764 = vmatpush1.msra.mxu0 0.0
        %8765 = vmatprep.subr.mxu0 0.0
        %8766 = vmatpush1.msra.mxu0 0.0
        %8767 = vmatprep.subr.mxu0 0.0
        %8768 = vmatpush1.msra.mxu0 0.0
        %8769 = vmatprep.subr.mxu0 0.0
        %8770 = vmatpush1.msra.mxu0 0.0
        %8771 = vmatprep.mubr.f32.mxu0 0.0
        %8772 = vmatmul.mubr.f32.gmra.mrb[0].mxu0 %v8684
        %v8773 = vpop.f32.mrb[0].mxu0
        %v8774 = vadd.f32 0.0, %v8773
        %v8775 = vpop.f32.mrb[0].mxu0
        %8776 = vmatprep.mubr.f32.mxu0 0.0
        %8777 = vmatmul.mubr.f32.gmra.mrb[0].mxu0 %v8687
        %v8778 = vpop.f32.mrb[0].mxu0
        %v8779 = vadd.f32 0.0, %v8778
        %v8780 = vpop.f32.mrb[0].mxu0
        %8781 = vmatprep.mubr.f32.mxu0 0.0
        %8782 = vmatmul.mubr.f32.gmra.mrb[0].mxu0 %v8690
        %v8783 = vpop.f32.mrb[0].mxu0
        %v8784 = vadd.f32 0.0, %v8783
        %v8785 = vpop.f32.mrb[0].mxu0
        %8786 = vmatprep.mubr.f32.mxu0 0.0
        %8787 = vmatmul.mubr.f32.gmra.mrb[0].mxu0 %v8693
        %v8788 = vpop.f32.mrb[0].mxu0
        %v8789 = vadd.f32 0.0, %v8788
        %v8790 = vpop.f32.mrb[0].mxu0
        %8791 = vmatprep.mubr.f32.mxu0 0.0
        %8792 = vmatmul.mubr.f32.gmra.mrb[0].mxu0 %v8696
        %v8793 = vpop.f32.mrb[0].mxu0
        %v8794 = vadd.f32 0.0, %v8793
        %v8795 = vpop.f32.mrb[0].mxu0
        %8796 = vmatprep.mubr.f32.mxu0 0.0
        %8797 = vmatmul.mubr.f32.gmra.mrb[0].mxu0 %v8699
        %v8798 = vpop.f32.mrb[0].mxu0
        %v8799 = vadd.f32 0.0, %v8798
        %v8800 = vpop.f32.mrb[0].mxu0
        %8801 = vmatprep.mubr.f32.mxu0 0.0
        %8802 = vmatmul.mubr.f32.gmra.mrb[0].mxu0 %v8702
        %v8803 = vpop.f32.mrb[0].mxu0
        %v8804 = vadd.f32 0.0, %v8803
        %v8805 = vpop.f32.mrb[0].mxu0
        %8806 = vmatprep.mubr.f32.mxu0 0.0
        %8807 = vmatmul.mubr.f32.gmra.mrb[0].mxu0 %v8705
        %v8808 = vpop.f32.mrb[0].mxu0
        %v8809 = vadd.f32 0.0, %v8808
        %v8810 = vpop.f32.mrb[0].mxu0
        %8811 = vdwg.mxu0
        %8812 = vrot.lane.b32.xlu0 %v3289, 64
        %v8813 = vpop.permute.xlu0 %8812
        %8814 = vrot.lane.b32.xlu0 %v3291, 64
        %v8815 = vpop.permute.xlu0 %8814
        %8816 = vrot.lane.b32.xlu0 %v3293, 64
        %v8817 = vpop.permute.xlu0 %8816
        %8818 = vrot.lane.b32.xlu0 %v3295, 64
        %v8819 = vpop.permute.xlu0 %8818
        %8820 = vrot.lane.b32.xlu0 %v3297, 64
        %v8821 = vpop.permute.xlu0 %8820
        %8822 = vrot.lane.b32.xlu0 %v3299, 64
        %v8823 = vpop.permute.xlu0 %8822
        %8824 = vrot.lane.b32.xlu0 %v3301, 64
        %v8825 = vpop.permute.xlu0 %8824
        %8826 = vrot.lane.b32.xlu0 %v3303, 64
        %v8827 = vpop.permute.xlu0 %8826
        %v8837 = vsel %vm364, %v6666, 0
        %v8840 = vsel %vm364, %v6668, 0
        %v8843 = vsel %vm364, %v6670, 0
        %v8846 = vsel %vm364, %v6672, 0
        %v8849 = vsel %vm364, %v6674, 0
        %v8852 = vsel %vm364, %v6676, 0
        %v8855 = vsel %vm364, %v6678, 0
        %v8858 = vsel %vm364, %v6680, 0
        %8860 = vmatprep.subr.mxu0 0.0
        %8861 = vmatpush1.msra.mxu0 %v8813
        %8862 = vmatprep.subr.mxu0 0.0
        %8863 = vmatpush1.msra.mxu0 %v8815
        %8864 = vmatprep.subr.mxu0 0.0
        %8865 = vmatpush1.msra.mxu0 %v8817
        %8866 = vmatprep.subr.mxu0 0.0
        %8867 = vmatpush1.msra.mxu0 %v8819
        %8868 = vmatprep.subr.mxu0 0.0
        %8869 = vmatpush1.msra.mxu0 %v8821
        %8870 = vmatprep.subr.mxu0 0.0
        %8871 = vmatpush1.msra.mxu0 %v8823
        %8872 = vmatprep.subr.mxu0 0.0
        %8873 = vmatpush1.msra.mxu0 %v8825
        %8874 = vmatprep.subr.mxu0 0.0
        %8875 = vmatpush1.msra.mxu0 %v8827
        %8876 = vmatprep.subr.mxu0 0.0
        %8877 = vmatpush1.msra.mxu0 0.0
        %8878 = vmatprep.subr.mxu0 0.0
        %8879 = vmatpush1.msra.mxu0 0.0
        %8880 = vmatprep.subr.mxu0 0.0
        %8881 = vmatpush1.msra.mxu0 0.0
        %8882 = vmatprep.subr.mxu0 0.0
        %8883 = vmatpush1.msra.mxu0 0.0
        %8884 = vmatprep.subr.mxu0 0.0
        %8885 = vmatpush1.msra.mxu0 0.0
        %8886 = vmatprep.subr.mxu0 0.0
        %8887 = vmatpush1.msra.mxu0 0.0
        %8888 = vmatprep.subr.mxu0 0.0
        %8889 = vmatpush1.msra.mxu0 0.0
        %8890 = vmatprep.subr.mxu0 0.0
        %8891 = vmatpush1.msra.mxu0 0.0
        %8892 = vmatprep.subr.mxu0 0.0
        %8893 = vmatpush1.msra.mxu0 0.0
        %8894 = vmatprep.subr.mxu0 0.0
        %8895 = vmatpush1.msra.mxu0 0.0
        %8896 = vmatprep.subr.mxu0 0.0
        %8897 = vmatpush1.msra.mxu0 0.0
        %8898 = vmatprep.subr.mxu0 0.0
        %8899 = vmatpush1.msra.mxu0 0.0
        %8900 = vmatprep.subr.mxu0 0.0
        %8901 = vmatpush1.msra.mxu0 0.0
        %8902 = vmatprep.subr.mxu0 0.0
        %8903 = vmatpush1.msra.mxu0 0.0
        %8904 = vmatprep.subr.mxu0 0.0
        %8905 = vmatpush1.msra.mxu0 0.0
        %8906 = vmatprep.subr.mxu0 0.0
        %8907 = vmatpush1.msra.mxu0 0.0
        %8908 = vmatprep.subr.mxu0 0.0
        %8909 = vmatpush1.msra.mxu0 0.0
        %8910 = vmatprep.subr.mxu0 0.0
        %8911 = vmatpush1.msra.mxu0 0.0
        %8912 = vmatprep.subr.mxu0 0.0
        %8913 = vmatpush1.msra.mxu0 0.0
        %8914 = vmatprep.subr.mxu0 0.0
        %8915 = vmatpush1.msra.mxu0 0.0
        %8916 = vmatprep.subr.mxu0 0.0
        %8917 = vmatpush1.msra.mxu0 0.0
        %8918 = vmatprep.subr.mxu0 0.0
        %8919 = vmatpush1.msra.mxu0 0.0
        %8920 = vmatprep.subr.mxu0 0.0
        %8921 = vmatpush1.msra.mxu0 0.0
        %8922 = vmatprep.subr.mxu0 0.0
        %8923 = vmatpush1.msra.mxu0 0.0
        %8924 = vmatprep.mubr.f32.mxu0 0.0
        %8925 = vmatmul.mubr.f32.gmra.mrb[0].mxu0 %v8837
        %v8926 = vpop.f32.mrb[0].mxu0
        %v8927 = vadd.f32 0.0, %v8926
        %v8928 = vpop.f32.mrb[0].mxu0
        %8929 = vmatprep.mubr.f32.mxu0 0.0
        %8930 = vmatmul.mubr.f32.gmra.mrb[0].mxu0 %v8840
        %v8931 = vpop.f32.mrb[0].mxu0
        %v8932 = vadd.f32 0.0, %v8931
        %v8933 = vpop.f32.mrb[0].mxu0
        %8934 = vmatprep.mubr.f32.mxu0 0.0
        %8935 = vmatmul.mubr.f32.gmra.mrb[0].mxu0 %v8843
        %v8936 = vpop.f32.mrb[0].mxu0
        %v8937 = vadd.f32 0.0, %v8936
        %v8938 = vpop.f32.mrb[0].mxu0
        %8939 = vmatprep.mubr.f32.mxu0 0.0
        %8940 = vmatmul.mubr.f32.gmra.mrb[0].mxu0 %v8846
        %v8941 = vpop.f32.mrb[0].mxu0
        %v8942 = vadd.f32 0.0, %v8941
        %v8943 = vpop.f32.mrb[0].mxu0
        %8944 = vmatprep.mubr.f32.mxu0 0.0
        %8945 = vmatmul.mubr.f32.gmra.mrb[0].mxu0 %v8849
        %v8946 = vpop.f32.mrb[0].mxu0
        %v8947 = vadd.f32 0.0, %v8946
        %v8948 = vpop.f32.mrb[0].mxu0
        %8949 = vmatprep.mubr.f32.mxu0 0.0
        %8950 = vmatmul.mubr.f32.gmra.mrb[0].mxu0 %v8852
        %v8951 = vpop.f32.mrb[0].mxu0
        %v8952 = vadd.f32 0.0, %v8951
        %v8953 = vpop.f32.mrb[0].mxu0
        %8954 = vmatprep.mubr.f32.mxu0 0.0
        %8955 = vmatmul.mubr.f32.gmra.mrb[0].mxu0 %v8855
        %v8956 = vpop.f32.mrb[0].mxu0
        %v8957 = vadd.f32 0.0, %v8956
        %v8958 = vpop.f32.mrb[0].mxu0
        %8959 = vmatprep.mubr.f32.mxu0 0.0
        %8960 = vmatmul.mubr.f32.gmra.mrb[0].mxu0 %v8858
        %v8961 = vpop.f32.mrb[0].mxu0
        %v8962 = vadd.f32 0.0, %v8961
        %v8963 = vpop.f32.mrb[0].mxu0
        %8964 = vdwg.mxu0
        %8965 = vrot.lane.b32.xlu0 %v3305, 64
        %v8966 = vpop.permute.xlu0 %8965
        %8967 = vrot.lane.b32.xlu0 %v3307, 64
        %v8968 = vpop.permute.xlu0 %8967
        %8969 = vrot.lane.b32.xlu0 %v3309, 64
        %v8970 = vpop.permute.xlu0 %8969
        %8971 = vrot.lane.b32.xlu0 %v3311, 64
        %v8972 = vpop.permute.xlu0 %8971
        %8973 = vrot.lane.b32.xlu0 %v3313, 64
        %v8974 = vpop.permute.xlu0 %8973
        %8975 = vrot.lane.b32.xlu0 %v3315, 64
        %v8976 = vpop.permute.xlu0 %8975
        %8977 = vrot.lane.b32.xlu0 %v3317, 64
        %v8978 = vpop.permute.xlu0 %8977
        %8979 = vrot.lane.b32.xlu0 %v3319, 64
        %v8980 = vpop.permute.xlu0 %8979
        %v8990 = vsel %vm364, %v6682, 0
        %v8993 = vsel %vm364, %v6684, 0
        %v8996 = vsel %vm364, %v6686, 0
        %v8999 = vsel %vm364, %v6688, 0
        %v9002 = vsel %vm364, %v6690, 0
        %v9005 = vsel %vm364, %v6692, 0
        %v9008 = vsel %vm364, %v6694, 0
        %v9011 = vsel %vm364, %v6696, 0
        %9013 = vmatprep.subr.mxu0 0.0
        %9014 = vmatpush1.msra.mxu0 %v8966
        %9015 = vmatprep.subr.mxu0 0.0
        %9016 = vmatpush1.msra.mxu0 %v8968
        %9017 = vmatprep.subr.mxu0 0.0
        %9018 = vmatpush1.msra.mxu0 %v8970
        %9019 = vmatprep.subr.mxu0 0.0
        %9020 = vmatpush1.msra.mxu0 %v8972
        %9021 = vmatprep.subr.mxu0 0.0
        %9022 = vmatpush1.msra.mxu0 %v8974
        %9023 = vmatprep.subr.mxu0 0.0
        %9024 = vmatpush1.msra.mxu0 %v8976
        %9025 = vmatprep.subr.mxu0 0.0
        %9026 = vmatpush1.msra.mxu0 %v8978
        %9027 = vmatprep.subr.mxu0 0.0
        %9028 = vmatpush1.msra.mxu0 %v8980
        %9029 = vmatprep.subr.mxu0 0.0
        %9030 = vmatpush1.msra.mxu0 0.0
        %9031 = vmatprep.subr.mxu0 0.0
        %9032 = vmatpush1.msra.mxu0 0.0
        %9033 = vmatprep.subr.mxu0 0.0
        %9034 = vmatpush1.msra.mxu0 0.0
        %9035 = vmatprep.subr.mxu0 0.0
        %9036 = vmatpush1.msra.mxu0 0.0
        %9037 = vmatprep.subr.mxu0 0.0
        %9038 = vmatpush1.msra.mxu0 0.0
        %9039 = vmatprep.subr.mxu0 0.0
        %9040 = vmatpush1.msra.mxu0 0.0
        %9041 = vmatprep.subr.mxu0 0.0
        %9042 = vmatpush1.msra.mxu0 0.0
        %9043 = vmatprep.subr.mxu0 0.0
        %9044 = vmatpush1.msra.mxu0 0.0
        %9045 = vmatprep.subr.mxu0 0.0
        %9046 = vmatpush1.msra.mxu0 0.0
        %9047 = vmatprep.subr.mxu0 0.0
        %9048 = vmatpush1.msra.mxu0 0.0
        %9049 = vmatprep.subr.mxu0 0.0
        %9050 = vmatpush1.msra.mxu0 0.0
        %9051 = vmatprep.subr.mxu0 0.0
        %9052 = vmatpush1.msra.mxu0 0.0
        %9053 = vmatprep.subr.mxu0 0.0
        %9054 = vmatpush1.msra.mxu0 0.0
        %9055 = vmatprep.subr.mxu0 0.0
        %9056 = vmatpush1.msra.mxu0 0.0
        %9057 = vmatprep.subr.mxu0 0.0
        %9058 = vmatpush1.msra.mxu0 0.0
        %9059 = vmatprep.subr.mxu0 0.0
        %9060 = vmatpush1.msra.mxu0 0.0
        %9061 = vmatprep.subr.mxu0 0.0
        %9062 = vmatpush1.msra.mxu0 0.0
        %9063 = vmatprep.subr.mxu0 0.0
        %9064 = vmatpush1.msra.mxu0 0.0
        %9065 = vmatprep.subr.mxu0 0.0
        %9066 = vmatpush1.msra.mxu0 0.0
        %9067 = vmatprep.subr.mxu0 0.0
        %9068 = vmatpush1.msra.mxu0 0.0
        %9069 = vmatprep.subr.mxu0 0.0
        %9070 = vmatpush1.msra.mxu0 0.0
        %9071 = vmatprep.subr.mxu0 0.0
        %9072 = vmatpush1.msra.mxu0 0.0
        %9073 = vmatprep.subr.mxu0 0.0
        %9074 = vmatpush1.msra.mxu0 0.0
        %9075 = vmatprep.subr.mxu0 0.0
        %9076 = vmatpush1.msra.mxu0 0.0
        %9077 = vmatprep.mubr.f32.mxu0 0.0
        %9078 = vmatmul.mubr.f32.gmra.mrb[0].mxu0 %v8990
        %v9079 = vpop.f32.mrb[0].mxu0
        %v9080 = vadd.f32 0.0, %v9079
        %v9081 = vpop.f32.mrb[0].mxu0
        %9082 = vmatprep.mubr.f32.mxu0 0.0
        %9083 = vmatmul.mubr.f32.gmra.mrb[0].mxu0 %v8993
        %v9084 = vpop.f32.mrb[0].mxu0
        %v9085 = vadd.f32 0.0, %v9084
        %v9086 = vpop.f32.mrb[0].mxu0
        %9087 = vmatprep.mubr.f32.mxu0 0.0
        %9088 = vmatmul.mubr.f32.gmra.mrb[0].mxu0 %v8996
        %v9089 = vpop.f32.mrb[0].mxu0
        %v9090 = vadd.f32 0.0, %v9089
        %v9091 = vpop.f32.mrb[0].mxu0
        %9092 = vmatprep.mubr.f32.mxu0 0.0
        %9093 = vmatmul.mubr.f32.gmra.mrb[0].mxu0 %v8999
        %v9094 = vpop.f32.mrb[0].mxu0
        %v9095 = vadd.f32 0.0, %v9094
        %v9096 = vpop.f32.mrb[0].mxu0
        %9097 = vmatprep.mubr.f32.mxu0 0.0
        %9098 = vmatmul.mubr.f32.gmra.mrb[0].mxu0 %v9002
        %v9099 = vpop.f32.mrb[0].mxu0
        %v9100 = vadd.f32 0.0, %v9099
        %v9101 = vpop.f32.mrb[0].mxu0
        %9102 = vmatprep.mubr.f32.mxu0 0.0
        %9103 = vmatmul.mubr.f32.gmra.mrb[0].mxu0 %v9005
        %v9104 = vpop.f32.mrb[0].mxu0
        %v9105 = vadd.f32 0.0, %v9104
        %v9106 = vpop.f32.mrb[0].mxu0
        %9107 = vmatprep.mubr.f32.mxu0 0.0
        %9108 = vmatmul.mubr.f32.gmra.mrb[0].mxu0 %v9008
        %v9109 = vpop.f32.mrb[0].mxu0
        %v9110 = vadd.f32 0.0, %v9109
        %v9111 = vpop.f32.mrb[0].mxu0
        %9112 = vmatprep.mubr.f32.mxu0 0.0
        %9113 = vmatmul.mubr.f32.gmra.mrb[0].mxu0 %v9011
        %v9114 = vpop.f32.mrb[0].mxu0
        %v9115 = vadd.f32 0.0, %v9114
        %v9116 = vpop.f32.mrb[0].mxu0
        %9117 = vdwg.mxu0
        %9118 = vrot.lane.b32.xlu0 %v3321, 64
        %v9119 = vpop.permute.xlu0 %9118
        %9120 = vrot.lane.b32.xlu0 %v3323, 64
        %v9121 = vpop.permute.xlu0 %9120
        %9122 = vrot.lane.b32.xlu0 %v3325, 64
        %v9123 = vpop.permute.xlu0 %9122
        %9124 = vrot.lane.b32.xlu0 %v3327, 64
        %v9125 = vpop.permute.xlu0 %9124
        %9126 = vrot.lane.b32.xlu0 %v3329, 64
        %v9127 = vpop.permute.xlu0 %9126
        %9128 = vrot.lane.b32.xlu0 %v3331, 64
        %v9129 = vpop.permute.xlu0 %9128
        %9130 = vrot.lane.b32.xlu0 %v3333, 64
        %v9131 = vpop.permute.xlu0 %9130
        %9132 = vrot.lane.b32.xlu0 %v3335, 64
        %v9133 = vpop.permute.xlu0 %9132
        %v9143 = vsel %vm364, %v6698, 0
        %v9146 = vsel %vm364, %v6700, 0
        %v9149 = vsel %vm364, %v6702, 0
        %v9152 = vsel %vm364, %v6704, 0
        %v9155 = vsel %vm364, %v6706, 0
        %v9158 = vsel %vm364, %v6708, 0
        %v9161 = vsel %vm364, %v6710, 0
        %v9164 = vsel %vm364, %v6712, 0
        %9166 = vmatprep.subr.mxu0 0.0
        %9167 = vmatpush1.msra.mxu0 %v9119
        %9168 = vmatprep.subr.mxu0 0.0
        %9169 = vmatpush1.msra.mxu0 %v9121
        %9170 = vmatprep.subr.mxu0 0.0
        %9171 = vmatpush1.msra.mxu0 %v9123
        %9172 = vmatprep.subr.mxu0 0.0
        %9173 = vmatpush1.msra.mxu0 %v9125
        %9174 = vmatprep.subr.mxu0 0.0
        %9175 = vmatpush1.msra.mxu0 %v9127
        %9176 = vmatprep.subr.mxu0 0.0
        %9177 = vmatpush1.msra.mxu0 %v9129
        %9178 = vmatprep.subr.mxu0 0.0
        %9179 = vmatpush1.msra.mxu0 %v9131
        %9180 = vmatprep.subr.mxu0 0.0
        %9181 = vmatpush1.msra.mxu0 %v9133
        %9182 = vmatprep.subr.mxu0 0.0
        %9183 = vmatpush1.msra.mxu0 0.0
        %9184 = vmatprep.subr.mxu0 0.0
        %9185 = vmatpush1.msra.mxu0 0.0
        %9186 = vmatprep.subr.mxu0 0.0
        %9187 = vmatpush1.msra.mxu0 0.0
        %9188 = vmatprep.subr.mxu0 0.0
        %9189 = vmatpush1.msra.mxu0 0.0
        %9190 = vmatprep.subr.mxu0 0.0
        %9191 = vmatpush1.msra.mxu0 0.0
        %9192 = vmatprep.subr.mxu0 0.0
        %9193 = vmatpush1.msra.mxu0 0.0
        %9194 = vmatprep.subr.mxu0 0.0
        %9195 = vmatpush1.msra.mxu0 0.0
        %9196 = vmatprep.subr.mxu0 0.0
        %9197 = vmatpush1.msra.mxu0 0.0
        %9198 = vmatprep.subr.mxu0 0.0
        %9199 = vmatpush1.msra.mxu0 0.0
        %9200 = vmatprep.subr.mxu0 0.0
        %9201 = vmatpush1.msra.mxu0 0.0
        %9202 = vmatprep.subr.mxu0 0.0
        %9203 = vmatpush1.msra.mxu0 0.0
        %9204 = vmatprep.subr.mxu0 0.0
        %9205 = vmatpush1.msra.mxu0 0.0
        %9206 = vmatprep.subr.mxu0 0.0
        %9207 = vmatpush1.msra.mxu0 0.0
        %9208 = vmatprep.subr.mxu0 0.0
        %9209 = vmatpush1.msra.mxu0 0.0
        %9210 = vmatprep.subr.mxu0 0.0
        %9211 = vmatpush1.msra.mxu0 0.0
        %9212 = vmatprep.subr.mxu0 0.0
        %9213 = vmatpush1.msra.mxu0 0.0
        %9214 = vmatprep.subr.mxu0 0.0
        %9215 = vmatpush1.msra.mxu0 0.0
        %9216 = vmatprep.subr.mxu0 0.0
        %9217 = vmatpush1.msra.mxu0 0.0
        %9218 = vmatprep.subr.mxu0 0.0
        %9219 = vmatpush1.msra.mxu0 0.0
        %9220 = vmatprep.subr.mxu0 0.0
        %9221 = vmatpush1.msra.mxu0 0.0
        %9222 = vmatprep.subr.mxu0 0.0
        %9223 = vmatpush1.msra.mxu0 0.0
        %9224 = vmatprep.subr.mxu0 0.0
        %9225 = vmatpush1.msra.mxu0 0.0
        %9226 = vmatprep.subr.mxu0 0.0
        %9227 = vmatpush1.msra.mxu0 0.0
        %9228 = vmatprep.subr.mxu0 0.0
        %9229 = vmatpush1.msra.mxu0 0.0
        %9230 = vmatprep.mubr.f32.mxu0 0.0
        %9231 = vmatmul.mubr.f32.gmra.mrb[0].mxu0 %v9143
        %v9232 = vpop.f32.mrb[0].mxu0
        %v9233 = vadd.f32 0.0, %v9232
        %v9234 = vpop.f32.mrb[0].mxu0
        %9235 = vmatprep.mubr.f32.mxu0 0.0
        %9236 = vmatmul.mubr.f32.gmra.mrb[0].mxu0 %v9146
        %v9237 = vpop.f32.mrb[0].mxu0
        %v9238 = vadd.f32 0.0, %v9237
        %v9239 = vpop.f32.mrb[0].mxu0
        %9240 = vmatprep.mubr.f32.mxu0 0.0
        %9241 = vmatmul.mubr.f32.gmra.mrb[0].mxu0 %v9149
        %v9242 = vpop.f32.mrb[0].mxu0
        %v9243 = vadd.f32 0.0, %v9242
        %v9244 = vpop.f32.mrb[0].mxu0
        %9245 = vmatprep.mubr.f32.mxu0 0.0
        %9246 = vmatmul.mubr.f32.gmra.mrb[0].mxu0 %v9152
        %v9247 = vpop.f32.mrb[0].mxu0
        %v9248 = vadd.f32 0.0, %v9247
        %v9249 = vpop.f32.mrb[0].mxu0
        %9250 = vmatprep.mubr.f32.mxu0 0.0
        %9251 = vmatmul.mubr.f32.gmra.mrb[0].mxu0 %v9155
        %v9252 = vpop.f32.mrb[0].mxu0
        %v9253 = vadd.f32 0.0, %v9252
        %v9254 = vpop.f32.mrb[0].mxu0
        %9255 = vmatprep.mubr.f32.mxu0 0.0
        %9256 = vmatmul.mubr.f32.gmra.mrb[0].mxu0 %v9158
        %v9257 = vpop.f32.mrb[0].mxu0
        %v9258 = vadd.f32 0.0, %v9257
        %v9259 = vpop.f32.mrb[0].mxu0
        %9260 = vmatprep.mubr.f32.mxu0 0.0
        %9261 = vmatmul.mubr.f32.gmra.mrb[0].mxu0 %v9161
        %v9262 = vpop.f32.mrb[0].mxu0
        %v9263 = vadd.f32 0.0, %v9262
        %v9264 = vpop.f32.mrb[0].mxu0
        %9265 = vmatprep.mubr.f32.mxu0 0.0
        %9266 = vmatmul.mubr.f32.gmra.mrb[0].mxu0 %v9164
        %v9267 = vpop.f32.mrb[0].mxu0
        %v9268 = vadd.f32 0.0, %v9267
        %v9269 = vpop.f32.mrb[0].mxu0
        %9270 = vdwg.mxu0
        %9271 = vrot.lane.b32.xlu0 %v3337, 64
        %v9272 = vpop.permute.xlu0 %9271
        %9273 = vrot.lane.b32.xlu0 %v3339, 64
        %v9274 = vpop.permute.xlu0 %9273
        %9275 = vrot.lane.b32.xlu0 %v3341, 64
        %v9276 = vpop.permute.xlu0 %9275
        %9277 = vrot.lane.b32.xlu0 %v3343, 64
        %v9278 = vpop.permute.xlu0 %9277
        %9279 = vrot.lane.b32.xlu0 %v3345, 64
        %v9280 = vpop.permute.xlu0 %9279
        %9281 = vrot.lane.b32.xlu0 %v3347, 64
        %v9282 = vpop.permute.xlu0 %9281
        %9283 = vrot.lane.b32.xlu0 %v3349, 64
        %v9284 = vpop.permute.xlu0 %9283
        %9285 = vrot.lane.b32.xlu0 %v3351, 64
        %v9286 = vpop.permute.xlu0 %9285
        %v9296 = vsel %vm364, %v6714, 0
        %v9299 = vsel %vm364, %v6716, 0
        %v9302 = vsel %vm364, %v6718, 0
        %v9305 = vsel %vm364, %v6720, 0
        %v9308 = vsel %vm364, %v6722, 0
        %v9311 = vsel %vm364, %v6724, 0
        %v9314 = vsel %vm364, %v6726, 0
        %v9317 = vsel %vm364, %v6728, 0
        %9319 = vmatprep.subr.mxu0 0.0
        %9320 = vmatpush1.msra.mxu0 %v9272
        %9321 = vmatprep.subr.mxu0 0.0
        %9322 = vmatpush1.msra.mxu0 %v9274
        %9323 = vmatprep.subr.mxu0 0.0
        %9324 = vmatpush1.msra.mxu0 %v9276
        %9325 = vmatprep.subr.mxu0 0.0
        %9326 = vmatpush1.msra.mxu0 %v9278
        %9327 = vmatprep.subr.mxu0 0.0
        %9328 = vmatpush1.msra.mxu0 %v9280
        %9329 = vmatprep.subr.mxu0 0.0
        %9330 = vmatpush1.msra.mxu0 %v9282
        %9331 = vmatprep.subr.mxu0 0.0
        %9332 = vmatpush1.msra.mxu0 %v9284
        %9333 = vmatprep.subr.mxu0 0.0
        %9334 = vmatpush1.msra.mxu0 %v9286
        %9335 = vmatprep.subr.mxu0 0.0
        %9336 = vmatpush1.msra.mxu0 0.0
        %9337 = vmatprep.subr.mxu0 0.0
        %9338 = vmatpush1.msra.mxu0 0.0
        %9339 = vmatprep.subr.mxu0 0.0
        %9340 = vmatpush1.msra.mxu0 0.0
        %9341 = vmatprep.subr.mxu0 0.0
        %9342 = vmatpush1.msra.mxu0 0.0
        %9343 = vmatprep.subr.mxu0 0.0
        %9344 = vmatpush1.msra.mxu0 0.0
        %9345 = vmatprep.subr.mxu0 0.0
        %9346 = vmatpush1.msra.mxu0 0.0
        %9347 = vmatprep.subr.mxu0 0.0
        %9348 = vmatpush1.msra.mxu0 0.0
        %9349 = vmatprep.subr.mxu0 0.0
        %9350 = vmatpush1.msra.mxu0 0.0
        %9351 = vmatprep.subr.mxu0 0.0
        %9352 = vmatpush1.msra.mxu0 0.0
        %9353 = vmatprep.subr.mxu0 0.0
        %9354 = vmatpush1.msra.mxu0 0.0
        %9355 = vmatprep.subr.mxu0 0.0
        %9356 = vmatpush1.msra.mxu0 0.0
        %9357 = vmatprep.subr.mxu0 0.0
        %9358 = vmatpush1.msra.mxu0 0.0
        %9359 = vmatprep.subr.mxu0 0.0
        %9360 = vmatpush1.msra.mxu0 0.0
        %9361 = vmatprep.subr.mxu0 0.0
        %9362 = vmatpush1.msra.mxu0 0.0
        %9363 = vmatprep.subr.mxu0 0.0
        %9364 = vmatpush1.msra.mxu0 0.0
        %9365 = vmatprep.subr.mxu0 0.0
        %9366 = vmatpush1.msra.mxu0 0.0
        %9367 = vmatprep.subr.mxu0 0.0
        %9368 = vmatpush1.msra.mxu0 0.0
        %9369 = vmatprep.subr.mxu0 0.0
        %9370 = vmatpush1.msra.mxu0 0.0
        %9371 = vmatprep.subr.mxu0 0.0
        %9372 = vmatpush1.msra.mxu0 0.0
        %9373 = vmatprep.subr.mxu0 0.0
        %9374 = vmatpush1.msra.mxu0 0.0
        %9375 = vmatprep.subr.mxu0 0.0
        %9376 = vmatpush1.msra.mxu0 0.0
        %9377 = vmatprep.subr.mxu0 0.0
        %9378 = vmatpush1.msra.mxu0 0.0
        %9379 = vmatprep.subr.mxu0 0.0
        %9380 = vmatpush1.msra.mxu0 0.0
        %9381 = vmatprep.subr.mxu0 0.0
        %9382 = vmatpush1.msra.mxu0 0.0
        %9383 = vmatprep.mubr.f32.mxu0 0.0
        %9384 = vmatmul.mubr.f32.gmra.mrb[0].mxu0 %v9296
        %v9385 = vpop.f32.mrb[0].mxu0
        %v9386 = vadd.f32 0.0, %v9385
        %v9387 = vpop.f32.mrb[0].mxu0
        %9388 = vmatprep.mubr.f32.mxu0 0.0
        %9389 = vmatmul.mubr.f32.gmra.mrb[0].mxu0 %v9299
        %v9390 = vpop.f32.mrb[0].mxu0
        %v9391 = vadd.f32 0.0, %v9390
        %v9392 = vpop.f32.mrb[0].mxu0
        %9393 = vmatprep.mubr.f32.mxu0 0.0
        %9394 = vmatmul.mubr.f32.gmra.mrb[0].mxu0 %v9302
        %v9395 = vpop.f32.mrb[0].mxu0
        %v9396 = vadd.f32 0.0, %v9395
        %v9397 = vpop.f32.mrb[0].mxu0
        %9398 = vmatprep.mubr.f32.mxu0 0.0
        %9399 = vmatmul.mubr.f32.gmra.mrb[0].mxu0 %v9305
        %v9400 = vpop.f32.mrb[0].mxu0
        %v9401 = vadd.f32 0.0, %v9400
        %v9402 = vpop.f32.mrb[0].mxu0
        %9403 = vmatprep.mubr.f32.mxu0 0.0
        %9404 = vmatmul.mubr.f32.gmra.mrb[0].mxu0 %v9308
        %v9405 = vpop.f32.mrb[0].mxu0
        %v9406 = vadd.f32 0.0, %v9405
        %v9407 = vpop.f32.mrb[0].mxu0
        %9408 = vmatprep.mubr.f32.mxu0 0.0
        %9409 = vmatmul.mubr.f32.gmra.mrb[0].mxu0 %v9311
        %v9410 = vpop.f32.mrb[0].mxu0
        %v9411 = vadd.f32 0.0, %v9410
        %v9412 = vpop.f32.mrb[0].mxu0
        %9413 = vmatprep.mubr.f32.mxu0 0.0
        %9414 = vmatmul.mubr.f32.gmra.mrb[0].mxu0 %v9314
        %v9415 = vpop.f32.mrb[0].mxu0
        %v9416 = vadd.f32 0.0, %v9415
        %v9417 = vpop.f32.mrb[0].mxu0
        %9418 = vmatprep.mubr.f32.mxu0 0.0
        %9419 = vmatmul.mubr.f32.gmra.mrb[0].mxu0 %v9317
        %v9420 = vpop.f32.mrb[0].mxu0
        %v9421 = vadd.f32 0.0, %v9420
        %v9422 = vpop.f32.mrb[0].mxu0
        %9423 = vdwg.mxu0
        %9424 = vrot.lane.b32.xlu0 %v3353, 64
        %v9425 = vpop.permute.xlu0 %9424
        %9426 = vrot.lane.b32.xlu0 %v3355, 64
        %v9427 = vpop.permute.xlu0 %9426
        %9428 = vrot.lane.b32.xlu0 %v3357, 64
        %v9429 = vpop.permute.xlu0 %9428
        %9430 = vrot.lane.b32.xlu0 %v3359, 64
        %v9431 = vpop.permute.xlu0 %9430
        %9432 = vrot.lane.b32.xlu0 %v3361, 64
        %v9433 = vpop.permute.xlu0 %9432
        %9434 = vrot.lane.b32.xlu0 %v3363, 64
        %v9435 = vpop.permute.xlu0 %9434
        %9436 = vrot.lane.b32.xlu0 %v3365, 64
        %v9437 = vpop.permute.xlu0 %9436
        %9438 = vrot.lane.b32.xlu0 %v3367, 64
        %v9439 = vpop.permute.xlu0 %9438
        %v9449 = vsel %vm364, %v6730, 0
        %v9452 = vsel %vm364, %v6732, 0
        %v9455 = vsel %vm364, %v6734, 0
        %v9458 = vsel %vm364, %v6736, 0
        %v9461 = vsel %vm364, %v6738, 0
        %v9464 = vsel %vm364, %v6740, 0
        %v9467 = vsel %vm364, %v6742, 0
        %v9470 = vsel %vm364, %v6744, 0
        %9472 = vmatprep.subr.mxu0 0.0
        %9473 = vmatpush1.msra.mxu0 %v9425
        %9474 = vmatprep.subr.mxu0 0.0
        %9475 = vmatpush1.msra.mxu0 %v9427
        %9476 = vmatprep.subr.mxu0 0.0
        %9477 = vmatpush1.msra.mxu0 %v9429
        %9478 = vmatprep.subr.mxu0 0.0
        %9479 = vmatpush1.msra.mxu0 %v9431
        %9480 = vmatprep.subr.mxu0 0.0
        %9481 = vmatpush1.msra.mxu0 %v9433
        %9482 = vmatprep.subr.mxu0 0.0
        %9483 = vmatpush1.msra.mxu0 %v9435
        %9484 = vmatprep.subr.mxu0 0.0
        %9485 = vmatpush1.msra.mxu0 %v9437
        %9486 = vmatprep.subr.mxu0 0.0
        %9487 = vmatpush1.msra.mxu0 %v9439
        %9488 = vmatprep.subr.mxu0 0.0
        %9489 = vmatpush1.msra.mxu0 0.0
        %9490 = vmatprep.subr.mxu0 0.0
        %9491 = vmatpush1.msra.mxu0 0.0
        %9492 = vmatprep.subr.mxu0 0.0
        %9493 = vmatpush1.msra.mxu0 0.0
        %9494 = vmatprep.subr.mxu0 0.0
        %9495 = vmatpush1.msra.mxu0 0.0
        %9496 = vmatprep.subr.mxu0 0.0
        %9497 = vmatpush1.msra.mxu0 0.0
        %9498 = vmatprep.subr.mxu0 0.0
        %9499 = vmatpush1.msra.mxu0 0.0
        %9500 = vmatprep.subr.mxu0 0.0
        %9501 = vmatpush1.msra.mxu0 0.0
        %9502 = vmatprep.subr.mxu0 0.0
        %9503 = vmatpush1.msra.mxu0 0.0
        %9504 = vmatprep.subr.mxu0 0.0
        %9505 = vmatpush1.msra.mxu0 0.0
        %9506 = vmatprep.subr.mxu0 0.0
        %9507 = vmatpush1.msra.mxu0 0.0
        %9508 = vmatprep.subr.mxu0 0.0
        %9509 = vmatpush1.msra.mxu0 0.0
        %9510 = vmatprep.subr.mxu0 0.0
        %9511 = vmatpush1.msra.mxu0 0.0
        %9512 = vmatprep.subr.mxu0 0.0
        %9513 = vmatpush1.msra.mxu0 0.0
        %9514 = vmatprep.subr.mxu0 0.0
        %9515 = vmatpush1.msra.mxu0 0.0
        %9516 = vmatprep.subr.mxu0 0.0
        %9517 = vmatpush1.msra.mxu0 0.0
        %9518 = vmatprep.subr.mxu0 0.0
        %9519 = vmatpush1.msra.mxu0 0.0
        %9520 = vmatprep.subr.mxu0 0.0
        %9521 = vmatpush1.msra.mxu0 0.0
        %9522 = vmatprep.subr.mxu0 0.0
        %9523 = vmatpush1.msra.mxu0 0.0
        %9524 = vmatprep.subr.mxu0 0.0
        %9525 = vmatpush1.msra.mxu0 0.0
        %9526 = vmatprep.subr.mxu0 0.0
        %9527 = vmatpush1.msra.mxu0 0.0
        %9528 = vmatprep.subr.mxu0 0.0
        %9529 = vmatpush1.msra.mxu0 0.0
        %9530 = vmatprep.subr.mxu0 0.0
        %9531 = vmatpush1.msra.mxu0 0.0
        %9532 = vmatprep.subr.mxu0 0.0
        %9533 = vmatpush1.msra.mxu0 0.0
        %9534 = vmatprep.subr.mxu0 0.0
        %9535 = vmatpush1.msra.mxu0 0.0
        %9536 = vmatprep.mubr.f32.mxu0 0.0
        %9537 = vmatmul.mubr.f32.gmra.mrb[0].mxu0 %v9449
        %v9538 = vpop.f32.mrb[0].mxu0
        %v9539 = vadd.f32 0.0, %v9538
        %v9540 = vpop.f32.mrb[0].mxu0
        %9541 = vmatprep.mubr.f32.mxu0 0.0
        %9542 = vmatmul.mubr.f32.gmra.mrb[0].mxu0 %v9452
        %v9543 = vpop.f32.mrb[0].mxu0
        %v9544 = vadd.f32 0.0, %v9543
        %v9545 = vpop.f32.mrb[0].mxu0
        %9546 = vmatprep.mubr.f32.mxu0 0.0
        %9547 = vmatmul.mubr.f32.gmra.mrb[0].mxu0 %v9455
        %v9548 = vpop.f32.mrb[0].mxu0
        %v9549 = vadd.f32 0.0, %v9548
        %v9550 = vpop.f32.mrb[0].mxu0
        %9551 = vmatprep.mubr.f32.mxu0 0.0
        %9552 = vmatmul.mubr.f32.gmra.mrb[0].mxu0 %v9458
        %v9553 = vpop.f32.mrb[0].mxu0
        %v9554 = vadd.f32 0.0, %v9553
        %v9555 = vpop.f32.mrb[0].mxu0
        %9556 = vmatprep.mubr.f32.mxu0 0.0
        %9557 = vmatmul.mubr.f32.gmra.mrb[0].mxu0 %v9461
        %v9558 = vpop.f32.mrb[0].mxu0
        %v9559 = vadd.f32 0.0, %v9558
        %v9560 = vpop.f32.mrb[0].mxu0
        %9561 = vmatprep.mubr.f32.mxu0 0.0
        %9562 = vmatmul.mubr.f32.gmra.mrb[0].mxu0 %v9464
        %v9563 = vpop.f32.mrb[0].mxu0
        %v9564 = vadd.f32 0.0, %v9563
        %v9565 = vpop.f32.mrb[0].mxu0
        %9566 = vmatprep.mubr.f32.mxu0 0.0
        %9567 = vmatmul.mubr.f32.gmra.mrb[0].mxu0 %v9467
        %v9568 = vpop.f32.mrb[0].mxu0
        %v9569 = vadd.f32 0.0, %v9568
        %v9570 = vpop.f32.mrb[0].mxu0
        %9571 = vmatprep.mubr.f32.mxu0 0.0
        %9572 = vmatmul.mubr.f32.gmra.mrb[0].mxu0 %v9470
        %v9573 = vpop.f32.mrb[0].mxu0
        %v9574 = vadd.f32 0.0, %v9573
        %v9575 = vpop.f32.mrb[0].mxu0
        %9576 = vdwg.mxu0
        %v9577 = vrcp.pop %v6747
        %v9578 = vmul.f32 %v7244, %v9577
        %v9579 = vrcp.pop %v6750
        %v9580 = vmul.f32 %v7249, %v9579
        %v9581 = vrcp.pop %v6753
        %v9582 = vmul.f32 %v7254, %v9581
        %v9583 = vrcp.pop %v6756
        %v9584 = vmul.f32 %v7259, %v9583
        %v9585 = vrcp.pop %v6759
        %v9586 = vmul.f32 %v7264, %v9585
        %v9587 = vrcp.pop %v6762
        %v9588 = vmul.f32 %v7269, %v9587
        %v9589 = vrcp.pop %v6765
        %v9590 = vmul.f32 %v7274, %v9589
        %v9591 = vrcp.pop %v6768
        %v9592 = vmul.f32 %v7279, %v9591
        %v9593 = vrcp.pop %v6771
        %v9594 = vmul.f32 %v7397, %v9593
        %v9595 = vrcp.pop %v6774
        %v9596 = vmul.f32 %v7402, %v9595
        %v9597 = vrcp.pop %v6777
        %v9598 = vmul.f32 %v7407, %v9597
        %v9599 = vrcp.pop %v6780
        %v9600 = vmul.f32 %v7412, %v9599
        %v9601 = vrcp.pop %v6783
        %v9602 = vmul.f32 %v7417, %v9601
        %v9603 = vrcp.pop %v6786
        %v9604 = vmul.f32 %v7422, %v9603
        %v9605 = vrcp.pop %v6789
        %v9606 = vmul.f32 %v7427, %v9605
        %v9607 = vrcp.pop %v6792
        %v9608 = vmul.f32 %v7432, %v9607
        %v9609 = vrcp.pop %v6795
        %v9610 = vmul.f32 %v7550, %v9609
        %v9611 = vrcp.pop %v6798
        %v9612 = vmul.f32 %v7555, %v9611
        %v9613 = vrcp.pop %v6801
        %v9614 = vmul.f32 %v7560, %v9613
        %v9615 = vrcp.pop %v6804
        %v9616 = vmul.f32 %v7565, %v9615
        %v9617 = vrcp.pop %v6807
        %v9618 = vmul.f32 %v7570, %v9617
        %v9619 = vrcp.pop %v6810
        %v9620 = vmul.f32 %v7575, %v9619
        %v9621 = vrcp.pop %v6813
        %v9622 = vmul.f32 %v7580, %v9621
        %v9623 = vrcp.pop %v6816
        %v9624 = vmul.f32 %v7585, %v9623
        %v9625 = vrcp.pop %v6819
        %v9626 = vmul.f32 %v7703, %v9625
        %v9627 = vrcp.pop %v6822
        %v9628 = vmul.f32 %v7708, %v9627
        %v9629 = vrcp.pop %v6825
        %v9630 = vmul.f32 %v7713, %v9629
        %v9631 = vrcp.pop %v6828
        %v9632 = vmul.f32 %v7718, %v9631
        %v9633 = vrcp.pop %v6831
        %v9634 = vmul.f32 %v7723, %v9633
        %v9635 = vrcp.pop %v6834
        %v9636 = vmul.f32 %v7728, %v9635
        %v9637 = vrcp.pop %v6837
        %v9638 = vmul.f32 %v7733, %v9637
        %v9639 = vrcp.pop %v6840
        %v9640 = vmul.f32 %v7738, %v9639
        %v9641 = vrcp.pop %v6843
        %v9642 = vmul.f32 %v7856, %v9641
        %v9643 = vrcp.pop %v6846
        %v9644 = vmul.f32 %v7861, %v9643
        %v9645 = vrcp.pop %v6849
        %v9646 = vmul.f32 %v7866, %v9645
        %v9647 = vrcp.pop %v6852
        %v9648 = vmul.f32 %v7871, %v9647
        %v9649 = vrcp.pop %v6855
        %v9650 = vmul.f32 %v7876, %v9649
        %v9651 = vrcp.pop %v6858
        %v9652 = vmul.f32 %v7881, %v9651
        %v9653 = vrcp.pop %v6861
        %v9654 = vmul.f32 %v7886, %v9653
        %v9655 = vrcp.pop %v6864
        %v9656 = vmul.f32 %v7891, %v9655
        %v9657 = vrcp.pop %v6867
        %v9658 = vmul.f32 %v8009, %v9657
        %v9659 = vrcp.pop %v6870
        %v9660 = vmul.f32 %v8014, %v9659
        %v9661 = vrcp.pop %v6873
        %v9662 = vmul.f32 %v8019, %v9661
        %v9663 = vrcp.pop %v6876
        %v9664 = vmul.f32 %v8024, %v9663
        %v9665 = vrcp.pop %v6879
        %v9666 = vmul.f32 %v8029, %v9665
        %v9667 = vrcp.pop %v6882
        %v9668 = vmul.f32 %v8034, %v9667
        %v9669 = vrcp.pop %v6885
        %v9670 = vmul.f32 %v8039, %v9669
        %v9671 = vrcp.pop %v6888
        %v9672 = vmul.f32 %v8044, %v9671
        %v9673 = vrcp.pop %v6891
        %v9674 = vmul.f32 %v8162, %v9673
        %v9675 = vrcp.pop %v6894
        %v9676 = vmul.f32 %v8167, %v9675
        %v9677 = vrcp.pop %v6897
        %v9678 = vmul.f32 %v8172, %v9677
        %v9679 = vrcp.pop %v6900
        %v9680 = vmul.f32 %v8177, %v9679
        %v9681 = vrcp.pop %v6903
        %v9682 = vmul.f32 %v8182, %v9681
        %v9683 = vrcp.pop %v6906
        %v9684 = vmul.f32 %v8187, %v9683
        %v9685 = vrcp.pop %v6909
        %v9686 = vmul.f32 %v8192, %v9685
        %v9687 = vrcp.pop %v6912
        %v9688 = vmul.f32 %v8197, %v9687
        %v9689 = vrcp.pop %v6915
        %v9690 = vmul.f32 %v8315, %v9689
        %v9691 = vrcp.pop %v6918
        %v9692 = vmul.f32 %v8320, %v9691
        %v9693 = vrcp.pop %v6921
        %v9694 = vmul.f32 %v8325, %v9693
        %v9695 = vrcp.pop %v6924
        %v9696 = vmul.f32 %v8330, %v9695
        %v9697 = vrcp.pop %v6927
        %v9698 = vmul.f32 %v8335, %v9697
        %v9699 = vrcp.pop %v6930
        %v9700 = vmul.f32 %v8340, %v9699
        %v9701 = vrcp.pop %v6933
        %v9702 = vmul.f32 %v8345, %v9701
        %v9703 = vrcp.pop %v6936
        %v9704 = vmul.f32 %v8350, %v9703
        %v9705 = vrcp.pop %v6939
        %v9706 = vmul.f32 %v8468, %v9705
        %v9707 = vrcp.pop %v6942
        %v9708 = vmul.f32 %v8473, %v9707
        %v9709 = vrcp.pop %v6945
        %v9710 = vmul.f32 %v8478, %v9709
        %v9711 = vrcp.pop %v6948
        %v9712 = vmul.f32 %v8483, %v9711
        %v9713 = vrcp.pop %v6951
        %v9714 = vmul.f32 %v8488, %v9713
        %v9715 = vrcp.pop %v6954
        %v9716 = vmul.f32 %v8493, %v9715
        %v9717 = vrcp.pop %v6957
        %v9718 = vmul.f32 %v8498, %v9717
        %v9719 = vrcp.pop %v6960
        %v9720 = vmul.f32 %v8503, %v9719
        %v9721 = vrcp.pop %v6963
        %v9722 = vmul.f32 %v8621, %v9721
        %v9723 = vrcp.pop %v6966
        %v9724 = vmul.f32 %v8626, %v9723
        %v9725 = vrcp.pop %v6969
        %v9726 = vmul.f32 %v8631, %v9725
        %v9727 = vrcp.pop %v6972
        %v9728 = vmul.f32 %v8636, %v9727
        %v9729 = vrcp.pop %v6975
        %v9730 = vmul.f32 %v8641, %v9729
        %v9731 = vrcp.pop %v6978
        %v9732 = vmul.f32 %v8646, %v9731
        %v9733 = vrcp.pop %v6981
        %v9734 = vmul.f32 %v8651, %v9733
        %v9735 = vrcp.pop %v6984
        %v9736 = vmul.f32 %v8656, %v9735
        %v9737 = vrcp.pop %v6987
        %v9738 = vmul.f32 %v8774, %v9737
        %v9739 = vrcp.pop %v6990
        %v9740 = vmul.f32 %v8779, %v9739
        %v9741 = vrcp.pop %v6993
        %v9742 = vmul.f32 %v8784, %v9741
        %v9743 = vrcp.pop %v6996
        %v9744 = vmul.f32 %v8789, %v9743
        %v9745 = vrcp.pop %v6999
        %v9746 = vmul.f32 %v8794, %v9745
        %v9747 = vrcp.pop %v7002
        %v9748 = vmul.f32 %v8799, %v9747
        %v9749 = vrcp.pop %v7005
        %v9750 = vmul.f32 %v8804, %v9749
        %v9751 = vrcp.pop %v7008
        %v9752 = vmul.f32 %v8809, %v9751
        %v9753 = vrcp.pop %v7011
        %v9754 = vmul.f32 %v8927, %v9753
        %v9755 = vrcp.pop %v7014
        %v9756 = vmul.f32 %v8932, %v9755
        %v9757 = vrcp.pop %v7017
        %v9758 = vmul.f32 %v8937, %v9757
        %v9759 = vrcp.pop %v7020
        %v9760 = vmul.f32 %v8942, %v9759
        %v9761 = vrcp.pop %v7023
        %v9762 = vmul.f32 %v8947, %v9761
        %v9763 = vrcp.pop %v7026
        %v9764 = vmul.f32 %v8952, %v9763
        %v9765 = vrcp.pop %v7029
        %v9766 = vmul.f32 %v8957, %v9765
        %v9767 = vrcp.pop %v7032
        %v9768 = vmul.f32 %v8962, %v9767
        %v9769 = vrcp.pop %v7035
        %v9770 = vmul.f32 %v9080, %v9769
        %v9771 = vrcp.pop %v7038
        %v9772 = vmul.f32 %v9085, %v9771
        %v9773 = vrcp.pop %v7041
        %v9774 = vmul.f32 %v9090, %v9773
        %v9775 = vrcp.pop %v7044
        %v9776 = vmul.f32 %v9095, %v9775
        %v9777 = vrcp.pop %v7047
        %v9778 = vmul.f32 %v9100, %v9777
        %v9779 = vrcp.pop %v7050
        %v9780 = vmul.f32 %v9105, %v9779
        %v9781 = vrcp.pop %v7053
        %v9782 = vmul.f32 %v9110, %v9781
        %v9783 = vrcp.pop %v7056
        %v9784 = vmul.f32 %v9115, %v9783
        %v9785 = vrcp.pop %v7059
        %v9786 = vmul.f32 %v9233, %v9785
        %v9787 = vrcp.pop %v7062
        %v9788 = vmul.f32 %v9238, %v9787
        %v9789 = vrcp.pop %v7065
        %v9790 = vmul.f32 %v9243, %v9789
        %v9791 = vrcp.pop %v7068
        %v9792 = vmul.f32 %v9248, %v9791
        %v9793 = vrcp.pop %v7071
        %v9794 = vmul.f32 %v9253, %v9793
        %v9795 = vrcp.pop %v7074
        %v9796 = vmul.f32 %v9258, %v9795
        %v9797 = vrcp.pop %v7077
        %v9798 = vmul.f32 %v9263, %v9797
        %v9799 = vrcp.pop %v7080
        %v9800 = vmul.f32 %v9268, %v9799
        %v9801 = vrcp.pop %v7083
        %v9802 = vmul.f32 %v9386, %v9801
        %v9803 = vrcp.pop %v7086
        %v9804 = vmul.f32 %v9391, %v9803
        %v9805 = vrcp.pop %v7089
        %v9806 = vmul.f32 %v9396, %v9805
        %v9807 = vrcp.pop %v7092
        %v9808 = vmul.f32 %v9401, %v9807
        %v9809 = vrcp.pop %v7095
        %v9810 = vmul.f32 %v9406, %v9809
        %v9811 = vrcp.pop %v7098
        %v9812 = vmul.f32 %v9411, %v9811
        %v9813 = vrcp.pop %v7101
        %v9814 = vmul.f32 %v9416, %v9813
        %v9815 = vrcp.pop %v7104
        %v9816 = vmul.f32 %v9421, %v9815
        %v9817 = vrcp.pop %v7107
        %v9818 = vmul.f32 %v9539, %v9817
        %v9819 = vrcp.pop %v7110
        %v9820 = vmul.f32 %v9544, %v9819
        %v9821 = vrcp.pop %v7113
        %v9822 = vmul.f32 %v9549, %v9821
        %v9823 = vrcp.pop %v7116
        %v9824 = vmul.f32 %v9554, %v9823
        %v9825 = vrcp.pop %v7119
        %v9826 = vmul.f32 %v9559, %v9825
        %v9827 = vrcp.pop %v7122
        %v9828 = vmul.f32 %v9564, %v9827
        %v9829 = vrcp.pop %v7125
        %v9830 = vmul.f32 %v9569, %v9829
        %v9831 = vrcp.pop %v7128
        %v9832 = vmul.f32 %v9574, %v9831
        %9865 = vrot.lane.b32.xlu0 %v9642, 8
        %v9866 = vpop.permute.xlu0 %9865
        %9867 = vrot.lane.b32.xlu0 %v9644, 8
        %v9868 = vpop.permute.xlu0 %9867
        %9869 = vrot.lane.b32.xlu0 %v9646, 8
        %v9870 = vpop.permute.xlu0 %9869
        %9871 = vrot.lane.b32.xlu0 %v9648, 8
        %v9872 = vpop.permute.xlu0 %9871
        %9873 = vrot.lane.b32.xlu0 %v9650, 8
        %v9874 = vpop.permute.xlu0 %9873
        %9875 = vrot.lane.b32.xlu0 %v9652, 8
        %v9876 = vpop.permute.xlu0 %9875
        %9877 = vrot.lane.b32.xlu0 %v9654, 8
        %v9878 = vpop.permute.xlu0 %9877
        %9879 = vrot.lane.b32.xlu0 %v9656, 8
        %v9880 = vpop.permute.xlu0 %9879
        %9881 = vrot.lane.b32.xlu0 %v9658, 8
        %v9882 = vpop.permute.xlu0 %9881
        %9883 = vrot.lane.b32.xlu0 %v9660, 8
        %v9884 = vpop.permute.xlu0 %9883
        %9885 = vrot.lane.b32.xlu0 %v9662, 8
        %v9886 = vpop.permute.xlu0 %9885
        %9887 = vrot.lane.b32.xlu0 %v9664, 8
        %v9888 = vpop.permute.xlu0 %9887
        %9889 = vrot.lane.b32.xlu0 %v9666, 8
        %v9890 = vpop.permute.xlu0 %9889
        %9891 = vrot.lane.b32.xlu0 %v9668, 8
        %v9892 = vpop.permute.xlu0 %9891
        %9893 = vrot.lane.b32.xlu0 %v9670, 8
        %v9894 = vpop.permute.xlu0 %9893
        %9895 = vrot.lane.b32.xlu0 %v9672, 8
        %v9896 = vpop.permute.xlu0 %9895
        %9897 = vrot.lane.b32.xlu0 %v9674, 8
        %v9898 = vpop.permute.xlu0 %9897
        %9899 = vrot.lane.b32.xlu0 %v9676, 8
        %v9900 = vpop.permute.xlu0 %9899
        %9901 = vrot.lane.b32.xlu0 %v9678, 8
        %v9902 = vpop.permute.xlu0 %9901
        %9903 = vrot.lane.b32.xlu0 %v9680, 8
        %v9904 = vpop.permute.xlu0 %9903
        %9905 = vrot.lane.b32.xlu0 %v9682, 8
        %v9906 = vpop.permute.xlu0 %9905
        %9907 = vrot.lane.b32.xlu0 %v9684, 8
        %v9908 = vpop.permute.xlu0 %9907
        %9909 = vrot.lane.b32.xlu0 %v9686, 8
        %v9910 = vpop.permute.xlu0 %9909
        %9911 = vrot.lane.b32.xlu0 %v9688, 8
        %v9912 = vpop.permute.xlu0 %9911
        %9913 = vrot.lane.b32.xlu0 %v9690, 8
        %v9914 = vpop.permute.xlu0 %9913
        %9915 = vrot.lane.b32.xlu0 %v9692, 8
        %v9916 = vpop.permute.xlu0 %9915
        %9917 = vrot.lane.b32.xlu0 %v9694, 8
        %v9918 = vpop.permute.xlu0 %9917
        %9919 = vrot.lane.b32.xlu0 %v9696, 8
        %v9920 = vpop.permute.xlu0 %9919
        %9921 = vrot.lane.b32.xlu0 %v9698, 8
        %v9922 = vpop.permute.xlu0 %9921
        %9923 = vrot.lane.b32.xlu0 %v9700, 8
        %v9924 = vpop.permute.xlu0 %9923
        %9925 = vrot.lane.b32.xlu0 %v9702, 8
        %v9926 = vpop.permute.xlu0 %9925
        %9927 = vrot.lane.b32.xlu0 %v9704, 8
        %v9928 = vpop.permute.xlu0 %9927
        %9993 = vrot.lane.b32.xlu0 %v9706, 16
        %v9994 = vpop.permute.xlu0 %9993
        %9995 = vrot.lane.b32.xlu0 %v9708, 16
        %v9996 = vpop.permute.xlu0 %9995
        %9997 = vrot.lane.b32.xlu0 %v9710, 16
        %v9998 = vpop.permute.xlu0 %9997
        %9999 = vrot.lane.b32.xlu0 %v9712, 16
        %v10000 = vpop.permute.xlu0 %9999
        %10001 = vrot.lane.b32.xlu0 %v9714, 16
        %v10002 = vpop.permute.xlu0 %10001
        %10003 = vrot.lane.b32.xlu0 %v9716, 16
        %v10004 = vpop.permute.xlu0 %10003
        %10005 = vrot.lane.b32.xlu0 %v9718, 16
        %v10006 = vpop.permute.xlu0 %10005
        %10007 = vrot.lane.b32.xlu0 %v9720, 16
        %v10008 = vpop.permute.xlu0 %10007
        %10009 = vrot.lane.b32.xlu0 %v9722, 16
        %v10010 = vpop.permute.xlu0 %10009
        %10011 = vrot.lane.b32.xlu0 %v9724, 16
        %v10012 = vpop.permute.xlu0 %10011
        %10013 = vrot.lane.b32.xlu0 %v9726, 16
        %v10014 = vpop.permute.xlu0 %10013
        %10015 = vrot.lane.b32.xlu0 %v9728, 16
        %v10016 = vpop.permute.xlu0 %10015
        %10017 = vrot.lane.b32.xlu0 %v9730, 16
        %v10018 = vpop.permute.xlu0 %10017
        %10019 = vrot.lane.b32.xlu0 %v9732, 16
        %v10020 = vpop.permute.xlu0 %10019
        %10021 = vrot.lane.b32.xlu0 %v9734, 16
        %v10022 = vpop.permute.xlu0 %10021
        %10023 = vrot.lane.b32.xlu0 %v9736, 16
        %v10024 = vpop.permute.xlu0 %10023
        %10025 = vrot.lane.b32.xlu0 %v9738, 16
        %v10026 = vpop.permute.xlu0 %10025
        %10027 = vrot.lane.b32.xlu0 %v9740, 16
        %v10028 = vpop.permute.xlu0 %10027
        %10029 = vrot.lane.b32.xlu0 %v9742, 16
        %v10030 = vpop.permute.xlu0 %10029
        %10031 = vrot.lane.b32.xlu0 %v9744, 16
        %v10032 = vpop.permute.xlu0 %10031
        %10033 = vrot.lane.b32.xlu0 %v9746, 16
        %v10034 = vpop.permute.xlu0 %10033
        %10035 = vrot.lane.b32.xlu0 %v9748, 16
        %v10036 = vpop.permute.xlu0 %10035
        %10037 = vrot.lane.b32.xlu0 %v9750, 16
        %v10038 = vpop.permute.xlu0 %10037
        %10039 = vrot.lane.b32.xlu0 %v9752, 16
        %v10040 = vpop.permute.xlu0 %10039
        %10041 = vrot.lane.b32.xlu0 %v9754, 16
        %v10042 = vpop.permute.xlu0 %10041
        %10043 = vrot.lane.b32.xlu0 %v9756, 16
        %v10044 = vpop.permute.xlu0 %10043
        %10045 = vrot.lane.b32.xlu0 %v9758, 16
        %v10046 = vpop.permute.xlu0 %10045
        %10047 = vrot.lane.b32.xlu0 %v9760, 16
        %v10048 = vpop.permute.xlu0 %10047
        %10049 = vrot.lane.b32.xlu0 %v9762, 16
        %v10050 = vpop.permute.xlu0 %10049
        %10051 = vrot.lane.b32.xlu0 %v9764, 16
        %v10052 = vpop.permute.xlu0 %10051
        %10053 = vrot.lane.b32.xlu0 %v9766, 16
        %v10054 = vpop.permute.xlu0 %10053
        %10055 = vrot.lane.b32.xlu0 %v9768, 16
        %v10056 = vpop.permute.xlu0 %10055
        %10121 = vrot.lane.b32.xlu0 %v9770, 24
        %v10122 = vpop.permute.xlu0 %10121
        %10123 = vrot.lane.b32.xlu0 %v9772, 24
        %v10124 = vpop.permute.xlu0 %10123
        %10125 = vrot.lane.b32.xlu0 %v9774, 24
        %v10126 = vpop.permute.xlu0 %10125
        %10127 = vrot.lane.b32.xlu0 %v9776, 24
        %v10128 = vpop.permute.xlu0 %10127
        %10129 = vrot.lane.b32.xlu0 %v9778, 24
        %v10130 = vpop.permute.xlu0 %10129
        %10131 = vrot.lane.b32.xlu0 %v9780, 24
        %v10132 = vpop.permute.xlu0 %10131
        %10133 = vrot.lane.b32.xlu0 %v9782, 24
        %v10134 = vpop.permute.xlu0 %10133
        %10135 = vrot.lane.b32.xlu0 %v9784, 24
        %v10136 = vpop.permute.xlu0 %10135
        %10137 = vrot.lane.b32.xlu0 %v9786, 24
        %v10138 = vpop.permute.xlu0 %10137
        %10139 = vrot.lane.b32.xlu0 %v9788, 24
        %v10140 = vpop.permute.xlu0 %10139
        %10141 = vrot.lane.b32.xlu0 %v9790, 24
        %v10142 = vpop.permute.xlu0 %10141
        %10143 = vrot.lane.b32.xlu0 %v9792, 24
        %v10144 = vpop.permute.xlu0 %10143
        %10145 = vrot.lane.b32.xlu0 %v9794, 24
        %v10146 = vpop.permute.xlu0 %10145
        %10147 = vrot.lane.b32.xlu0 %v9796, 24
        %v10148 = vpop.permute.xlu0 %10147
        %10149 = vrot.lane.b32.xlu0 %v9798, 24
        %v10150 = vpop.permute.xlu0 %10149
        %10151 = vrot.lane.b32.xlu0 %v9800, 24
        %v10152 = vpop.permute.xlu0 %10151
        %10153 = vrot.lane.b32.xlu0 %v9802, 24
        %v10154 = vpop.permute.xlu0 %10153
        %10155 = vrot.lane.b32.xlu0 %v9804, 24
        %v10156 = vpop.permute.xlu0 %10155
        %10157 = vrot.lane.b32.xlu0 %v9806, 24
        %v10158 = vpop.permute.xlu0 %10157
        %10159 = vrot.lane.b32.xlu0 %v9808, 24
        %v10160 = vpop.permute.xlu0 %10159
        %10161 = vrot.lane.b32.xlu0 %v9810, 24
        %v10162 = vpop.permute.xlu0 %10161
        %10163 = vrot.lane.b32.xlu0 %v9812, 24
        %v10164 = vpop.permute.xlu0 %10163
        %10165 = vrot.lane.b32.xlu0 %v9814, 24
        %v10166 = vpop.permute.xlu0 %10165
        %10167 = vrot.lane.b32.xlu0 %v9816, 24
        %v10168 = vpop.permute.xlu0 %10167
        %10169 = vrot.lane.b32.xlu0 %v9818, 24
        %v10170 = vpop.permute.xlu0 %10169
        %10171 = vrot.lane.b32.xlu0 %v9820, 24
        %v10172 = vpop.permute.xlu0 %10171
        %10173 = vrot.lane.b32.xlu0 %v9822, 24
        %v10174 = vpop.permute.xlu0 %10173
        %10175 = vrot.lane.b32.xlu0 %v9824, 24
        %v10176 = vpop.permute.xlu0 %10175
        %10177 = vrot.lane.b32.xlu0 %v9826, 24
        %v10178 = vpop.permute.xlu0 %10177
        %10179 = vrot.lane.b32.xlu0 %v9828, 24
        %v10180 = vpop.permute.xlu0 %10179
        %10181 = vrot.lane.b32.xlu0 %v9830, 24
        %v10182 = vpop.permute.xlu0 %10181
        %10183 = vrot.lane.b32.xlu0 %v9832, 24
        %v10184 = vpop.permute.xlu0 %10183
        %v10217 = vsel %vm3384, %v9578, %v9866
        %v10218 = vsel %vm3384, %v9580, %v9868
        %v10219 = vsel %vm3384, %v9582, %v9870
        %v10220 = vsel %vm3384, %v9584, %v9872
        %v10221 = vsel %vm3384, %v9586, %v9874
        %v10222 = vsel %vm3384, %v9588, %v9876
        %v10223 = vsel %vm3384, %v9590, %v9878
        %v10224 = vsel %vm3384, %v9592, %v9880
        %v10225 = vsel %vm3384, %v9594, %v9882
        %v10226 = vsel %vm3384, %v9596, %v9884
        %v10227 = vsel %vm3384, %v9598, %v9886
        %v10228 = vsel %vm3384, %v9600, %v9888
        %v10229 = vsel %vm3384, %v9602, %v9890
        %v10230 = vsel %vm3384, %v9604, %v9892
        %v10231 = vsel %vm3384, %v9606, %v9894
        %v10232 = vsel %vm3384, %v9608, %v9896
        %v10233 = vsel %vm3384, %v9610, %v9898
        %v10234 = vsel %vm3384, %v9612, %v9900
        %v10235 = vsel %vm3384, %v9614, %v9902
        %v10236 = vsel %vm3384, %v9616, %v9904
        %v10237 = vsel %vm3384, %v9618, %v9906
        %v10238 = vsel %vm3384, %v9620, %v9908
        %v10239 = vsel %vm3384, %v9622, %v9910
        %v10240 = vsel %vm3384, %v9624, %v9912
        %v10241 = vsel %vm3384, %v9626, %v9914
        %v10242 = vsel %vm3384, %v9628, %v9916
        %v10243 = vsel %vm3384, %v9630, %v9918
        %v10244 = vsel %vm3384, %v9632, %v9920
        %v10245 = vsel %vm3384, %v9634, %v9922
        %v10246 = vsel %vm3384, %v9636, %v9924
        %v10247 = vsel %vm3384, %v9638, %v9926
        %v10248 = vsel %vm3384, %v9640, %v9928
        %vm10249 = vcmask 130048
        %v10250 = vsel %vm10249, %v10217, %v9994
        %v10251 = vsel %vm10249, %v10218, %v9996
        %v10252 = vsel %vm10249, %v10219, %v9998
        %v10253 = vsel %vm10249, %v10220, %v10000
        %v10254 = vsel %vm10249, %v10221, %v10002
        %v10255 = vsel %vm10249, %v10222, %v10004
        %v10256 = vsel %vm10249, %v10223, %v10006
        %v10257 = vsel %vm10249, %v10224, %v10008
        %v10258 = vsel %vm10249, %v10225, %v10010
        %v10259 = vsel %vm10249, %v10226, %v10012
        %v10260 = vsel %vm10249, %v10227, %v10014
        %v10261 = vsel %vm10249, %v10228, %v10016
        %v10262 = vsel %vm10249, %v10229, %v10018
        %v10263 = vsel %vm10249, %v10230, %v10020
        %v10264 = vsel %vm10249, %v10231, %v10022
        %v10265 = vsel %vm10249, %v10232, %v10024
        %v10266 = vsel %vm10249, %v10233, %v10026
        %v10267 = vsel %vm10249, %v10234, %v10028
        %v10268 = vsel %vm10249, %v10235, %v10030
        %v10269 = vsel %vm10249, %v10236, %v10032
        %v10270 = vsel %vm10249, %v10237, %v10034
        %v10271 = vsel %vm10249, %v10238, %v10036
        %v10272 = vsel %vm10249, %v10239, %v10038
        %v10273 = vsel %vm10249, %v10240, %v10040
        %v10274 = vsel %vm10249, %v10241, %v10042
        %v10275 = vsel %vm10249, %v10242, %v10044
        %v10276 = vsel %vm10249, %v10243, %v10046
        %v10277 = vsel %vm10249, %v10244, %v10048
        %v10278 = vsel %vm10249, %v10245, %v10050
        %v10279 = vsel %vm10249, %v10246, %v10052
        %v10280 = vsel %vm10249, %v10247, %v10054
        %v10281 = vsel %vm10249, %v10248, %v10056
        %vm10282 = vcmask 195584
        %v10283 = vsel %vm10282, %v10250, %v10122
        %v10284 = vsel %vm10282, %v10251, %v10124
        %v10285 = vsel %vm10282, %v10252, %v10126
        %v10286 = vsel %vm10282, %v10253, %v10128
        %v10287 = vsel %vm10282, %v10254, %v10130
        %v10288 = vsel %vm10282, %v10255, %v10132
        %v10289 = vsel %vm10282, %v10256, %v10134
        %v10290 = vsel %vm10282, %v10257, %v10136
        %v10291 = vsel %vm10282, %v10258, %v10138
        %v10292 = vsel %vm10282, %v10259, %v10140
        %v10293 = vsel %vm10282, %v10260, %v10142
        %v10294 = vsel %vm10282, %v10261, %v10144
        %v10295 = vsel %vm10282, %v10262, %v10146
        %v10296 = vsel %vm10282, %v10263, %v10148
        %v10297 = vsel %vm10282, %v10264, %v10150
        %v10298 = vsel %vm10282, %v10265, %v10152
        %v10299 = vsel %vm10282, %v10266, %v10154
        %v10300 = vsel %vm10282, %v10267, %v10156
        %v10301 = vsel %vm10282, %v10268, %v10158
        %v10302 = vsel %vm10282, %v10269, %v10160
        %v10303 = vsel %vm10282, %v10270, %v10162
        %v10304 = vsel %vm10282, %v10271, %v10164
        %v10305 = vsel %vm10282, %v10272, %v10166
        %v10306 = vsel %vm10282, %v10273, %v10168
        %v10307 = vsel %vm10282, %v10274, %v10170
        %v10308 = vsel %vm10282, %v10275, %v10172
        %v10309 = vsel %vm10282, %v10276, %v10174
        %v10310 = vsel %vm10282, %v10277, %v10176
        %v10311 = vsel %vm10282, %v10278, %v10178
        %v10312 = vsel %vm10282, %v10279, %v10180
        %v10313 = vsel %vm10282, %v10280, %v10182
        %v10314 = vsel %vm10282, %v10281, %v10184
        %v10315 = vld [vmem:[%s6] sm:$0xff]
        %v10316 = vld [vmem:[%s6 + $0x8] sm:$0xff]
        %v10317 = vld [vmem:[%s6 + $0x10] sm:$0xff]
        %v10318 = vld [vmem:[%s6 + $0x18] sm:$0xff]
        %v10319 = vld [vmem:[%s7] sm:$0x1]
        %v10321 = vlaneseq
        %v10322 = vshrl.u32 %v10321, 7
        %v10323 = vsub.s32 0, %v10322
        %v10324 = vrot.slane %v10319, %v10323
        %vm10326 = vcmask 261120
        %v10328 = vsel %vm10326, %v10283, 0
        %v10331 = vsel %vm10326, %v10284, 0
        %v10334 = vsel %vm10326, %v10285, 0
        %v10337 = vsel %vm10326, %v10286, 0
        %v10340 = vsel %vm10326, %v10287, 0
        %v10343 = vsel %vm10326, %v10288, 0
        %v10346 = vsel %vm10326, %v10289, 0
        %v10349 = vsel %vm10326, %v10290, 0
        %v10352 = vsel %vm10326, %v10291, 0
        %v10355 = vsel %vm10326, %v10292, 0
        %v10358 = vsel %vm10326, %v10293, 0
        %v10361 = vsel %vm10326, %v10294, 0
        %v10364 = vsel %vm10326, %v10295, 0
        %v10367 = vsel %vm10326, %v10296, 0
        %v10370 = vsel %vm10326, %v10297, 0
        %v10373 = vsel %vm10326, %v10298, 0
        %v10376 = vsel %vm10326, %v10299, 0
        %v10379 = vsel %vm10326, %v10300, 0
        %v10382 = vsel %vm10326, %v10301, 0
        %v10385 = vsel %vm10326, %v10302, 0
        %v10388 = vsel %vm10326, %v10303, 0
        %v10391 = vsel %vm10326, %v10304, 0
        %v10394 = vsel %vm10326, %v10305, 0
        %v10397 = vsel %vm10326, %v10306, 0
        %v10400 = vsel %vm10326, %v10307, 0
        %v10403 = vsel %vm10326, %v10308, 0
        %v10406 = vsel %vm10326, %v10309, 0
        %v10409 = vsel %vm10326, %v10310, 0
        %v10412 = vsel %vm10326, %v10311, 0
        %v10415 = vsel %vm10326, %v10312, 0
        %v10418 = vsel %vm10326, %v10313, 0
        %v10421 = vsel %vm10326, %v10314, 0
        %10423 = vmatprep.subr.mxu0 0.0
        %10424 = vmatpush1.msra.mxu0 %v10315
        %10425 = vmatprep.subr.mxu0 0.0
        %10426 = vmatpush1.msra.mxu0 %v10316
        %10427 = vmatprep.subr.mxu0 0.0
        %10428 = vmatpush1.msra.mxu0 %v10317
        %10429 = vmatprep.subr.mxu0 0.0
        %10430 = vmatpush1.msra.mxu0 %v10318
        %10431 = vmatprep.subr.mxu0 0.0
        %10432 = vmatpush1.msra.mxu0 0.0
        %10433 = vmatprep.subr.mxu0 0.0
        %10434 = vmatpush1.msra.mxu0 0.0
        %10435 = vmatprep.subr.mxu0 0.0
        %10436 = vmatpush1.msra.mxu0 0.0
        %10437 = vmatprep.subr.mxu0 0.0
        %10438 = vmatpush1.msra.mxu0 0.0
        %10439 = vmatprep.subr.mxu0 0.0
        %10440 = vmatpush1.msra.mxu0 0.0
        %10441 = vmatprep.subr.mxu0 0.0
        %10442 = vmatpush1.msra.mxu0 0.0
        %10443 = vmatprep.subr.mxu0 0.0
        %10444 = vmatpush1.msra.mxu0 0.0
        %10445 = vmatprep.subr.mxu0 0.0
        %10446 = vmatpush1.msra.mxu0 0.0
        %10447 = vmatprep.subr.mxu0 0.0
        %10448 = vmatpush1.msra.mxu0 0.0
        %10449 = vmatprep.subr.mxu0 0.0
        %10450 = vmatpush1.msra.mxu0 0.0
        %10451 = vmatprep.subr.mxu0 0.0
        %10452 = vmatpush1.msra.mxu0 0.0
        %10453 = vmatprep.subr.mxu0 0.0
        %10454 = vmatpush1.msra.mxu0 0.0
        %10455 = vmatprep.subr.mxu0 0.0
        %10456 = vmatpush1.msra.mxu0 0.0
        %10457 = vmatprep.subr.mxu0 0.0
        %10458 = vmatpush1.msra.mxu0 0.0
        %10459 = vmatprep.subr.mxu0 0.0
        %10460 = vmatpush1.msra.mxu0 0.0
        %10461 = vmatprep.subr.mxu0 0.0
        %10462 = vmatpush1.msra.mxu0 0.0
        %10463 = vmatprep.subr.mxu0 0.0
        %10464 = vmatpush1.msra.mxu0 0.0
        %10465 = vmatprep.subr.mxu0 0.0
        %10466 = vmatpush1.msra.mxu0 0.0
        %10467 = vmatprep.subr.mxu0 0.0
        %10468 = vmatpush1.msra.mxu0 0.0
        %10469 = vmatprep.subr.mxu0 0.0
        %10470 = vmatpush1.msra.mxu0 0.0
        %10471 = vmatprep.subr.mxu0 0.0
        %10472 = vmatpush1.msra.mxu0 0.0
        %10473 = vmatprep.subr.mxu0 0.0
        %10474 = vmatpush1.msra.mxu0 0.0
        %10475 = vmatprep.subr.mxu0 0.0
        %10476 = vmatpush1.msra.mxu0 0.0
        %10477 = vmatprep.subr.mxu0 0.0
        %10478 = vmatpush1.msra.mxu0 0.0
        %10479 = vmatprep.subr.mxu0 0.0
        %10480 = vmatpush1.msra.mxu0 0.0
        %10481 = vmatprep.subr.mxu0 0.0
        %10482 = vmatpush1.msra.mxu0 0.0
        %10483 = vmatprep.subr.mxu0 0.0
        %10484 = vmatpush1.msra.mxu0 0.0
        %10485 = vmatprep.subr.mxu0 0.0
        %10486 = vmatpush1.msra.mxu0 0.0
        %10487 = vmatprep.mubr.f32.mxu0 0.0
        %10488 = vmatmul.mubr.f32.gmra.mrb[0].mxu0 %v10328
        %v10489 = vpop.f32.mrb[0].mxu0
        %v10490 = vadd.f32 %v10324, %v10489
        %v10491 = vpop.f32.mrb[0].mxu0
        %10492 = vmatprep.mubr.f32.mxu0 0.0
        %10493 = vmatmul.mubr.f32.gmra.mrb[0].mxu0 %v10331
        %v10494 = vpop.f32.mrb[0].mxu0
        %v10495 = vadd.f32 %v10324, %v10494
        %v10496 = vpop.f32.mrb[0].mxu0
        %10497 = vmatprep.mubr.f32.mxu0 0.0
        %10498 = vmatmul.mubr.f32.gmra.mrb[0].mxu0 %v10334
        %v10499 = vpop.f32.mrb[0].mxu0
        %v10500 = vadd.f32 %v10324, %v10499
        %v10501 = vpop.f32.mrb[0].mxu0
        %10502 = vmatprep.mubr.f32.mxu0 0.0
        %10503 = vmatmul.mubr.f32.gmra.mrb[0].mxu0 %v10337
        %v10504 = vpop.f32.mrb[0].mxu0
        %v10505 = vadd.f32 %v10324, %v10504
        %v10506 = vpop.f32.mrb[0].mxu0
        %10507 = vmatprep.mubr.f32.mxu0 0.0
        %10508 = vmatmul.mubr.f32.gmra.mrb[0].mxu0 %v10340
        %v10509 = vpop.f32.mrb[0].mxu0
        %v10510 = vadd.f32 %v10324, %v10509
        %v10511 = vpop.f32.mrb[0].mxu0
        %10512 = vmatprep.mubr.f32.mxu0 0.0
        %10513 = vmatmul.mubr.f32.gmra.mrb[0].mxu0 %v10343
        %v10514 = vpop.f32.mrb[0].mxu0
        %v10515 = vadd.f32 %v10324, %v10514
        %v10516 = vpop.f32.mrb[0].mxu0
        %10517 = vmatprep.mubr.f32.mxu0 0.0
        %10518 = vmatmul.mubr.f32.gmra.mrb[0].mxu0 %v10346
        %v10519 = vpop.f32.mrb[0].mxu0
        %v10520 = vadd.f32 %v10324, %v10519
        %v10521 = vpop.f32.mrb[0].mxu0
        %10522 = vmatprep.mubr.f32.mxu0 0.0
        %10523 = vmatmul.mubr.f32.gmra.mrb[0].mxu0 %v10349
        %v10524 = vpop.f32.mrb[0].mxu0
        %v10525 = vadd.f32 %v10324, %v10524
        %v10526 = vpop.f32.mrb[0].mxu0
        %10527 = vmatprep.mubr.f32.mxu0 0.0
        %10528 = vmatmul.mubr.f32.gmra.mrb[0].mxu0 %v10352
        %v10529 = vpop.f32.mrb[0].mxu0
        %v10530 = vadd.f32 %v10324, %v10529
        %v10531 = vpop.f32.mrb[0].mxu0
        %10532 = vmatprep.mubr.f32.mxu0 0.0
        %10533 = vmatmul.mubr.f32.gmra.mrb[0].mxu0 %v10355
        %v10534 = vpop.f32.mrb[0].mxu0
        %v10535 = vadd.f32 %v10324, %v10534
        %v10536 = vpop.f32.mrb[0].mxu0
        %10537 = vmatprep.mubr.f32.mxu0 0.0
        %10538 = vmatmul.mubr.f32.gmra.mrb[0].mxu0 %v10358
        %v10539 = vpop.f32.mrb[0].mxu0
        %v10540 = vadd.f32 %v10324, %v10539
        %v10541 = vpop.f32.mrb[0].mxu0
        %10542 = vmatprep.mubr.f32.mxu0 0.0
        %10543 = vmatmul.mubr.f32.gmra.mrb[0].mxu0 %v10361
        %v10544 = vpop.f32.mrb[0].mxu0
        %v10545 = vadd.f32 %v10324, %v10544
        %v10546 = vpop.f32.mrb[0].mxu0
        %10547 = vmatprep.mubr.f32.mxu0 0.0
        %10548 = vmatmul.mubr.f32.gmra.mrb[0].mxu0 %v10364
        %v10549 = vpop.f32.mrb[0].mxu0
        %v10550 = vadd.f32 %v10324, %v10549
        %v10551 = vpop.f32.mrb[0].mxu0
        %10552 = vmatprep.mubr.f32.mxu0 0.0
        %10553 = vmatmul.mubr.f32.gmra.mrb[0].mxu0 %v10367
        %v10554 = vpop.f32.mrb[0].mxu0
        %v10555 = vadd.f32 %v10324, %v10554
        %v10556 = vpop.f32.mrb[0].mxu0
        %10557 = vmatprep.mubr.f32.mxu0 0.0
        %10558 = vmatmul.mubr.f32.gmra.mrb[0].mxu0 %v10370
        %v10559 = vpop.f32.mrb[0].mxu0
        %v10560 = vadd.f32 %v10324, %v10559
        %v10561 = vpop.f32.mrb[0].mxu0
        %10562 = vmatprep.mubr.f32.mxu0 0.0
        %10563 = vmatmul.mubr.f32.gmra.mrb[0].mxu0 %v10373
        %v10564 = vpop.f32.mrb[0].mxu0
        %v10565 = vadd.f32 %v10324, %v10564
        %v10566 = vpop.f32.mrb[0].mxu0
        %10567 = vmatprep.mubr.f32.mxu0 0.0
        %10568 = vmatmul.mubr.f32.gmra.mrb[0].mxu0 %v10376
        %v10569 = vpop.f32.mrb[0].mxu0
        %v10570 = vadd.f32 %v10324, %v10569
        %v10571 = vpop.f32.mrb[0].mxu0
        %10572 = vmatprep.mubr.f32.mxu0 0.0
        %10573 = vmatmul.mubr.f32.gmra.mrb[0].mxu0 %v10379
        %v10574 = vpop.f32.mrb[0].mxu0
        %v10575 = vadd.f32 %v10324, %v10574
        %v10576 = vpop.f32.mrb[0].mxu0
        %10577 = vmatprep.mubr.f32.mxu0 0.0
        %10578 = vmatmul.mubr.f32.gmra.mrb[0].mxu0 %v10382
        %v10579 = vpop.f32.mrb[0].mxu0
        %v10580 = vadd.f32 %v10324, %v10579
        %v10581 = vpop.f32.mrb[0].mxu0
        %10582 = vmatprep.mubr.f32.mxu0 0.0
        %10583 = vmatmul.mubr.f32.gmra.mrb[0].mxu0 %v10385
        %v10584 = vpop.f32.mrb[0].mxu0
        %v10585 = vadd.f32 %v10324, %v10584
        %v10586 = vpop.f32.mrb[0].mxu0
        %10587 = vmatprep.mubr.f32.mxu0 0.0
        %10588 = vmatmul.mubr.f32.gmra.mrb[0].mxu0 %v10388
        %v10589 = vpop.f32.mrb[0].mxu0
        %v10590 = vadd.f32 %v10324, %v10589
        %v10591 = vpop.f32.mrb[0].mxu0
        %10592 = vmatprep.mubr.f32.mxu0 0.0
        %10593 = vmatmul.mubr.f32.gmra.mrb[0].mxu0 %v10391
        %v10594 = vpop.f32.mrb[0].mxu0
        %v10595 = vadd.f32 %v10324, %v10594
        %v10596 = vpop.f32.mrb[0].mxu0
        %10597 = vmatprep.mubr.f32.mxu0 0.0
        %10598 = vmatmul.mubr.f32.gmra.mrb[0].mxu0 %v10394
        %v10599 = vpop.f32.mrb[0].mxu0
        %v10600 = vadd.f32 %v10324, %v10599
        %v10601 = vpop.f32.mrb[0].mxu0
        %10602 = vmatprep.mubr.f32.mxu0 0.0
        %10603 = vmatmul.mubr.f32.gmra.mrb[0].mxu0 %v10397
        %v10604 = vpop.f32.mrb[0].mxu0
        %v10605 = vadd.f32 %v10324, %v10604
        %v10606 = vpop.f32.mrb[0].mxu0
        %10607 = vmatprep.mubr.f32.mxu0 0.0
        %10608 = vmatmul.mubr.f32.gmra.mrb[0].mxu0 %v10400
        %v10609 = vpop.f32.mrb[0].mxu0
        %v10610 = vadd.f32 %v10324, %v10609
        %v10611 = vpop.f32.mrb[0].mxu0
        %10612 = vmatprep.mubr.f32.mxu0 0.0
        %10613 = vmatmul.mubr.f32.gmra.mrb[0].mxu0 %v10403
        %v10614 = vpop.f32.mrb[0].mxu0
        %v10615 = vadd.f32 %v10324, %v10614
        %v10616 = vpop.f32.mrb[0].mxu0
        %10617 = vmatprep.mubr.f32.mxu0 0.0
        %10618 = vmatmul.mubr.f32.gmra.mrb[0].mxu0 %v10406
        %v10619 = vpop.f32.mrb[0].mxu0
        %v10620 = vadd.f32 %v10324, %v10619
        %v10621 = vpop.f32.mrb[0].mxu0
        %10622 = vmatprep.mubr.f32.mxu0 0.0
        %10623 = vmatmul.mubr.f32.gmra.mrb[0].mxu0 %v10409
        %v10624 = vpop.f32.mrb[0].mxu0
        %v10625 = vadd.f32 %v10324, %v10624
        %v10626 = vpop.f32.mrb[0].mxu0
        %10627 = vmatprep.mubr.f32.mxu0 0.0
        %10628 = vmatmul.mubr.f32.gmra.mrb[0].mxu0 %v10412
        %v10629 = vpop.f32.mrb[0].mxu0
        %v10630 = vadd.f32 %v10324, %v10629
        %v10631 = vpop.f32.mrb[0].mxu0
        %10632 = vmatprep.mubr.f32.mxu0 0.0
        %10633 = vmatmul.mubr.f32.gmra.mrb[0].mxu0 %v10415
        %v10634 = vpop.f32.mrb[0].mxu0
        %v10635 = vadd.f32 %v10324, %v10634
        %v10636 = vpop.f32.mrb[0].mxu0
        %10637 = vmatprep.mubr.f32.mxu0 0.0
        %10638 = vmatmul.mubr.f32.gmra.mrb[0].mxu0 %v10418
        %v10639 = vpop.f32.mrb[0].mxu0
        %v10640 = vadd.f32 %v10324, %v10639
        %v10641 = vpop.f32.mrb[0].mxu0
        %10642 = vmatprep.mubr.f32.mxu0 0.0
        %10643 = vmatmul.mubr.f32.gmra.mrb[0].mxu0 %v10421
        %v10644 = vpop.f32.mrb[0].mxu0
        %v10645 = vadd.f32 %v10324, %v10644
        %v10646 = vpop.f32.mrb[0].mxu0
        %10647 = vdwg.mxu0
        %v10656 = vrot.slane %v10495, 7
        %vm10657 = vcmask 1041409
        %v10658 = vsel %vm10657, %v10656, %v10490
        %v10659 = vrot.slane %v10500, 6
        %vm10660 = vcmask 1042434
        %v10661 = vsel %vm10660, %v10659, %v10658
        %v10662 = vrot.slane %v10505, 5
        %vm10663 = vcmask 1043459
        %v10664 = vsel %vm10663, %v10662, %v10661
        %v10665 = vrot.slane %v10510, 4
        %vm10666 = vcmask 1044484
        %v10667 = vsel %vm10666, %v10665, %v10664
        %v10668 = vrot.slane %v10515, 3
        %vm10669 = vcmask 1045509
        %v10670 = vsel %vm10669, %v10668, %v10667
        %v10671 = vrot.slane %v10520, 2
        %vm10672 = vcmask 1046534
        %v10673 = vsel %vm10672, %v10671, %v10670
        %v10674 = vrot.slane %v10525, 1
        %vm10675 = vcmask 1047559
        %v10676 = vsel %vm10675, %v10674, %v10673
        %v10678 = vrot.slane %v10490, 1
        %v10679 = vsel %vm10657, %v10495, %v10678
        %v10680 = vrot.slane %v10500, 7
        %v10681 = vsel %vm10660, %v10680, %v10679
        %v10682 = vrot.slane %v10505, 6
        %v10683 = vsel %vm10663, %v10682, %v10681
        %v10684 = vrot.slane %v10510, 5
        %v10685 = vsel %vm10666, %v10684, %v10683
        %v10686 = vrot.slane %v10515, 4
        %v10687 = vsel %vm10669, %v10686, %v10685
        %v10688 = vrot.slane %v10520, 3
        %v10689 = vsel %vm10672, %v10688, %v10687
        %v10690 = vrot.slane %v10525, 2
        %v10691 = vsel %vm10675, %v10690, %v10689
        %10692 = vrot.lane.b32.xlu0 %v10691, 32
        %v10693 = vpop.permute.xlu0 %10692
        %v10695 = vrot.slane %v10490, 2
        %v10696 = vrot.slane %v10495, 1
        %v10697 = vsel %vm10657, %v10696, %v10695
        %v10698 = vsel %vm10660, %v10500, %v10697
        %v10699 = vrot.slane %v10505, 7
        %v10700 = vsel %vm10663, %v10699, %v10698
        %v10701 = vrot.slane %v10510, 6
        %v10702 = vsel %vm10666, %v10701, %v10700
        %v10703 = vrot.slane %v10515, 5
        %v10704 = vsel %vm10669, %v10703, %v10702
        %v10705 = vrot.slane %v10520, 4
        %v10706 = vsel %vm10672, %v10705, %v10704
        %v10707 = vrot.slane %v10525, 3
        %v10708 = vsel %vm10675, %v10707, %v10706
        %10709 = vrot.lane.b32.xlu0 %v10708, 64
        %v10710 = vpop.permute.xlu0 %10709
        %v10712 = vrot.slane %v10490, 3
        %v10713 = vrot.slane %v10495, 2
        %v10714 = vsel %vm10657, %v10713, %v10712
        %v10715 = vrot.slane %v10500, 1
        %v10716 = vsel %vm10660, %v10715, %v10714
        %v10717 = vsel %vm10663, %v10505, %v10716
        %v10718 = vrot.slane %v10510, 7
        %v10719 = vsel %vm10666, %v10718, %v10717
        %v10720 = vrot.slane %v10515, 6
        %v10721 = vsel %vm10669, %v10720, %v10719
        %v10722 = vrot.slane %v10520, 5
        %v10723 = vsel %vm10672, %v10722, %v10721
        %v10724 = vrot.slane %v10525, 4
        %v10725 = vsel %vm10675, %v10724, %v10723
        %10726 = vrot.lane.b32.xlu0 %v10725, 96
        %v10727 = vpop.permute.xlu0 %10726
        %v10729 = vrot.slane %v10490, 4
        %v10730 = vrot.slane %v10495, 3
        %v10731 = vsel %vm10657, %v10730, %v10729
        %v10732 = vrot.slane %v10500, 2
        %v10733 = vsel %vm10660, %v10732, %v10731
        %v10734 = vrot.slane %v10505, 1
        %v10735 = vsel %vm10663, %v10734, %v10733
        %v10736 = vsel %vm10666, %v10510, %v10735
        %v10737 = vrot.slane %v10515, 7
        %v10738 = vsel %vm10669, %v10737, %v10736
        %v10739 = vrot.slane %v10520, 6
        %v10740 = vsel %vm10672, %v10739, %v10738
        %v10741 = vrot.slane %v10525, 5
        %v10742 = vsel %vm10675, %v10741, %v10740
        %v10744 = vrot.slane %v10490, 5
        %v10745 = vrot.slane %v10495, 4
        %v10746 = vsel %vm10657, %v10745, %v10744
        %v10747 = vrot.slane %v10500, 3
        %v10748 = vsel %vm10660, %v10747, %v10746
        %v10749 = vrot.slane %v10505, 2
        %v10750 = vsel %vm10663, %v10749, %v10748
        %v10751 = vrot.slane %v10510, 1
        %v10752 = vsel %vm10666, %v10751, %v10750
        %v10753 = vsel %vm10669, %v10515, %v10752
        %v10754 = vrot.slane %v10520, 7
        %v10755 = vsel %vm10672, %v10754, %v10753
        %v10756 = vrot.slane %v10525, 6
        %v10757 = vsel %vm10675, %v10756, %v10755
        %10758 = vrot.lane.b32.xlu0 %v10757, 32
        %v10759 = vpop.permute.xlu0 %10758
        %v10761 = vrot.slane %v10490, 6
        %v10762 = vrot.slane %v10495, 5
        %v10763 = vsel %vm10657, %v10762, %v10761
        %v10764 = vrot.slane %v10500, 4
        %v10765 = vsel %vm10660, %v10764, %v10763
        %v10766 = vrot.slane %v10505, 3
        %v10767 = vsel %vm10663, %v10766, %v10765
        %v10768 = vrot.slane %v10510, 2
        %v10769 = vsel %vm10666, %v10768, %v10767
        %v10770 = vrot.slane %v10515, 1
        %v10771 = vsel %vm10669, %v10770, %v10769
        %v10772 = vsel %vm10672, %v10520, %v10771
        %v10773 = vrot.slane %v10525, 7
        %v10774 = vsel %vm10675, %v10773, %v10772
        %10775 = vrot.lane.b32.xlu0 %v10774, 64
        %v10776 = vpop.permute.xlu0 %10775
        %v10778 = vrot.slane %v10490, 7
        %v10779 = vrot.slane %v10495, 6
        %v10780 = vsel %vm10657, %v10779, %v10778
        %v10781 = vrot.slane %v10500, 5
        %v10782 = vsel %vm10660, %v10781, %v10780
        %v10783 = vrot.slane %v10505, 4
        %v10784 = vsel %vm10663, %v10783, %v10782
        %v10785 = vrot.slane %v10510, 3
        %v10786 = vsel %vm10666, %v10785, %v10784
        %v10787 = vrot.slane %v10515, 2
        %v10788 = vsel %vm10669, %v10787, %v10786
        %v10789 = vrot.slane %v10520, 1
        %v10790 = vsel %vm10672, %v10789, %v10788
        %v10791 = vsel %vm10675, %v10525, %v10790
        %10792 = vrot.lane.b32.xlu0 %v10791, 96
        %v10793 = vpop.permute.xlu0 %10792
        %v10795 = vsel %vm10326, %v10676, %v10693
        %v10796 = vsel %vm364, %v10795, %v10710
        %vm10797 = vcmask 785408
        %v10798 = vsel %vm10797, %v10796, %v10727
        %v10799 = vsel %vm10326, %v10742, %v10759
        %v10800 = vsel %vm364, %v10799, %v10776
        %v10801 = vsel %vm10797, %v10800, %v10793
        %v10810 = vrot.slane %v10535, 7
        %v10811 = vsel %vm10657, %v10810, %v10530
        %v10812 = vrot.slane %v10540, 6
        %v10813 = vsel %vm10660, %v10812, %v10811
        %v10814 = vrot.slane %v10545, 5
        %v10815 = vsel %vm10663, %v10814, %v10813
        %v10816 = vrot.slane %v10550, 4
        %v10817 = vsel %vm10666, %v10816, %v10815
        %v10818 = vrot.slane %v10555, 3
        %v10819 = vsel %vm10669, %v10818, %v10817
        %v10820 = vrot.slane %v10560, 2
        %v10821 = vsel %vm10672, %v10820, %v10819
        %v10822 = vrot.slane %v10565, 1
        %v10823 = vsel %vm10675, %v10822, %v10821
        %v10825 = vrot.slane %v10530, 1
        %v10826 = vsel %vm10657, %v10535, %v10825
        %v10827 = vrot.slane %v10540, 7
        %v10828 = vsel %vm10660, %v10827, %v10826
        %v10829 = vrot.slane %v10545, 6
        %v10830 = vsel %vm10663, %v10829, %v10828
        %v10831 = vrot.slane %v10550, 5
        %v10832 = vsel %vm10666, %v10831, %v10830
        %v10833 = vrot.slane %v10555, 4
        %v10834 = vsel %vm10669, %v10833, %v10832
        %v10835 = vrot.slane %v10560, 3
        %v10836 = vsel %vm10672, %v10835, %v10834
        %v10837 = vrot.slane %v10565, 2
        %v10838 = vsel %vm10675, %v10837, %v10836
        %10839 = vrot.lane.b32.xlu0 %v10838, 32
        %v10840 = vpop.permute.xlu0 %10839
        %v10842 = vrot.slane %v10530, 2
        %v10843 = vrot.slane %v10535, 1
        %v10844 = vsel %vm10657, %v10843, %v10842
        %v10845 = vsel %vm10660, %v10540, %v10844
        %v10846 = vrot.slane %v10545, 7
        %v10847 = vsel %vm10663, %v10846, %v10845
        %v10848 = vrot.slane %v10550, 6
        %v10849 = vsel %vm10666, %v10848, %v10847
        %v10850 = vrot.slane %v10555, 5
        %v10851 = vsel %vm10669, %v10850, %v10849
        %v10852 = vrot.slane %v10560, 4
        %v10853 = vsel %vm10672, %v10852, %v10851
        %v10854 = vrot.slane %v10565, 3
        %v10855 = vsel %vm10675, %v10854, %v10853
        %10856 = vrot.lane.b32.xlu0 %v10855, 64
        %v10857 = vpop.permute.xlu0 %10856
        %v10859 = vrot.slane %v10530, 3
        %v10860 = vrot.slane %v10535, 2
        %v10861 = vsel %vm10657, %v10860, %v10859
        %v10862 = vrot.slane %v10540, 1
        %v10863 = vsel %vm10660, %v10862, %v10861
        %v10864 = vsel %vm10663, %v10545, %v10863
        %v10865 = vrot.slane %v10550, 7
        %v10866 = vsel %vm10666, %v10865, %v10864
        %v10867 = vrot.slane %v10555, 6
        %v10868 = vsel %vm10669, %v10867, %v10866
        %v10869 = vrot.slane %v10560, 5
        %v10870 = vsel %vm10672, %v10869, %v10868
        %v10871 = vrot.slane %v10565, 4
        %v10872 = vsel %vm10675, %v10871, %v10870
        %10873 = vrot.lane.b32.xlu0 %v10872, 96
        %v10874 = vpop.permute.xlu0 %10873
        %v10876 = vrot.slane %v10530, 4
        %v10877 = vrot.slane %v10535, 3
        %v10878 = vsel %vm10657, %v10877, %v10876
        %v10879 = vrot.slane %v10540, 2
        %v10880 = vsel %vm10660, %v10879, %v10878
        %v10881 = vrot.slane %v10545, 1
        %v10882 = vsel %vm10663, %v10881, %v10880
        %v10883 = vsel %vm10666, %v10550, %v10882
        %v10884 = vrot.slane %v10555, 7
        %v10885 = vsel %vm10669, %v10884, %v10883
        %v10886 = vrot.slane %v10560, 6
        %v10887 = vsel %vm10672, %v10886, %v10885
        %v10888 = vrot.slane %v10565, 5
        %v10889 = vsel %vm10675, %v10888, %v10887
        %v10891 = vrot.slane %v10530, 5
        %v10892 = vrot.slane %v10535, 4
        %v10893 = vsel %vm10657, %v10892, %v10891
        %v10894 = vrot.slane %v10540, 3
        %v10895 = vsel %vm10660, %v10894, %v10893
        %v10896 = vrot.slane %v10545, 2
        %v10897 = vsel %vm10663, %v10896, %v10895
        %v10898 = vrot.slane %v10550, 1
        %v10899 = vsel %vm10666, %v10898, %v10897
        %v10900 = vsel %vm10669, %v10555, %v10899
        %v10901 = vrot.slane %v10560, 7
        %v10902 = vsel %vm10672, %v10901, %v10900
        %v10903 = vrot.slane %v10565, 6
        %v10904 = vsel %vm10675, %v10903, %v10902
        %10905 = vrot.lane.b32.xlu0 %v10904, 32
        %v10906 = vpop.permute.xlu0 %10905
        %v10908 = vrot.slane %v10530, 6
        %v10909 = vrot.slane %v10535, 5
        %v10910 = vsel %vm10657, %v10909, %v10908
        %v10911 = vrot.slane %v10540, 4
        %v10912 = vsel %vm10660, %v10911, %v10910
        %v10913 = vrot.slane %v10545, 3
        %v10914 = vsel %vm10663, %v10913, %v10912
        %v10915 = vrot.slane %v10550, 2
        %v10916 = vsel %vm10666, %v10915, %v10914
        %v10917 = vrot.slane %v10555, 1
        %v10918 = vsel %vm10669, %v10917, %v10916
        %v10919 = vsel %vm10672, %v10560, %v10918
        %v10920 = vrot.slane %v10565, 7
        %v10921 = vsel %vm10675, %v10920, %v10919
        %10922 = vrot.lane.b32.xlu0 %v10921, 64
        %v10923 = vpop.permute.xlu0 %10922
        %v10925 = vrot.slane %v10530, 7
        %v10926 = vrot.slane %v10535, 6
        %v10927 = vsel %vm10657, %v10926, %v10925
        %v10928 = vrot.slane %v10540, 5
        %v10929 = vsel %vm10660, %v10928, %v10927
        %v10930 = vrot.slane %v10545, 4
        %v10931 = vsel %vm10663, %v10930, %v10929
        %v10932 = vrot.slane %v10550, 3
        %v10933 = vsel %vm10666, %v10932, %v10931
        %v10934 = vrot.slane %v10555, 2
        %v10935 = vsel %vm10669, %v10934, %v10933
        %v10936 = vrot.slane %v10560, 1
        %v10937 = vsel %vm10672, %v10936, %v10935
        %v10938 = vsel %vm10675, %v10565, %v10937
        %10939 = vrot.lane.b32.xlu0 %v10938, 96
        %v10940 = vpop.permute.xlu0 %10939
        %v10942 = vsel %vm10326, %v10823, %v10840
        %v10943 = vsel %vm364, %v10942, %v10857
        %v10944 = vsel %vm10797, %v10943, %v10874
        %v10945 = vsel %vm10326, %v10889, %v10906
        %v10946 = vsel %vm364, %v10945, %v10923
        %v10947 = vsel %vm10797, %v10946, %v10940
        %v10956 = vrot.slane %v10575, 7
        %v10957 = vsel %vm10657, %v10956, %v10570
        %v10958 = vrot.slane %v10580, 6
        %v10959 = vsel %vm10660, %v10958, %v10957
        %v10960 = vrot.slane %v10585, 5
        %v10961 = vsel %vm10663, %v10960, %v10959
        %v10962 = vrot.slane %v10590, 4
        %v10963 = vsel %vm10666, %v10962, %v10961
        %v10964 = vrot.slane %v10595, 3
        %v10965 = vsel %vm10669, %v10964, %v10963
        %v10966 = vrot.slane %v10600, 2
        %v10967 = vsel %vm10672, %v10966, %v10965
        %v10968 = vrot.slane %v10605, 1
        %v10969 = vsel %vm10675, %v10968, %v10967
        %v10971 = vrot.slane %v10570, 1
        %v10972 = vsel %vm10657, %v10575, %v10971
        %v10973 = vrot.slane %v10580, 7
        %v10974 = vsel %vm10660, %v10973, %v10972
        %v10975 = vrot.slane %v10585, 6
        %v10976 = vsel %vm10663, %v10975, %v10974
        %v10977 = vrot.slane %v10590, 5
        %v10978 = vsel %vm10666, %v10977, %v10976
        %v10979 = vrot.slane %v10595, 4
        %v10980 = vsel %vm10669, %v10979, %v10978
        %v10981 = vrot.slane %v10600, 3
        %v10982 = vsel %vm10672, %v10981, %v10980
        %v10983 = vrot.slane %v10605, 2
        %v10984 = vsel %vm10675, %v10983, %v10982
        %10985 = vrot.lane.b32.xlu0 %v10984, 32
        %v10986 = vpop.permute.xlu0 %10985
        %v10988 = vrot.slane %v10570, 2
        %v10989 = vrot.slane %v10575, 1
        %v10990 = vsel %vm10657, %v10989, %v10988
        %v10991 = vsel %vm10660, %v10580, %v10990
        %v10992 = vrot.slane %v10585, 7
        %v10993 = vsel %vm10663, %v10992, %v10991
        %v10994 = vrot.slane %v10590, 6
        %v10995 = vsel %vm10666, %v10994, %v10993
        %v10996 = vrot.slane %v10595, 5
        %v10997 = vsel %vm10669, %v10996, %v10995
        %v10998 = vrot.slane %v10600, 4
        %v10999 = vsel %vm10672, %v10998, %v10997
        %v11000 = vrot.slane %v10605, 3
        %v11001 = vsel %vm10675, %v11000, %v10999
        %11002 = vrot.lane.b32.xlu0 %v11001, 64
        %v11003 = vpop.permute.xlu0 %11002
        %v11005 = vrot.slane %v10570, 3
        %v11006 = vrot.slane %v10575, 2
        %v11007 = vsel %vm10657, %v11006, %v11005
        %v11008 = vrot.slane %v10580, 1
        %v11009 = vsel %vm10660, %v11008, %v11007
        %v11010 = vsel %vm10663, %v10585, %v11009
        %v11011 = vrot.slane %v10590, 7
        %v11012 = vsel %vm10666, %v11011, %v11010
        %v11013 = vrot.slane %v10595, 6
        %v11014 = vsel %vm10669, %v11013, %v11012
        %v11015 = vrot.slane %v10600, 5
        %v11016 = vsel %vm10672, %v11015, %v11014
        %v11017 = vrot.slane %v10605, 4
        %v11018 = vsel %vm10675, %v11017, %v11016
        %11019 = vrot.lane.b32.xlu0 %v11018, 96
        %v11020 = vpop.permute.xlu0 %11019
        %v11022 = vrot.slane %v10570, 4
        %v11023 = vrot.slane %v10575, 3
        %v11024 = vsel %vm10657, %v11023, %v11022
        %v11025 = vrot.slane %v10580, 2
        %v11026 = vsel %vm10660, %v11025, %v11024
        %v11027 = vrot.slane %v10585, 1
        %v11028 = vsel %vm10663, %v11027, %v11026
        %v11029 = vsel %vm10666, %v10590, %v11028
        %v11030 = vrot.slane %v10595, 7
        %v11031 = vsel %vm10669, %v11030, %v11029
        %v11032 = vrot.slane %v10600, 6
        %v11033 = vsel %vm10672, %v11032, %v11031
        %v11034 = vrot.slane %v10605, 5
        %v11035 = vsel %vm10675, %v11034, %v11033
        %v11037 = vrot.slane %v10570, 5
        %v11038 = vrot.slane %v10575, 4
        %v11039 = vsel %vm10657, %v11038, %v11037
        %v11040 = vrot.slane %v10580, 3
        %v11041 = vsel %vm10660, %v11040, %v11039
        %v11042 = vrot.slane %v10585, 2
        %v11043 = vsel %vm10663, %v11042, %v11041
        %v11044 = vrot.slane %v10590, 1
        %v11045 = vsel %vm10666, %v11044, %v11043
        %v11046 = vsel %vm10669, %v10595, %v11045
        %v11047 = vrot.slane %v10600, 7
        %v11048 = vsel %vm10672, %v11047, %v11046
        %v11049 = vrot.slane %v10605, 6
        %v11050 = vsel %vm10675, %v11049, %v11048
        %11051 = vrot.lane.b32.xlu0 %v11050, 32
        %v11052 = vpop.permute.xlu0 %11051
        %v11054 = vrot.slane %v10570, 6
        %v11055 = vrot.slane %v10575, 5
        %v11056 = vsel %vm10657, %v11055, %v11054
        %v11057 = vrot.slane %v10580, 4
        %v11058 = vsel %vm10660, %v11057, %v11056
        %v11059 = vrot.slane %v10585, 3
        %v11060 = vsel %vm10663, %v11059, %v11058
        %v11061 = vrot.slane %v10590, 2
        %v11062 = vsel %vm10666, %v11061, %v11060
        %v11063 = vrot.slane %v10595, 1
        %v11064 = vsel %vm10669, %v11063, %v11062
        %v11065 = vsel %vm10672, %v10600, %v11064
        %v11066 = vrot.slane %v10605, 7
        %v11067 = vsel %vm10675, %v11066, %v11065
        %11068 = vrot.lane.b32.xlu0 %v11067, 64
        %v11069 = vpop.permute.xlu0 %11068
        %v11071 = vrot.slane %v10570, 7
        %v11072 = vrot.slane %v10575, 6
        %v11073 = vsel %vm10657, %v11072, %v11071
        %v11074 = vrot.slane %v10580, 5
        %v11075 = vsel %vm10660, %v11074, %v11073
        %v11076 = vrot.slane %v10585, 4
        %v11077 = vsel %vm10663, %v11076, %v11075
        %v11078 = vrot.slane %v10590, 3
        %v11079 = vsel %vm10666, %v11078, %v11077
        %v11080 = vrot.slane %v10595, 2
        %v11081 = vsel %vm10669, %v11080, %v11079
        %v11082 = vrot.slane %v10600, 1
        %v11083 = vsel %vm10672, %v11082, %v11081
        %v11084 = vsel %vm10675, %v10605, %v11083
        %11085 = vrot.lane.b32.xlu0 %v11084, 96
        %v11086 = vpop.permute.xlu0 %11085
        %v11088 = vsel %vm10326, %v10969, %v10986
        %v11089 = vsel %vm364, %v11088, %v11003
        %v11090 = vsel %vm10797, %v11089, %v11020
        %v11091 = vsel %vm10326, %v11035, %v11052
        %v11092 = vsel %vm364, %v11091, %v11069
        %v11093 = vsel %vm10797, %v11092, %v11086
        %v11102 = vrot.slane %v10615, 7
        %v11103 = vsel %vm10657, %v11102, %v10610
        %v11104 = vrot.slane %v10620, 6
        %v11105 = vsel %vm10660, %v11104, %v11103
        %v11106 = vrot.slane %v10625, 5
        %v11107 = vsel %vm10663, %v11106, %v11105
        %v11108 = vrot.slane %v10630, 4
        %v11109 = vsel %vm10666, %v11108, %v11107
        %v11110 = vrot.slane %v10635, 3
        %v11111 = vsel %vm10669, %v11110, %v11109
        %v11112 = vrot.slane %v10640, 2
        %v11113 = vsel %vm10672, %v11112, %v11111
        %v11114 = vrot.slane %v10645, 1
        %v11115 = vsel %vm10675, %v11114, %v11113
        %v11117 = vrot.slane %v10610, 1
        %v11118 = vsel %vm10657, %v10615, %v11117
        %v11119 = vrot.slane %v10620, 7
        %v11120 = vsel %vm10660, %v11119, %v11118
        %v11121 = vrot.slane %v10625, 6
        %v11122 = vsel %vm10663, %v11121, %v11120
        %v11123 = vrot.slane %v10630, 5
        %v11124 = vsel %vm10666, %v11123, %v11122
        %v11125 = vrot.slane %v10635, 4
        %v11126 = vsel %vm10669, %v11125, %v11124
        %v11127 = vrot.slane %v10640, 3
        %v11128 = vsel %vm10672, %v11127, %v11126
        %v11129 = vrot.slane %v10645, 2
        %v11130 = vsel %vm10675, %v11129, %v11128
        %11131 = vrot.lane.b32.xlu0 %v11130, 32
        %v11132 = vpop.permute.xlu0 %11131
        %v11134 = vrot.slane %v10610, 2
        %v11135 = vrot.slane %v10615, 1
        %v11136 = vsel %vm10657, %v11135, %v11134
        %v11137 = vsel %vm10660, %v10620, %v11136
        %v11138 = vrot.slane %v10625, 7
        %v11139 = vsel %vm10663, %v11138, %v11137
        %v11140 = vrot.slane %v10630, 6
        %v11141 = vsel %vm10666, %v11140, %v11139
        %v11142 = vrot.slane %v10635, 5
        %v11143 = vsel %vm10669, %v11142, %v11141
        %v11144 = vrot.slane %v10640, 4
        %v11145 = vsel %vm10672, %v11144, %v11143
        %v11146 = vrot.slane %v10645, 3
        %v11147 = vsel %vm10675, %v11146, %v11145
        %11148 = vrot.lane.b32.xlu0 %v11147, 64
        %v11149 = vpop.permute.xlu0 %11148
        %v11151 = vrot.slane %v10610, 3
        %v11152 = vrot.slane %v10615, 2
        %v11153 = vsel %vm10657, %v11152, %v11151
        %v11154 = vrot.slane %v10620, 1
        %v11155 = vsel %vm10660, %v11154, %v11153
        %v11156 = vsel %vm10663, %v10625, %v11155
        %v11157 = vrot.slane %v10630, 7
        %v11158 = vsel %vm10666, %v11157, %v11156
        %v11159 = vrot.slane %v10635, 6
        %v11160 = vsel %vm10669, %v11159, %v11158
        %v11161 = vrot.slane %v10640, 5
        %v11162 = vsel %vm10672, %v11161, %v11160
        %v11163 = vrot.slane %v10645, 4
        %v11164 = vsel %vm10675, %v11163, %v11162
        %11165 = vrot.lane.b32.xlu0 %v11164, 96
        %v11166 = vpop.permute.xlu0 %11165
        %v11168 = vrot.slane %v10610, 4
        %v11169 = vrot.slane %v10615, 3
        %v11170 = vsel %vm10657, %v11169, %v11168
        %v11171 = vrot.slane %v10620, 2
        %v11172 = vsel %vm10660, %v11171, %v11170
        %v11173 = vrot.slane %v10625, 1
        %v11174 = vsel %vm10663, %v11173, %v11172
        %v11175 = vsel %vm10666, %v10630, %v11174
        %v11176 = vrot.slane %v10635, 7
        %v11177 = vsel %vm10669, %v11176, %v11175
        %v11178 = vrot.slane %v10640, 6
        %v11179 = vsel %vm10672, %v11178, %v11177
        %v11180 = vrot.slane %v10645, 5
        %v11181 = vsel %vm10675, %v11180, %v11179
        %v11183 = vrot.slane %v10610, 5
        %v11184 = vrot.slane %v10615, 4
        %v11185 = vsel %vm10657, %v11184, %v11183
        %v11186 = vrot.slane %v10620, 3
        %v11187 = vsel %vm10660, %v11186, %v11185
        %v11188 = vrot.slane %v10625, 2
        %v11189 = vsel %vm10663, %v11188, %v11187
        %v11190 = vrot.slane %v10630, 1
        %v11191 = vsel %vm10666, %v11190, %v11189
        %v11192 = vsel %vm10669, %v10635, %v11191
        %v11193 = vrot.slane %v10640, 7
        %v11194 = vsel %vm10672, %v11193, %v11192
        %v11195 = vrot.slane %v10645, 6
        %v11196 = vsel %vm10675, %v11195, %v11194
        %11197 = vrot.lane.b32.xlu0 %v11196, 32
        %v11198 = vpop.permute.xlu0 %11197
        %v11200 = vrot.slane %v10610, 6
        %v11201 = vrot.slane %v10615, 5
        %v11202 = vsel %vm10657, %v11201, %v11200
        %v11203 = vrot.slane %v10620, 4
        %v11204 = vsel %vm10660, %v11203, %v11202
        %v11205 = vrot.slane %v10625, 3
        %v11206 = vsel %vm10663, %v11205, %v11204
        %v11207 = vrot.slane %v10630, 2
        %v11208 = vsel %vm10666, %v11207, %v11206
        %v11209 = vrot.slane %v10635, 1
        %v11210 = vsel %vm10669, %v11209, %v11208
        %v11211 = vsel %vm10672, %v10640, %v11210
        %v11212 = vrot.slane %v10645, 7
        %v11213 = vsel %vm10675, %v11212, %v11211
        %11214 = vrot.lane.b32.xlu0 %v11213, 64
        %v11215 = vpop.permute.xlu0 %11214
        %v11217 = vrot.slane %v10610, 7
        %v11218 = vrot.slane %v10615, 6
        %v11219 = vsel %vm10657, %v11218, %v11217
        %v11220 = vrot.slane %v10620, 5
        %v11221 = vsel %vm10660, %v11220, %v11219
        %v11222 = vrot.slane %v10625, 4
        %v11223 = vsel %vm10663, %v11222, %v11221
        %v11224 = vrot.slane %v10630, 3
        %v11225 = vsel %vm10666, %v11224, %v11223
        %v11226 = vrot.slane %v10635, 2
        %v11227 = vsel %vm10669, %v11226, %v11225
        %v11228 = vrot.slane %v10640, 1
        %v11229 = vsel %vm10672, %v11228, %v11227
        %v11230 = vsel %vm10675, %v10645, %v11229
        %11231 = vrot.lane.b32.xlu0 %v11230, 96
        %v11232 = vpop.permute.xlu0 %11231
        %v11234 = vsel %vm10326, %v11115, %v11132
        %v11235 = vsel %vm364, %v11234, %v11149
        %v11236 = vsel %vm10797, %v11235, %v11166
        %v11237 = vsel %vm10326, %v11181, %v11198
        %v11238 = vsel %vm364, %v11237, %v11215
        %v11239 = vsel %vm10797, %v11238, %v11232
        %11240 = vst [vmem:[%s298] sm:$0xff] %v10798
        %11241 = vst [vmem:[%s298 + $0x8] sm:$0xff] %v10801
        %11242 = vst [vmem:[%s298 + $0x10] sm:$0xff] %v10944
        %11243 = vst [vmem:[%s298 + $0x18] sm:$0xff] %v10947
        %11244 = vst [vmem:[%s298 + $0x20] sm:$0xff] %v11090
        %11245 = vst [vmem:[%s298 + $0x28] sm:$0xff] %v11093
        %11246 = vst [vmem:[%s298 + $0x30] sm:$0xff] %v11236
        %11247 = vst [vmem:[%s298 + $0x38] sm:$0xff] %v11239
        %s11248 = sand.u32 %s203, 1
        %s11249 = scalar_lea.sflag [#allocation3], %s11248
        %s11250 = sand.u32 %s203, 1
        %s11251 = smul.addr %s11250, 64
        %s11252 = scalar_lea.vmem [#allocation2], %s11251
        // Predicated region
        $region53: #{tpu_custom_call.1} parent=51 // pred_check
          %p11253 = pneg %p213
        $region54: #{tpu_custom_call.1} parent=51 // pred_check_branch
          %11255 = sbr.rel (%p11253) target = $region56
        $region55: #{tpu_custom_call.1} parent=51 // pred_region
          %s11257 = ssub.s32 1024, 1024
          %11258 = vsyncadd %s11249, %s11257
          %s11259 = smul.addr %s22, 8
          %s11260 = smul.addr %s11259, 128
          %s11261 = scalar_lea.hbm %s8, %s11260
          %s11262 = sshll.u32 %s11252, 4
          %s11263 = int_to_ptr.vmem [resolvable:$true] %s11262
          %11268 = dma.vmem_to_hbm [thread:$0]  %s11263, 1024, %s11261, %s11249, 512, 512, 32
        $region56: #{tpu_custom_call.1} parent=51 // pred_fallthru
          _
      $region52: #{tpu_custom_call.1} parent=5 // pred_fallthru
        _
      %p11269 = scmp.le.s32.totalorder 2, %s17
      // Predicated region
      $region57: #{tpu_custom_call.1} parent=5 // pred_check
        %p11270 = pneg %p11269
      $region58: #{tpu_custom_call.1} parent=5 // pred_check_branch
        %11272 = sbr.rel (%p11270) target = $region60
      $region59: #{tpu_custom_call.1} parent=5 // pred_region
        %s11273 = ssub.s32 %s17, 2
        // Predicated region
        $region61: #{tpu_custom_call.1} parent=59 // pred_check
          %p11274 = pneg %p219
        $region62: #{tpu_custom_call.1} parent=59 // pred_check_branch
          %11276 = sbr.rel (%p11274) target = $region64
        $region63: #{tpu_custom_call.1} parent=59 // pred_region
          %s11277 = sand.u32 %s204, 1
          %s11278 = scalar_lea.sflag [#allocation3], %s11277
          %s11279 = sand.u32 %s204, 1
          %s11280 = smul.addr %s11279, 64
          %s11281 = scalar_lea.vmem [#allocation2], %s11280
          %11282 = dma.done %s11278, 1024
        $region64: #{tpu_custom_call.1} parent=59 // pred_fallthru
          _
      $region60: #{tpu_custom_call.1} parent=5 // pred_fallthru
        _
    $region6: #{tpu_custom_call.1} parent=1 // loop_footer
      %s21 = sadd.s32 1, %s17
    $region7: #{tpu_custom_call.1} parent=1 // loop_footer_branch
      %16 = sbr.rel target = $region3
    $region8: #{tpu_custom_call.1} parent=1 // loop_exit
      _
    %11283 = vsyncpa [#allocation3], 1
    %s11284 = scalar_lea.sflag [#allocation3], 1
    %11285 = vsyncpa %s11284, 1

</llo_original>
